<compile_context>
chip_gen: v5e
topology: v5e:2x2
jax: 0.10.0
libtpu: 0.0.40
codegen_flags: <defaults>
</compile_context>

<pallas_src>
import math
import numpy as np

import jax
import jax.numpy as jnp
from jax.experimental import pallas as pl
from jax.experimental.pallas import tpu as pltpu


# ---------------------------------------------------------------------------
# Hexagonal geometry on an offset square lattice (hexagdly-style addressing).
# TODO(synk): the module does not specify the input spatial size; (H1, W1) =
#             (10, 11) is chosen so the stride-2 hex pool yields the 5x6 grid
#             that FC1 (in_features = 63*5*6) expects.
# TODO(synk): hexagdly's column-parity convention is assumed to be "odd
#             columns shifted down by half a cell"; flip `u` in _tap_coord if
#             the installed hexagdly uses the mirrored convention.
# TODO(synk): hexagdly.Conv2d_CustomKernel is assumed bias-free (Hex_AvPool
#             passes no bias).
# ---------------------------------------------------------------------------
H1, W1 = 10, 11
P1 = H1 * W1              # 110 stride-1 positions
H2, W2 = 5, 6
P2 = H2 * W2              # 30 pooled (stride-2) positions
N_TAPS = 7                # centre + 6 hexagonal neighbours

CONV_DIMS = [(3, 12), (15, 12), (27, 12), (39, 12), (51, 12), (63, 63), (63, 63)]
FC_DIMS = [(63 * P2, 100), (100, 100), (100, 100), (100, 1)]

SELU_ALPHA = 1.6732632423543772
SELU_SCALE = 1.0507009873554805


def _tap_coord(r, c, tap):
    """Absolute (row, col) of tap `tap` of the hex 7-neighbourhood of (r, c)."""
    if tap == 0:
        return r, c                    # centre
    if tap == 1:
        return r - 1, c                # N
    if tap == 2:
        return r + 1, c                # S
    u = 1 if (c % 2) else 0            # odd columns sit half a cell lower
    if tap == 3:
        return r - 1 + u, c - 1        # upper-left
    if tap == 4:
        return r + u, c - 1            # lower-left
    if tap == 5:
        return r - 1 + u, c + 1        # upper-right
    return r + u, c + 1                # lower-right (tap == 6)


def _build_shiftsT(h, w):
    """shiftsT[k-1][q, p] = 1 iff tap k of position p is in-bounds position q.

    Used from the right: (C, P) @ shiftsT[k-1] gathers the tap-k neighbour of
    every position (zero where the neighbour is outside the grid).
    """
    p_tot = h * w
    out = np.zeros((N_TAPS - 1, p_tot, p_tot), np.float32)
    for r in range(h):
        for c in range(w):
            p = r * w + c
            for k in range(1, N_TAPS):
                rr, cc = _tap_coord(r, c, k)
                if 0 <= rr < h and 0 <= cc < w:
                    out[k - 1, rr * w + cc, p] = 1.0
    return out


def _build_poolT():
    """poolT[q, m] = 1/7 iff position q is one of the 7 taps of pooled centre m."""
    out = np.zeros((P1, P2), np.float32)
    for i in range(H2):
        for j in range(W2):
            m = i * W2 + j
            r, c = 2 * i + (j % 2), 2 * j         # keeps the pooled grid hexagonal
            for k in range(N_TAPS):
                rr, cc = _tap_coord(r, c, k)
                if 0 <= rr < H1 and 0 <= cc < W1:
                    out[rr * W1 + cc, m] = 1.0 / 7.0
    return out


_SHIFTS1 = _build_shiftsT(H1, W1)     # (6, 110, 110)
_SHIFTS2 = _build_shiftsT(H2, W2)     # (6, 30, 30)
_POOLT = _build_poolT()               # (110, 30)


# ---------------------------------------------------------------------------
# Kernel A: Conv1..Conv5 (dense concat) -> hex avg pool (stride 2) -> Conv6/7
# ---------------------------------------------------------------------------
def hex_feature_kernel(x_ref, sh1_ref, poolT_ref, sh2_ref,
                       w1, w2, w3, w4, w5, w6, w7, bconv_ref,
                       feat_ref, hcat_ref):
    def hexconv(h, w_ref, shifts_ref, layer, c_out):
        # h: (C_in, P) f32, w_ref: (7, C_out, C_in) bf16, shifts_ref: (6, P, P) bf16
        hb = h.astype(jnp.bfloat16)
        acc = jnp.dot(w_ref[0], hb, preferred_element_type=jnp.float32)
        for k in range(1, N_TAPS):
            # Gather the tap-k neighbours (0/1 shift matrix -> exact selection).
            hk = jnp.dot(hb, shifts_ref[k - 1],
                         preferred_element_type=jnp.float32).astype(jnp.bfloat16)
            acc = acc + jnp.dot(w_ref[k], hk, preferred_element_type=jnp.float32)
        bias = bconv_ref[:c_out, layer:layer + 1]              # (C_out, 1) f32
        return jnp.maximum(acc + bias, 0.0)                    # ReLU

    # DenseNet-style concat chain lives in a (63, P1) f32 VMEM scratch.
    hcat_ref[0:3, :] = x_ref[0]
    off = 3
    for layer, w_ref in enumerate((w1, w2, w3, w4, w5)):
        out = hexconv(hcat_ref[:off, :], w_ref, sh1_ref, layer, 12)
        hcat_ref[off:off + 12, :] = out
        off += 12

    # Hexagonal "average pool": hexagdly custom kernel, every weight = 1/7,
    # dense over channels (63 -> 63, all output channels identical), stride 2.
    h5 = hcat_ref[...]                                         # (63, P1) f32
    hp = jnp.dot(h5.astype(jnp.bfloat16), poolT_ref[...],
                 preferred_element_type=jnp.float32)           # (63, P2)
    s = jnp.sum(hp, axis=0, keepdims=True)                     # (1, P2)
    h = jnp.broadcast_to(s, (63, P2))

    h = hexconv(h, w6, sh2_ref, 5, 63)
    h = hexconv(h, w7, sh2_ref, 6, 63)
    feat_ref[0] = h                                            # (63, P2) f32


# ---------------------------------------------------------------------------
# Kernel B: SELU MLP head (batch-tiled)
# ---------------------------------------------------------------------------
def mlp_head_kernel(f_ref, wfc1_ref, wfc2_ref, wfc3_ref, wout_ref, bfc_ref, out_ref):
    def selu(v):
        return SELU_SCALE * jnp.where(
            v > 0, v, SELU_ALPHA * (jnp.exp(jnp.minimum(v, 0.0)) - 1.0))

    h = f_ref[...]                                             # (TB, 1890) f32
    h = selu(jnp.dot(h.astype(jnp.bfloat16), wfc1_ref[...],
                     preferred_element_type=jnp.float32) + bfc_ref[0:1, :])
    h = selu(jnp.dot(h.astype(jnp.bfloat16), wfc2_ref[...],
                     preferred_element_type=jnp.float32) + bfc_ref[1:2, :])
    h = selu(jnp.dot(h.astype(jnp.bfloat16), wfc3_ref[...],
                     preferred_element_type=jnp.float32) + bfc_ref[2:3, :])
    # Output layer (100 -> 1): VPU multiply + lane reduction, not an N=1 matmul.
    out_ref[...] = (jnp.sum(h * wout_ref[...], axis=-1, keepdims=True)
                    + bfc_ref[3:4, 0:1])


# ---------------------------------------------------------------------------
# Wrapper
# ---------------------------------------------------------------------------
def _const_spec(arr):
    nd = arr.ndim
    return pl.BlockSpec(arr.shape, lambda b, _nd=nd: (0,) * _nd)


def model_x0_forward(x, params):
    """x: (B, 3, 10, 11) -> (B, 1) float32."""
    B = x.shape[0]
    x_cp = x.reshape(B, 3, P1).astype(jnp.float32)             # channel-major (C, H*W)

    sh1 = jnp.asarray(_SHIFTS1, jnp.bfloat16)
    sh2 = jnp.asarray(_SHIFTS2, jnp.bfloat16)
    poolT = jnp.asarray(_POOLT, jnp.bfloat16)

    conv_consts = [sh1, poolT, sh2] + list(params["conv_w"]) + [params["conv_b"]]

    feats = pl.pallas_call(
        hex_feature_kernel,
        out_shape=jax.ShapeDtypeStruct((B, 63, P2), jnp.float32),
        grid=(B,),
        in_specs=[pl.BlockSpec((1, 3, P1), lambda b: (b, 0, 0))]
                 + [_const_spec(a) for a in conv_consts],
        out_specs=pl.BlockSpec((1, 63, P2), lambda b: (b, 0, 0)),
        scratch_shapes=[pltpu.VMEM((63, P1), jnp.float32)],
        compiler_params=pltpu.CompilerParams(dimension_semantics=("parallel",)),
    )(x_cp, *conv_consts)

    # (B, 63, 30) -> (B, 1890): identical ordering to torch's reshape(-1, 63*5*6).
    feats = feats.reshape(B, 63 * P2)

    # Batch-tiled MLP head (pad batch to a multiple of the tile).
    tb = 256 if B >= 256 else max(8, ((B + 7) // 8) * 8)
    bp = ((B + tb - 1) // tb) * tb
    if bp != B:
        feats = jnp.pad(feats, ((0, bp - B), (0, 0)))

    mlp_consts = [params["fc_w"][0], params["fc_w"][1], params["fc_w"][2],
                  params["out_w"], params["fc_b"]]
    out = pl.pallas_call(
        mlp_head_kernel,
        out_shape=jax.ShapeDtypeStruct((bp, 1), jnp.float32),
        grid=(bp // tb,),
        in_specs=[pl.BlockSpec((tb, 63 * P2), lambda i: (i, 0))]
                 + [_const_spec(a) for a in mlp_consts],
        out_specs=pl.BlockSpec((tb, 1), lambda i: (i, 0)),
        compiler_params=pltpu.CompilerParams(dimension_semantics=("parallel",)),
    )(feats, *mlp_consts)
    return out[:B]


# ---------------------------------------------------------------------------
# Parameter init (deterministic; PyTorch-style uniform with hex fan-in)
# ---------------------------------------------------------------------------
def init_params(key):
    keys = jax.random.split(key, 2 * (len(CONV_DIMS) + len(FC_DIMS)))
    ki = iter(keys)

    conv_w, bcols = [], []
    for cin, cout in CONV_DIMS:
        bound = 1.0 / math.sqrt(cin * N_TAPS)
        w = jax.random.uniform(next(ki), (N_TAPS, cout, cin), jnp.float32, -bound, bound)
        b = jax.random.uniform(next(ki), (cout,), jnp.float32, -bound, bound)
        conv_w.append(w.astype(jnp.bfloat16))
        bcols.append(jnp.zeros((63,), jnp.float32).at[:cout].set(b))
    conv_b = jnp.stack(bcols, axis=1)                           # (63, 7) f32, packed

    fc_w, fc_b_rows = [], []
    for cin, cout in FC_DIMS[:3]:
        bound = 1.0 / math.sqrt(cin)
        w = jax.random.uniform(next(ki), (cin, cout), jnp.float32, -bound, bound)
        b = jax.random.uniform(next(ki), (cout,), jnp.float32, -bound, bound)
        fc_w.append(w.astype(jnp.bfloat16))
        fc_b_rows.append(b)
    bound = 1.0 / math.sqrt(FC_DIMS[3][0])
    out_w = jax.random.uniform(next(ki), (1, 100), jnp.float32, -bound, bound)
    out_b = jax.random.uniform(next(ki), (1,), jnp.float32, -bound, bound)
    fc_b = jnp.zeros((4, 100), jnp.float32)
    fc_b = fc_b.at[0].set(fc_b_rows[0]).at[1].set(fc_b_rows[1]).at[2].set(fc_b_rows[2])
    fc_b = fc_b.at[3, 0].set(out_b[0])

    return {"conv_w": conv_w, "conv_b": conv_b,
            "fc_w": fc_w, "out_w": out_w, "fc_b": fc_b}


# ---------------------------------------------------------------------------
# Pure-JAX reference (structurally different: explicit shifted/padded maps)
# ---------------------------------------------------------------------------
def _shift2d(a, dr, dc):
    hh, ww = a.shape[-2:]
    ap = jnp.pad(a, [(0, 0)] * (a.ndim - 2) + [(1, 1), (1, 1)])
    return ap[..., 1 + dr:1 + dr + hh, 1 + dc:1 + dc + ww]


def _hex_taps_ref(h):
    """(B, C, H, W) -> (7, B, C, H, W) hex-neighbour maps (zero outside)."""
    ww = h.shape[-1]
    odd = (jnp.arange(ww) % 2 == 1)[None, None, None, :]
    taps = [h, _shift2d(h, -1, 0), _shift2d(h, 1, 0)]
    for dc in (-1, 1):
        up = jnp.where(odd, _shift2d(h, 0, dc), _shift2d(h, -1, dc))
        lo = jnp.where(odd, _shift2d(h, 1, dc), _shift2d(h, 0, dc))
        taps.extend([up, lo])
    return jnp.stack(taps, axis=0)


def _hex_conv_ref(h, w_taps, bias):
    hq = h.astype(jnp.bfloat16).astype(jnp.float32)    # mirror kernel quantisation
    t = _hex_taps_ref(hq)
    out = jnp.einsum("koi,kbihw->bohw", w_taps.astype(jnp.float32), t)
    return out + bias[None, :, None, None]


def _hex_pool_ref(h):
    hq = h.astype(jnp.bfloat16).astype(jnp.float32)
    t = _hex_taps_ref(hq)
    s = jnp.sum(t, axis=(0, 2))                        # (B, H, W)
    ii = 2 * np.arange(H2)[:, None] + (np.arange(W2)[None, :] % 2)
    jj = np.broadcast_to(2 * np.arange(W2)[None, :], (H2, W2))
    w7 = jnp.asarray(1.0 / 7.0, jnp.bfloat16).astype(jnp.float32)
    pooled = s[:, ii, jj] * w7                         # (B, 5, 6)
    return jnp.broadcast_to(pooled[:, None, :, :], (h.shape[0], 63, H2, W2))


def model_x0_ref(x, params):
    h = x.astype(jnp.float32)
    for l in range(5):
        o = jax.nn.relu(_hex_conv_ref(h, params["conv_w"][l], params["conv_b"][:12, l]))
        h = jnp.concatenate([h, o], axis=1)
    h = _hex_pool_ref(h)
    for l in (5, 6):
        h = jax.nn.relu(_hex_conv_ref(h, params["conv_w"][l], params["conv_b"][:63, l]))
    f = h.reshape(x.shape[0], 63 * H2 * W2)

    def selu(v):
        return SELU_SCALE * jnp.where(
            v > 0, v, SELU_ALPHA * (jnp.exp(jnp.minimum(v, 0.0)) - 1.0))

    for i in range(3):
        f = selu(jnp.dot(f.astype(jnp.bfloat16), params["fc_w"][i],
                         preferred_element_type=jnp.float32) + params["fc_b"][i:i + 1, :])
    return jnp.sum(f * params["out_w"], axis=-1, keepdims=True) + params["fc_b"][3, 0]


if __name__ == "__main__":
    root = jax.random.PRNGKey(0)
    kp, kx = jax.random.split(root)
    params = init_params(kp)

    # Small deterministic batch consistent with the module's FC sizes.
    x = jax.random.normal(kx, (2, 3, H1, W1), dtype=jnp.float32)

    fwd = jax.jit(model_x0_forward)
    out = jax.block_until_ready(fwd(x, params))

    ref = jax.block_until_ready(model_x0_ref(x, params))
    assert out.shape == (2, 1), out.shape
    assert jnp.allclose(out, ref, rtol=2e-3, atol=2e-3), (out, ref)
    print("KERNEL_OK")
</pallas_src>

<mosaic_0001>
module attributes {stable_mosaic.version = 11 : i64} {
  func.func @hex_feature_kernel(%arg0: i32, %arg1: memref<1x3x110xf32, #tpu.memory_space<vmem>>, %arg2: memref<6x110x110xbf16, #tpu.memory_space<vmem>>, %arg3: memref<110x30xbf16, #tpu.memory_space<vmem>>, %arg4: memref<6x30x30xbf16, #tpu.memory_space<vmem>>, %arg5: memref<7x12x3xbf16, #tpu.memory_space<vmem>>, %arg6: memref<7x12x15xbf16, #tpu.memory_space<vmem>>, %arg7: memref<7x12x27xbf16, #tpu.memory_space<vmem>>, %arg8: memref<7x12x39xbf16, #tpu.memory_space<vmem>>, %arg9: memref<7x12x51xbf16, #tpu.memory_space<vmem>>, %arg10: memref<7x63x63xbf16, #tpu.memory_space<vmem>>, %arg11: memref<7x63x63xbf16, #tpu.memory_space<vmem>>, %arg12: memref<63x7xf32, #tpu.memory_space<vmem>>, %arg13: memref<1x63x30xf32, #tpu.memory_space<vmem>>, %arg14: memref<63x110xf32, #tpu.memory_space<vmem>>) attributes {dimension_semantics = [#tpu.dimension_semantics<parallel>], iteration_bounds = array<i64: 2>, scalar_prefetch = 0 : i64, scratch_operands = 1 : i64, tpu.core_type = #tpu.core_type<tc>, window_params = [{transform_indices = @transform_0, window_bounds = array<i64: 1, 3, 110>}, {pipeline_mode = #tpu.pipeline_mode<synchronous>, transform_indices = @transform_1, window_bounds = array<i64: 6, 110, 110>}, {pipeline_mode = #tpu.pipeline_mode<synchronous>, transform_indices = @transform_2, window_bounds = array<i64: 110, 30>}, {pipeline_mode = #tpu.pipeline_mode<synchronous>, transform_indices = @transform_3, window_bounds = array<i64: 6, 30, 30>}, {pipeline_mode = #tpu.pipeline_mode<synchronous>, transform_indices = @transform_4, window_bounds = array<i64: 7, 12, 3>}, {pipeline_mode = #tpu.pipeline_mode<synchronous>, transform_indices = @transform_5, window_bounds = array<i64: 7, 12, 15>}, {pipeline_mode = #tpu.pipeline_mode<synchronous>, transform_indices = @transform_6, window_bounds = array<i64: 7, 12, 27>}, {pipeline_mode = #tpu.pipeline_mode<synchronous>, transform_indices = @transform_7, window_bounds = array<i64: 7, 12, 39>}, {pipeline_mode = #tpu.pipeline_mode<synchronous>, transform_indices = @transform_8, window_bounds = array<i64: 7, 12, 51>}, {pipeline_mode = #tpu.pipeline_mode<synchronous>, transform_indices = @transform_9, window_bounds = array<i64: 7, 63, 63>}, {pipeline_mode = #tpu.pipeline_mode<synchronous>, transform_indices = @transform_10, window_bounds = array<i64: 7, 63, 63>}, {pipeline_mode = #tpu.pipeline_mode<synchronous>, transform_indices = @transform_11, window_bounds = array<i64: 63, 7>}, {transform_indices = @transform_12, window_bounds = array<i64: 1, 63, 30>}]} {
    %c0 = arith.constant 0 : index
    %c0_0 = arith.constant 0 : index
    %c0_1 = arith.constant 0 : index
    %0 = vector.load %arg1[%c0, %c0_0, %c0_1] : memref<1x3x110xf32, #tpu.memory_space<vmem>>, vector<1x3x110xf32>
    %1 = vector.shape_cast %0 : vector<1x3x110xf32> to vector<3x110xf32>
    %c0_2 = arith.constant 0 : index
    %c0_3 = arith.constant 0 : index
    %2 = vector.load %arg14[%c0_2, %c0_3] : memref<63x110xf32, #tpu.memory_space<vmem>>, vector<3x110xf32>
    tpu.vector_store %arg14[%c0_2, %c0_3], %1 {strides = array<i32>} : memref<63x110xf32, #tpu.memory_space<vmem>>, vector<3x110xf32>,
    %c0_4 = arith.constant 0 : index
    %c0_5 = arith.constant 0 : index
    %3 = vector.load %arg14[%c0_4, %c0_5] : memref<63x110xf32, #tpu.memory_space<vmem>>, vector<3x110xf32>
    %4 = arith.truncf %3 : vector<3x110xf32> to vector<3x110xbf16>
    %c0_6 = arith.constant 0 : index
    %c0_7 = arith.constant 0 : index
    %c0_8 = arith.constant 0 : index
    %5 = vector.load %arg5[%c0_6, %c0_7, %c0_8] : memref<7x12x3xbf16, #tpu.memory_space<vmem>>, vector<1x12x3xbf16>
    %6 = vector.shape_cast %5 : vector<1x12x3xbf16> to vector<12x3xbf16>
    %cst = arith.constant dense<0.000000e+00> : vector<12x110xf32>
    %7 = tpu.matmul %6, %4, %cst {dimension_numbers = #tpu.dot_dimension_numbers<[1], [0], [0], [1], [0, 0, 1, 1], [], []>} : vector<12x3xbf16>, vector<3x110xbf16>, vector<12x110xf32> -> vector<12x110xf32>
    %c0_9 = arith.constant 0 : index
    %c0_10 = arith.constant 0 : index
    %c0_11 = arith.constant 0 : index
    %8 = vector.load %arg2[%c0_9, %c0_10, %c0_11] : memref<6x110x110xbf16, #tpu.memory_space<vmem>>, vector<1x110x110xbf16>
    %9 = vector.shape_cast %8 : vector<1x110x110xbf16> to vector<110x110xbf16>
    %cst_12 = arith.constant dense<0.000000e+00> : vector<3x110xf32>
    %10 = tpu.matmul %4, %9, %cst_12 {dimension_numbers = #tpu.dot_dimension_numbers<[1], [0], [0], [1], [0, 0, 1, 1], [], []>} : vector<3x110xbf16>, vector<110x110xbf16>, vector<3x110xf32> -> vector<3x110xf32>
    %11 = arith.truncf %10 : vector<3x110xf32> to vector<3x110xbf16>
    %c1 = arith.constant 1 : index
    %c0_13 = arith.constant 0 : index
    %c0_14 = arith.constant 0 : index
    %12 = vector.load %arg5[%c1, %c0_13, %c0_14] : memref<7x12x3xbf16, #tpu.memory_space<vmem>>, vector<1x12x3xbf16>
    %13 = vector.shape_cast %12 : vector<1x12x3xbf16> to vector<12x3xbf16>
    %cst_15 = arith.constant dense<0.000000e+00> : vector<12x110xf32>
    %14 = tpu.matmul %13, %11, %cst_15 {dimension_numbers = #tpu.dot_dimension_numbers<[1], [0], [0], [1], [0, 0, 1, 1], [], []>} : vector<12x3xbf16>, vector<3x110xbf16>, vector<12x110xf32> -> vector<12x110xf32>
    %15 = arith.addf %7, %14 : vector<12x110xf32>
    %c1_16 = arith.constant 1 : index
    %c0_17 = arith.constant 0 : index
    %c0_18 = arith.constant 0 : index
    %16 = vector.load %arg2[%c1_16, %c0_17, %c0_18] : memref<6x110x110xbf16, #tpu.memory_space<vmem>>, vector<1x110x110xbf16>
    %17 = vector.shape_cast %16 : vector<1x110x110xbf16> to vector<110x110xbf16>
    %cst_19 = arith.constant dense<0.000000e+00> : vector<3x110xf32>
    %18 = tpu.matmul %4, %17, %cst_19 {dimension_numbers = #tpu.dot_dimension_numbers<[1], [0], [0], [1], [0, 0, 1, 1], [], []>} : vector<3x110xbf16>, vector<110x110xbf16>, vector<3x110xf32> -> vector<3x110xf32>
    %19 = arith.truncf %18 : vector<3x110xf32> to vector<3x110xbf16>
    %c2 = arith.constant 2 : index
    %c0_20 = arith.constant 0 : index
    %c0_21 = arith.constant 0 : index
    %20 = vector.load %arg5[%c2, %c0_20, %c0_21] : memref<7x12x3xbf16, #tpu.memory_space<vmem>>, vector<1x12x3xbf16>
    %21 = vector.shape_cast %20 : vector<1x12x3xbf16> to vector<12x3xbf16>
    %cst_22 = arith.constant dense<0.000000e+00> : vector<12x110xf32>
    %22 = tpu.matmul %21, %19, %cst_22 {dimension_numbers = #tpu.dot_dimension_numbers<[1], [0], [0], [1], [0, 0, 1, 1], [], []>} : vector<12x3xbf16>, vector<3x110xbf16>, vector<12x110xf32> -> vector<12x110xf32>
    %23 = arith.addf %15, %22 : vector<12x110xf32>
    %c2_23 = arith.constant 2 : index
    %c0_24 = arith.constant 0 : index
    %c0_25 = arith.constant 0 : index
    %24 = vector.load %arg2[%c2_23, %c0_24, %c0_25] : memref<6x110x110xbf16, #tpu.memory_space<vmem>>, vector<1x110x110xbf16>
    %25 = vector.shape_cast %24 : vector<1x110x110xbf16> to vector<110x110xbf16>
    %cst_26 = arith.constant dense<0.000000e+00> : vector<3x110xf32>
    %26 = tpu.matmul %4, %25, %cst_26 {dimension_numbers = #tpu.dot_dimension_numbers<[1], [0], [0], [1], [0, 0, 1, 1], [], []>} : vector<3x110xbf16>, vector<110x110xbf16>, vector<3x110xf32> -> vector<3x110xf32>
    %27 = arith.truncf %26 : vector<3x110xf32> to vector<3x110xbf16>
    %c3 = arith.constant 3 : index
    %c0_27 = arith.constant 0 : index
    %c0_28 = arith.constant 0 : index
    %28 = vector.load %arg5[%c3, %c0_27, %c0_28] : memref<7x12x3xbf16, #tpu.memory_space<vmem>>, vector<1x12x3xbf16>
    %29 = vector.shape_cast %28 : vector<1x12x3xbf16> to vector<12x3xbf16>
    %cst_29 = arith.constant dense<0.000000e+00> : vector<12x110xf32>
    %30 = tpu.matmul %29, %27, %cst_29 {dimension_numbers = #tpu.dot_dimension_numbers<[1], [0], [0], [1], [0, 0, 1, 1], [], []>} : vector<12x3xbf16>, vector<3x110xbf16>, vector<12x110xf32> -> vector<12x110xf32>
    %31 = arith.addf %23, %30 : vector<12x110xf32>
    %c3_30 = arith.constant 3 : index
    %c0_31 = arith.constant 0 : index
    %c0_32 = arith.constant 0 : index
    %32 = vector.load %arg2[%c3_30, %c0_31, %c0_32] : memref<6x110x110xbf16, #tpu.memory_space<vmem>>, vector<1x110x110xbf16>
    %33 = vector.shape_cast %32 : vector<1x110x110xbf16> to vector<110x110xbf16>
    %cst_33 = arith.constant dense<0.000000e+00> : vector<3x110xf32>
    %34 = tpu.matmul %4, %33, %cst_33 {dimension_numbers = #tpu.dot_dimension_numbers<[1], [0], [0], [1], [0, 0, 1, 1], [], []>} : vector<3x110xbf16>, vector<110x110xbf16>, vector<3x110xf32> -> vector<3x110xf32>
    %35 = arith.truncf %34 : vector<3x110xf32> to vector<3x110xbf16>
    %c4 = arith.constant 4 : index
    %c0_34 = arith.constant 0 : index
    %c0_35 = arith.constant 0 : index
    %36 = vector.load %arg5[%c4, %c0_34, %c0_35] : memref<7x12x3xbf16, #tpu.memory_space<vmem>>, vector<1x12x3xbf16>
    %37 = vector.shape_cast %36 : vector<1x12x3xbf16> to vector<12x3xbf16>
    %cst_36 = arith.constant dense<0.000000e+00> : vector<12x110xf32>
    %38 = tpu.matmul %37, %35, %cst_36 {dimension_numbers = #tpu.dot_dimension_numbers<[1], [0], [0], [1], [0, 0, 1, 1], [], []>} : vector<12x3xbf16>, vector<3x110xbf16>, vector<12x110xf32> -> vector<12x110xf32>
    %39 = arith.addf %31, %38 : vector<12x110xf32>
    %c4_37 = arith.constant 4 : index
    %c0_38 = arith.constant 0 : index
    %c0_39 = arith.constant 0 : index
    %40 = vector.load %arg2[%c4_37, %c0_38, %c0_39] : memref<6x110x110xbf16, #tpu.memory_space<vmem>>, vector<1x110x110xbf16>
    %41 = vector.shape_cast %40 : vector<1x110x110xbf16> to vector<110x110xbf16>
    %cst_40 = arith.constant dense<0.000000e+00> : vector<3x110xf32>
    %42 = tpu.matmul %4, %41, %cst_40 {dimension_numbers = #tpu.dot_dimension_numbers<[1], [0], [0], [1], [0, 0, 1, 1], [], []>} : vector<3x110xbf16>, vector<110x110xbf16>, vector<3x110xf32> -> vector<3x110xf32>
    %43 = arith.truncf %42 : vector<3x110xf32> to vector<3x110xbf16>
    %c5 = arith.constant 5 : index
    %c0_41 = arith.constant 0 : index
    %c0_42 = arith.constant 0 : index
    %44 = vector.load %arg5[%c5, %c0_41, %c0_42] : memref<7x12x3xbf16, #tpu.memory_space<vmem>>, vector<1x12x3xbf16>
    %45 = vector.shape_cast %44 : vector<1x12x3xbf16> to vector<12x3xbf16>
    %cst_43 = arith.constant dense<0.000000e+00> : vector<12x110xf32>
    %46 = tpu.matmul %45, %43, %cst_43 {dimension_numbers = #tpu.dot_dimension_numbers<[1], [0], [0], [1], [0, 0, 1, 1], [], []>} : vector<12x3xbf16>, vector<3x110xbf16>, vector<12x110xf32> -> vector<12x110xf32>
    %47 = arith.addf %39, %46 : vector<12x110xf32>
    %c5_44 = arith.constant 5 : index
    %c0_45 = arith.constant 0 : index
    %c0_46 = arith.constant 0 : index
    %48 = vector.load %arg2[%c5_44, %c0_45, %c0_46] : memref<6x110x110xbf16, #tpu.memory_space<vmem>>, vector<1x110x110xbf16>
    %49 = vector.shape_cast %48 : vector<1x110x110xbf16> to vector<110x110xbf16>
    %cst_47 = arith.constant dense<0.000000e+00> : vector<3x110xf32>
    %50 = tpu.matmul %4, %49, %cst_47 {dimension_numbers = #tpu.dot_dimension_numbers<[1], [0], [0], [1], [0, 0, 1, 1], [], []>} : vector<3x110xbf16>, vector<110x110xbf16>, vector<3x110xf32> -> vector<3x110xf32>
    %51 = arith.truncf %50 : vector<3x110xf32> to vector<3x110xbf16>
    %c6 = arith.constant 6 : index
    %c0_48 = arith.constant 0 : index
    %c0_49 = arith.constant 0 : index
    %52 = vector.load %arg5[%c6, %c0_48, %c0_49] : memref<7x12x3xbf16, #tpu.memory_space<vmem>>, vector<1x12x3xbf16>
    %53 = vector.shape_cast %52 : vector<1x12x3xbf16> to vector<12x3xbf16>
    %cst_50 = arith.constant dense<0.000000e+00> : vector<12x110xf32>
    %54 = tpu.matmul %53, %51, %cst_50 {dimension_numbers = #tpu.dot_dimension_numbers<[1], [0], [0], [1], [0, 0, 1, 1], [], []>} : vector<12x3xbf16>, vector<3x110xbf16>, vector<12x110xf32> -> vector<12x110xf32>
    %55 = arith.addf %47, %54 : vector<12x110xf32>
    %c0_51 = arith.constant 0 : index
    %c0_52 = arith.constant 0 : index
    %56 = vector.load %arg12[%c0_51, %c0_52] : memref<63x7xf32, #tpu.memory_space<vmem>>, vector<12x1xf32>
    %57 = vector.broadcast %56 : vector<12x1xf32> to vector<12x110xf32>
    %58 = arith.addf %55, %57 : vector<12x110xf32>
    %cst_53 = arith.constant 0.000000e+00 : f32
    %59 = vector.broadcast %cst_53 : f32 to vector<12x110xf32>
    %60 = arith.maximumf %58, %59 : vector<12x110xf32>
    %c3_54 = arith.constant 3 : index
    %c0_55 = arith.constant 0 : index
    %61 = vector.load %arg14[%c3_54, %c0_55] : memref<63x110xf32, #tpu.memory_space<vmem>>, vector<12x110xf32>
    tpu.vector_store %arg14[%c3_54, %c0_55], %60 {strides = array<i32>} : memref<63x110xf32, #tpu.memory_space<vmem>>, vector<12x110xf32>,
    %c0_56 = arith.constant 0 : index
    %c0_57 = arith.constant 0 : index
    %62 = vector.load %arg14[%c0_56, %c0_57] : memref<63x110xf32, #tpu.memory_space<vmem>>, vector<15x110xf32>
    %63 = arith.truncf %62 : vector<15x110xf32> to vector<15x110xbf16>
    %c0_58 = arith.constant 0 : index
    %c0_59 = arith.constant 0 : index
    %c0_60 = arith.constant 0 : index
    %64 = vector.load %arg6[%c0_58, %c0_59, %c0_60] : memref<7x12x15xbf16, #tpu.memory_space<vmem>>, vector<1x12x15xbf16>
    %65 = vector.shape_cast %64 : vector<1x12x15xbf16> to vector<12x15xbf16>
    %cst_61 = arith.constant dense<0.000000e+00> : vector<12x110xf32>
    %66 = tpu.matmul %65, %63, %cst_61 {dimension_numbers = #tpu.dot_dimension_numbers<[1], [0], [0], [1], [0, 0, 1, 1], [], []>} : vector<12x15xbf16>, vector<15x110xbf16>, vector<12x110xf32> -> vector<12x110xf32>
    %c0_62 = arith.constant 0 : index
    %c0_63 = arith.constant 0 : index
    %c0_64 = arith.constant 0 : index
    %67 = vector.load %arg2[%c0_62, %c0_63, %c0_64] : memref<6x110x110xbf16, #tpu.memory_space<vmem>>, vector<1x110x110xbf16>
    %68 = vector.shape_cast %67 : vector<1x110x110xbf16> to vector<110x110xbf16>
    %cst_65 = arith.constant dense<0.000000e+00> : vector<15x110xf32>
    %69 = tpu.matmul %63, %68, %cst_65 {dimension_numbers = #tpu.dot_dimension_numbers<[1], [0], [0], [1], [0, 0, 1, 1], [], []>} : vector<15x110xbf16>, vector<110x110xbf16>, vector<15x110xf32> -> vector<15x110xf32>
    %70 = arith.truncf %69 : vector<15x110xf32> to vector<15x110xbf16>
    %c1_66 = arith.constant 1 : index
    %c0_67 = arith.constant 0 : index
    %c0_68 = arith.constant 0 : index
    %71 = vector.load %arg6[%c1_66, %c0_67, %c0_68] : memref<7x12x15xbf16, #tpu.memory_space<vmem>>, vector<1x12x15xbf16>
    %72 = vector.shape_cast %71 : vector<1x12x15xbf16> to vector<12x15xbf16>
    %cst_69 = arith.constant dense<0.000000e+00> : vector<12x110xf32>
    %73 = tpu.matmul %72, %70, %cst_69 {dimension_numbers = #tpu.dot_dimension_numbers<[1], [0], [0], [1], [0, 0, 1, 1], [], []>} : vector<12x15xbf16>, vector<15x110xbf16>, vector<12x110xf32> -> vector<12x110xf32>
    %74 = arith.addf %66, %73 : vector<12x110xf32>
    %c1_70 = arith.constant 1 : index
    %c0_71 = arith.constant 0 : index
    %c0_72 = arith.constant 0 : index
    %75 = vector.load %arg2[%c1_70, %c0_71, %c0_72] : memref<6x110x110xbf16, #tpu.memory_space<vmem>>, vector<1x110x110xbf16>
    %76 = vector.shape_cast %75 : vector<1x110x110xbf16> to vector<110x110xbf16>
    %cst_73 = arith.constant dense<0.000000e+00> : vector<15x110xf32>
    %77 = tpu.matmul %63, %76, %cst_73 {dimension_numbers = #tpu.dot_dimension_numbers<[1], [0], [0], [1], [0, 0, 1, 1], [], []>} : vector<15x110xbf16>, vector<110x110xbf16>, vector<15x110xf32> -> vector<15x110xf32>
    %78 = arith.truncf %77 : vector<15x110xf32> to vector<15x110xbf16>
    %c2_74 = arith.constant 2 : index
    %c0_75 = arith.constant 0 : index
    %c0_76 = arith.constant 0 : index
    %79 = vector.load %arg6[%c2_74, %c0_75, %c0_76] : memref<7x12x15xbf16, #tpu.memory_space<vmem>>, vector<1x12x15xbf16>
    %80 = vector.shape_cast %79 : vector<1x12x15xbf16> to vector<12x15xbf16>
    %cst_77 = arith.constant dense<0.000000e+00> : vector<12x110xf32>
    %81 = tpu.matmul %80, %78, %cst_77 {dimension_numbers = #tpu.dot_dimension_numbers<[1], [0], [0], [1], [0, 0, 1, 1], [], []>} : vector<12x15xbf16>, vector<15x110xbf16>, vector<12x110xf32> -> vector<12x110xf32>
    %82 = arith.addf %74, %81 : vector<12x110xf32>
    %c2_78 = arith.constant 2 : index
    %c0_79 = arith.constant 0 : index
    %c0_80 = arith.constant 0 : index
    %83 = vector.load %arg2[%c2_78, %c0_79, %c0_80] : memref<6x110x110xbf16, #tpu.memory_space<vmem>>, vector<1x110x110xbf16>
    %84 = vector.shape_cast %83 : vector<1x110x110xbf16> to vector<110x110xbf16>
    %cst_81 = arith.constant dense<0.000000e+00> : vector<15x110xf32>
    %85 = tpu.matmul %63, %84, %cst_81 {dimension_numbers = #tpu.dot_dimension_numbers<[1], [0], [0], [1], [0, 0, 1, 1], [], []>} : vector<15x110xbf16>, vector<110x110xbf16>, vector<15x110xf32> -> vector<15x110xf32>
    %86 = arith.truncf %85 : vector<15x110xf32> to vector<15x110xbf16>
    %c3_82 = arith.constant 3 : index
    %c0_83 = arith.constant 0 : index
    %c0_84 = arith.constant 0 : index
    %87 = vector.load %arg6[%c3_82, %c0_83, %c0_84] : memref<7x12x15xbf16, #tpu.memory_space<vmem>>, vector<1x12x15xbf16>
    %88 = vector.shape_cast %87 : vector<1x12x15xbf16> to vector<12x15xbf16>
    %cst_85 = arith.constant dense<0.000000e+00> : vector<12x110xf32>
    %89 = tpu.matmul %88, %86, %cst_85 {dimension_numbers = #tpu.dot_dimension_numbers<[1], [0], [0], [1], [0, 0, 1, 1], [], []>} : vector<12x15xbf16>, vector<15x110xbf16>, vector<12x110xf32> -> vector<12x110xf32>
    %90 = arith.addf %82, %89 : vector<12x110xf32>
    %c3_86 = arith.constant 3 : index
    %c0_87 = arith.constant 0 : index
    %c0_88 = arith.constant 0 : index
    %91 = vector.load %arg2[%c3_86, %c0_87, %c0_88] : memref<6x110x110xbf16, #tpu.memory_space<vmem>>, vector<1x110x110xbf16>
    %92 = vector.shape_cast %91 : vector<1x110x110xbf16> to vector<110x110xbf16>
    %cst_89 = arith.constant dense<0.000000e+00> : vector<15x110xf32>
    %93 = tpu.matmul %63, %92, %cst_89 {dimension_numbers = #tpu.dot_dimension_numbers<[1], [0], [0], [1], [0, 0, 1, 1], [], []>} : vector<15x110xbf16>, vector<110x110xbf16>, vector<15x110xf32> -> vector<15x110xf32>
    %94 = arith.truncf %93 : vector<15x110xf32> to vector<15x110xbf16>
    %c4_90 = arith.constant 4 : index
    %c0_91 = arith.constant 0 : index
    %c0_92 = arith.constant 0 : index
    %95 = vector.load %arg6[%c4_90, %c0_91, %c0_92] : memref<7x12x15xbf16, #tpu.memory_space<vmem>>, vector<1x12x15xbf16>
    %96 = vector.shape_cast %95 : vector<1x12x15xbf16> to vector<12x15xbf16>
    %cst_93 = arith.constant dense<0.000000e+00> : vector<12x110xf32>
    %97 = tpu.matmul %96, %94, %cst_93 {dimension_numbers = #tpu.dot_dimension_numbers<[1], [0], [0], [1], [0, 0, 1, 1], [], []>} : vector<12x15xbf16>, vector<15x110xbf16>, vector<12x110xf32> -> vector<12x110xf32>
    %98 = arith.addf %90, %97 : vector<12x110xf32>
    %c4_94 = arith.constant 4 : index
    %c0_95 = arith.constant 0 : index
    %c0_96 = arith.constant 0 : index
    %99 = vector.load %arg2[%c4_94, %c0_95, %c0_96] : memref<6x110x110xbf16, #tpu.memory_space<vmem>>, vector<1x110x110xbf16>
    %100 = vector.shape_cast %99 : vector<1x110x110xbf16> to vector<110x110xbf16>
    %cst_97 = arith.constant dense<0.000000e+00> : vector<15x110xf32>
    %101 = tpu.matmul %63, %100, %cst_97 {dimension_numbers = #tpu.dot_dimension_numbers<[1], [0], [0], [1], [0, 0, 1, 1], [], []>} : vector<15x110xbf16>, vector<110x110xbf16>, vector<15x110xf32> -> vector<15x110xf32>
    %102 = arith.truncf %101 : vector<15x110xf32> to vector<15x110xbf16>
    %c5_98 = arith.constant 5 : index
    %c0_99 = arith.constant 0 : index
    %c0_100 = arith.constant 0 : index
    %103 = vector.load %arg6[%c5_98, %c0_99, %c0_100] : memref<7x12x15xbf16, #tpu.memory_space<vmem>>, vector<1x12x15xbf16>
    %104 = vector.shape_cast %103 : vector<1x12x15xbf16> to vector<12x15xbf16>
    %cst_101 = arith.constant dense<0.000000e+00> : vector<12x110xf32>
    %105 = tpu.matmul %104, %102, %cst_101 {dimension_numbers = #tpu.dot_dimension_numbers<[1], [0], [0], [1], [0, 0, 1, 1], [], []>} : vector<12x15xbf16>, vector<15x110xbf16>, vector<12x110xf32> -> vector<12x110xf32>
    %106 = arith.addf %98, %105 : vector<12x110xf32>
    %c5_102 = arith.constant 5 : index
    %c0_103 = arith.constant 0 : index
    %c0_104 = arith.constant 0 : index
    %107 = vector.load %arg2[%c5_102, %c0_103, %c0_104] : memref<6x110x110xbf16, #tpu.memory_space<vmem>>, vector<1x110x110xbf16>
    %108 = vector.shape_cast %107 : vector<1x110x110xbf16> to vector<110x110xbf16>
    %cst_105 = arith.constant dense<0.000000e+00> : vector<15x110xf32>
    %109 = tpu.matmul %63, %108, %cst_105 {dimension_numbers = #tpu.dot_dimension_numbers<[1], [0], [0], [1], [0, 0, 1, 1], [], []>} : vector<15x110xbf16>, vector<110x110xbf16>, vector<15x110xf32> -> vector<15x110xf32>
    %110 = arith.truncf %109 : vector<15x110xf32> to vector<15x110xbf16>
    %c6_106 = arith.constant 6 : index
    %c0_107 = arith.constant 0 : index
    %c0_108 = arith.constant 0 : index
    %111 = vector.load %arg6[%c6_106, %c0_107, %c0_108] : memref<7x12x15xbf16, #tpu.memory_space<vmem>>, vector<1x12x15xbf16>
    %112 = vector.shape_cast %111 : vector<1x12x15xbf16> to vector<12x15xbf16>
    %cst_109 = arith.constant dense<0.000000e+00> : vector<12x110xf32>
    %113 = tpu.matmul %112, %110, %cst_109 {dimension_numbers = #tpu.dot_dimension_numbers<[1], [0], [0], [1], [0, 0, 1, 1], [], []>} : vector<12x15xbf16>, vector<15x110xbf16>, vector<12x110xf32> -> vector<12x110xf32>
    %114 = arith.addf %106, %113 : vector<12x110xf32>
    %c0_110 = arith.constant 0 : index
    %c1_111 = arith.constant 1 : index
    %115 = vector.load %arg12[%c0_110, %c1_111] : memref<63x7xf32, #tpu.memory_space<vmem>>, vector<12x1xf32>
    %116 = vector.broadcast %115 : vector<12x1xf32> to vector<12x110xf32>
    %117 = arith.addf %114, %116 : vector<12x110xf32>
    %cst_112 = arith.constant 0.000000e+00 : f32
    %118 = vector.broadcast %cst_112 : f32 to vector<12x110xf32>
    %119 = arith.maximumf %117, %118 : vector<12x110xf32>
    %c15 = arith.constant 15 : index
    %c0_113 = arith.constant 0 : index
    %120 = vector.load %arg14[%c15, %c0_113] : memref<63x110xf32, #tpu.memory_space<vmem>>, vector<12x110xf32>
    tpu.vector_store %arg14[%c15, %c0_113], %119 {strides = array<i32>} : memref<63x110xf32, #tpu.memory_space<vmem>>, vector<12x110xf32>,
    %c0_114 = arith.constant 0 : index
    %c0_115 = arith.constant 0 : index
    %121 = vector.load %arg14[%c0_114, %c0_115] : memref<63x110xf32, #tpu.memory_space<vmem>>, vector<27x110xf32>
    %122 = arith.truncf %121 : vector<27x110xf32> to vector<27x110xbf16>
    %c0_116 = arith.constant 0 : index
    %c0_117 = arith.constant 0 : index
    %c0_118 = arith.constant 0 : index
    %123 = vector.load %arg7[%c0_116, %c0_117, %c0_118] : memref<7x12x27xbf16, #tpu.memory_space<vmem>>, vector<1x12x27xbf16>
    %124 = vector.shape_cast %123 : vector<1x12x27xbf16> to vector<12x27xbf16>
    %cst_119 = arith.constant dense<0.000000e+00> : vector<12x110xf32>
    %125 = tpu.matmul %124, %122, %cst_119 {dimension_numbers = #tpu.dot_dimension_numbers<[1], [0], [0], [1], [0, 0, 1, 1], [], []>} : vector<12x27xbf16>, vector<27x110xbf16>, vector<12x110xf32> -> vector<12x110xf32>
    %c0_120 = arith.constant 0 : index
    %c0_121 = arith.constant 0 : index
    %c0_122 = arith.constant 0 : index
    %126 = vector.load %arg2[%c0_120, %c0_121, %c0_122] : memref<6x110x110xbf16, #tpu.memory_space<vmem>>, vector<1x110x110xbf16>
    %127 = vector.shape_cast %126 : vector<1x110x110xbf16> to vector<110x110xbf16>
    %cst_123 = arith.constant dense<0.000000e+00> : vector<27x110xf32>
    %128 = tpu.matmul %122, %127, %cst_123 {dimension_numbers = #tpu.dot_dimension_numbers<[1], [0], [0], [1], [0, 0, 1, 1], [], []>} : vector<27x110xbf16>, vector<110x110xbf16>, vector<27x110xf32> -> vector<27x110xf32>
    %129 = arith.truncf %128 : vector<27x110xf32> to vector<27x110xbf16>
    %c1_124 = arith.constant 1 : index
    %c0_125 = arith.constant 0 : index
    %c0_126 = arith.constant 0 : index
    %130 = vector.load %arg7[%c1_124, %c0_125, %c0_126] : memref<7x12x27xbf16, #tpu.memory_space<vmem>>, vector<1x12x27xbf16>
    %131 = vector.shape_cast %130 : vector<1x12x27xbf16> to vector<12x27xbf16>
    %cst_127 = arith.constant dense<0.000000e+00> : vector<12x110xf32>
    %132 = tpu.matmul %131, %129, %cst_127 {dimension_numbers = #tpu.dot_dimension_numbers<[1], [0], [0], [1], [0, 0, 1, 1], [], []>} : vector<12x27xbf16>, vector<27x110xbf16>, vector<12x110xf32> -> vector<12x110xf32>
    %133 = arith.addf %125, %132 : vector<12x110xf32>
    %c1_128 = arith.constant 1 : index
    %c0_129 = arith.constant 0 : index
    %c0_130 = arith.constant 0 : index
    %134 = vector.load %arg2[%c1_128, %c0_129, %c0_130] : memref<6x110x110xbf16, #tpu.memory_space<vmem>>, vector<1x110x110xbf16>
    %135 = vector.shape_cast %134 : vector<1x110x110xbf16> to vector<110x110xbf16>
    %cst_131 = arith.constant dense<0.000000e+00> : vector<27x110xf32>
    %136 = tpu.matmul %122, %135, %cst_131 {dimension_numbers = #tpu.dot_dimension_numbers<[1], [0], [0], [1], [0, 0, 1, 1], [], []>} : vector<27x110xbf16>, vector<110x110xbf16>, vector<27x110xf32> -> vector<27x110xf32>
    %137 = arith.truncf %136 : vector<27x110xf32> to vector<27x110xbf16>
    %c2_132 = arith.constant 2 : index
    %c0_133 = arith.constant 0 : index
    %c0_134 = arith.constant 0 : index
    %138 = vector.load %arg7[%c2_132, %c0_133, %c0_134] : memref<7x12x27xbf16, #tpu.memory_space<vmem>>, vector<1x12x27xbf16>
    %139 = vector.shape_cast %138 : vector<1x12x27xbf16> to vector<12x27xbf16>
    %cst_135 = arith.constant dense<0.000000e+00> : vector<12x110xf32>
    %140 = tpu.matmul %139, %137, %cst_135 {dimension_numbers = #tpu.dot_dimension_numbers<[1], [0], [0], [1], [0, 0, 1, 1], [], []>} : vector<12x27xbf16>, vector<27x110xbf16>, vector<12x110xf32> -> vector<12x110xf32>
    %141 = arith.addf %133, %140 : vector<12x110xf32>
    %c2_136 = arith.constant 2 : index
    %c0_137 = arith.constant 0 : index
    %c0_138 = arith.constant 0 : index
    %142 = vector.load %arg2[%c2_136, %c0_137, %c0_138] : memref<6x110x110xbf16, #tpu.memory_space<vmem>>, vector<1x110x110xbf16>
    %143 = vector.shape_cast %142 : vector<1x110x110xbf16> to vector<110x110xbf16>
    %cst_139 = arith.constant dense<0.000000e+00> : vector<27x110xf32>
    %144 = tpu.matmul %122, %143, %cst_139 {dimension_numbers = #tpu.dot_dimension_numbers<[1], [0], [0], [1], [0, 0, 1, 1], [], []>} : vector<27x110xbf16>, vector<110x110xbf16>, vector<27x110xf32> -> vector<27x110xf32>
    %145 = arith.truncf %144 : vector<27x110xf32> to vector<27x110xbf16>
    %c3_140 = arith.constant 3 : index
    %c0_141 = arith.constant 0 : index
    %c0_142 = arith.constant 0 : index
    %146 = vector.load %arg7[%c3_140, %c0_141, %c0_142] : memref<7x12x27xbf16, #tpu.memory_space<vmem>>, vector<1x12x27xbf16>
    %147 = vector.shape_cast %146 : vector<1x12x27xbf16> to vector<12x27xbf16>
    %cst_143 = arith.constant dense<0.000000e+00> : vector<12x110xf32>
    %148 = tpu.matmul %147, %145, %cst_143 {dimension_numbers = #tpu.dot_dimension_numbers<[1], [0], [0], [1], [0, 0, 1, 1], [], []>} : vector<12x27xbf16>, vector<27x110xbf16>, vector<12x110xf32> -> vector<12x110xf32>
    %149 = arith.addf %141, %148 : vector<12x110xf32>
    %c3_144 = arith.constant 3 : index
    %c0_145 = arith.constant 0 : index
    %c0_146 = arith.constant 0 : index
    %150 = vector.load %arg2[%c3_144, %c0_145, %c0_146] : memref<6x110x110xbf16, #tpu.memory_space<vmem>>, vector<1x110x110xbf16>
    %151 = vector.shape_cast %150 : vector<1x110x110xbf16> to vector<110x110xbf16>
    %cst_147 = arith.constant dense<0.000000e+00> : vector<27x110xf32>
    %152 = tpu.matmul %122, %151, %cst_147 {dimension_numbers = #tpu.dot_dimension_numbers<[1], [0], [0], [1], [0, 0, 1, 1], [], []>} : vector<27x110xbf16>, vector<110x110xbf16>, vector<27x110xf32> -> vector<27x110xf32>
    %153 = arith.truncf %152 : vector<27x110xf32> to vector<27x110xbf16>
    %c4_148 = arith.constant 4 : index
    %c0_149 = arith.constant 0 : index
    %c0_150 = arith.constant 0 : index
    %154 = vector.load %arg7[%c4_148, %c0_149, %c0_150] : memref<7x12x27xbf16, #tpu.memory_space<vmem>>, vector<1x12x27xbf16>
    %155 = vector.shape_cast %154 : vector<1x12x27xbf16> to vector<12x27xbf16>
    %cst_151 = arith.constant dense<0.000000e+00> : vector<12x110xf32>
    %156 = tpu.matmul %155, %153, %cst_151 {dimension_numbers = #tpu.dot_dimension_numbers<[1], [0], [0], [1], [0, 0, 1, 1], [], []>} : vector<12x27xbf16>, vector<27x110xbf16>, vector<12x110xf32> -> vector<12x110xf32>
    %157 = arith.addf %149, %156 : vector<12x110xf32>
    %c4_152 = arith.constant 4 : index
    %c0_153 = arith.constant 0 : index
    %c0_154 = arith.constant 0 : index
    %158 = vector.load %arg2[%c4_152, %c0_153, %c0_154] : memref<6x110x110xbf16, #tpu.memory_space<vmem>>, vector<1x110x110xbf16>
    %159 = vector.shape_cast %158 : vector<1x110x110xbf16> to vector<110x110xbf16>
    %cst_155 = arith.constant dense<0.000000e+00> : vector<27x110xf32>
    %160 = tpu.matmul %122, %159, %cst_155 {dimension_numbers = #tpu.dot_dimension_numbers<[1], [0], [0], [1], [0, 0, 1, 1], [], []>} : vector<27x110xbf16>, vector<110x110xbf16>, vector<27x110xf32> -> vector<27x110xf32>
    %161 = arith.truncf %160 : vector<27x110xf32> to vector<27x110xbf16>
    %c5_156 = arith.constant 5 : index
    %c0_157 = arith.constant 0 : index
    %c0_158 = arith.constant 0 : index
    %162 = vector.load %arg7[%c5_156, %c0_157, %c0_158] : memref<7x12x27xbf16, #tpu.memory_space<vmem>>, vector<1x12x27xbf16>
    %163 = vector.shape_cast %162 : vector<1x12x27xbf16> to vector<12x27xbf16>
    %cst_159 = arith.constant dense<0.000000e+00> : vector<12x110xf32>
    %164 = tpu.matmul %163, %161, %cst_159 {dimension_numbers = #tpu.dot_dimension_numbers<[1], [0], [0], [1], [0, 0, 1, 1], [], []>} : vector<12x27xbf16>, vector<27x110xbf16>, vector<12x110xf32> -> vector<12x110xf32>
    %165 = arith.addf %157, %164 : vector<12x110xf32>
    %c5_160 = arith.constant 5 : index
    %c0_161 = arith.constant 0 : index
    %c0_162 = arith.constant 0 : index
    %166 = vector.load %arg2[%c5_160, %c0_161, %c0_162] : memref<6x110x110xbf16, #tpu.memory_space<vmem>>, vector<1x110x110xbf16>
    %167 = vector.shape_cast %166 : vector<1x110x110xbf16> to vector<110x110xbf16>
    %cst_163 = arith.constant dense<0.000000e+00> : vector<27x110xf32>
    %168 = tpu.matmul %122, %167, %cst_163 {dimension_numbers = #tpu.dot_dimension_numbers<[1], [0], [0], [1], [0, 0, 1, 1], [], []>} : vector<27x110xbf16>, vector<110x110xbf16>, vector<27x110xf32> -> vector<27x110xf32>
    %169 = arith.truncf %168 : vector<27x110xf32> to vector<27x110xbf16>
    %c6_164 = arith.constant 6 : index
    %c0_165 = arith.constant 0 : index
    %c0_166 = arith.constant 0 : index
    %170 = vector.load %arg7[%c6_164, %c0_165, %c0_166] : memref<7x12x27xbf16, #tpu.memory_space<vmem>>, vector<1x12x27xbf16>
    %171 = vector.shape_cast %170 : vector<1x12x27xbf16> to vector<12x27xbf16>
    %cst_167 = arith.constant dense<0.000000e+00> : vector<12x110xf32>
    %172 = tpu.matmul %171, %169, %cst_167 {dimension_numbers = #tpu.dot_dimension_numbers<[1], [0], [0], [1], [0, 0, 1, 1], [], []>} : vector<12x27xbf16>, vector<27x110xbf16>, vector<12x110xf32> -> vector<12x110xf32>
    %173 = arith.addf %165, %172 : vector<12x110xf32>
    %c0_168 = arith.constant 0 : index
    %c2_169 = arith.constant 2 : index
    %174 = vector.load %arg12[%c0_168, %c2_169] : memref<63x7xf32, #tpu.memory_space<vmem>>, vector<12x1xf32>
    %175 = vector.broadcast %174 : vector<12x1xf32> to vector<12x110xf32>
    %176 = arith.addf %173, %175 : vector<12x110xf32>
    %cst_170 = arith.constant 0.000000e+00 : f32
    %177 = vector.broadcast %cst_170 : f32 to vector<12x110xf32>
    %178 = arith.maximumf %176, %177 : vector<12x110xf32>
    %c27 = arith.constant 27 : index
    %c0_171 = arith.constant 0 : index
    %179 = vector.load %arg14[%c27, %c0_171] : memref<63x110xf32, #tpu.memory_space<vmem>>, vector<12x110xf32>
    tpu.vector_store %arg14[%c27, %c0_171], %178 {strides = array<i32>} : memref<63x110xf32, #tpu.memory_space<vmem>>, vector<12x110xf32>,
    %c0_172 = arith.constant 0 : index
    %c0_173 = arith.constant 0 : index
    %180 = vector.load %arg14[%c0_172, %c0_173] : memref<63x110xf32, #tpu.memory_space<vmem>>, vector<39x110xf32>
    %181 = arith.truncf %180 : vector<39x110xf32> to vector<39x110xbf16>
    %c0_174 = arith.constant 0 : index
    %c0_175 = arith.constant 0 : index
    %c0_176 = arith.constant 0 : index
    %182 = vector.load %arg8[%c0_174, %c0_175, %c0_176] : memref<7x12x39xbf16, #tpu.memory_space<vmem>>, vector<1x12x39xbf16>
    %183 = vector.shape_cast %182 : vector<1x12x39xbf16> to vector<12x39xbf16>
    %cst_177 = arith.constant dense<0.000000e+00> : vector<12x110xf32>
    %184 = tpu.matmul %183, %181, %cst_177 {dimension_numbers = #tpu.dot_dimension_numbers<[1], [0], [0], [1], [0, 0, 1, 1], [], []>} : vector<12x39xbf16>, vector<39x110xbf16>, vector<12x110xf32> -> vector<12x110xf32>
    %c0_178 = arith.constant 0 : index
    %c0_179 = arith.constant 0 : index
    %c0_180 = arith.constant 0 : index
    %185 = vector.load %arg2[%c0_178, %c0_179, %c0_180] : memref<6x110x110xbf16, #tpu.memory_space<vmem>>, vector<1x110x110xbf16>
    %186 = vector.shape_cast %185 : vector<1x110x110xbf16> to vector<110x110xbf16>
    %cst_181 = arith.constant dense<0.000000e+00> : vector<39x110xf32>
    %187 = tpu.matmul %181, %186, %cst_181 {dimension_numbers = #tpu.dot_dimension_numbers<[1], [0], [0], [1], [0, 0, 1, 1], [], []>} : vector<39x110xbf16>, vector<110x110xbf16>, vector<39x110xf32> -> vector<39x110xf32>
    %188 = arith.truncf %187 : vector<39x110xf32> to vector<39x110xbf16>
    %c1_182 = arith.constant 1 : index
    %c0_183 = arith.constant 0 : index
    %c0_184 = arith.constant 0 : index
    %189 = vector.load %arg8[%c1_182, %c0_183, %c0_184] : memref<7x12x39xbf16, #tpu.memory_space<vmem>>, vector<1x12x39xbf16>
    %190 = vector.shape_cast %189 : vector<1x12x39xbf16> to vector<12x39xbf16>
    %cst_185 = arith.constant dense<0.000000e+00> : vector<12x110xf32>
    %191 = tpu.matmul %190, %188, %cst_185 {dimension_numbers = #tpu.dot_dimension_numbers<[1], [0], [0], [1], [0, 0, 1, 1], [], []>} : vector<12x39xbf16>, vector<39x110xbf16>, vector<12x110xf32> -> vector<12x110xf32>
    %192 = arith.addf %184, %191 : vector<12x110xf32>
    %c1_186 = arith.constant 1 : index
    %c0_187 = arith.constant 0 : index
    %c0_188 = arith.constant 0 : index
    %193 = vector.load %arg2[%c1_186, %c0_187, %c0_188] : memref<6x110x110xbf16, #tpu.memory_space<vmem>>, vector<1x110x110xbf16>
    %194 = vector.shape_cast %193 : vector<1x110x110xbf16> to vector<110x110xbf16>
    %cst_189 = arith.constant dense<0.000000e+00> : vector<39x110xf32>
    %195 = tpu.matmul %181, %194, %cst_189 {dimension_numbers = #tpu.dot_dimension_numbers<[1], [0], [0], [1], [0, 0, 1, 1], [], []>} : vector<39x110xbf16>, vector<110x110xbf16>, vector<39x110xf32> -> vector<39x110xf32>
    %196 = arith.truncf %195 : vector<39x110xf32> to vector<39x110xbf16>
    %c2_190 = arith.constant 2 : index
    %c0_191 = arith.constant 0 : index
    %c0_192 = arith.constant 0 : index
    %197 = vector.load %arg8[%c2_190, %c0_191, %c0_192] : memref<7x12x39xbf16, #tpu.memory_space<vmem>>, vector<1x12x39xbf16>
    %198 = vector.shape_cast %197 : vector<1x12x39xbf16> to vector<12x39xbf16>
    %cst_193 = arith.constant dense<0.000000e+00> : vector<12x110xf32>
    %199 = tpu.matmul %198, %196, %cst_193 {dimension_numbers = #tpu.dot_dimension_numbers<[1], [0], [0], [1], [0, 0, 1, 1], [], []>} : vector<12x39xbf16>, vector<39x110xbf16>, vector<12x110xf32> -> vector<12x110xf32>
    %200 = arith.addf %192, %199 : vector<12x110xf32>
    %c2_194 = arith.constant 2 : index
    %c0_195 = arith.constant 0 : index
    %c0_196 = arith.constant 0 : index
    %201 = vector.load %arg2[%c2_194, %c0_195, %c0_196] : memref<6x110x110xbf16, #tpu.memory_space<vmem>>, vector<1x110x110xbf16>
    %202 = vector.shape_cast %201 : vector<1x110x110xbf16> to vector<110x110xbf16>
    %cst_197 = arith.constant dense<0.000000e+00> : vector<39x110xf32>
    %203 = tpu.matmul %181, %202, %cst_197 {dimension_numbers = #tpu.dot_dimension_numbers<[1], [0], [0], [1], [0, 0, 1, 1], [], []>} : vector<39x110xbf16>, vector<110x110xbf16>, vector<39x110xf32> -> vector<39x110xf32>
    %204 = arith.truncf %203 : vector<39x110xf32> to vector<39x110xbf16>
    %c3_198 = arith.constant 3 : index
    %c0_199 = arith.constant 0 : index
    %c0_200 = arith.constant 0 : index
    %205 = vector.load %arg8[%c3_198, %c0_199, %c0_200] : memref<7x12x39xbf16, #tpu.memory_space<vmem>>, vector<1x12x39xbf16>
    %206 = vector.shape_cast %205 : vector<1x12x39xbf16> to vector<12x39xbf16>
    %cst_201 = arith.constant dense<0.000000e+00> : vector<12x110xf32>
    %207 = tpu.matmul %206, %204, %cst_201 {dimension_numbers = #tpu.dot_dimension_numbers<[1], [0], [0], [1], [0, 0, 1, 1], [], []>} : vector<12x39xbf16>, vector<39x110xbf16>, vector<12x110xf32> -> vector<12x110xf32>
    %208 = arith.addf %200, %207 : vector<12x110xf32>
    %c3_202 = arith.constant 3 : index
    %c0_203 = arith.constant 0 : index
    %c0_204 = arith.constant 0 : index
    %209 = vector.load %arg2[%c3_202, %c0_203, %c0_204] : memref<6x110x110xbf16, #tpu.memory_space<vmem>>, vector<1x110x110xbf16>
    %210 = vector.shape_cast %209 : vector<1x110x110xbf16> to vector<110x110xbf16>
    %cst_205 = arith.constant dense<0.000000e+00> : vector<39x110xf32>
    %211 = tpu.matmul %181, %210, %cst_205 {dimension_numbers = #tpu.dot_dimension_numbers<[1], [0], [0], [1], [0, 0, 1, 1], [], []>} : vector<39x110xbf16>, vector<110x110xbf16>, vector<39x110xf32> -> vector<39x110xf32>
    %212 = arith.truncf %211 : vector<39x110xf32> to vector<39x110xbf16>
    %c4_206 = arith.constant 4 : index
    %c0_207 = arith.constant 0 : index
    %c0_208 = arith.constant 0 : index
    %213 = vector.load %arg8[%c4_206, %c0_207, %c0_208] : memref<7x12x39xbf16, #tpu.memory_space<vmem>>, vector<1x12x39xbf16>
    %214 = vector.shape_cast %213 : vector<1x12x39xbf16> to vector<12x39xbf16>
    %cst_209 = arith.constant dense<0.000000e+00> : vector<12x110xf32>
    %215 = tpu.matmul %214, %212, %cst_209 {dimension_numbers = #tpu.dot_dimension_numbers<[1], [0], [0], [1], [0, 0, 1, 1], [], []>} : vector<12x39xbf16>, vector<39x110xbf16>, vector<12x110xf32> -> vector<12x110xf32>
    %216 = arith.addf %208, %215 : vector<12x110xf32>
    %c4_210 = arith.constant 4 : index
    %c0_211 = arith.constant 0 : index
    %c0_212 = arith.constant 0 : index
    %217 = vector.load %arg2[%c4_210, %c0_211, %c0_212] : memref<6x110x110xbf16, #tpu.memory_space<vmem>>, vector<1x110x110xbf16>
    %218 = vector.shape_cast %217 : vector<1x110x110xbf16> to vector<110x110xbf16>
    %cst_213 = arith.constant dense<0.000000e+00> : vector<39x110xf32>
    %219 = tpu.matmul %181, %218, %cst_213 {dimension_numbers = #tpu.dot_dimension_numbers<[1], [0], [0], [1], [0, 0, 1, 1], [], []>} : vector<39x110xbf16>, vector<110x110xbf16>, vector<39x110xf32> -> vector<39x110xf32>
    %220 = arith.truncf %219 : vector<39x110xf32> to vector<39x110xbf16>
    %c5_214 = arith.constant 5 : index
    %c0_215 = arith.constant 0 : index
    %c0_216 = arith.constant 0 : index
    %221 = vector.load %arg8[%c5_214, %c0_215, %c0_216] : memref<7x12x39xbf16, #tpu.memory_space<vmem>>, vector<1x12x39xbf16>
    %222 = vector.shape_cast %221 : vector<1x12x39xbf16> to vector<12x39xbf16>
    %cst_217 = arith.constant dense<0.000000e+00> : vector<12x110xf32>
    %223 = tpu.matmul %222, %220, %cst_217 {dimension_numbers = #tpu.dot_dimension_numbers<[1], [0], [0], [1], [0, 0, 1, 1], [], []>} : vector<12x39xbf16>, vector<39x110xbf16>, vector<12x110xf32> -> vector<12x110xf32>
    %224 = arith.addf %216, %223 : vector<12x110xf32>
    %c5_218 = arith.constant 5 : index
    %c0_219 = arith.constant 0 : index
    %c0_220 = arith.constant 0 : index
    %225 = vector.load %arg2[%c5_218, %c0_219, %c0_220] : memref<6x110x110xbf16, #tpu.memory_space<vmem>>, vector<1x110x110xbf16>
    %226 = vector.shape_cast %225 : vector<1x110x110xbf16> to vector<110x110xbf16>
    %cst_221 = arith.constant dense<0.000000e+00> : vector<39x110xf32>
    %227 = tpu.matmul %181, %226, %cst_221 {dimension_numbers = #tpu.dot_dimension_numbers<[1], [0], [0], [1], [0, 0, 1, 1], [], []>} : vector<39x110xbf16>, vector<110x110xbf16>, vector<39x110xf32> -> vector<39x110xf32>
    %228 = arith.truncf %227 : vector<39x110xf32> to vector<39x110xbf16>
    %c6_222 = arith.constant 6 : index
    %c0_223 = arith.constant 0 : index
    %c0_224 = arith.constant 0 : index
    %229 = vector.load %arg8[%c6_222, %c0_223, %c0_224] : memref<7x12x39xbf16, #tpu.memory_space<vmem>>, vector<1x12x39xbf16>
    %230 = vector.shape_cast %229 : vector<1x12x39xbf16> to vector<12x39xbf16>
    %cst_225 = arith.constant dense<0.000000e+00> : vector<12x110xf32>
    %231 = tpu.matmul %230, %228, %cst_225 {dimension_numbers = #tpu.dot_dimension_numbers<[1], [0], [0], [1], [0, 0, 1, 1], [], []>} : vector<12x39xbf16>, vector<39x110xbf16>, vector<12x110xf32> -> vector<12x110xf32>
    %232 = arith.addf %224, %231 : vector<12x110xf32>
    %c0_226 = arith.constant 0 : index
    %c3_227 = arith.constant 3 : index
    %233 = vector.load %arg12[%c0_226, %c3_227] : memref<63x7xf32, #tpu.memory_space<vmem>>, vector<12x1xf32>
    %234 = vector.broadcast %233 : vector<12x1xf32> to vector<12x110xf32>
    %235 = arith.addf %232, %234 : vector<12x110xf32>
    %cst_228 = arith.constant 0.000000e+00 : f32
    %236 = vector.broadcast %cst_228 : f32 to vector<12x110xf32>
    %237 = arith.maximumf %235, %236 : vector<12x110xf32>
    %c39 = arith.constant 39 : index
    %c0_229 = arith.constant 0 : index
    %238 = vector.load %arg14[%c39, %c0_229] : memref<63x110xf32, #tpu.memory_space<vmem>>, vector<12x110xf32>
    tpu.vector_store %arg14[%c39, %c0_229], %237 {strides = array<i32>} : memref<63x110xf32, #tpu.memory_space<vmem>>, vector<12x110xf32>,
    %c0_230 = arith.constant 0 : index
    %c0_231 = arith.constant 0 : index
    %239 = vector.load %arg14[%c0_230, %c0_231] : memref<63x110xf32, #tpu.memory_space<vmem>>, vector<51x110xf32>
    %240 = arith.truncf %239 : vector<51x110xf32> to vector<51x110xbf16>
    %c0_232 = arith.constant 0 : index
    %c0_233 = arith.constant 0 : index
    %c0_234 = arith.constant 0 : index
    %241 = vector.load %arg9[%c0_232, %c0_233, %c0_234] : memref<7x12x51xbf16, #tpu.memory_space<vmem>>, vector<1x12x51xbf16>
    %242 = vector.shape_cast %241 : vector<1x12x51xbf16> to vector<12x51xbf16>
    %cst_235 = arith.constant dense<0.000000e+00> : vector<12x110xf32>
    %243 = tpu.matmul %242, %240, %cst_235 {dimension_numbers = #tpu.dot_dimension_numbers<[1], [0], [0], [1], [0, 0, 1, 1], [], []>} : vector<12x51xbf16>, vector<51x110xbf16>, vector<12x110xf32> -> vector<12x110xf32>
    %c0_236 = arith.constant 0 : index
    %c0_237 = arith.constant 0 : index
    %c0_238 = arith.constant 0 : index
    %244 = vector.load %arg2[%c0_236, %c0_237, %c0_238] : memref<6x110x110xbf16, #tpu.memory_space<vmem>>, vector<1x110x110xbf16>
    %245 = vector.shape_cast %244 : vector<1x110x110xbf16> to vector<110x110xbf16>
    %cst_239 = arith.constant dense<0.000000e+00> : vector<51x110xf32>
    %246 = tpu.matmul %240, %245, %cst_239 {dimension_numbers = #tpu.dot_dimension_numbers<[1], [0], [0], [1], [0, 0, 1, 1], [], []>} : vector<51x110xbf16>, vector<110x110xbf16>, vector<51x110xf32> -> vector<51x110xf32>
    %247 = arith.truncf %246 : vector<51x110xf32> to vector<51x110xbf16>
    %c1_240 = arith.constant 1 : index
    %c0_241 = arith.constant 0 : index
    %c0_242 = arith.constant 0 : index
    %248 = vector.load %arg9[%c1_240, %c0_241, %c0_242] : memref<7x12x51xbf16, #tpu.memory_space<vmem>>, vector<1x12x51xbf16>
    %249 = vector.shape_cast %248 : vector<1x12x51xbf16> to vector<12x51xbf16>
    %cst_243 = arith.constant dense<0.000000e+00> : vector<12x110xf32>
    %250 = tpu.matmul %249, %247, %cst_243 {dimension_numbers = #tpu.dot_dimension_numbers<[1], [0], [0], [1], [0, 0, 1, 1], [], []>} : vector<12x51xbf16>, vector<51x110xbf16>, vector<12x110xf32> -> vector<12x110xf32>
    %251 = arith.addf %243, %250 : vector<12x110xf32>
    %c1_244 = arith.constant 1 : index
    %c0_245 = arith.constant 0 : index
    %c0_246 = arith.constant 0 : index
    %252 = vector.load %arg2[%c1_244, %c0_245, %c0_246] : memref<6x110x110xbf16, #tpu.memory_space<vmem>>, vector<1x110x110xbf16>
    %253 = vector.shape_cast %252 : vector<1x110x110xbf16> to vector<110x110xbf16>
    %cst_247 = arith.constant dense<0.000000e+00> : vector<51x110xf32>
    %254 = tpu.matmul %240, %253, %cst_247 {dimension_numbers = #tpu.dot_dimension_numbers<[1], [0], [0], [1], [0, 0, 1, 1], [], []>} : vector<51x110xbf16>, vector<110x110xbf16>, vector<51x110xf32> -> vector<51x110xf32>
    %255 = arith.truncf %254 : vector<51x110xf32> to vector<51x110xbf16>
    %c2_248 = arith.constant 2 : index
    %c0_249 = arith.constant 0 : index
    %c0_250 = arith.constant 0 : index
    %256 = vector.load %arg9[%c2_248, %c0_249, %c0_250] : memref<7x12x51xbf16, #tpu.memory_space<vmem>>, vector<1x12x51xbf16>
    %257 = vector.shape_cast %256 : vector<1x12x51xbf16> to vector<12x51xbf16>
    %cst_251 = arith.constant dense<0.000000e+00> : vector<12x110xf32>
    %258 = tpu.matmul %257, %255, %cst_251 {dimension_numbers = #tpu.dot_dimension_numbers<[1], [0], [0], [1], [0, 0, 1, 1], [], []>} : vector<12x51xbf16>, vector<51x110xbf16>, vector<12x110xf32> -> vector<12x110xf32>
    %259 = arith.addf %251, %258 : vector<12x110xf32>
    %c2_252 = arith.constant 2 : index
    %c0_253 = arith.constant 0 : index
    %c0_254 = arith.constant 0 : index
    %260 = vector.load %arg2[%c2_252, %c0_253, %c0_254] : memref<6x110x110xbf16, #tpu.memory_space<vmem>>, vector<1x110x110xbf16>
    %261 = vector.shape_cast %260 : vector<1x110x110xbf16> to vector<110x110xbf16>
    %cst_255 = arith.constant dense<0.000000e+00> : vector<51x110xf32>
    %262 = tpu.matmul %240, %261, %cst_255 {dimension_numbers = #tpu.dot_dimension_numbers<[1], [0], [0], [1], [0, 0, 1, 1], [], []>} : vector<51x110xbf16>, vector<110x110xbf16>, vector<51x110xf32> -> vector<51x110xf32>
    %263 = arith.truncf %262 : vector<51x110xf32> to vector<51x110xbf16>
    %c3_256 = arith.constant 3 : index
    %c0_257 = arith.constant 0 : index
    %c0_258 = arith.constant 0 : index
    %264 = vector.load %arg9[%c3_256, %c0_257, %c0_258] : memref<7x12x51xbf16, #tpu.memory_space<vmem>>, vector<1x12x51xbf16>
    %265 = vector.shape_cast %264 : vector<1x12x51xbf16> to vector<12x51xbf16>
    %cst_259 = arith.constant dense<0.000000e+00> : vector<12x110xf32>
    %266 = tpu.matmul %265, %263, %cst_259 {dimension_numbers = #tpu.dot_dimension_numbers<[1], [0], [0], [1], [0, 0, 1, 1], [], []>} : vector<12x51xbf16>, vector<51x110xbf16>, vector<12x110xf32> -> vector<12x110xf32>
    %267 = arith.addf %259, %266 : vector<12x110xf32>
    %c3_260 = arith.constant 3 : index
    %c0_261 = arith.constant 0 : index
    %c0_262 = arith.constant 0 : index
    %268 = vector.load %arg2[%c3_260, %c0_261, %c0_262] : memref<6x110x110xbf16, #tpu.memory_space<vmem>>, vector<1x110x110xbf16>
    %269 = vector.shape_cast %268 : vector<1x110x110xbf16> to vector<110x110xbf16>
    %cst_263 = arith.constant dense<0.000000e+00> : vector<51x110xf32>
    %270 = tpu.matmul %240, %269, %cst_263 {dimension_numbers = #tpu.dot_dimension_numbers<[1], [0], [0], [1], [0, 0, 1, 1], [], []>} : vector<51x110xbf16>, vector<110x110xbf16>, vector<51x110xf32> -> vector<51x110xf32>
    %271 = arith.truncf %270 : vector<51x110xf32> to vector<51x110xbf16>
    %c4_264 = arith.constant 4 : index
    %c0_265 = arith.constant 0 : index
    %c0_266 = arith.constant 0 : index
    %272 = vector.load %arg9[%c4_264, %c0_265, %c0_266] : memref<7x12x51xbf16, #tpu.memory_space<vmem>>, vector<1x12x51xbf16>
    %273 = vector.shape_cast %272 : vector<1x12x51xbf16> to vector<12x51xbf16>
    %cst_267 = arith.constant dense<0.000000e+00> : vector<12x110xf32>
    %274 = tpu.matmul %273, %271, %cst_267 {dimension_numbers = #tpu.dot_dimension_numbers<[1], [0], [0], [1], [0, 0, 1, 1], [], []>} : vector<12x51xbf16>, vector<51x110xbf16>, vector<12x110xf32> -> vector<12x110xf32>
    %275 = arith.addf %267, %274 : vector<12x110xf32>
    %c4_268 = arith.constant 4 : index
    %c0_269 = arith.constant 0 : index
    %c0_270 = arith.constant 0 : index
    %276 = vector.load %arg2[%c4_268, %c0_269, %c0_270] : memref<6x110x110xbf16, #tpu.memory_space<vmem>>, vector<1x110x110xbf16>
    %277 = vector.shape_cast %276 : vector<1x110x110xbf16> to vector<110x110xbf16>
    %cst_271 = arith.constant dense<0.000000e+00> : vector<51x110xf32>
    %278 = tpu.matmul %240, %277, %cst_271 {dimension_numbers = #tpu.dot_dimension_numbers<[1], [0], [0], [1], [0, 0, 1, 1], [], []>} : vector<51x110xbf16>, vector<110x110xbf16>, vector<51x110xf32> -> vector<51x110xf32>
    %279 = arith.truncf %278 : vector<51x110xf32> to vector<51x110xbf16>
    %c5_272 = arith.constant 5 : index
    %c0_273 = arith.constant 0 : index
    %c0_274 = arith.constant 0 : index
    %280 = vector.load %arg9[%c5_272, %c0_273, %c0_274] : memref<7x12x51xbf16, #tpu.memory_space<vmem>>, vector<1x12x51xbf16>
    %281 = vector.shape_cast %280 : vector<1x12x51xbf16> to vector<12x51xbf16>
    %cst_275 = arith.constant dense<0.000000e+00> : vector<12x110xf32>
    %282 = tpu.matmul %281, %279, %cst_275 {dimension_numbers = #tpu.dot_dimension_numbers<[1], [0], [0], [1], [0, 0, 1, 1], [], []>} : vector<12x51xbf16>, vector<51x110xbf16>, vector<12x110xf32> -> vector<12x110xf32>
    %283 = arith.addf %275, %282 : vector<12x110xf32>
    %c5_276 = arith.constant 5 : index
    %c0_277 = arith.constant 0 : index
    %c0_278 = arith.constant 0 : index
    %284 = vector.load %arg2[%c5_276, %c0_277, %c0_278] : memref<6x110x110xbf16, #tpu.memory_space<vmem>>, vector<1x110x110xbf16>
    %285 = vector.shape_cast %284 : vector<1x110x110xbf16> to vector<110x110xbf16>
    %cst_279 = arith.constant dense<0.000000e+00> : vector<51x110xf32>
    %286 = tpu.matmul %240, %285, %cst_279 {dimension_numbers = #tpu.dot_dimension_numbers<[1], [0], [0], [1], [0, 0, 1, 1], [], []>} : vector<51x110xbf16>, vector<110x110xbf16>, vector<51x110xf32> -> vector<51x110xf32>
    %287 = arith.truncf %286 : vector<51x110xf32> to vector<51x110xbf16>
    %c6_280 = arith.constant 6 : index
    %c0_281 = arith.constant 0 : index
    %c0_282 = arith.constant 0 : index
    %288 = vector.load %arg9[%c6_280, %c0_281, %c0_282] : memref<7x12x51xbf16, #tpu.memory_space<vmem>>, vector<1x12x51xbf16>
    %289 = vector.shape_cast %288 : vector<1x12x51xbf16> to vector<12x51xbf16>
    %cst_283 = arith.constant dense<0.000000e+00> : vector<12x110xf32>
    %290 = tpu.matmul %289, %287, %cst_283 {dimension_numbers = #tpu.dot_dimension_numbers<[1], [0], [0], [1], [0, 0, 1, 1], [], []>} : vector<12x51xbf16>, vector<51x110xbf16>, vector<12x110xf32> -> vector<12x110xf32>
    %291 = arith.addf %283, %290 : vector<12x110xf32>
    %c0_284 = arith.constant 0 : index
    %c4_285 = arith.constant 4 : index
    %292 = vector.load %arg12[%c0_284, %c4_285] : memref<63x7xf32, #tpu.memory_space<vmem>>, vector<12x1xf32>
    %293 = vector.broadcast %292 : vector<12x1xf32> to vector<12x110xf32>
    %294 = arith.addf %291, %293 : vector<12x110xf32>
    %cst_286 = arith.constant 0.000000e+00 : f32
    %295 = vector.broadcast %cst_286 : f32 to vector<12x110xf32>
    %296 = arith.maximumf %294, %295 : vector<12x110xf32>
    %c51 = arith.constant 51 : index
    %c0_287 = arith.constant 0 : index
    %297 = vector.load %arg14[%c51, %c0_287] : memref<63x110xf32, #tpu.memory_space<vmem>>, vector<12x110xf32>
    tpu.vector_store %arg14[%c51, %c0_287], %296 {strides = array<i32>} : memref<63x110xf32, #tpu.memory_space<vmem>>, vector<12x110xf32>,
    %c0_288 = arith.constant 0 : index
    %c0_289 = arith.constant 0 : index
    %298 = vector.load %arg14[%c0_288, %c0_289] : memref<63x110xf32, #tpu.memory_space<vmem>>, vector<63x110xf32>
    %299 = arith.truncf %298 : vector<63x110xf32> to vector<63x110xbf16>
    %c0_290 = arith.constant 0 : index
    %c0_291 = arith.constant 0 : index
    %300 = vector.load %arg3[%c0_290, %c0_291] : memref<110x30xbf16, #tpu.memory_space<vmem>>, vector<110x30xbf16>
    %cst_292 = arith.constant dense<0.000000e+00> : vector<63x30xf32>
    %301 = tpu.matmul %299, %300, %cst_292 {dimension_numbers = #tpu.dot_dimension_numbers<[1], [0], [0], [1], [0, 0, 1, 1], [], []>} : vector<63x110xbf16>, vector<110x30xbf16>, vector<63x30xf32> -> vector<63x30xf32>
    %cst_293 = arith.constant dense<0.000000e+00> : vector<30xf32>
    %302 = vector.multi_reduction <add>, %301, %cst_293 [0] : vector<63x30xf32> to vector<30xf32>
    %303 = vector.shape_cast %302 : vector<30xf32> to vector<1x30xf32>
    %304 = vector.shape_cast %303 : vector<1x30xf32> to vector<1x30xf32>
    %305 = vector.broadcast %304 : vector<1x30xf32> to vector<63x30xf32>
    %306 = arith.truncf %305 : vector<63x30xf32> to vector<63x30xbf16>
    %c0_294 = arith.constant 0 : index
    %c0_295 = arith.constant 0 : index
    %c0_296 = arith.constant 0 : index
    %307 = vector.load %arg10[%c0_294, %c0_295, %c0_296] : memref<7x63x63xbf16, #tpu.memory_space<vmem>>, vector<1x63x63xbf16>
    %308 = vector.shape_cast %307 : vector<1x63x63xbf16> to vector<63x63xbf16>
    %cst_297 = arith.constant dense<0.000000e+00> : vector<63x30xf32>
    %309 = tpu.matmul %308, %306, %cst_297 {dimension_numbers = #tpu.dot_dimension_numbers<[1], [0], [0], [1], [0, 0, 1, 1], [], []>} : vector<63x63xbf16>, vector<63x30xbf16>, vector<63x30xf32> -> vector<63x30xf32>
    %c0_298 = arith.constant 0 : index
    %c0_299 = arith.constant 0 : index
    %c0_300 = arith.constant 0 : index
    %310 = vector.load %arg4[%c0_298, %c0_299, %c0_300] : memref<6x30x30xbf16, #tpu.memory_space<vmem>>, vector<1x30x30xbf16>
    %311 = vector.shape_cast %310 : vector<1x30x30xbf16> to vector<30x30xbf16>
    %cst_301 = arith.constant dense<0.000000e+00> : vector<63x30xf32>
    %312 = tpu.matmul %306, %311, %cst_301 {dimension_numbers = #tpu.dot_dimension_numbers<[1], [0], [0], [1], [0, 0, 1, 1], [], []>} : vector<63x30xbf16>, vector<30x30xbf16>, vector<63x30xf32> -> vector<63x30xf32>
    %313 = arith.truncf %312 : vector<63x30xf32> to vector<63x30xbf16>
    %c1_302 = arith.constant 1 : index
    %c0_303 = arith.constant 0 : index
    %c0_304 = arith.constant 0 : index
    %314 = vector.load %arg10[%c1_302, %c0_303, %c0_304] : memref<7x63x63xbf16, #tpu.memory_space<vmem>>, vector<1x63x63xbf16>
    %315 = vector.shape_cast %314 : vector<1x63x63xbf16> to vector<63x63xbf16>
    %cst_305 = arith.constant dense<0.000000e+00> : vector<63x30xf32>
    %316 = tpu.matmul %315, %313, %cst_305 {dimension_numbers = #tpu.dot_dimension_numbers<[1], [0], [0], [1], [0, 0, 1, 1], [], []>} : vector<63x63xbf16>, vector<63x30xbf16>, vector<63x30xf32> -> vector<63x30xf32>
    %317 = arith.addf %309, %316 : vector<63x30xf32>
    %c1_306 = arith.constant 1 : index
    %c0_307 = arith.constant 0 : index
    %c0_308 = arith.constant 0 : index
    %318 = vector.load %arg4[%c1_306, %c0_307, %c0_308] : memref<6x30x30xbf16, #tpu.memory_space<vmem>>, vector<1x30x30xbf16>
    %319 = vector.shape_cast %318 : vector<1x30x30xbf16> to vector<30x30xbf16>
    %cst_309 = arith.constant dense<0.000000e+00> : vector<63x30xf32>
    %320 = tpu.matmul %306, %319, %cst_309 {dimension_numbers = #tpu.dot_dimension_numbers<[1], [0], [0], [1], [0, 0, 1, 1], [], []>} : vector<63x30xbf16>, vector<30x30xbf16>, vector<63x30xf32> -> vector<63x30xf32>
    %321 = arith.truncf %320 : vector<63x30xf32> to vector<63x30xbf16>
    %c2_310 = arith.constant 2 : index
    %c0_311 = arith.constant 0 : index
    %c0_312 = arith.constant 0 : index
    %322 = vector.load %arg10[%c2_310, %c0_311, %c0_312] : memref<7x63x63xbf16, #tpu.memory_space<vmem>>, vector<1x63x63xbf16>
    %323 = vector.shape_cast %322 : vector<1x63x63xbf16> to vector<63x63xbf16>
    %cst_313 = arith.constant dense<0.000000e+00> : vector<63x30xf32>
    %324 = tpu.matmul %323, %321, %cst_313 {dimension_numbers = #tpu.dot_dimension_numbers<[1], [0], [0], [1], [0, 0, 1, 1], [], []>} : vector<63x63xbf16>, vector<63x30xbf16>, vector<63x30xf32> -> vector<63x30xf32>
    %325 = arith.addf %317, %324 : vector<63x30xf32>
    %c2_314 = arith.constant 2 : index
    %c0_315 = arith.constant 0 : index
    %c0_316 = arith.constant 0 : index
    %326 = vector.load %arg4[%c2_314, %c0_315, %c0_316] : memref<6x30x30xbf16, #tpu.memory_space<vmem>>, vector<1x30x30xbf16>
    %327 = vector.shape_cast %326 : vector<1x30x30xbf16> to vector<30x30xbf16>
    %cst_317 = arith.constant dense<0.000000e+00> : vector<63x30xf32>
    %328 = tpu.matmul %306, %327, %cst_317 {dimension_numbers = #tpu.dot_dimension_numbers<[1], [0], [0], [1], [0, 0, 1, 1], [], []>} : vector<63x30xbf16>, vector<30x30xbf16>, vector<63x30xf32> -> vector<63x30xf32>
    %329 = arith.truncf %328 : vector<63x30xf32> to vector<63x30xbf16>
    %c3_318 = arith.constant 3 : index
    %c0_319 = arith.constant 0 : index
    %c0_320 = arith.constant 0 : index
    %330 = vector.load %arg10[%c3_318, %c0_319, %c0_320] : memref<7x63x63xbf16, #tpu.memory_space<vmem>>, vector<1x63x63xbf16>
    %331 = vector.shape_cast %330 : vector<1x63x63xbf16> to vector<63x63xbf16>
    %cst_321 = arith.constant dense<0.000000e+00> : vector<63x30xf32>
    %332 = tpu.matmul %331, %329, %cst_321 {dimension_numbers = #tpu.dot_dimension_numbers<[1], [0], [0], [1], [0, 0, 1, 1], [], []>} : vector<63x63xbf16>, vector<63x30xbf16>, vector<63x30xf32> -> vector<63x30xf32>
    %333 = arith.addf %325, %332 : vector<63x30xf32>
    %c3_322 = arith.constant 3 : index
    %c0_323 = arith.constant 0 : index
    %c0_324 = arith.constant 0 : index
    %334 = vector.load %arg4[%c3_322, %c0_323, %c0_324] : memref<6x30x30xbf16, #tpu.memory_space<vmem>>, vector<1x30x30xbf16>
    %335 = vector.shape_cast %334 : vector<1x30x30xbf16> to vector<30x30xbf16>
    %cst_325 = arith.constant dense<0.000000e+00> : vector<63x30xf32>
    %336 = tpu.matmul %306, %335, %cst_325 {dimension_numbers = #tpu.dot_dimension_numbers<[1], [0], [0], [1], [0, 0, 1, 1], [], []>} : vector<63x30xbf16>, vector<30x30xbf16>, vector<63x30xf32> -> vector<63x30xf32>
    %337 = arith.truncf %336 : vector<63x30xf32> to vector<63x30xbf16>
    %c4_326 = arith.constant 4 : index
    %c0_327 = arith.constant 0 : index
    %c0_328 = arith.constant 0 : index
    %338 = vector.load %arg10[%c4_326, %c0_327, %c0_328] : memref<7x63x63xbf16, #tpu.memory_space<vmem>>, vector<1x63x63xbf16>
    %339 = vector.shape_cast %338 : vector<1x63x63xbf16> to vector<63x63xbf16>
    %cst_329 = arith.constant dense<0.000000e+00> : vector<63x30xf32>
    %340 = tpu.matmul %339, %337, %cst_329 {dimension_numbers = #tpu.dot_dimension_numbers<[1], [0], [0], [1], [0, 0, 1, 1], [], []>} : vector<63x63xbf16>, vector<63x30xbf16>, vector<63x30xf32> -> vector<63x30xf32>
    %341 = arith.addf %333, %340 : vector<63x30xf32>
    %c4_330 = arith.constant 4 : index
    %c0_331 = arith.constant 0 : index
    %c0_332 = arith.constant 0 : index
    %342 = vector.load %arg4[%c4_330, %c0_331, %c0_332] : memref<6x30x30xbf16, #tpu.memory_space<vmem>>, vector<1x30x30xbf16>
    %343 = vector.shape_cast %342 : vector<1x30x30xbf16> to vector<30x30xbf16>
    %cst_333 = arith.constant dense<0.000000e+00> : vector<63x30xf32>
    %344 = tpu.matmul %306, %343, %cst_333 {dimension_numbers = #tpu.dot_dimension_numbers<[1], [0], [0], [1], [0, 0, 1, 1], [], []>} : vector<63x30xbf16>, vector<30x30xbf16>, vector<63x30xf32> -> vector<63x30xf32>
    %345 = arith.truncf %344 : vector<63x30xf32> to vector<63x30xbf16>
    %c5_334 = arith.constant 5 : index
    %c0_335 = arith.constant 0 : index
    %c0_336 = arith.constant 0 : index
    %346 = vector.load %arg10[%c5_334, %c0_335, %c0_336] : memref<7x63x63xbf16, #tpu.memory_space<vmem>>, vector<1x63x63xbf16>
    %347 = vector.shape_cast %346 : vector<1x63x63xbf16> to vector<63x63xbf16>
    %cst_337 = arith.constant dense<0.000000e+00> : vector<63x30xf32>
    %348 = tpu.matmul %347, %345, %cst_337 {dimension_numbers = #tpu.dot_dimension_numbers<[1], [0], [0], [1], [0, 0, 1, 1], [], []>} : vector<63x63xbf16>, vector<63x30xbf16>, vector<63x30xf32> -> vector<63x30xf32>
    %349 = arith.addf %341, %348 : vector<63x30xf32>
    %c5_338 = arith.constant 5 : index
    %c0_339 = arith.constant 0 : index
    %c0_340 = arith.constant 0 : index
    %350 = vector.load %arg4[%c5_338, %c0_339, %c0_340] : memref<6x30x30xbf16, #tpu.memory_space<vmem>>, vector<1x30x30xbf16>
    %351 = vector.shape_cast %350 : vector<1x30x30xbf16> to vector<30x30xbf16>
    %cst_341 = arith.constant dense<0.000000e+00> : vector<63x30xf32>
    %352 = tpu.matmul %306, %351, %cst_341 {dimension_numbers = #tpu.dot_dimension_numbers<[1], [0], [0], [1], [0, 0, 1, 1], [], []>} : vector<63x30xbf16>, vector<30x30xbf16>, vector<63x30xf32> -> vector<63x30xf32>
    %353 = arith.truncf %352 : vector<63x30xf32> to vector<63x30xbf16>
    %c6_342 = arith.constant 6 : index
    %c0_343 = arith.constant 0 : index
    %c0_344 = arith.constant 0 : index
    %354 = vector.load %arg10[%c6_342, %c0_343, %c0_344] : memref<7x63x63xbf16, #tpu.memory_space<vmem>>, vector<1x63x63xbf16>
    %355 = vector.shape_cast %354 : vector<1x63x63xbf16> to vector<63x63xbf16>
    %cst_345 = arith.constant dense<0.000000e+00> : vector<63x30xf32>
    %356 = tpu.matmul %355, %353, %cst_345 {dimension_numbers = #tpu.dot_dimension_numbers<[1], [0], [0], [1], [0, 0, 1, 1], [], []>} : vector<63x63xbf16>, vector<63x30xbf16>, vector<63x30xf32> -> vector<63x30xf32>
    %357 = arith.addf %349, %356 : vector<63x30xf32>
    %c0_346 = arith.constant 0 : index
    %c5_347 = arith.constant 5 : index
    %358 = vector.load %arg12[%c0_346, %c5_347] : memref<63x7xf32, #tpu.memory_space<vmem>>, vector<63x1xf32>
    %359 = vector.broadcast %358 : vector<63x1xf32> to vector<63x30xf32>
    %360 = arith.addf %357, %359 : vector<63x30xf32>
    %cst_348 = arith.constant 0.000000e+00 : f32
    %361 = vector.broadcast %cst_348 : f32 to vector<63x30xf32>
    %362 = arith.maximumf %360, %361 : vector<63x30xf32>
    %363 = arith.truncf %362 : vector<63x30xf32> to vector<63x30xbf16>
    %c0_349 = arith.constant 0 : index
    %c0_350 = arith.constant 0 : index
    %c0_351 = arith.constant 0 : index
    %364 = vector.load %arg11[%c0_349, %c0_350, %c0_351] : memref<7x63x63xbf16, #tpu.memory_space<vmem>>, vector<1x63x63xbf16>
    %365 = vector.shape_cast %364 : vector<1x63x63xbf16> to vector<63x63xbf16>
    %cst_352 = arith.constant dense<0.000000e+00> : vector<63x30xf32>
    %366 = tpu.matmul %365, %363, %cst_352 {dimension_numbers = #tpu.dot_dimension_numbers<[1], [0], [0], [1], [0, 0, 1, 1], [], []>} : vector<63x63xbf16>, vector<63x30xbf16>, vector<63x30xf32> -> vector<63x30xf32>
    %c0_353 = arith.constant 0 : index
    %c0_354 = arith.constant 0 : index
    %c0_355 = arith.constant 0 : index
    %367 = vector.load %arg4[%c0_353, %c0_354, %c0_355] : memref<6x30x30xbf16, #tpu.memory_space<vmem>>, vector<1x30x30xbf16>
    %368 = vector.shape_cast %367 : vector<1x30x30xbf16> to vector<30x30xbf16>
    %cst_356 = arith.constant dense<0.000000e+00> : vector<63x30xf32>
    %369 = tpu.matmul %363, %368, %cst_356 {dimension_numbers = #tpu.dot_dimension_numbers<[1], [0], [0], [1], [0, 0, 1, 1], [], []>} : vector<63x30xbf16>, vector<30x30xbf16>, vector<63x30xf32> -> vector<63x30xf32>
    %370 = arith.truncf %369 : vector<63x30xf32> to vector<63x30xbf16>
    %c1_357 = arith.constant 1 : index
    %c0_358 = arith.constant 0 : index
    %c0_359 = arith.constant 0 : index
    %371 = vector.load %arg11[%c1_357, %c0_358, %c0_359] : memref<7x63x63xbf16, #tpu.memory_space<vmem>>, vector<1x63x63xbf16>
    %372 = vector.shape_cast %371 : vector<1x63x63xbf16> to vector<63x63xbf16>
    %cst_360 = arith.constant dense<0.000000e+00> : vector<63x30xf32>
    %373 = tpu.matmul %372, %370, %cst_360 {dimension_numbers = #tpu.dot_dimension_numbers<[1], [0], [0], [1], [0, 0, 1, 1], [], []>} : vector<63x63xbf16>, vector<63x30xbf16>, vector<63x30xf32> -> vector<63x30xf32>
    %374 = arith.addf %366, %373 : vector<63x30xf32>
    %c1_361 = arith.constant 1 : index
    %c0_362 = arith.constant 0 : index
    %c0_363 = arith.constant 0 : index
    %375 = vector.load %arg4[%c1_361, %c0_362, %c0_363] : memref<6x30x30xbf16, #tpu.memory_space<vmem>>, vector<1x30x30xbf16>
    %376 = vector.shape_cast %375 : vector<1x30x30xbf16> to vector<30x30xbf16>
    %cst_364 = arith.constant dense<0.000000e+00> : vector<63x30xf32>
    %377 = tpu.matmul %363, %376, %cst_364 {dimension_numbers = #tpu.dot_dimension_numbers<[1], [0], [0], [1], [0, 0, 1, 1], [], []>} : vector<63x30xbf16>, vector<30x30xbf16>, vector<63x30xf32> -> vector<63x30xf32>
    %378 = arith.truncf %377 : vector<63x30xf32> to vector<63x30xbf16>
    %c2_365 = arith.constant 2 : index
    %c0_366 = arith.constant 0 : index
    %c0_367 = arith.constant 0 : index
    %379 = vector.load %arg11[%c2_365, %c0_366, %c0_367] : memref<7x63x63xbf16, #tpu.memory_space<vmem>>, vector<1x63x63xbf16>
    %380 = vector.shape_cast %379 : vector<1x63x63xbf16> to vector<63x63xbf16>
    %cst_368 = arith.constant dense<0.000000e+00> : vector<63x30xf32>
    %381 = tpu.matmul %380, %378, %cst_368 {dimension_numbers = #tpu.dot_dimension_numbers<[1], [0], [0], [1], [0, 0, 1, 1], [], []>} : vector<63x63xbf16>, vector<63x30xbf16>, vector<63x30xf32> -> vector<63x30xf32>
    %382 = arith.addf %374, %381 : vector<63x30xf32>
    %c2_369 = arith.constant 2 : index
    %c0_370 = arith.constant 0 : index
    %c0_371 = arith.constant 0 : index
    %383 = vector.load %arg4[%c2_369, %c0_370, %c0_371] : memref<6x30x30xbf16, #tpu.memory_space<vmem>>, vector<1x30x30xbf16>
    %384 = vector.shape_cast %383 : vector<1x30x30xbf16> to vector<30x30xbf16>
    %cst_372 = arith.constant dense<0.000000e+00> : vector<63x30xf32>
    %385 = tpu.matmul %363, %384, %cst_372 {dimension_numbers = #tpu.dot_dimension_numbers<[1], [0], [0], [1], [0, 0, 1, 1], [], []>} : vector<63x30xbf16>, vector<30x30xbf16>, vector<63x30xf32> -> vector<63x30xf32>
    %386 = arith.truncf %385 : vector<63x30xf32> to vector<63x30xbf16>
    %c3_373 = arith.constant 3 : index
    %c0_374 = arith.constant 0 : index
    %c0_375 = arith.constant 0 : index
    %387 = vector.load %arg11[%c3_373, %c0_374, %c0_375] : memref<7x63x63xbf16, #tpu.memory_space<vmem>>, vector<1x63x63xbf16>
    %388 = vector.shape_cast %387 : vector<1x63x63xbf16> to vector<63x63xbf16>
    %cst_376 = arith.constant dense<0.000000e+00> : vector<63x30xf32>
    %389 = tpu.matmul %388, %386, %cst_376 {dimension_numbers = #tpu.dot_dimension_numbers<[1], [0], [0], [1], [0, 0, 1, 1], [], []>} : vector<63x63xbf16>, vector<63x30xbf16>, vector<63x30xf32> -> vector<63x30xf32>
    %390 = arith.addf %382, %389 : vector<63x30xf32>
    %c3_377 = arith.constant 3 : index
    %c0_378 = arith.constant 0 : index
    %c0_379 = arith.constant 0 : index
    %391 = vector.load %arg4[%c3_377, %c0_378, %c0_379] : memref<6x30x30xbf16, #tpu.memory_space<vmem>>, vector<1x30x30xbf16>
    %392 = vector.shape_cast %391 : vector<1x30x30xbf16> to vector<30x30xbf16>
    %cst_380 = arith.constant dense<0.000000e+00> : vector<63x30xf32>
    %393 = tpu.matmul %363, %392, %cst_380 {dimension_numbers = #tpu.dot_dimension_numbers<[1], [0], [0], [1], [0, 0, 1, 1], [], []>} : vector<63x30xbf16>, vector<30x30xbf16>, vector<63x30xf32> -> vector<63x30xf32>
    %394 = arith.truncf %393 : vector<63x30xf32> to vector<63x30xbf16>
    %c4_381 = arith.constant 4 : index
    %c0_382 = arith.constant 0 : index
    %c0_383 = arith.constant 0 : index
    %395 = vector.load %arg11[%c4_381, %c0_382, %c0_383] : memref<7x63x63xbf16, #tpu.memory_space<vmem>>, vector<1x63x63xbf16>
    %396 = vector.shape_cast %395 : vector<1x63x63xbf16> to vector<63x63xbf16>
    %cst_384 = arith.constant dense<0.000000e+00> : vector<63x30xf32>
    %397 = tpu.matmul %396, %394, %cst_384 {dimension_numbers = #tpu.dot_dimension_numbers<[1], [0], [0], [1], [0, 0, 1, 1], [], []>} : vector<63x63xbf16>, vector<63x30xbf16>, vector<63x30xf32> -> vector<63x30xf32>
    %398 = arith.addf %390, %397 : vector<63x30xf32>
    %c4_385 = arith.constant 4 : index
    %c0_386 = arith.constant 0 : index
    %c0_387 = arith.constant 0 : index
    %399 = vector.load %arg4[%c4_385, %c0_386, %c0_387] : memref<6x30x30xbf16, #tpu.memory_space<vmem>>, vector<1x30x30xbf16>
    %400 = vector.shape_cast %399 : vector<1x30x30xbf16> to vector<30x30xbf16>
    %cst_388 = arith.constant dense<0.000000e+00> : vector<63x30xf32>
    %401 = tpu.matmul %363, %400, %cst_388 {dimension_numbers = #tpu.dot_dimension_numbers<[1], [0], [0], [1], [0, 0, 1, 1], [], []>} : vector<63x30xbf16>, vector<30x30xbf16>, vector<63x30xf32> -> vector<63x30xf32>
    %402 = arith.truncf %401 : vector<63x30xf32> to vector<63x30xbf16>
    %c5_389 = arith.constant 5 : index
    %c0_390 = arith.constant 0 : index
    %c0_391 = arith.constant 0 : index
    %403 = vector.load %arg11[%c5_389, %c0_390, %c0_391] : memref<7x63x63xbf16, #tpu.memory_space<vmem>>, vector<1x63x63xbf16>
    %404 = vector.shape_cast %403 : vector<1x63x63xbf16> to vector<63x63xbf16>
    %cst_392 = arith.constant dense<0.000000e+00> : vector<63x30xf32>
    %405 = tpu.matmul %404, %402, %cst_392 {dimension_numbers = #tpu.dot_dimension_numbers<[1], [0], [0], [1], [0, 0, 1, 1], [], []>} : vector<63x63xbf16>, vector<63x30xbf16>, vector<63x30xf32> -> vector<63x30xf32>
    %406 = arith.addf %398, %405 : vector<63x30xf32>
    %c5_393 = arith.constant 5 : index
    %c0_394 = arith.constant 0 : index
    %c0_395 = arith.constant 0 : index
    %407 = vector.load %arg4[%c5_393, %c0_394, %c0_395] : memref<6x30x30xbf16, #tpu.memory_space<vmem>>, vector<1x30x30xbf16>
    %408 = vector.shape_cast %407 : vector<1x30x30xbf16> to vector<30x30xbf16>
    %cst_396 = arith.constant dense<0.000000e+00> : vector<63x30xf32>
    %409 = tpu.matmul %363, %408, %cst_396 {dimension_numbers = #tpu.dot_dimension_numbers<[1], [0], [0], [1], [0, 0, 1, 1], [], []>} : vector<63x30xbf16>, vector<30x30xbf16>, vector<63x30xf32> -> vector<63x30xf32>
    %410 = arith.truncf %409 : vector<63x30xf32> to vector<63x30xbf16>
    %c6_397 = arith.constant 6 : index
    %c0_398 = arith.constant 0 : index
    %c0_399 = arith.constant 0 : index
    %411 = vector.load %arg11[%c6_397, %c0_398, %c0_399] : memref<7x63x63xbf16, #tpu.memory_space<vmem>>, vector<1x63x63xbf16>
    %412 = vector.shape_cast %411 : vector<1x63x63xbf16> to vector<63x63xbf16>
    %cst_400 = arith.constant dense<0.000000e+00> : vector<63x30xf32>
    %413 = tpu.matmul %412, %410, %cst_400 {dimension_numbers = #tpu.dot_dimension_numbers<[1], [0], [0], [1], [0, 0, 1, 1], [], []>} : vector<63x63xbf16>, vector<63x30xbf16>, vector<63x30xf32> -> vector<63x30xf32>
    %414 = arith.addf %406, %413 : vector<63x30xf32>
    %c0_401 = arith.constant 0 : index
    %c6_402 = arith.constant 6 : index
    %415 = vector.load %arg12[%c0_401, %c6_402] : memref<63x7xf32, #tpu.memory_space<vmem>>, vector<63x1xf32>
    %416 = vector.broadcast %415 : vector<63x1xf32> to vector<63x30xf32>
    %417 = arith.addf %414, %416 : vector<63x30xf32>
    %cst_403 = arith.constant 0.000000e+00 : f32
    %418 = vector.broadcast %cst_403 : f32 to vector<63x30xf32>
    %419 = arith.maximumf %417, %418 : vector<63x30xf32>
    %c0_404 = arith.constant 0 : index
    %c0_405 = arith.constant 0 : index
    %c0_406 = arith.constant 0 : index
    %420 = vector.load %arg13[%c0_404, %c0_405, %c0_406] : memref<1x63x30xf32, #tpu.memory_space<vmem>>, vector<1x63x30xf32>
    %421 = vector.shape_cast %420 : vector<1x63x30xf32> to vector<63x30xf32>
    %422 = vector.shape_cast %419 : vector<63x30xf32> to vector<1x63x30xf32>
    tpu.vector_store %arg13[%c0_404, %c0_405, %c0_406], %422 {strides = array<i32>} : memref<1x63x30xf32, #tpu.memory_space<vmem>>, vector<1x63x30xf32>,
    return
  }
  func.func @transform_0(%arg0: i32) -> (i32, i32, i32) {
    %c0_i32 = arith.constant 0 : i32
    %c0_i32_0 = arith.constant 0 : i32
    %c0_i32_1 = arith.constant 0 : i32
    return %arg0, %c0_i32, %c0_i32_0 : i32, i32, i32
  }
  func.func @transform_1(%arg0: i32) -> (i32, i32, i32) {
    %c0_i32 = arith.constant 0 : i32
    %c0_i32_0 = arith.constant 0 : i32
    %c0_i32_1 = arith.constant 0 : i32
    %c0_i32_2 = arith.constant 0 : i32
    return %c0_i32, %c0_i32_0, %c0_i32_1 : i32, i32, i32
  }
  func.func @transform_2(%arg0: i32) -> (i32, i32) {
    %c0_i32 = arith.constant 0 : i32
    %c0_i32_0 = arith.constant 0 : i32
    %c0_i32_1 = arith.constant 0 : i32
    return %c0_i32, %c0_i32_0 : i32, i32
  }
  func.func @transform_3(%arg0: i32) -> (i32, i32, i32) {
    %c0_i32 = arith.constant 0 : i32
    %c0_i32_0 = arith.constant 0 : i32
    %c0_i32_1 = arith.constant 0 : i32
    %c0_i32_2 = arith.constant 0 : i32
    return %c0_i32, %c0_i32_0, %c0_i32_1 : i32, i32, i32
  }
  func.func @transform_4(%arg0: i32) -> (i32, i32, i32) {
    %c0_i32 = arith.constant 0 : i32
    %c0_i32_0 = arith.constant 0 : i32
    %c0_i32_1 = arith.constant 0 : i32
    %c0_i32_2 = arith.constant 0 : i32
    return %c0_i32, %c0_i32_0, %c0_i32_1 : i32, i32, i32
  }
  func.func @transform_5(%arg0: i32) -> (i32, i32, i32) {
    %c0_i32 = arith.constant 0 : i32
    %c0_i32_0 = arith.constant 0 : i32
    %c0_i32_1 = arith.constant 0 : i32
    %c0_i32_2 = arith.constant 0 : i32
    return %c0_i32, %c0_i32_0, %c0_i32_1 : i32, i32, i32
  }
  func.func @transform_6(%arg0: i32) -> (i32, i32, i32) {
    %c0_i32 = arith.constant 0 : i32
    %c0_i32_0 = arith.constant 0 : i32
    %c0_i32_1 = arith.constant 0 : i32
    %c0_i32_2 = arith.constant 0 : i32
    return %c0_i32, %c0_i32_0, %c0_i32_1 : i32, i32, i32
  }
  func.func @transform_7(%arg0: i32) -> (i32, i32, i32) {
    %c0_i32 = arith.constant 0 : i32
    %c0_i32_0 = arith.constant 0 : i32
    %c0_i32_1 = arith.constant 0 : i32
    %c0_i32_2 = arith.constant 0 : i32
    return %c0_i32, %c0_i32_0, %c0_i32_1 : i32, i32, i32
  }
  func.func @transform_8(%arg0: i32) -> (i32, i32, i32) {
    %c0_i32 = arith.constant 0 : i32
    %c0_i32_0 = arith.constant 0 : i32
    %c0_i32_1 = arith.constant 0 : i32
    %c0_i32_2 = arith.constant 0 : i32
    return %c0_i32, %c0_i32_0, %c0_i32_1 : i32, i32, i32
  }
  func.func @transform_9(%arg0: i32) -> (i32, i32, i32) {
    %c0_i32 = arith.constant 0 : i32
    %c0_i32_0 = arith.constant 0 : i32
    %c0_i32_1 = arith.constant 0 : i32
    %c0_i32_2 = arith.constant 0 : i32
    return %c0_i32, %c0_i32_0, %c0_i32_1 : i32, i32, i32
  }
  func.func @transform_10(%arg0: i32) -> (i32, i32, i32) {
    %c0_i32 = arith.constant 0 : i32
    %c0_i32_0 = arith.constant 0 : i32
    %c0_i32_1 = arith.constant 0 : i32
    %c0_i32_2 = arith.constant 0 : i32
    return %c0_i32, %c0_i32_0, %c0_i32_1 : i32, i32, i32
  }
  func.func @transform_11(%arg0: i32) -> (i32, i32) {
    %c0_i32 = arith.constant 0 : i32
    %c0_i32_0 = arith.constant 0 : i32
    %c0_i32_1 = arith.constant 0 : i32
    return %c0_i32, %c0_i32_0 : i32, i32
  }
  func.func @transform_12(%arg0: i32) -> (i32, i32, i32) {
    %c0_i32 = arith.constant 0 : i32
    %c0_i32_0 = arith.constant 0 : i32
    %c0_i32_1 = arith.constant 0 : i32
    return %arg0, %c0_i32, %c0_i32_0 : i32, i32, i32
  }
}

module attributes {stable_mosaic.version = 11 : i64} {
  func.func @mlp_head_kernel(%arg0: i32, %arg1: memref<8x1890xf32, #tpu.memory_space<vmem>>, %arg2: memref<1890x100xbf16, #tpu.memory_space<vmem>>, %arg3: memref<100x100xbf16, #tpu.memory_space<vmem>>, %arg4: memref<100x100xbf16, #tpu.memory_space<vmem>>, %arg5: memref<1x100xf32, #tpu.memory_space<vmem>>, %arg6: memref<4x100xf32, #tpu.memory_space<vmem>>, %arg7: memref<8x1xf32, #tpu.memory_space<vmem>>) attributes {dimension_semantics = [#tpu.dimension_semantics<parallel>], iteration_bounds = array<i64: 1>, scalar_prefetch = 0 : i64, scratch_operands = 0 : i64, tpu.core_type = #tpu.core_type<tc>, window_params = [{transform_indices = @transform_0, window_bounds = array<i64: 8, 1890>}, {pipeline_mode = #tpu.pipeline_mode<synchronous>, transform_indices = @transform_1, window_bounds = array<i64: 1890, 100>}, {pipeline_mode = #tpu.pipeline_mode<synchronous>, transform_indices = @transform_2, window_bounds = array<i64: 100, 100>}, {pipeline_mode = #tpu.pipeline_mode<synchronous>, transform_indices = @transform_3, window_bounds = array<i64: 100, 100>}, {pipeline_mode = #tpu.pipeline_mode<synchronous>, transform_indices = @transform_4, window_bounds = array<i64: 1, 100>}, {pipeline_mode = #tpu.pipeline_mode<synchronous>, transform_indices = @transform_5, window_bounds = array<i64: 4, 100>}, {transform_indices = @transform_6, window_bounds = array<i64: 8, 1>}]} {
    %c0 = arith.constant 0 : index
    %c0_0 = arith.constant 0 : index
    %0 = vector.load %arg1[%c0, %c0_0] : memref<8x1890xf32, #tpu.memory_space<vmem>>, vector<8x1890xf32>
    %1 = arith.truncf %0 : vector<8x1890xf32> to vector<8x1890xbf16>
    %c0_1 = arith.constant 0 : index
    %c0_2 = arith.constant 0 : index
    %2 = vector.load %arg2[%c0_1, %c0_2] : memref<1890x100xbf16, #tpu.memory_space<vmem>>, vector<1890x100xbf16>
    %cst = arith.constant dense<0.000000e+00> : vector<8x100xf32>
    %3 = tpu.matmul %1, %2, %cst {dimension_numbers = #tpu.dot_dimension_numbers<[1], [0], [0], [1], [0, 0, 1, 1], [], []>} : vector<8x1890xbf16>, vector<1890x100xbf16>, vector<8x100xf32> -> vector<8x100xf32>
    %c0_3 = arith.constant 0 : index
    %c0_4 = arith.constant 0 : index
    %4 = vector.load %arg6[%c0_3, %c0_4] : memref<4x100xf32, #tpu.memory_space<vmem>>, vector<1x100xf32>
    %5 = vector.broadcast %4 : vector<1x100xf32> to vector<8x100xf32>
    %6 = arith.addf %3, %5 : vector<8x100xf32>
    %cst_5 = arith.constant 0.000000e+00 : f32
    %7 = vector.broadcast %cst_5 : f32 to vector<8x100xf32>
    %8 = arith.cmpf ogt, %6, %7 : vector<8x100xf32>
    %cst_6 = arith.constant 0.000000e+00 : f32
    %9 = vector.broadcast %cst_6 : f32 to vector<8x100xf32>
    %10 = arith.minimumf %6, %9 : vector<8x100xf32>
    %11 = math.exp %10 : vector<8x100xf32>
    %cst_7 = arith.constant 1.000000e+00 : f32
    %12 = vector.broadcast %cst_7 : f32 to vector<8x100xf32>
    %13 = arith.subf %11, %12 : vector<8x100xf32>
    %cst_8 = arith.constant 1.67326319 : f32
    %14 = vector.broadcast %cst_8 : f32 to vector<8x100xf32>
    %15 = arith.mulf %14, %13 : vector<8x100xf32>
    %16 = arith.select %8, %6, %15 : vector<8x100xi1>, vector<8x100xf32>
    %cst_9 = arith.constant 1.05070102 : f32
    %17 = vector.broadcast %cst_9 : f32 to vector<8x100xf32>
    %18 = arith.mulf %17, %16 : vector<8x100xf32>
    %19 = arith.truncf %18 : vector<8x100xf32> to vector<8x100xbf16>
    %c0_10 = arith.constant 0 : index
    %c0_11 = arith.constant 0 : index
    %20 = vector.load %arg3[%c0_10, %c0_11] : memref<100x100xbf16, #tpu.memory_space<vmem>>, vector<100x100xbf16>
    %cst_12 = arith.constant dense<0.000000e+00> : vector<8x100xf32>
    %21 = tpu.matmul %19, %20, %cst_12 {dimension_numbers = #tpu.dot_dimension_numbers<[1], [0], [0], [1], [0, 0, 1, 1], [], []>} : vector<8x100xbf16>, vector<100x100xbf16>, vector<8x100xf32> -> vector<8x100xf32>
    %c1 = arith.constant 1 : index
    %c0_13 = arith.constant 0 : index
    %22 = vector.load %arg6[%c1, %c0_13] : memref<4x100xf32, #tpu.memory_space<vmem>>, vector<1x100xf32>
    %23 = vector.broadcast %22 : vector<1x100xf32> to vector<8x100xf32>
    %24 = arith.addf %21, %23 : vector<8x100xf32>
    %cst_14 = arith.constant 0.000000e+00 : f32
    %25 = vector.broadcast %cst_14 : f32 to vector<8x100xf32>
    %26 = arith.cmpf ogt, %24, %25 : vector<8x100xf32>
    %cst_15 = arith.constant 0.000000e+00 : f32
    %27 = vector.broadcast %cst_15 : f32 to vector<8x100xf32>
    %28 = arith.minimumf %24, %27 : vector<8x100xf32>
    %29 = math.exp %28 : vector<8x100xf32>
    %cst_16 = arith.constant 1.000000e+00 : f32
    %30 = vector.broadcast %cst_16 : f32 to vector<8x100xf32>
    %31 = arith.subf %29, %30 : vector<8x100xf32>
    %cst_17 = arith.constant 1.67326319 : f32
    %32 = vector.broadcast %cst_17 : f32 to vector<8x100xf32>
    %33 = arith.mulf %32, %31 : vector<8x100xf32>
    %34 = arith.select %26, %24, %33 : vector<8x100xi1>, vector<8x100xf32>
    %cst_18 = arith.constant 1.05070102 : f32
    %35 = vector.broadcast %cst_18 : f32 to vector<8x100xf32>
    %36 = arith.mulf %35, %34 : vector<8x100xf32>
    %37 = arith.truncf %36 : vector<8x100xf32> to vector<8x100xbf16>
    %c0_19 = arith.constant 0 : index
    %c0_20 = arith.constant 0 : index
    %38 = vector.load %arg4[%c0_19, %c0_20] : memref<100x100xbf16, #tpu.memory_space<vmem>>, vector<100x100xbf16>
    %cst_21 = arith.constant dense<0.000000e+00> : vector<8x100xf32>
    %39 = tpu.matmul %37, %38, %cst_21 {dimension_numbers = #tpu.dot_dimension_numbers<[1], [0], [0], [1], [0, 0, 1, 1], [], []>} : vector<8x100xbf16>, vector<100x100xbf16>, vector<8x100xf32> -> vector<8x100xf32>
    %c2 = arith.constant 2 : index
    %c0_22 = arith.constant 0 : index
    %40 = vector.load %arg6[%c2, %c0_22] : memref<4x100xf32, #tpu.memory_space<vmem>>, vector<1x100xf32>
    %41 = vector.broadcast %40 : vector<1x100xf32> to vector<8x100xf32>
    %42 = arith.addf %39, %41 : vector<8x100xf32>
    %cst_23 = arith.constant 0.000000e+00 : f32
    %43 = vector.broadcast %cst_23 : f32 to vector<8x100xf32>
    %44 = arith.cmpf ogt, %42, %43 : vector<8x100xf32>
    %cst_24 = arith.constant 0.000000e+00 : f32
    %45 = vector.broadcast %cst_24 : f32 to vector<8x100xf32>
    %46 = arith.minimumf %42, %45 : vector<8x100xf32>
    %47 = math.exp %46 : vector<8x100xf32>
    %cst_25 = arith.constant 1.000000e+00 : f32
    %48 = vector.broadcast %cst_25 : f32 to vector<8x100xf32>
    %49 = arith.subf %47, %48 : vector<8x100xf32>
    %cst_26 = arith.constant 1.67326319 : f32
    %50 = vector.broadcast %cst_26 : f32 to vector<8x100xf32>
    %51 = arith.mulf %50, %49 : vector<8x100xf32>
    %52 = arith.select %44, %42, %51 : vector<8x100xi1>, vector<8x100xf32>
    %cst_27 = arith.constant 1.05070102 : f32
    %53 = vector.broadcast %cst_27 : f32 to vector<8x100xf32>
    %54 = arith.mulf %53, %52 : vector<8x100xf32>
    %c0_28 = arith.constant 0 : index
    %c0_29 = arith.constant 0 : index
    %55 = vector.load %arg5[%c0_28, %c0_29] : memref<1x100xf32, #tpu.memory_space<vmem>>, vector<1x100xf32>
    %56 = vector.broadcast %55 : vector<1x100xf32> to vector<8x100xf32>
    %57 = arith.mulf %54, %56 : vector<8x100xf32>
    %cst_30 = arith.constant dense<0.000000e+00> : vector<8xf32>
    %58 = vector.multi_reduction <add>, %57, %cst_30 [1] : vector<8x100xf32> to vector<8xf32>
    %59 = vector.shape_cast %58 : vector<8xf32> to vector<8x1xf32>
    %c3 = arith.constant 3 : index
    %c0_31 = arith.constant 0 : index
    %60 = vector.load %arg6[%c3, %c0_31] : memref<4x100xf32, #tpu.memory_space<vmem>>, vector<1x1xf32>
    %61 = vector.broadcast %60 : vector<1x1xf32> to vector<8x1xf32>
    %62 = arith.addf %59, %61 : vector<8x1xf32>
    %c0_32 = arith.constant 0 : index
    %c0_33 = arith.constant 0 : index
    %63 = vector.load %arg7[%c0_32, %c0_33] : memref<8x1xf32, #tpu.memory_space<vmem>>, vector<8x1xf32>
    tpu.vector_store %arg7[%c0_32, %c0_33], %62 {strides = array<i32>} : memref<8x1xf32, #tpu.memory_space<vmem>>, vector<8x1xf32>,
    return
  }
  func.func @transform_0(%arg0: i32) -> (i32, i32) {
    %c0_i32 = arith.constant 0 : i32
    %c0_i32_0 = arith.constant 0 : i32
    return %arg0, %c0_i32 : i32, i32
  }
  func.func @transform_1(%arg0: i32) -> (i32, i32) {
    %c0_i32 = arith.constant 0 : i32
    %c0_i32_0 = arith.constant 0 : i32
    %c0_i32_1 = arith.constant 0 : i32
    return %c0_i32, %c0_i32_0 : i32, i32
  }
  func.func @transform_2(%arg0: i32) -> (i32, i32) {
    %c0_i32 = arith.constant 0 : i32
    %c0_i32_0 = arith.constant 0 : i32
    %c0_i32_1 = arith.constant 0 : i32
    return %c0_i32, %c0_i32_0 : i32, i32
  }
  func.func @transform_3(%arg0: i32) -> (i32, i32) {
    %c0_i32 = arith.constant 0 : i32
    %c0_i32_0 = arith.constant 0 : i32
    %c0_i32_1 = arith.constant 0 : i32
    return %c0_i32, %c0_i32_0 : i32, i32
  }
  func.func @transform_4(%arg0: i32) -> (i32, i32) {
    %c0_i32 = arith.constant 0 : i32
    %c0_i32_0 = arith.constant 0 : i32
    %c0_i32_1 = arith.constant 0 : i32
    return %c0_i32, %c0_i32_0 : i32, i32
  }
  func.func @transform_5(%arg0: i32) -> (i32, i32) {
    %c0_i32 = arith.constant 0 : i32
    %c0_i32_0 = arith.constant 0 : i32
    %c0_i32_1 = arith.constant 0 : i32
    return %c0_i32, %c0_i32_0 : i32, i32
  }
  func.func @transform_6(%arg0: i32) -> (i32, i32) {
    %c0_i32 = arith.constant 0 : i32
    %c0_i32_0 = arith.constant 0 : i32
    return %arg0, %c0_i32 : i32, i32
  }
}

</mosaic_0001>

<llo_original>
// kernel: model_x0_forward.3
$region0: #{model_x0_forward.3}
  #allocation0 [shape = 'u32[]', space=smem, size = 0x4, offset = 0x4, fixed_abs, tag = 'smem constant byte address 0x4 - core index']
  #allocation1 [shape = 'u32[72,128]{1,0:T(1,128)}', space=vmem, size = 0x9000, scoped, tag = 'internal scratch']
  %s0 = inlined_call_operand.vmem [shape: f32[8,1890], index: 0, kind: input, shape index: {}]
  %s1 = inlined_call_operand.vmem [shape: bf16[1890,100], index: 1, kind: input, shape index: {}]
  %s2 = inlined_call_operand.vmem [shape: bf16[100,100], index: 2, kind: input, shape index: {}]
  %s3 = inlined_call_operand.vmem [shape: bf16[100,100], index: 3, kind: input, shape index: {}]
  %s4 = inlined_call_operand.vmem [shape: f32[1,100], index: 4, kind: input, shape index: {}]
  %s5 = inlined_call_operand.vmem [shape: f32[4,100], index: 5, kind: input, shape index: {}]
  %s6 = inlined_call_operand.vmem [shape: f32[8,1], index: 6, kind: output, shape index: {}]
  %s7 = sld [smem:[#allocation0]]
  $region34: #{model_x0_forward.3} parent=0
    _
  %s9 = ssub.s32 1, %s7
  %s10 = scalar_select 0, %s9, %s7
  // Predicated region
  $region2: #{model_x0_forward.3} parent=0 // pred_check
    _
  $region3: #{model_x0_forward.3} parent=0 // pred_check_branch
    %12 = sbr.rel (0) target = $region5
  $region4: #{model_x0_forward.3} parent=0 // pred_region
    _
  $region5: #{model_x0_forward.3} parent=0 // pred_fallthru
    _
  // Predicated region
  $region6: #{model_x0_forward.3} parent=0 // pred_check
    _
  $region7: #{model_x0_forward.3} parent=0 // pred_check_branch
    %14 = sbr.rel (0) target = $region9
  $region8: #{model_x0_forward.3} parent=0 // pred_region
    _
  $region9: #{model_x0_forward.3} parent=0 // pred_fallthru
    _
  // Predicated region
  $region10: #{model_x0_forward.3} parent=0 // pred_check
    _
  $region11: #{model_x0_forward.3} parent=0 // pred_check_branch
    %16 = sbr.rel (0) target = $region13
  $region12: #{model_x0_forward.3} parent=0 // pred_region
    _
  $region13: #{model_x0_forward.3} parent=0 // pred_fallthru
    _
  // Predicated region
  $region14: #{model_x0_forward.3} parent=0 // pred_check
    _
  $region15: #{model_x0_forward.3} parent=0 // pred_check_branch
    %18 = sbr.rel (0) target = $region17
  $region16: #{model_x0_forward.3} parent=0 // pred_region
    _
  $region17: #{model_x0_forward.3} parent=0 // pred_fallthru
    _
  // Predicated region
  $region18: #{model_x0_forward.3} parent=0 // pred_check
    _
  $region19: #{model_x0_forward.3} parent=0 // pred_check_branch
    %20 = sbr.rel (0) target = $region21
  $region20: #{model_x0_forward.3} parent=0 // pred_region
    _
  $region21: #{model_x0_forward.3} parent=0 // pred_fallthru
    _
  // Predicated region
  $region22: #{model_x0_forward.3} parent=0 // pred_check
    _
  $region23: #{model_x0_forward.3} parent=0 // pred_check_branch
    %22 = sbr.rel (0) target = $region25
  $region24: #{model_x0_forward.3} parent=0 // pred_region
    _
  $region25: #{model_x0_forward.3} parent=0 // pred_fallthru
    _
  %v24 = vld [vmem:[%s0] sm:$0xff]
  %v25 = vld [vmem:[%s0 + $0x8] sm:$0xff]
  %v26 = vld [vmem:[%s0 + $0x10] sm:$0xff]
  %v27 = vld [vmem:[%s0 + $0x18] sm:$0xff]
  %v28 = vld [vmem:[%s0 + $0x20] sm:$0xff]
  %v29 = vld [vmem:[%s0 + $0x28] sm:$0xff]
  %v30 = vld [vmem:[%s0 + $0x30] sm:$0xff]
  %v31 = vld [vmem:[%s0 + $0x38] sm:$0xff]
  %v32 = vld [vmem:[%s0 + $0x40] sm:$0xff]
  %v33 = vld [vmem:[%s0 + $0x48] sm:$0xff]
  %v34 = vld [vmem:[%s0 + $0x50] sm:$0xff]
  %v35 = vld [vmem:[%s0 + $0x58] sm:$0xff]
  %v36 = vld [vmem:[%s0 + $0x60] sm:$0xff]
  %v37 = vld [vmem:[%s0 + $0x68] sm:$0xff]
  %v38 = vld [vmem:[%s0 + $0x70] sm:$0xff]
  %v39 = vpack.c.bf16 %v24, %v24
  %v40 = vpack.c.bf16 %v25, %v25
  %v41 = vpack.c.bf16 %v26, %v26
  %v42 = vpack.c.bf16 %v27, %v27
  %v43 = vpack.c.bf16 %v28, %v28
  %v44 = vpack.c.bf16 %v29, %v29
  %v45 = vpack.c.bf16 %v30, %v30
  %v46 = vpack.c.bf16 %v31, %v31
  %v47 = vpack.c.bf16 %v32, %v32
  %v48 = vpack.c.bf16 %v33, %v33
  %v49 = vpack.c.bf16 %v34, %v34
  %v50 = vpack.c.bf16 %v35, %v35
  %v51 = vpack.c.bf16 %v36, %v36
  %v52 = vpack.c.bf16 %v37, %v37
  %v53 = vpack.c.bf16 %v38, %v38
  %v54 = vld [vmem:[%s1] sm:$0xf]
  %v55 = vld [vmem:[%s1 + $0x4] sm:$0xf]
  %v56 = vld [vmem:[%s1 + $0x8] sm:$0xf]
  %v57 = vld [vmem:[%s1 + $0xc] sm:$0xf]
  %v58 = vld [vmem:[%s1 + $0x10] sm:$0xf]
  %v59 = vld [vmem:[%s1 + $0x14] sm:$0xf]
  %v60 = vld [vmem:[%s1 + $0x18] sm:$0xf]
  %v61 = vld [vmem:[%s1 + $0x1c] sm:$0xf]
  %v62 = vld [vmem:[%s1 + $0x20] sm:$0xf]
  %v63 = vld [vmem:[%s1 + $0x24] sm:$0xf]
  %v64 = vld [vmem:[%s1 + $0x28] sm:$0xf]
  %v65 = vld [vmem:[%s1 + $0x2c] sm:$0xf]
  %v66 = vld [vmem:[%s1 + $0x30] sm:$0xf]
  %v67 = vld [vmem:[%s1 + $0x34] sm:$0xf]
  %v68 = vld [vmem:[%s1 + $0x38] sm:$0xf]
  %v69 = vld [vmem:[%s1 + $0x3c] sm:$0xf]
  %v70 = vld [vmem:[%s1 + $0x40] sm:$0xf]
  %v71 = vld [vmem:[%s1 + $0x44] sm:$0xf]
  %v72 = vld [vmem:[%s1 + $0x48] sm:$0xf]
  %v73 = vld [vmem:[%s1 + $0x4c] sm:$0xf]
  %v74 = vld [vmem:[%s1 + $0x50] sm:$0xf]
  %v75 = vld [vmem:[%s1 + $0x54] sm:$0xf]
  %v76 = vld [vmem:[%s1 + $0x58] sm:$0xf]
  %v77 = vld [vmem:[%s1 + $0x5c] sm:$0xf]
  %v78 = vld [vmem:[%s1 + $0x60] sm:$0xf]
  %v79 = vld [vmem:[%s1 + $0x64] sm:$0xf]
  %v80 = vld [vmem:[%s1 + $0x68] sm:$0xf]
  %v81 = vld [vmem:[%s1 + $0x6c] sm:$0xf]
  %v82 = vld [vmem:[%s1 + $0x70] sm:$0xf]
  %v83 = vld [vmem:[%s1 + $0x74] sm:$0xf]
  %v84 = vld [vmem:[%s1 + $0x78] sm:$0xf]
  %v85 = vld [vmem:[%s1 + $0x7c] sm:$0xf]
  %v86 = vld [vmem:[%s1 + $0x80] sm:$0xf]
  %v87 = vld [vmem:[%s1 + $0x84] sm:$0xf]
  %v88 = vld [vmem:[%s1 + $0x88] sm:$0xf]
  %v89 = vld [vmem:[%s1 + $0x8c] sm:$0xf]
  %v90 = vld [vmem:[%s1 + $0x90] sm:$0xf]
  %v91 = vld [vmem:[%s1 + $0x94] sm:$0xf]
  %v92 = vld [vmem:[%s1 + $0x98] sm:$0xf]
  %v93 = vld [vmem:[%s1 + $0x9c] sm:$0xf]
  %v94 = vld [vmem:[%s1 + $0xa0] sm:$0xf]
  %v95 = vld [vmem:[%s1 + $0xa4] sm:$0xf]
  %v96 = vld [vmem:[%s1 + $0xa8] sm:$0xf]
  %v97 = vld [vmem:[%s1 + $0xac] sm:$0xf]
  %v98 = vld [vmem:[%s1 + $0xb0] sm:$0xf]
  %v99 = vld [vmem:[%s1 + $0xb4] sm:$0xf]
  %v100 = vld [vmem:[%s1 + $0xb8] sm:$0xf]
  %v101 = vld [vmem:[%s1 + $0xbc] sm:$0xf]
  %v102 = vld [vmem:[%s1 + $0xc0] sm:$0xf]
  %v103 = vld [vmem:[%s1 + $0xc4] sm:$0xf]
  %v104 = vld [vmem:[%s1 + $0xc8] sm:$0xf]
  %v105 = vld [vmem:[%s1 + $0xcc] sm:$0xf]
  %v106 = vld [vmem:[%s1 + $0xd0] sm:$0xf]
  %v107 = vld [vmem:[%s1 + $0xd4] sm:$0xf]
  %v108 = vld [vmem:[%s1 + $0xd8] sm:$0xf]
  %v109 = vld [vmem:[%s1 + $0xdc] sm:$0xf]
  %v110 = vld [vmem:[%s1 + $0xe0] sm:$0xf]
  %v111 = vld [vmem:[%s1 + $0xe4] sm:$0xf]
  %v112 = vld [vmem:[%s1 + $0xe8] sm:$0xf]
  %v113 = vld [vmem:[%s1 + $0xec] sm:$0xf]
  %v114 = vld [vmem:[%s1 + $0xf0] sm:$0xf]
  %v115 = vld [vmem:[%s1 + $0xf4] sm:$0xf]
  %v116 = vld [vmem:[%s1 + $0xf8] sm:$0xf]
  %v117 = vld [vmem:[%s1 + $0xfc] sm:$0xf]
  %v118 = vld [vmem:[%s1 + $0x100] sm:$0xf]
  %v119 = vld [vmem:[%s1 + $0x104] sm:$0xf]
  %v120 = vld [vmem:[%s1 + $0x108] sm:$0xf]
  %v121 = vld [vmem:[%s1 + $0x10c] sm:$0xf]
  %v122 = vld [vmem:[%s1 + $0x110] sm:$0xf]
  %v123 = vld [vmem:[%s1 + $0x114] sm:$0xf]
  %v124 = vld [vmem:[%s1 + $0x118] sm:$0xf]
  %v125 = vld [vmem:[%s1 + $0x11c] sm:$0xf]
  %v126 = vld [vmem:[%s1 + $0x120] sm:$0xf]
  %v127 = vld [vmem:[%s1 + $0x124] sm:$0xf]
  %v128 = vld [vmem:[%s1 + $0x128] sm:$0xf]
  %v129 = vld [vmem:[%s1 + $0x12c] sm:$0xf]
  %v130 = vld [vmem:[%s1 + $0x130] sm:$0xf]
  %v131 = vld [vmem:[%s1 + $0x134] sm:$0xf]
  %v132 = vld [vmem:[%s1 + $0x138] sm:$0xf]
  %v133 = vld [vmem:[%s1 + $0x13c] sm:$0xf]
  %v134 = vld [vmem:[%s1 + $0x140] sm:$0xf]
  %v135 = vld [vmem:[%s1 + $0x144] sm:$0xf]
  %v136 = vld [vmem:[%s1 + $0x148] sm:$0xf]
  %v137 = vld [vmem:[%s1 + $0x14c] sm:$0xf]
  %v138 = vld [vmem:[%s1 + $0x150] sm:$0xf]
  %v139 = vld [vmem:[%s1 + $0x154] sm:$0xf]
  %v140 = vld [vmem:[%s1 + $0x158] sm:$0xf]
  %v141 = vld [vmem:[%s1 + $0x15c] sm:$0xf]
  %v142 = vld [vmem:[%s1 + $0x160] sm:$0xf]
  %v143 = vld [vmem:[%s1 + $0x164] sm:$0xf]
  %v144 = vld [vmem:[%s1 + $0x168] sm:$0xf]
  %v145 = vld [vmem:[%s1 + $0x16c] sm:$0xf]
  %v146 = vld [vmem:[%s1 + $0x170] sm:$0xf]
  %v147 = vld [vmem:[%s1 + $0x174] sm:$0xf]
  %v148 = vld [vmem:[%s1 + $0x178] sm:$0xf]
  %v149 = vld [vmem:[%s1 + $0x17c] sm:$0xf]
  %v150 = vld [vmem:[%s1 + $0x180] sm:$0xf]
  %v151 = vld [vmem:[%s1 + $0x184] sm:$0xf]
  %v152 = vld [vmem:[%s1 + $0x188] sm:$0xf]
  %v153 = vld [vmem:[%s1 + $0x18c] sm:$0xf]
  %v154 = vld [vmem:[%s1 + $0x190] sm:$0xf]
  %v155 = vld [vmem:[%s1 + $0x194] sm:$0xf]
  %v156 = vld [vmem:[%s1 + $0x198] sm:$0xf]
  %v157 = vld [vmem:[%s1 + $0x19c] sm:$0xf]
  %v158 = vld [vmem:[%s1 + $0x1a0] sm:$0xf]
  %v159 = vld [vmem:[%s1 + $0x1a4] sm:$0xf]
  %v160 = vld [vmem:[%s1 + $0x1a8] sm:$0xf]
  %v161 = vld [vmem:[%s1 + $0x1ac] sm:$0xf]
  %v162 = vld [vmem:[%s1 + $0x1b0] sm:$0xf]
  %v163 = vld [vmem:[%s1 + $0x1b4] sm:$0xf]
  %v164 = vld [vmem:[%s1 + $0x1b8] sm:$0xf]
  %v165 = vld [vmem:[%s1 + $0x1bc] sm:$0xf]
  %v166 = vld [vmem:[%s1 + $0x1c0] sm:$0xf]
  %v167 = vld [vmem:[%s1 + $0x1c4] sm:$0xf]
  %v168 = vld [vmem:[%s1 + $0x1c8] sm:$0xf]
  %v169 = vld [vmem:[%s1 + $0x1cc] sm:$0xf]
  %v170 = vld [vmem:[%s1 + $0x1d0] sm:$0xf]
  %v171 = vld [vmem:[%s1 + $0x1d4] sm:$0xf]
  %v172 = vld [vmem:[%s1 + $0x1d8] sm:$0xf]
  %v173 = vld [vmem:[%s1 + $0x1dc] sm:$0xf]
  %v174 = vld [vmem:[%s1 + $0x1e0] sm:$0xf]
  %v175 = vld [vmem:[%s1 + $0x1e4] sm:$0xf]
  %v176 = vld [vmem:[%s1 + $0x1e8] sm:$0xf]
  %v177 = vld [vmem:[%s1 + $0x1ec] sm:$0xf]
  %v178 = vld [vmem:[%s1 + $0x1f0] sm:$0xf]
  %v179 = vld [vmem:[%s1 + $0x1f4] sm:$0xf]
  %v180 = vld [vmem:[%s1 + $0x1f8] sm:$0xf]
  %v181 = vld [vmem:[%s1 + $0x1fc] sm:$0xf]
  %v182 = vld [vmem:[%s1 + $0x200] sm:$0xf]
  %v183 = vld [vmem:[%s1 + $0x204] sm:$0xf]
  %v184 = vld [vmem:[%s1 + $0x208] sm:$0xf]
  %v185 = vld [vmem:[%s1 + $0x20c] sm:$0xf]
  %v186 = vld [vmem:[%s1 + $0x210] sm:$0xf]
  %v187 = vld [vmem:[%s1 + $0x214] sm:$0xf]
  %v188 = vld [vmem:[%s1 + $0x218] sm:$0xf]
  %v189 = vld [vmem:[%s1 + $0x21c] sm:$0xf]
  %v190 = vld [vmem:[%s1 + $0x220] sm:$0xf]
  %v191 = vld [vmem:[%s1 + $0x224] sm:$0xf]
  %v192 = vld [vmem:[%s1 + $0x228] sm:$0xf]
  %v193 = vld [vmem:[%s1 + $0x22c] sm:$0xf]
  %v194 = vld [vmem:[%s1 + $0x230] sm:$0xf]
  %v195 = vld [vmem:[%s1 + $0x234] sm:$0xf]
  %v196 = vld [vmem:[%s1 + $0x238] sm:$0xf]
  %v197 = vld [vmem:[%s1 + $0x23c] sm:$0xf]
  %v198 = vld [vmem:[%s1 + $0x240] sm:$0xf]
  %v199 = vld [vmem:[%s1 + $0x244] sm:$0xf]
  %v200 = vld [vmem:[%s1 + $0x248] sm:$0xf]
  %v201 = vld [vmem:[%s1 + $0x24c] sm:$0xf]
  %v202 = vld [vmem:[%s1 + $0x250] sm:$0xf]
  %v203 = vld [vmem:[%s1 + $0x254] sm:$0xf]
  %v204 = vld [vmem:[%s1 + $0x258] sm:$0xf]
  %v205 = vld [vmem:[%s1 + $0x25c] sm:$0xf]
  %v206 = vld [vmem:[%s1 + $0x260] sm:$0xf]
  %v207 = vld [vmem:[%s1 + $0x264] sm:$0xf]
  %v208 = vld [vmem:[%s1 + $0x268] sm:$0xf]
  %v209 = vld [vmem:[%s1 + $0x26c] sm:$0xf]
  %v210 = vld [vmem:[%s1 + $0x270] sm:$0xf]
  %v211 = vld [vmem:[%s1 + $0x274] sm:$0xf]
  %v212 = vld [vmem:[%s1 + $0x278] sm:$0xf]
  %v213 = vld [vmem:[%s1 + $0x27c] sm:$0xf]
  %v214 = vld [vmem:[%s1 + $0x280] sm:$0xf]
  %v215 = vld [vmem:[%s1 + $0x284] sm:$0xf]
  %v216 = vld [vmem:[%s1 + $0x288] sm:$0xf]
  %v217 = vld [vmem:[%s1 + $0x28c] sm:$0xf]
  %v218 = vld [vmem:[%s1 + $0x290] sm:$0xf]
  %v219 = vld [vmem:[%s1 + $0x294] sm:$0xf]
  %v220 = vld [vmem:[%s1 + $0x298] sm:$0xf]
  %v221 = vld [vmem:[%s1 + $0x29c] sm:$0xf]
  %v222 = vld [vmem:[%s1 + $0x2a0] sm:$0xf]
  %v223 = vld [vmem:[%s1 + $0x2a4] sm:$0xf]
  %v224 = vld [vmem:[%s1 + $0x2a8] sm:$0xf]
  %v225 = vld [vmem:[%s1 + $0x2ac] sm:$0xf]
  %v226 = vld [vmem:[%s1 + $0x2b0] sm:$0xf]
  %v227 = vld [vmem:[%s1 + $0x2b4] sm:$0xf]
  %v228 = vld [vmem:[%s1 + $0x2b8] sm:$0xf]
  %v229 = vld [vmem:[%s1 + $0x2bc] sm:$0xf]
  %v230 = vld [vmem:[%s1 + $0x2c0] sm:$0xf]
  %v231 = vld [vmem:[%s1 + $0x2c4] sm:$0xf]
  %v232 = vld [vmem:[%s1 + $0x2c8] sm:$0xf]
  %v233 = vld [vmem:[%s1 + $0x2cc] sm:$0xf]
  %v234 = vld [vmem:[%s1 + $0x2d0] sm:$0xf]
  %v235 = vld [vmem:[%s1 + $0x2d4] sm:$0xf]
  %v236 = vld [vmem:[%s1 + $0x2d8] sm:$0xf]
  %v237 = vld [vmem:[%s1 + $0x2dc] sm:$0xf]
  %v238 = vld [vmem:[%s1 + $0x2e0] sm:$0xf]
  %v239 = vld [vmem:[%s1 + $0x2e4] sm:$0xf]
  %v240 = vld [vmem:[%s1 + $0x2e8] sm:$0xf]
  %v241 = vld [vmem:[%s1 + $0x2ec] sm:$0xf]
  %v242 = vld [vmem:[%s1 + $0x2f0] sm:$0xf]
  %v243 = vld [vmem:[%s1 + $0x2f4] sm:$0xf]
  %v244 = vld [vmem:[%s1 + $0x2f8] sm:$0xf]
  %v245 = vld [vmem:[%s1 + $0x2fc] sm:$0xf]
  %v246 = vld [vmem:[%s1 + $0x300] sm:$0xf]
  %v247 = vld [vmem:[%s1 + $0x304] sm:$0xf]
  %v248 = vld [vmem:[%s1 + $0x308] sm:$0xf]
  %v249 = vld [vmem:[%s1 + $0x30c] sm:$0xf]
  %v250 = vld [vmem:[%s1 + $0x310] sm:$0xf]
  %v251 = vld [vmem:[%s1 + $0x314] sm:$0xf]
  %v252 = vld [vmem:[%s1 + $0x318] sm:$0xf]
  %v253 = vld [vmem:[%s1 + $0x31c] sm:$0xf]
  %v254 = vld [vmem:[%s1 + $0x320] sm:$0xf]
  %v255 = vld [vmem:[%s1 + $0x324] sm:$0xf]
  %v256 = vld [vmem:[%s1 + $0x328] sm:$0xf]
  %v257 = vld [vmem:[%s1 + $0x32c] sm:$0xf]
  %v258 = vld [vmem:[%s1 + $0x330] sm:$0xf]
  %v259 = vld [vmem:[%s1 + $0x334] sm:$0xf]
  %v260 = vld [vmem:[%s1 + $0x338] sm:$0xf]
  %v261 = vld [vmem:[%s1 + $0x33c] sm:$0xf]
  %v262 = vld [vmem:[%s1 + $0x340] sm:$0xf]
  %v263 = vld [vmem:[%s1 + $0x344] sm:$0xf]
  %v264 = vld [vmem:[%s1 + $0x348] sm:$0xf]
  %v265 = vld [vmem:[%s1 + $0x34c] sm:$0xf]
  %v266 = vld [vmem:[%s1 + $0x350] sm:$0xf]
  %v267 = vld [vmem:[%s1 + $0x354] sm:$0xf]
  %v268 = vld [vmem:[%s1 + $0x358] sm:$0xf]
  %v269 = vld [vmem:[%s1 + $0x35c] sm:$0xf]
  %v270 = vld [vmem:[%s1 + $0x360] sm:$0xf]
  %v271 = vld [vmem:[%s1 + $0x364] sm:$0xf]
  %v272 = vld [vmem:[%s1 + $0x368] sm:$0xf]
  %v273 = vld [vmem:[%s1 + $0x36c] sm:$0xf]
  %v274 = vld [vmem:[%s1 + $0x370] sm:$0xf]
  %v275 = vld [vmem:[%s1 + $0x374] sm:$0xf]
  %v276 = vld [vmem:[%s1 + $0x378] sm:$0xf]
  %v277 = vld [vmem:[%s1 + $0x37c] sm:$0xf]
  %v278 = vld [vmem:[%s1 + $0x380] sm:$0xf]
  %v279 = vld [vmem:[%s1 + $0x384] sm:$0xf]
  %v280 = vld [vmem:[%s1 + $0x388] sm:$0xf]
  %v281 = vld [vmem:[%s1 + $0x38c] sm:$0xf]
  %v282 = vld [vmem:[%s1 + $0x390] sm:$0xf]
  %v283 = vld [vmem:[%s1 + $0x394] sm:$0xf]
  %v284 = vld [vmem:[%s1 + $0x398] sm:$0xf]
  %v285 = vld [vmem:[%s1 + $0x39c] sm:$0xf]
  %v286 = vld [vmem:[%s1 + $0x3a0] sm:$0xf]
  %v287 = vld [vmem:[%s1 + $0x3a4] sm:$0xf]
  %v288 = vld [vmem:[%s1 + $0x3a8] sm:$0xf]
  %v289 = vld [vmem:[%s1 + $0x3ac] sm:$0xf]
  %v290 = vld [vmem:[%s1 + $0x3b0] sm:$0x1]
  %v291 = vld [vmem:[%s5] sm:$0x1]
  %v292 = vperm.slane %v291, 0
  %v530 = vunpack.c.l.b16 %v54
  %v531 = vunpack.c.l.b16 %v55
  %v532 = vunpack.c.l.b16 %v56
  %v533 = vunpack.c.l.b16 %v57
  %v534 = vunpack.c.l.b16 %v58
  %v535 = vunpack.c.l.b16 %v59
  %v536 = vunpack.c.l.b16 %v60
  %v537 = vunpack.c.l.b16 %v61
  %v538 = vunpack.c.l.b16 %v62
  %v539 = vunpack.c.l.b16 %v63
  %v540 = vunpack.c.l.b16 %v64
  %v541 = vunpack.c.l.b16 %v65
  %v542 = vunpack.c.l.b16 %v66
  %v543 = vunpack.c.l.b16 %v67
  %v544 = vunpack.c.l.b16 %v68
  %v545 = vunpack.c.l.b16 %v69
  %v546 = vunpack.c.l.b16 %v70
  %v547 = vunpack.c.l.b16 %v71
  %v548 = vunpack.c.l.b16 %v72
  %v549 = vunpack.c.l.b16 %v73
  %v550 = vunpack.c.l.b16 %v74
  %v551 = vunpack.c.l.b16 %v75
  %v552 = vunpack.c.l.b16 %v76
  %v553 = vunpack.c.l.b16 %v77
  %v554 = vunpack.c.l.b16 %v78
  %v555 = vunpack.c.l.b16 %v79
  %v556 = vunpack.c.l.b16 %v80
  %v557 = vunpack.c.l.b16 %v81
  %v558 = vunpack.c.l.b16 %v82
  %v559 = vunpack.c.l.b16 %v83
  %v560 = vunpack.c.l.b16 %v84
  %v561 = vunpack.c.l.b16 %v85
  %v562 = vunpack.c.l.b16 %v86
  %v563 = vunpack.c.l.b16 %v87
  %v564 = vunpack.c.l.b16 %v88
  %v565 = vunpack.c.l.b16 %v89
  %v566 = vunpack.c.l.b16 %v90
  %v567 = vunpack.c.l.b16 %v91
  %v568 = vunpack.c.l.b16 %v92
  %v569 = vunpack.c.l.b16 %v93
  %v570 = vunpack.c.l.b16 %v94
  %v571 = vunpack.c.l.b16 %v95
  %v572 = vunpack.c.l.b16 %v96
  %v573 = vunpack.c.l.b16 %v97
  %v574 = vunpack.c.l.b16 %v98
  %v575 = vunpack.c.l.b16 %v99
  %v576 = vunpack.c.l.b16 %v100
  %v577 = vunpack.c.l.b16 %v101
  %v578 = vunpack.c.l.b16 %v102
  %v579 = vunpack.c.l.b16 %v103
  %v580 = vunpack.c.l.b16 %v104
  %v581 = vunpack.c.l.b16 %v105
  %v582 = vunpack.c.l.b16 %v106
  %v583 = vunpack.c.l.b16 %v107
  %v584 = vunpack.c.l.b16 %v108
  %v585 = vunpack.c.l.b16 %v109
  %v586 = vunpack.c.l.b16 %v110
  %v587 = vunpack.c.l.b16 %v111
  %v588 = vunpack.c.l.b16 %v112
  %v589 = vunpack.c.l.b16 %v113
  %v590 = vunpack.c.l.b16 %v114
  %v591 = vunpack.c.l.b16 %v115
  %v592 = vunpack.c.l.b16 %v116
  %v593 = vunpack.c.l.b16 %v117
  %v594 = vunpack.c.l.b16 %v118
  %v595 = vunpack.c.l.b16 %v119
  %v596 = vunpack.c.l.b16 %v120
  %v597 = vunpack.c.l.b16 %v121
  %v598 = vunpack.c.l.b16 %v122
  %v599 = vunpack.c.l.b16 %v123
  %v600 = vunpack.c.l.b16 %v124
  %v601 = vunpack.c.l.b16 %v125
  %v602 = vunpack.c.l.b16 %v126
  %v603 = vunpack.c.l.b16 %v127
  %v604 = vunpack.c.l.b16 %v128
  %v605 = vunpack.c.l.b16 %v129
  %v606 = vunpack.c.l.b16 %v130
  %v607 = vunpack.c.l.b16 %v131
  %v608 = vunpack.c.l.b16 %v132
  %v609 = vunpack.c.l.b16 %v133
  %v610 = vunpack.c.l.b16 %v134
  %v611 = vunpack.c.l.b16 %v135
  %v612 = vunpack.c.l.b16 %v136
  %v613 = vunpack.c.l.b16 %v137
  %v614 = vunpack.c.l.b16 %v138
  %v615 = vunpack.c.l.b16 %v139
  %v616 = vunpack.c.l.b16 %v140
  %v617 = vunpack.c.l.b16 %v141
  %v618 = vunpack.c.l.b16 %v142
  %v619 = vunpack.c.l.b16 %v143
  %v620 = vunpack.c.l.b16 %v144
  %v621 = vunpack.c.l.b16 %v145
  %v622 = vunpack.c.l.b16 %v146
  %v623 = vunpack.c.l.b16 %v147
  %v624 = vunpack.c.l.b16 %v148
  %v625 = vunpack.c.l.b16 %v149
  %v626 = vunpack.c.l.b16 %v150
  %v627 = vunpack.c.l.b16 %v151
  %v628 = vunpack.c.l.b16 %v152
  %v629 = vunpack.c.l.b16 %v153
  %v630 = vunpack.c.l.b16 %v154
  %v631 = vunpack.c.l.b16 %v155
  %v632 = vunpack.c.l.b16 %v156
  %v633 = vunpack.c.l.b16 %v157
  %v634 = vunpack.c.l.b16 %v158
  %v635 = vunpack.c.l.b16 %v159
  %v636 = vunpack.c.l.b16 %v160
  %v637 = vunpack.c.l.b16 %v161
  %v638 = vunpack.c.l.b16 %v162
  %v639 = vunpack.c.l.b16 %v163
  %v640 = vunpack.c.l.b16 %v164
  %v641 = vunpack.c.l.b16 %v165
  %v642 = vunpack.c.l.b16 %v166
  %v643 = vunpack.c.l.b16 %v167
  %v644 = vunpack.c.l.b16 %v168
  %v645 = vunpack.c.l.b16 %v169
  %v646 = vunpack.c.l.b16 %v170
  %v647 = vunpack.c.l.b16 %v171
  %v648 = vunpack.c.l.b16 %v172
  %v649 = vunpack.c.l.b16 %v173
  %v650 = vunpack.c.l.b16 %v174
  %v651 = vunpack.c.l.b16 %v175
  %v652 = vunpack.c.l.b16 %v176
  %v653 = vunpack.c.l.b16 %v177
  %v654 = vunpack.c.l.b16 %v178
  %v655 = vunpack.c.l.b16 %v179
  %v656 = vunpack.c.l.b16 %v180
  %v657 = vunpack.c.l.b16 %v181
  %v658 = vunpack.c.l.b16 %v182
  %v659 = vunpack.c.l.b16 %v183
  %v660 = vunpack.c.l.b16 %v184
  %v661 = vunpack.c.l.b16 %v185
  %v662 = vunpack.c.l.b16 %v186
  %v663 = vunpack.c.l.b16 %v187
  %v664 = vunpack.c.l.b16 %v188
  %v665 = vunpack.c.l.b16 %v189
  %v666 = vunpack.c.l.b16 %v190
  %v667 = vunpack.c.l.b16 %v191
  %v668 = vunpack.c.l.b16 %v192
  %v669 = vunpack.c.l.b16 %v193
  %v670 = vunpack.c.l.b16 %v194
  %v671 = vunpack.c.l.b16 %v195
  %v672 = vunpack.c.l.b16 %v196
  %v673 = vunpack.c.l.b16 %v197
  %v674 = vunpack.c.l.b16 %v198
  %v675 = vunpack.c.l.b16 %v199
  %v676 = vunpack.c.l.b16 %v200
  %v677 = vunpack.c.l.b16 %v201
  %v678 = vunpack.c.l.b16 %v202
  %v679 = vunpack.c.l.b16 %v203
  %v680 = vunpack.c.l.b16 %v204
  %v681 = vunpack.c.l.b16 %v205
  %v682 = vunpack.c.l.b16 %v206
  %v683 = vunpack.c.l.b16 %v207
  %v684 = vunpack.c.l.b16 %v208
  %v685 = vunpack.c.l.b16 %v209
  %v686 = vunpack.c.l.b16 %v210
  %v687 = vunpack.c.l.b16 %v211
  %v688 = vunpack.c.l.b16 %v212
  %v689 = vunpack.c.l.b16 %v213
  %v690 = vunpack.c.l.b16 %v214
  %v691 = vunpack.c.l.b16 %v215
  %v692 = vunpack.c.l.b16 %v216
  %v693 = vunpack.c.l.b16 %v217
  %v694 = vunpack.c.l.b16 %v218
  %v695 = vunpack.c.l.b16 %v219
  %v696 = vunpack.c.l.b16 %v220
  %v697 = vunpack.c.l.b16 %v221
  %v698 = vunpack.c.l.b16 %v222
  %v699 = vunpack.c.l.b16 %v223
  %v700 = vunpack.c.l.b16 %v224
  %v701 = vunpack.c.l.b16 %v225
  %v702 = vunpack.c.l.b16 %v226
  %v703 = vunpack.c.l.b16 %v227
  %v704 = vunpack.c.l.b16 %v228
  %v705 = vunpack.c.l.b16 %v229
  %v706 = vunpack.c.l.b16 %v230
  %v707 = vunpack.c.l.b16 %v231
  %v708 = vunpack.c.l.b16 %v232
  %v709 = vunpack.c.l.b16 %v233
  %v710 = vunpack.c.l.b16 %v234
  %v711 = vunpack.c.l.b16 %v235
  %v712 = vunpack.c.l.b16 %v236
  %v713 = vunpack.c.l.b16 %v237
  %v714 = vunpack.c.l.b16 %v238
  %v715 = vunpack.c.l.b16 %v239
  %v716 = vunpack.c.l.b16 %v240
  %v717 = vunpack.c.l.b16 %v241
  %v718 = vunpack.c.l.b16 %v242
  %v719 = vunpack.c.l.b16 %v243
  %v720 = vunpack.c.l.b16 %v244
  %v721 = vunpack.c.l.b16 %v245
  %v722 = vunpack.c.l.b16 %v246
  %v723 = vunpack.c.l.b16 %v247
  %v724 = vunpack.c.l.b16 %v248
  %v725 = vunpack.c.l.b16 %v249
  %v726 = vunpack.c.l.b16 %v250
  %v727 = vunpack.c.l.b16 %v251
  %v728 = vunpack.c.l.b16 %v252
  %v729 = vunpack.c.l.b16 %v253
  %v730 = vunpack.c.l.b16 %v254
  %v731 = vunpack.c.l.b16 %v255
  %v732 = vunpack.c.l.b16 %v256
  %v733 = vunpack.c.l.b16 %v257
  %v734 = vunpack.c.l.b16 %v258
  %v735 = vunpack.c.l.b16 %v259
  %v736 = vunpack.c.l.b16 %v260
  %v737 = vunpack.c.l.b16 %v261
  %v738 = vunpack.c.l.b16 %v262
  %v739 = vunpack.c.l.b16 %v263
  %v740 = vunpack.c.l.b16 %v264
  %v741 = vunpack.c.l.b16 %v265
  %v742 = vunpack.c.l.b16 %v266
  %v743 = vunpack.c.l.b16 %v267
  %v744 = vunpack.c.l.b16 %v268
  %v745 = vunpack.c.l.b16 %v269
  %v746 = vunpack.c.l.b16 %v270
  %v747 = vunpack.c.l.b16 %v271
  %v748 = vunpack.c.l.b16 %v272
  %v749 = vunpack.c.l.b16 %v273
  %v750 = vunpack.c.l.b16 %v274
  %v751 = vunpack.c.l.b16 %v275
  %v752 = vunpack.c.l.b16 %v276
  %v753 = vunpack.c.l.b16 %v277
  %v754 = vunpack.c.l.b16 %v278
  %v755 = vunpack.c.l.b16 %v279
  %v756 = vunpack.c.l.b16 %v280
  %v757 = vunpack.c.l.b16 %v281
  %v758 = vunpack.c.l.b16 %v282
  %v759 = vunpack.c.l.b16 %v283
  %v760 = vunpack.c.l.b16 %v284
  %v761 = vunpack.c.l.b16 %v285
  %v762 = vunpack.c.l.b16 %v286
  %v763 = vunpack.c.l.b16 %v287
  %v764 = vunpack.c.l.b16 %v288
  %v765 = vunpack.c.l.b16 %v289
  %v766 = vunpack.c.l.b16 %v290
  %v767 = vpack.c.b16 %v531, %v530
  %v768 = vpack.c.b16 %v533, %v532
  %v769 = vpack.c.b16 %v535, %v534
  %v770 = vpack.c.b16 %v537, %v536
  %v771 = vpack.c.b16 %v539, %v538
  %v772 = vpack.c.b16 %v541, %v540
  %v773 = vpack.c.b16 %v543, %v542
  %v774 = vpack.c.b16 %v545, %v544
  %v775 = vpack.c.b16 %v547, %v546
  %v776 = vpack.c.b16 %v549, %v548
  %v777 = vpack.c.b16 %v551, %v550
  %v778 = vpack.c.b16 %v553, %v552
  %v779 = vpack.c.b16 %v555, %v554
  %v780 = vpack.c.b16 %v557, %v556
  %v781 = vpack.c.b16 %v559, %v558
  %v782 = vpack.c.b16 %v561, %v560
  %v783 = vpack.c.b16 %v563, %v562
  %v784 = vpack.c.b16 %v565, %v564
  %v785 = vpack.c.b16 %v567, %v566
  %v786 = vpack.c.b16 %v569, %v568
  %v787 = vpack.c.b16 %v571, %v570
  %v788 = vpack.c.b16 %v573, %v572
  %v789 = vpack.c.b16 %v575, %v574
  %v790 = vpack.c.b16 %v577, %v576
  %v791 = vpack.c.b16 %v579, %v578
  %v792 = vpack.c.b16 %v581, %v580
  %v793 = vpack.c.b16 %v583, %v582
  %v794 = vpack.c.b16 %v585, %v584
  %v795 = vpack.c.b16 %v587, %v586
  %v796 = vpack.c.b16 %v589, %v588
  %v797 = vpack.c.b16 %v591, %v590
  %v798 = vpack.c.b16 %v593, %v592
  %v799 = vpack.c.b16 %v595, %v594
  %v800 = vpack.c.b16 %v597, %v596
  %v801 = vpack.c.b16 %v599, %v598
  %v802 = vpack.c.b16 %v601, %v600
  %v803 = vpack.c.b16 %v603, %v602
  %v804 = vpack.c.b16 %v605, %v604
  %v805 = vpack.c.b16 %v607, %v606
  %v806 = vpack.c.b16 %v609, %v608
  %v807 = vpack.c.b16 %v611, %v610
  %v808 = vpack.c.b16 %v613, %v612
  %v809 = vpack.c.b16 %v615, %v614
  %v810 = vpack.c.b16 %v617, %v616
  %v811 = vpack.c.b16 %v619, %v618
  %v812 = vpack.c.b16 %v621, %v620
  %v813 = vpack.c.b16 %v623, %v622
  %v814 = vpack.c.b16 %v625, %v624
  %v815 = vpack.c.b16 %v627, %v626
  %v816 = vpack.c.b16 %v629, %v628
  %v817 = vpack.c.b16 %v631, %v630
  %v818 = vpack.c.b16 %v633, %v632
  %v819 = vpack.c.b16 %v635, %v634
  %v820 = vpack.c.b16 %v637, %v636
  %v821 = vpack.c.b16 %v639, %v638
  %v822 = vpack.c.b16 %v641, %v640
  %v823 = vpack.c.b16 %v643, %v642
  %v824 = vpack.c.b16 %v645, %v644
  %v825 = vpack.c.b16 %v647, %v646
  %v826 = vpack.c.b16 %v649, %v648
  %v827 = vpack.c.b16 %v651, %v650
  %v828 = vpack.c.b16 %v653, %v652
  %v829 = vpack.c.b16 %v655, %v654
  %v830 = vpack.c.b16 %v657, %v656
  %v831 = vpack.c.b16 %v659, %v658
  %v832 = vpack.c.b16 %v661, %v660
  %v833 = vpack.c.b16 %v663, %v662
  %v834 = vpack.c.b16 %v665, %v664
  %v835 = vpack.c.b16 %v667, %v666
  %v836 = vpack.c.b16 %v669, %v668
  %v837 = vpack.c.b16 %v671, %v670
  %v838 = vpack.c.b16 %v673, %v672
  %v839 = vpack.c.b16 %v675, %v674
  %v840 = vpack.c.b16 %v677, %v676
  %v841 = vpack.c.b16 %v679, %v678
  %v842 = vpack.c.b16 %v681, %v680
  %v843 = vpack.c.b16 %v683, %v682
  %v844 = vpack.c.b16 %v685, %v684
  %v845 = vpack.c.b16 %v687, %v686
  %v846 = vpack.c.b16 %v689, %v688
  %v847 = vpack.c.b16 %v691, %v690
  %v848 = vpack.c.b16 %v693, %v692
  %v849 = vpack.c.b16 %v695, %v694
  %v850 = vpack.c.b16 %v697, %v696
  %v851 = vpack.c.b16 %v699, %v698
  %v852 = vpack.c.b16 %v701, %v700
  %v853 = vpack.c.b16 %v703, %v702
  %v854 = vpack.c.b16 %v705, %v704
  %v855 = vpack.c.b16 %v707, %v706
  %v856 = vpack.c.b16 %v709, %v708
  %v857 = vpack.c.b16 %v711, %v710
  %v858 = vpack.c.b16 %v713, %v712
  %v859 = vpack.c.b16 %v715, %v714
  %v860 = vpack.c.b16 %v717, %v716
  %v861 = vpack.c.b16 %v719, %v718
  %v862 = vpack.c.b16 %v721, %v720
  %v863 = vpack.c.b16 %v723, %v722
  %v864 = vpack.c.b16 %v725, %v724
  %v865 = vpack.c.b16 %v727, %v726
  %v866 = vpack.c.b16 %v729, %v728
  %v867 = vpack.c.b16 %v731, %v730
  %v868 = vpack.c.b16 %v733, %v732
  %v869 = vpack.c.b16 %v735, %v734
  %v870 = vpack.c.b16 %v737, %v736
  %v871 = vpack.c.b16 %v739, %v738
  %v872 = vpack.c.b16 %v741, %v740
  %v873 = vpack.c.b16 %v743, %v742
  %v874 = vpack.c.b16 %v745, %v744
  %v875 = vpack.c.b16 %v747, %v746
  %v876 = vpack.c.b16 %v749, %v748
  %v877 = vpack.c.b16 %v751, %v750
  %v878 = vpack.c.b16 %v753, %v752
  %v879 = vpack.c.b16 %v755, %v754
  %v880 = vpack.c.b16 %v757, %v756
  %v881 = vpack.c.b16 %v759, %v758
  %v882 = vpack.c.b16 %v761, %v760
  %v883 = vpack.c.b16 %v763, %v762
  %v884 = vpack.c.b16 %v765, %v764
  %v885 = vpack.c.b16 %v766, %v766
  %vm1004 = vcmask 801792
  %v1006 = vsel %vm1004, %v53, 0
  %vm1008 = vcmask 1040384
  %v1010 = vsel %vm1008, %v885, 0
  %1012 = vmatpush.bf16.msra.mxu0 %v774
  %1013 = vmatpush.bf16.msra.mxu0 %v773
  %1014 = vmatpush.bf16.msra.mxu0 %v772
  %1015 = vmatpush.bf16.msra.mxu0 %v771
  %1016 = vmatpush.bf16.msra.mxu0 %v770
  %1017 = vmatpush.bf16.msra.mxu0 %v769
  %1018 = vmatpush.bf16.msra.mxu0 %v768
  %1019 = vmatpush.bf16.msra.mxu0 %v767
  %1020 = vmatmul.bf16.gmra.mxu0 %v39
  %v1021 = vpop.f32.mrf.mxu0
  %v1022 = vadd.f32 %v292, %v1021
  %v1023 = vpop.f32.mrf.mxu0
  %1024 = vdwg.mxu0
  %1025 = vmatpush.bf16.msra.mxu0 %v782
  %1026 = vmatpush.bf16.msra.mxu0 %v781
  %1027 = vmatpush.bf16.msra.mxu0 %v780
  %1028 = vmatpush.bf16.msra.mxu0 %v779
  %1029 = vmatpush.bf16.msra.mxu0 %v778
  %1030 = vmatpush.bf16.msra.mxu0 %v777
  %1031 = vmatpush.bf16.msra.mxu0 %v776
  %1032 = vmatpush.bf16.msra.mxu0 %v775
  %1033 = vmatmul.bf16.gmra.mxu0 %v40
  %v1034 = vpop.f32.mrf.mxu0
  %v1035 = vadd.f32 %v1022, %v1034
  %v1036 = vpop.f32.mrf.mxu0
  %1037 = vdwg.mxu0
  %1038 = vmatpush.bf16.msra.mxu0 %v790
  %1039 = vmatpush.bf16.msra.mxu0 %v789
  %1040 = vmatpush.bf16.msra.mxu0 %v788
  %1041 = vmatpush.bf16.msra.mxu0 %v787
  %1042 = vmatpush.bf16.msra.mxu0 %v786
  %1043 = vmatpush.bf16.msra.mxu0 %v785
  %1044 = vmatpush.bf16.msra.mxu0 %v784
  %1045 = vmatpush.bf16.msra.mxu0 %v783
  %1046 = vmatmul.bf16.gmra.mxu0 %v41
  %v1047 = vpop.f32.mrf.mxu0
  %v1048 = vadd.f32 %v1035, %v1047
  %v1049 = vpop.f32.mrf.mxu0
  %1050 = vdwg.mxu0
  %1051 = vmatpush.bf16.msra.mxu0 %v798
  %1052 = vmatpush.bf16.msra.mxu0 %v797
  %1053 = vmatpush.bf16.msra.mxu0 %v796
  %1054 = vmatpush.bf16.msra.mxu0 %v795
  %1055 = vmatpush.bf16.msra.mxu0 %v794
  %1056 = vmatpush.bf16.msra.mxu0 %v793
  %1057 = vmatpush.bf16.msra.mxu0 %v792
  %1058 = vmatpush.bf16.msra.mxu0 %v791
  %1059 = vmatmul.bf16.gmra.mxu0 %v42
  %v1060 = vpop.f32.mrf.mxu0
  %v1061 = vadd.f32 %v1048, %v1060
  %v1062 = vpop.f32.mrf.mxu0
  %1063 = vdwg.mxu0
  %1064 = vmatpush.bf16.msra.mxu0 %v806
  %1065 = vmatpush.bf16.msra.mxu0 %v805
  %1066 = vmatpush.bf16.msra.mxu0 %v804
  %1067 = vmatpush.bf16.msra.mxu0 %v803
  %1068 = vmatpush.bf16.msra.mxu0 %v802
  %1069 = vmatpush.bf16.msra.mxu0 %v801
  %1070 = vmatpush.bf16.msra.mxu0 %v800
  %1071 = vmatpush.bf16.msra.mxu0 %v799
  %1072 = vmatmul.bf16.gmra.mxu0 %v43
  %v1073 = vpop.f32.mrf.mxu0
  %v1074 = vadd.f32 %v1061, %v1073
  %v1075 = vpop.f32.mrf.mxu0
  %1076 = vdwg.mxu0
  %1077 = vmatpush.bf16.msra.mxu0 %v814
  %1078 = vmatpush.bf16.msra.mxu0 %v813
  %1079 = vmatpush.bf16.msra.mxu0 %v812
  %1080 = vmatpush.bf16.msra.mxu0 %v811
  %1081 = vmatpush.bf16.msra.mxu0 %v810
  %1082 = vmatpush.bf16.msra.mxu0 %v809
  %1083 = vmatpush.bf16.msra.mxu0 %v808
  %1084 = vmatpush.bf16.msra.mxu0 %v807
  %1085 = vmatmul.bf16.gmra.mxu0 %v44
  %v1086 = vpop.f32.mrf.mxu0
  %v1087 = vadd.f32 %v1074, %v1086
  %v1088 = vpop.f32.mrf.mxu0
  %1089 = vdwg.mxu0
  %1090 = vmatpush.bf16.msra.mxu0 %v822
  %1091 = vmatpush.bf16.msra.mxu0 %v821
  %1092 = vmatpush.bf16.msra.mxu0 %v820
  %1093 = vmatpush.bf16.msra.mxu0 %v819
  %1094 = vmatpush.bf16.msra.mxu0 %v818
  %1095 = vmatpush.bf16.msra.mxu0 %v817
  %1096 = vmatpush.bf16.msra.mxu0 %v816
  %1097 = vmatpush.bf16.msra.mxu0 %v815
  %1098 = vmatmul.bf16.gmra.mxu0 %v45
  %v1099 = vpop.f32.mrf.mxu0
  %v1100 = vadd.f32 %v1087, %v1099
  %v1101 = vpop.f32.mrf.mxu0
  %1102 = vdwg.mxu0
  %1103 = vmatpush.bf16.msra.mxu0 %v830
  %1104 = vmatpush.bf16.msra.mxu0 %v829
  %1105 = vmatpush.bf16.msra.mxu0 %v828
  %1106 = vmatpush.bf16.msra.mxu0 %v827
  %1107 = vmatpush.bf16.msra.mxu0 %v826
  %1108 = vmatpush.bf16.msra.mxu0 %v825
  %1109 = vmatpush.bf16.msra.mxu0 %v824
  %1110 = vmatpush.bf16.msra.mxu0 %v823
  %1111 = vmatmul.bf16.gmra.mxu0 %v46
  %v1112 = vpop.f32.mrf.mxu0
  %v1113 = vadd.f32 %v1100, %v1112
  %v1114 = vpop.f32.mrf.mxu0
  %1115 = vdwg.mxu0
  %1116 = vmatpush.bf16.msra.mxu0 %v838
  %1117 = vmatpush.bf16.msra.mxu0 %v837
  %1118 = vmatpush.bf16.msra.mxu0 %v836
  %1119 = vmatpush.bf16.msra.mxu0 %v835
  %1120 = vmatpush.bf16.msra.mxu0 %v834
  %1121 = vmatpush.bf16.msra.mxu0 %v833
  %1122 = vmatpush.bf16.msra.mxu0 %v832
  %1123 = vmatpush.bf16.msra.mxu0 %v831
  %1124 = vmatmul.bf16.gmra.mxu0 %v47
  %v1125 = vpop.f32.mrf.mxu0
  %v1126 = vadd.f32 %v1113, %v1125
  %v1127 = vpop.f32.mrf.mxu0
  %1128 = vdwg.mxu0
  %1129 = vmatpush.bf16.msra.mxu0 %v846
  %1130 = vmatpush.bf16.msra.mxu0 %v845
  %1131 = vmatpush.bf16.msra.mxu0 %v844
  %1132 = vmatpush.bf16.msra.mxu0 %v843
  %1133 = vmatpush.bf16.msra.mxu0 %v842
  %1134 = vmatpush.bf16.msra.mxu0 %v841
  %1135 = vmatpush.bf16.msra.mxu0 %v840
  %1136 = vmatpush.bf16.msra.mxu0 %v839
  %1137 = vmatmul.bf16.gmra.mxu0 %v48
  %v1138 = vpop.f32.mrf.mxu0
  %v1139 = vadd.f32 %v1126, %v1138
  %v1140 = vpop.f32.mrf.mxu0
  %1141 = vdwg.mxu0
  %1142 = vmatpush.bf16.msra.mxu0 %v854
  %1143 = vmatpush.bf16.msra.mxu0 %v853
  %1144 = vmatpush.bf16.msra.mxu0 %v852
  %1145 = vmatpush.bf16.msra.mxu0 %v851
  %1146 = vmatpush.bf16.msra.mxu0 %v850
  %1147 = vmatpush.bf16.msra.mxu0 %v849
  %1148 = vmatpush.bf16.msra.mxu0 %v848
  %1149 = vmatpush.bf16.msra.mxu0 %v847
  %1150 = vmatmul.bf16.gmra.mxu0 %v49
  %v1151 = vpop.f32.mrf.mxu0
  %v1152 = vadd.f32 %v1139, %v1151
  %v1153 = vpop.f32.mrf.mxu0
  %1154 = vdwg.mxu0
  %1155 = vmatpush.bf16.msra.mxu0 %v862
  %1156 = vmatpush.bf16.msra.mxu0 %v861
  %1157 = vmatpush.bf16.msra.mxu0 %v860
  %1158 = vmatpush.bf16.msra.mxu0 %v859
  %1159 = vmatpush.bf16.msra.mxu0 %v858
  %1160 = vmatpush.bf16.msra.mxu0 %v857
  %1161 = vmatpush.bf16.msra.mxu0 %v856
  %1162 = vmatpush.bf16.msra.mxu0 %v855
  %1163 = vmatmul.bf16.gmra.mxu0 %v50
  %v1164 = vpop.f32.mrf.mxu0
  %v1165 = vadd.f32 %v1152, %v1164
  %v1166 = vpop.f32.mrf.mxu0
  %1167 = vdwg.mxu0
  %1168 = vmatpush.bf16.msra.mxu0 %v870
  %1169 = vmatpush.bf16.msra.mxu0 %v869
  %1170 = vmatpush.bf16.msra.mxu0 %v868
  %1171 = vmatpush.bf16.msra.mxu0 %v867
  %1172 = vmatpush.bf16.msra.mxu0 %v866
  %1173 = vmatpush.bf16.msra.mxu0 %v865
  %1174 = vmatpush.bf16.msra.mxu0 %v864
  %1175 = vmatpush.bf16.msra.mxu0 %v863
  %1176 = vmatmul.bf16.gmra.mxu0 %v51
  %v1177 = vpop.f32.mrf.mxu0
  %v1178 = vadd.f32 %v1165, %v1177
  %v1179 = vpop.f32.mrf.mxu0
  %1180 = vdwg.mxu0
  %1181 = vmatpush.bf16.msra.mxu0 %v878
  %1182 = vmatpush.bf16.msra.mxu0 %v877
  %1183 = vmatpush.bf16.msra.mxu0 %v876
  %1184 = vmatpush.bf16.msra.mxu0 %v875
  %1185 = vmatpush.bf16.msra.mxu0 %v874
  %1186 = vmatpush.bf16.msra.mxu0 %v873
  %1187 = vmatpush.bf16.msra.mxu0 %v872
  %1188 = vmatpush.bf16.msra.mxu0 %v871
  %1189 = vmatmul.bf16.gmra.mxu0 %v52
  %v1190 = vpop.f32.mrf.mxu0
  %v1191 = vadd.f32 %v1178, %v1190
  %v1192 = vpop.f32.mrf.mxu0
  %1193 = vdwg.mxu0
  %1194 = vmatpush.bf16.msra.mxu0 0
  %1195 = vmatpush.bf16.msra.mxu0 %v1010
  %1196 = vmatpush.bf16.msra.mxu0 %v884
  %1197 = vmatpush.bf16.msra.mxu0 %v883
  %1198 = vmatpush.bf16.msra.mxu0 %v882
  %1199 = vmatpush.bf16.msra.mxu0 %v881
  %1200 = vmatpush.bf16.msra.mxu0 %v880
  %1201 = vmatpush.bf16.msra.mxu0 %v879
  %1202 = vmatmul.bf16.gmra.mxu0 %v1006
  %v1203 = vpop.f32.mrf.mxu0
  %v1204 = vadd.f32 %v1191, %v1203
  %v1205 = vpop.f32.mrf.mxu0
  %1206 = vdwg.mxu0
  %vm1207 = vcmp.gt.f32.partialorder %v1204, 0.0
  %v1208 = vmin.f32 %v1204, 0.0
  %v1209 = vmul.f32 %v1208, 1.442695
  %v1210 = vpow.pop %v1209
  %v1211 = vsub.f32 %v1210, 1.0
  %v1212 = vmul.f32 %v1211, 1.6732632
  %v1213 = vsel %vm1207, %v1204, %v1212
  %v1214 = vmul.f32 %v1213, 1.050701
  %v1215 = vpack.c.bf16 %v1214, %v1214
  %v1216 = vld [vmem:[%s2] sm:$0xf]
  %v1217 = vld [vmem:[%s2 + $0x4] sm:$0xf]
  %v1218 = vld [vmem:[%s2 + $0x8] sm:$0xf]
  %v1219 = vld [vmem:[%s2 + $0xc] sm:$0xf]
  %v1220 = vld [vmem:[%s2 + $0x10] sm:$0xf]
  %v1221 = vld [vmem:[%s2 + $0x14] sm:$0xf]
  %v1222 = vld [vmem:[%s2 + $0x18] sm:$0xf]
  %v1223 = vld [vmem:[%s2 + $0x1c] sm:$0xf]
  %v1224 = vld [vmem:[%s2 + $0x20] sm:$0xf]
  %v1225 = vld [vmem:[%s2 + $0x24] sm:$0xf]
  %v1226 = vld [vmem:[%s2 + $0x28] sm:$0xf]
  %v1227 = vld [vmem:[%s2 + $0x2c] sm:$0xf]
  %v1228 = vld [vmem:[%s2 + $0x30] sm:$0x3]
  %v1229 = vld [vmem:[%s5 + $0x1] sm:$0x1]
  %v1230 = vperm.slane %v1229, 0
  %v1244 = vunpack.c.l.b16 %v1216
  %v1245 = vunpack.c.l.b16 %v1217
  %v1246 = vunpack.c.l.b16 %v1218
  %v1247 = vunpack.c.l.b16 %v1219
  %v1248 = vunpack.c.l.b16 %v1220
  %v1249 = vunpack.c.l.b16 %v1221
  %v1250 = vunpack.c.l.b16 %v1222
  %v1251 = vunpack.c.l.b16 %v1223
  %v1252 = vunpack.c.l.b16 %v1224
  %v1253 = vunpack.c.l.b16 %v1225
  %v1254 = vunpack.c.l.b16 %v1226
  %v1255 = vunpack.c.l.b16 %v1227
  %v1256 = vunpack.c.l.b16 %v1228
  %v1257 = vpack.c.b16 %v1245, %v1244
  %v1258 = vpack.c.b16 %v1247, %v1246
  %v1259 = vpack.c.b16 %v1249, %v1248
  %v1260 = vpack.c.b16 %v1251, %v1250
  %v1261 = vpack.c.b16 %v1253, %v1252
  %v1262 = vpack.c.b16 %v1255, %v1254
  %v1263 = vpack.c.b16 %v1256, %v1256
  %vm1270 = vcmask 818176
  %v1272 = vsel %vm1270, %v1215, 0
  %vm1274 = vcmask 1041408
  %v1276 = vsel %vm1274, %v1263, 0
  %1278 = vmatpush.bf16.msra.mxu0 0
  %1279 = vmatpush.bf16.msra.mxu0 %v1276
  %1280 = vmatpush.bf16.msra.mxu0 %v1262
  %1281 = vmatpush.bf16.msra.mxu0 %v1261
  %1282 = vmatpush.bf16.msra.mxu0 %v1260
  %1283 = vmatpush.bf16.msra.mxu0 %v1259
  %1284 = vmatpush.bf16.msra.mxu0 %v1258
  %1285 = vmatpush.bf16.msra.mxu0 %v1257
  %1286 = vmatmul.bf16.gmra.mxu0 %v1272
  %v1287 = vpop.f32.mrf.mxu0
  %v1288 = vadd.f32 %v1230, %v1287
  %v1289 = vpop.f32.mrf.mxu0
  %1290 = vdwg.mxu0
  %vm1291 = vcmp.gt.f32.partialorder %v1288, 0.0
  %v1292 = vmin.f32 %v1288, 0.0
  %v1293 = vmul.f32 %v1292, 1.442695
  %v1294 = vpow.pop %v1293
  %v1295 = vsub.f32 %v1294, 1.0
  %v1296 = vmul.f32 %v1295, 1.6732632
  %v1297 = vsel %vm1291, %v1288, %v1296
  %v1298 = vmul.f32 %v1297, 1.050701
  %v1299 = vpack.c.bf16 %v1298, %v1298
  %v1300 = vld [vmem:[%s3] sm:$0xf]
  %v1301 = vld [vmem:[%s3 + $0x4] sm:$0xf]
  %v1302 = vld [vmem:[%s3 + $0x8] sm:$0xf]
  %v1303 = vld [vmem:[%s3 + $0xc] sm:$0xf]
  %v1304 = vld [vmem:[%s3 + $0x10] sm:$0xf]
  %v1305 = vld [vmem:[%s3 + $0x14] sm:$0xf]
  %v1306 = vld [vmem:[%s3 + $0x18] sm:$0xf]
  %v1307 = vld [vmem:[%s3 + $0x1c] sm:$0xf]
  %v1308 = vld [vmem:[%s3 + $0x20] sm:$0xf]
  %v1309 = vld [vmem:[%s3 + $0x24] sm:$0xf]
  %v1310 = vld [vmem:[%s3 + $0x28] sm:$0xf]
  %v1311 = vld [vmem:[%s3 + $0x2c] sm:$0xf]
  %v1312 = vld [vmem:[%s3 + $0x30] sm:$0x3]
  %v1313 = vld [vmem:[%s5 + $0x2] sm:$0x1]
  %v1314 = vperm.slane %v1313, 0
  %v1328 = vunpack.c.l.b16 %v1300
  %v1329 = vunpack.c.l.b16 %v1301
  %v1330 = vunpack.c.l.b16 %v1302
  %v1331 = vunpack.c.l.b16 %v1303
  %v1332 = vunpack.c.l.b16 %v1304
  %v1333 = vunpack.c.l.b16 %v1305
  %v1334 = vunpack.c.l.b16 %v1306
  %v1335 = vunpack.c.l.b16 %v1307
  %v1336 = vunpack.c.l.b16 %v1308
  %v1337 = vunpack.c.l.b16 %v1309
  %v1338 = vunpack.c.l.b16 %v1310
  %v1339 = vunpack.c.l.b16 %v1311
  %v1340 = vunpack.c.l.b16 %v1312
  %v1341 = vpack.c.b16 %v1329, %v1328
  %v1342 = vpack.c.b16 %v1331, %v1330
  %v1343 = vpack.c.b16 %v1333, %v1332
  %v1344 = vpack.c.b16 %v1335, %v1334
  %v1345 = vpack.c.b16 %v1337, %v1336
  %v1346 = vpack.c.b16 %v1339, %v1338
  %v1347 = vpack.c.b16 %v1340, %v1340
  %v1355 = vsel %vm1270, %v1299, 0
  %v1358 = vsel %vm1274, %v1347, 0
  %1360 = vmatpush.bf16.msra.mxu0 0
  %1361 = vmatpush.bf16.msra.mxu0 %v1358
  %1362 = vmatpush.bf16.msra.mxu0 %v1346
  %1363 = vmatpush.bf16.msra.mxu0 %v1345
  %1364 = vmatpush.bf16.msra.mxu0 %v1344
  %1365 = vmatpush.bf16.msra.mxu0 %v1343
  %1366 = vmatpush.bf16.msra.mxu0 %v1342
  %1367 = vmatpush.bf16.msra.mxu0 %v1341
  %1368 = vmatmul.bf16.gmra.mxu0 %v1355
  %v1369 = vpop.f32.mrf.mxu0
  %v1370 = vadd.f32 %v1314, %v1369
  %v1371 = vpop.f32.mrf.mxu0
  %1372 = vdwg.mxu0
  %vm1373 = vcmp.gt.f32.partialorder %v1370, 0.0
  %v1374 = vmin.f32 %v1370, 0.0
  %v1375 = vmul.f32 %v1374, 1.442695
  %v1376 = vpow.pop %v1375
  %v1377 = vsub.f32 %v1376, 1.0
  %v1378 = vmul.f32 %v1377, 1.6732632
  %v1379 = vsel %vm1373, %v1370, %v1378
  %v1380 = vmul.f32 %v1379, 1.050701
  %v1381 = vld [vmem:[%s4] sm:$0x1]
  %v1383 = vperm.slane %v1381, 0
  %v1385 = vmul.f32 %v1380, %v1383
  %v1386 = vsel %vm1270, %v1385, 0.0
  %1387 = vadd.xlane.f32.xlu0 %v1386
  %v1388 = vpop.xlane.xlu0 %1387
  %v1389 = vld [vmem:[%s5 + $0x3] sm:$0x1]
  %v1390 = vperm.slane %v1389, 0
  %v1391 = vadd.f32 %v1388, %v1390
  %vm1392 = vcmask 7168
  %1393 = vst.msk [vmem:[%s6] sm:$0xff] %vm1392, %v1391
  // Predicated region
  $region26: #{model_x0_forward.3} parent=0 // pred_check
    _
  $region27: #{model_x0_forward.3} parent=0 // pred_check_branch
    %1395 = sbr.rel (0) target = $region29
  $region28: #{model_x0_forward.3} parent=0 // pred_region
    _
  $region29: #{model_x0_forward.3} parent=0 // pred_fallthru
    _
  // Predicated region
  $region30: #{model_x0_forward.3} parent=0 // pred_check
    _
  $region31: #{model_x0_forward.3} parent=0 // pred_check_branch
    %1397 = sbr.rel (0) target = $region33
  $region32: #{model_x0_forward.3} parent=0 // pred_region
    _
  $region33: #{model_x0_forward.3} parent=0 // pred_fallthru
    _

// kernel: model_x0_forward.2
$region0: #{model_x0_forward.2}
  #allocation0 [shape = 'u32[]', space=smem, size = 0x4, offset = 0x4, fixed_abs, tag = 'smem constant byte address 0x4 - core index']
  #allocation1 [shape = 'u32[72,128]{1,0:T(1,128)}', space=vmem, size = 0x9000, scoped, tag = 'internal scratch']
  #allocation2 [shape = 'f32[63,110]{1,0:T(8,128)}', space=vmem, size = 0x8000, scoped, tag = 'scratch operand']
  %s0 = inlined_call_operand.vmem [shape: f32[2,3,110], index: 0, kind: input, shape index: {}]
  %s1 = inlined_call_operand.hbm [shape: bf16[6,110,110], index: 1, kind: input, shape index: {}]
  %s2 = inlined_call_operand.hbm [shape: bf16[110,30], index: 2, kind: input, shape index: {}]
  %s3 = inlined_call_operand.hbm [shape: bf16[6,30,30], index: 3, kind: input, shape index: {}]
  %s4 = inlined_call_operand.vmem [shape: bf16[7,12,3], index: 4, kind: input, shape index: {}]
  %s5 = inlined_call_operand.vmem [shape: bf16[7,12,15], index: 5, kind: input, shape index: {}]
  %s6 = inlined_call_operand.vmem [shape: bf16[7,12,27], index: 6, kind: input, shape index: {}]
  %s7 = inlined_call_operand.vmem [shape: bf16[7,12,39], index: 7, kind: input, shape index: {}]
  %s8 = inlined_call_operand.vmem [shape: bf16[7,12,51], index: 8, kind: input, shape index: {}]
  %s9 = inlined_call_operand.hbm [shape: bf16[7,63,63], index: 9, kind: input, shape index: {}]
  %s10 = inlined_call_operand.hbm [shape: bf16[7,63,63], index: 10, kind: input, shape index: {}]
  %s11 = inlined_call_operand.vmem [shape: f32[63,7], index: 11, kind: input, shape index: {}]
  %s12 = inlined_call_operand.vmem [shape: f32[2,63,30], index: 12, kind: output, shape index: {}]
  %s13 = sld [smem:[#allocation0]]
  $region101: #{model_x0_forward.2} parent=0
    _
  %s15 = ssub.s32 1, %s13
  %s16 = scalar_select 0, %s15, %s13
  $region1: #{model_x0_forward.2} parent=0
    #allocation3 [shape = 'u8[172032]{0}', space=vmem, size = 0x2a000, scoped, tag = 'input window, operand 1, single buffered']
    #allocation4 [shape = 's32[2]{0}', space=sflag, size = 0x8, scoped, tag = 'scoped memory for model_x0_forward.2']
    #allocation5 [shape = 'u8[28672]{0}', space=vmem, size = 0x7000, scoped, tag = 'input window, operand 2, single buffered']
    #allocation6 [shape = 's32[1]{0}', space=sflag, size = 0x4, scoped, tag = 'scoped memory for model_x0_forward.2']
    #allocation7 [shape = 'u8[49152]{0}', space=vmem, size = 0xc000, scoped, tag = 'input window, operand 3, single buffered']
    #allocation8 [shape = 'u8[114688]{0}', space=vmem, size = 0x1c000, scoped, tag = 'input window, operand 9, single buffered']
    #allocation9 [shape = 's32[1]{0}', space=sflag, size = 0x4, scoped, tag = 'scoped memory for model_x0_forward.2']
    #allocation10 [shape = 'u8[114688]{0}', space=vmem, size = 0x1c000, scoped, tag = 'input window, operand 10, single buffered']
    %17 = vsyncpa [#allocation4], 0
    %18 = vsyncpa [#allocation6], 0
    %19 = vsyncpa [#allocation9], 0
    loop: start=0, step=1, limit=4
    $region2: #{model_x0_forward.2} parent=1 // loop_pre_header
      _
    $region3: #{model_x0_forward.2} parent=1 // loop_header
      %s21 = sphi 0, %s25
      %p22 = scmp.ge.s32.totalorder %s21, 4
      %s31 = sphi 0, %s33
      %s34 = sphi 0, %s31
      %s35 = sphi 0, %s34
      %s51 = sphi 0, %s35
      %s55 = sphi 0, %s55
      %s57 = sphi 0, %s55
      %s58 = sphi 0, %s57
      %s72 = sphi 0, %s58
      %s76 = sphi 0, %s76
      %s78 = sphi 0, %s76
      %s79 = sphi 0, %s78
      %s93 = sphi 0, %s79
      %s97 = sphi 0, %s97
      %s99 = sphi 0, %s97
      %s100 = sphi 0, %s99
      %s114 = sphi 0, %s100
      %s118 = sphi 0, %s118
      %s120 = sphi 0, %s118
      %s121 = sphi 0, %s120
      %s135 = sphi 0, %s121
      %s139 = sphi 0, %s139
      %s141 = sphi 0, %s139
      %s142 = sphi 0, %s141
      %s156 = sphi 0, %s142
      %s160 = sphi 0, %s160
      %s162 = sphi 0, %s160
      %s163 = sphi 0, %s162
      %s177 = sphi 0, %s163
      %s181 = sphi 0, %s181
      %s183 = sphi 0, %s181
      %s184 = sphi 0, %s183
      %s198 = sphi 0, %s184
      %s202 = sphi 0, %s202
      %s204 = sphi 0, %s202
      %s205 = sphi 0, %s204
      %s219 = sphi 0, %s205
      %s223 = sphi 0, %s223
      %s225 = sphi 0, %s223
      %s226 = sphi 0, %s225
      %s240 = sphi 0, %s226
      %s244 = sphi 0, %s244
      %s246 = sphi 0, %s244
      %s247 = sphi 0, %s246
      %s261 = sphi 0, %s247
      %s265 = sphi 0, %s265
      %s267 = sphi 0, %s265
      %s268 = sphi 0, %s267
      %s282 = sphi 0, %s268
      %s288 = sphi 0, %s290
      %s291 = sphi 0, %s288
      %s292 = sphi 0, %s291
      %s308 = sphi 0, %s292
    $region4: #{model_x0_forward.2} parent=1 // loop_header_branch
      %24 = sbr.rel (%p22) target = $region8
    $region5: #{model_x0_forward.2} parent=1 // loop_body
      %s26 = ssub.s32 %s21, 1
      %s27 = ssub.s32 %s21, 2
      %s28 = sadd.s32 %s21, 1
      %s29 = ssub.s32 %s21, %s28
      %p30 = scmp.eq.s32.totalorder %s29, 0
      %s32 = sadd.s32 %s31, 1
      %s33 = scalar_select %p30, %s31, %s32
      %p36 = pneg %p30
      %p37 = scmp.eq.s32.totalorder %s21, 1
      %p38 = por %p36, %p37
      %p39 = scmp.ne.s32.totalorder %s31, %s34
      %p40 = scmp.eq.s32.totalorder %s21, 0
      %p41 = por %p39, %p40
      %p42 = scmp.ne.s32.totalorder %s31, %s34
      %p43 = scmp.eq.s32.totalorder %s26, 1
      %p44 = por %p42, %p43
      %p45 = scmp.ne.s32.totalorder %s34, %s35
      %p46 = scmp.eq.s32.totalorder %s26, 0
      %p47 = por %p45, %p46
      %p48 = scmp.ne.s32.totalorder %s34, %s35
      %p49 = scmp.eq.s32.totalorder %s27, 1
      %p50 = por %p48, %p49
      %p52 = scmp.ne.s32.totalorder %s35, %s51
      %p53 = scmp.eq.s32.totalorder %s27, 0
      %p54 = por %p52, %p53
      %s56 = sadd.s32 %s55, 1
      %p59 = scmp.eq.s32.totalorder %s21, 1
      %p60 = scmp.ne.s32.totalorder %s55, %s57
      %p61 = scmp.eq.s32.totalorder %s21, 0
      %p62 = por %p60, %p61
      %p63 = scmp.ne.s32.totalorder %s55, %s57
      %p64 = scmp.eq.s32.totalorder %s26, 1
      %p65 = por %p63, %p64
      %p66 = scmp.ne.s32.totalorder %s57, %s58
      %p67 = scmp.eq.s32.totalorder %s26, 0
      %p68 = por %p66, %p67
      %p69 = scmp.ne.s32.totalorder %s57, %s58
      %p70 = scmp.eq.s32.totalorder %s27, 1
      %p71 = por %p69, %p70
      %p73 = scmp.ne.s32.totalorder %s58, %s72
      %p74 = scmp.eq.s32.totalorder %s27, 0
      %p75 = por %p73, %p74
      %s77 = sadd.s32 %s76, 1
      %p80 = scmp.eq.s32.totalorder %s21, 1
      %p81 = scmp.ne.s32.totalorder %s76, %s78
      %p82 = scmp.eq.s32.totalorder %s21, 0
      %p83 = por %p81, %p82
      %p84 = scmp.ne.s32.totalorder %s76, %s78
      %p85 = scmp.eq.s32.totalorder %s26, 1
      %p86 = por %p84, %p85
      %p87 = scmp.ne.s32.totalorder %s78, %s79
      %p88 = scmp.eq.s32.totalorder %s26, 0
      %p89 = por %p87, %p88
      %p90 = scmp.ne.s32.totalorder %s78, %s79
      %p91 = scmp.eq.s32.totalorder %s27, 1
      %p92 = por %p90, %p91
      %p94 = scmp.ne.s32.totalorder %s79, %s93
      %p95 = scmp.eq.s32.totalorder %s27, 0
      %p96 = por %p94, %p95
      %s98 = sadd.s32 %s97, 1
      %p101 = scmp.eq.s32.totalorder %s21, 1
      %p102 = scmp.ne.s32.totalorder %s97, %s99
      %p103 = scmp.eq.s32.totalorder %s21, 0
      %p104 = por %p102, %p103
      %p105 = scmp.ne.s32.totalorder %s97, %s99
      %p106 = scmp.eq.s32.totalorder %s26, 1
      %p107 = por %p105, %p106
      %p108 = scmp.ne.s32.totalorder %s99, %s100
      %p109 = scmp.eq.s32.totalorder %s26, 0
      %p110 = por %p108, %p109
      %p111 = scmp.ne.s32.totalorder %s99, %s100
      %p112 = scmp.eq.s32.totalorder %s27, 1
      %p113 = por %p111, %p112
      %p115 = scmp.ne.s32.totalorder %s100, %s114
      %p116 = scmp.eq.s32.totalorder %s27, 0
      %p117 = por %p115, %p116
      %s119 = sadd.s32 %s118, 1
      %p122 = scmp.eq.s32.totalorder %s21, 1
      %p123 = scmp.ne.s32.totalorder %s118, %s120
      %p124 = scmp.eq.s32.totalorder %s21, 0
      %p125 = por %p123, %p124
      %p126 = scmp.ne.s32.totalorder %s118, %s120
      %p127 = scmp.eq.s32.totalorder %s26, 1
      %p128 = por %p126, %p127
      %p129 = scmp.ne.s32.totalorder %s120, %s121
      %p130 = scmp.eq.s32.totalorder %s26, 0
      %p131 = por %p129, %p130
      %p132 = scmp.ne.s32.totalorder %s120, %s121
      %p133 = scmp.eq.s32.totalorder %s27, 1
      %p134 = por %p132, %p133
      %p136 = scmp.ne.s32.totalorder %s121, %s135
      %p137 = scmp.eq.s32.totalorder %s27, 0
      %p138 = por %p136, %p137
      %s140 = sadd.s32 %s139, 1
      %p143 = scmp.eq.s32.totalorder %s21, 1
      %p144 = scmp.ne.s32.totalorder %s139, %s141
      %p145 = scmp.eq.s32.totalorder %s21, 0
      %p146 = por %p144, %p145
      %p147 = scmp.ne.s32.totalorder %s139, %s141
      %p148 = scmp.eq.s32.totalorder %s26, 1
      %p149 = por %p147, %p148
      %p150 = scmp.ne.s32.totalorder %s141, %s142
      %p151 = scmp.eq.s32.totalorder %s26, 0
      %p152 = por %p150, %p151
      %p153 = scmp.ne.s32.totalorder %s141, %s142
      %p154 = scmp.eq.s32.totalorder %s27, 1
      %p155 = por %p153, %p154
      %p157 = scmp.ne.s32.totalorder %s142, %s156
      %p158 = scmp.eq.s32.totalorder %s27, 0
      %p159 = por %p157, %p158
      %s161 = sadd.s32 %s160, 1
      %p164 = scmp.eq.s32.totalorder %s21, 1
      %p165 = scmp.ne.s32.totalorder %s160, %s162
      %p166 = scmp.eq.s32.totalorder %s21, 0
      %p167 = por %p165, %p166
      %p168 = scmp.ne.s32.totalorder %s160, %s162
      %p169 = scmp.eq.s32.totalorder %s26, 1
      %p170 = por %p168, %p169
      %p171 = scmp.ne.s32.totalorder %s162, %s163
      %p172 = scmp.eq.s32.totalorder %s26, 0
      %p173 = por %p171, %p172
      %p174 = scmp.ne.s32.totalorder %s162, %s163
      %p175 = scmp.eq.s32.totalorder %s27, 1
      %p176 = por %p174, %p175
      %p178 = scmp.ne.s32.totalorder %s163, %s177
      %p179 = scmp.eq.s32.totalorder %s27, 0
      %p180 = por %p178, %p179
      %s182 = sadd.s32 %s181, 1
      %p185 = scmp.eq.s32.totalorder %s21, 1
      %p186 = scmp.ne.s32.totalorder %s181, %s183
      %p187 = scmp.eq.s32.totalorder %s21, 0
      %p188 = por %p186, %p187
      %p189 = scmp.ne.s32.totalorder %s181, %s183
      %p190 = scmp.eq.s32.totalorder %s26, 1
      %p191 = por %p189, %p190
      %p192 = scmp.ne.s32.totalorder %s183, %s184
      %p193 = scmp.eq.s32.totalorder %s26, 0
      %p194 = por %p192, %p193
      %p195 = scmp.ne.s32.totalorder %s183, %s184
      %p196 = scmp.eq.s32.totalorder %s27, 1
      %p197 = por %p195, %p196
      %p199 = scmp.ne.s32.totalorder %s184, %s198
      %p200 = scmp.eq.s32.totalorder %s27, 0
      %p201 = por %p199, %p200
      %s203 = sadd.s32 %s202, 1
      %p206 = scmp.eq.s32.totalorder %s21, 1
      %p207 = scmp.ne.s32.totalorder %s202, %s204
      %p208 = scmp.eq.s32.totalorder %s21, 0
      %p209 = por %p207, %p208
      %p210 = scmp.ne.s32.totalorder %s202, %s204
      %p211 = scmp.eq.s32.totalorder %s26, 1
      %p212 = por %p210, %p211
      %p213 = scmp.ne.s32.totalorder %s204, %s205
      %p214 = scmp.eq.s32.totalorder %s26, 0
      %p215 = por %p213, %p214
      %p216 = scmp.ne.s32.totalorder %s204, %s205
      %p217 = scmp.eq.s32.totalorder %s27, 1
      %p218 = por %p216, %p217
      %p220 = scmp.ne.s32.totalorder %s205, %s219
      %p221 = scmp.eq.s32.totalorder %s27, 0
      %p222 = por %p220, %p221
      %s224 = sadd.s32 %s223, 1
      %p227 = scmp.eq.s32.totalorder %s21, 1
      %p228 = scmp.ne.s32.totalorder %s223, %s225
      %p229 = scmp.eq.s32.totalorder %s21, 0
      %p230 = por %p228, %p229
      %p231 = scmp.ne.s32.totalorder %s223, %s225
      %p232 = scmp.eq.s32.totalorder %s26, 1
      %p233 = por %p231, %p232
      %p234 = scmp.ne.s32.totalorder %s225, %s226
      %p235 = scmp.eq.s32.totalorder %s26, 0
      %p236 = por %p234, %p235
      %p237 = scmp.ne.s32.totalorder %s225, %s226
      %p238 = scmp.eq.s32.totalorder %s27, 1
      %p239 = por %p237, %p238
      %p241 = scmp.ne.s32.totalorder %s226, %s240
      %p242 = scmp.eq.s32.totalorder %s27, 0
      %p243 = por %p241, %p242
      %s245 = sadd.s32 %s244, 1
      %p248 = scmp.eq.s32.totalorder %s21, 1
      %p249 = scmp.ne.s32.totalorder %s244, %s246
      %p250 = scmp.eq.s32.totalorder %s21, 0
      %p251 = por %p249, %p250
      %p252 = scmp.ne.s32.totalorder %s244, %s246
      %p253 = scmp.eq.s32.totalorder %s26, 1
      %p254 = por %p252, %p253
      %p255 = scmp.ne.s32.totalorder %s246, %s247
      %p256 = scmp.eq.s32.totalorder %s26, 0
      %p257 = por %p255, %p256
      %p258 = scmp.ne.s32.totalorder %s246, %s247
      %p259 = scmp.eq.s32.totalorder %s27, 1
      %p260 = por %p258, %p259
      %p262 = scmp.ne.s32.totalorder %s247, %s261
      %p263 = scmp.eq.s32.totalorder %s27, 0
      %p264 = por %p262, %p263
      %s266 = sadd.s32 %s265, 1
      %p269 = scmp.eq.s32.totalorder %s21, 1
      %p270 = scmp.ne.s32.totalorder %s265, %s267
      %p271 = scmp.eq.s32.totalorder %s21, 0
      %p272 = por %p270, %p271
      %p273 = scmp.ne.s32.totalorder %s265, %s267
      %p274 = scmp.eq.s32.totalorder %s26, 1
      %p275 = por %p273, %p274
      %p276 = scmp.ne.s32.totalorder %s267, %s268
      %p277 = scmp.eq.s32.totalorder %s26, 0
      %p278 = por %p276, %p277
      %p279 = scmp.ne.s32.totalorder %s267, %s268
      %p280 = scmp.eq.s32.totalorder %s27, 1
      %p281 = por %p279, %p280
      %p283 = scmp.ne.s32.totalorder %s268, %s282
      %p284 = scmp.eq.s32.totalorder %s27, 0
      %p285 = por %p283, %p284
      %s286 = ssub.s32 %s21, %s28
      %p287 = scmp.eq.s32.totalorder %s286, 0
      %s289 = sadd.s32 %s288, 1
      %s290 = scalar_select %p287, %s288, %s289
      %p293 = pneg %p287
      %p294 = scmp.eq.s32.totalorder %s21, 1
      %p295 = por %p293, %p294
      %p296 = scmp.ne.s32.totalorder %s288, %s291
      %p297 = scmp.eq.s32.totalorder %s21, 0
      %p298 = por %p296, %p297
      %p299 = scmp.ne.s32.totalorder %s288, %s291
      %p300 = scmp.eq.s32.totalorder %s26, 1
      %p301 = por %p299, %p300
      %p302 = scmp.ne.s32.totalorder %s291, %s292
      %p303 = scmp.eq.s32.totalorder %s26, 0
      %p304 = por %p302, %p303
      %p305 = scmp.ne.s32.totalorder %s291, %s292
      %p306 = scmp.eq.s32.totalorder %s27, 1
      %p307 = por %p305, %p306
      %p309 = scmp.ne.s32.totalorder %s292, %s308
      %p310 = scmp.eq.s32.totalorder %s27, 0
      %p311 = por %p309, %p310
      %p312 = scmp.le.s32.totalorder 1, %s21
      %p313 = scmp.lt.s32.totalorder %s21, 3
      %p314 = pnand %p312, %p313
      %p315 = pneg %p314
      // Predicated region
      $region9: #{model_x0_forward.2} parent=5 // pred_check
        _
      $region10: #{model_x0_forward.2} parent=5 // pred_check_branch
        %317 = sbr.rel (%p314) target = $region12
      $region11: #{model_x0_forward.2} parent=5 // pred_region
        %s318 = ssub.s32 %s21, 1
        // Predicated region
        $region13: #{model_x0_forward.2} parent=11 // pred_check
          %p319 = pneg %p68
        $region14: #{model_x0_forward.2} parent=11 // pred_check_branch
          %321 = sbr.rel (%p319) target = $region16
        $region15: #{model_x0_forward.2} parent=11 // pred_region
          %323 = vsyncadd [#allocation4], 0
          %s324 = sshll.u32 %s1, 4
          %s325 = int_to_ptr.hbm [resolvable:$true] %s324
          %s326 = sshll.u32 [#allocation3], 4
          %s327 = int_to_ptr.vmem [resolvable:$true] %s326
          %332 = dma.hbm_to_vmem [thread:$0]  %s325, 5376, %s327, [#allocation4], 64, 64, 4
        $region16: #{model_x0_forward.2} parent=11 // pred_fallthru
          _
        // Predicated region
        $region17: #{model_x0_forward.2} parent=11 // pred_check
          %p333 = pneg %p89
        $region18: #{model_x0_forward.2} parent=11 // pred_check_branch
          %335 = sbr.rel (%p333) target = $region20
        $region19: #{model_x0_forward.2} parent=11 // pred_region
          %337 = vsyncadd [#allocation6], 0
          %s338 = sshll.u32 %s2, 4
          %s339 = int_to_ptr.hbm [resolvable:$true] %s338
          %s340 = sshll.u32 [#allocation5], 4
          %s341 = int_to_ptr.vmem [resolvable:$true] %s340
          %346 = dma.hbm_to_vmem [thread:$0]  %s339, 896, %s341, [#allocation6], 64, 64, 4
        $region20: #{model_x0_forward.2} parent=11 // pred_fallthru
          _
        // Predicated region
        $region21: #{model_x0_forward.2} parent=11 // pred_check
          %p347 = pneg %p110
        $region22: #{model_x0_forward.2} parent=11 // pred_check_branch
          %349 = sbr.rel (%p347) target = $region24
        $region23: #{model_x0_forward.2} parent=11 // pred_region
          %351 = vsyncadd [#allocation6], 0
          %s352 = sshll.u32 %s3, 4
          %s353 = int_to_ptr.hbm [resolvable:$true] %s352
          %s354 = sshll.u32 [#allocation7], 4
          %s355 = int_to_ptr.vmem [resolvable:$true] %s354
          %360 = dma.hbm_to_vmem [thread:$0]  %s353, 1536, %s355, [#allocation6], 64, 64, 4
        $region24: #{model_x0_forward.2} parent=11 // pred_fallthru
          _
        // Predicated region
        $region25: #{model_x0_forward.2} parent=11 // pred_check
          %p361 = pneg %p131
        $region26: #{model_x0_forward.2} parent=11 // pred_check_branch
          %363 = sbr.rel (%p361) target = $region28
        $region27: #{model_x0_forward.2} parent=11 // pred_region
          _
        $region28: #{model_x0_forward.2} parent=11 // pred_fallthru
          _
        // Predicated region
        $region29: #{model_x0_forward.2} parent=11 // pred_check
          %p364 = pneg %p152
        $region30: #{model_x0_forward.2} parent=11 // pred_check_branch
          %366 = sbr.rel (%p364) target = $region32
        $region31: #{model_x0_forward.2} parent=11 // pred_region
          _
        $region32: #{model_x0_forward.2} parent=11 // pred_fallthru
          _
        // Predicated region
        $region33: #{model_x0_forward.2} parent=11 // pred_check
          %p367 = pneg %p173
        $region34: #{model_x0_forward.2} parent=11 // pred_check_branch
          %369 = sbr.rel (%p367) target = $region36
        $region35: #{model_x0_forward.2} parent=11 // pred_region
          _
        $region36: #{model_x0_forward.2} parent=11 // pred_fallthru
          _
        // Predicated region
        $region37: #{model_x0_forward.2} parent=11 // pred_check
          %p370 = pneg %p194
        $region38: #{model_x0_forward.2} parent=11 // pred_check_branch
          %372 = sbr.rel (%p370) target = $region40
        $region39: #{model_x0_forward.2} parent=11 // pred_region
          _
        $region40: #{model_x0_forward.2} parent=11 // pred_fallthru
          _
        // Predicated region
        $region41: #{model_x0_forward.2} parent=11 // pred_check
          %p373 = pneg %p215
        $region42: #{model_x0_forward.2} parent=11 // pred_check_branch
          %375 = sbr.rel (%p373) target = $region44
        $region43: #{model_x0_forward.2} parent=11 // pred_region
          _
        $region44: #{model_x0_forward.2} parent=11 // pred_fallthru
          _
        // Predicated region
        $region45: #{model_x0_forward.2} parent=11 // pred_check
          %p376 = pneg %p236
        $region46: #{model_x0_forward.2} parent=11 // pred_check_branch
          %378 = sbr.rel (%p376) target = $region48
        $region47: #{model_x0_forward.2} parent=11 // pred_region
          %380 = vsyncadd [#allocation9], 0
          %s381 = sshll.u32 %s9, 4
          %s382 = int_to_ptr.hbm [resolvable:$true] %s381
          %s383 = sshll.u32 [#allocation8], 4
          %s384 = int_to_ptr.vmem [resolvable:$true] %s383
          %389 = dma.hbm_to_vmem [thread:$0]  %s382, 3584, %s384, [#allocation9], 64, 64, 4
        $region48: #{model_x0_forward.2} parent=11 // pred_fallthru
          _
        // Predicated region
        $region49: #{model_x0_forward.2} parent=11 // pred_check
          %p390 = pneg %p257
        $region50: #{model_x0_forward.2} parent=11 // pred_check_branch
          %392 = sbr.rel (%p390) target = $region52
        $region51: #{model_x0_forward.2} parent=11 // pred_region
          %394 = vsyncadd [#allocation9], 0
          %s395 = sshll.u32 %s10, 4
          %s396 = int_to_ptr.hbm [resolvable:$true] %s395
          %s397 = sshll.u32 [#allocation10], 4
          %s398 = int_to_ptr.vmem [resolvable:$true] %s397
          %403 = dma.hbm_to_vmem [thread:$0]  %s396, 3584, %s398, [#allocation9], 64, 64, 4
        $region52: #{model_x0_forward.2} parent=11 // pred_fallthru
          _
        // Predicated region
        $region53: #{model_x0_forward.2} parent=11 // pred_check
          %p404 = pneg %p278
        $region54: #{model_x0_forward.2} parent=11 // pred_check_branch
          %406 = sbr.rel (%p404) target = $region56
        $region55: #{model_x0_forward.2} parent=11 // pred_region
          _
        $region56: #{model_x0_forward.2} parent=11 // pred_fallthru
          _
      $region12: #{model_x0_forward.2} parent=5 // pred_fallthru
        _
      %p407 = scmp.lt.s32.totalorder %s21, 2
      // Predicated region
      $region57: #{model_x0_forward.2} parent=5 // pred_check
        %p408 = pneg %p407
      $region58: #{model_x0_forward.2} parent=5 // pred_check_branch
        %410 = sbr.rel (%p408) target = $region60
      $region59: #{model_x0_forward.2} parent=5 // pred_region
        // Predicated region
        $region61: #{model_x0_forward.2} parent=59 // pred_check
          %p411 = pneg %p41
        $region62: #{model_x0_forward.2} parent=59 // pred_check_branch
          %413 = sbr.rel (%p411) target = $region64
        $region63: #{model_x0_forward.2} parent=59 // pred_region
          %p414 = scmp.lt.s32.totalorder %s21, 1
          %s415 = scalar_select %p414, %s21, 1
          %s416 = smul.addr %s415, 4
          %s417 = scalar_lea.vmem %s0, %s416
        $region64: #{model_x0_forward.2} parent=59 // pred_fallthru
          _
      $region60: #{model_x0_forward.2} parent=5 // pred_fallthru
        _
      %p418 = scmp.le.s32.totalorder 1, %s21
      %p419 = scmp.lt.s32.totalorder %s21, 3
      %p420 = pnand %p418, %p419
      %p421 = pneg %p420
      // Predicated region
      $region65: #{model_x0_forward.2} parent=5 // pred_check
        _
      $region66: #{model_x0_forward.2} parent=5 // pred_check_branch
        %423 = sbr.rel (%p420) target = $region68
      $region67: #{model_x0_forward.2} parent=5 // pred_region
        %s424 = ssub.s32 %s21, 1
        // Predicated region
        $region69: #{model_x0_forward.2} parent=67 // pred_check
          %p425 = pneg %p68
        $region70: #{model_x0_forward.2} parent=67 // pred_check_branch
          %427 = sbr.rel (%p425) target = $region72
        $region71: #{model_x0_forward.2} parent=67 // pred_region
          %429 = dma.done [#allocation4], 5376
        $region72: #{model_x0_forward.2} parent=67 // pred_fallthru
          _
        // Predicated region
        $region73: #{model_x0_forward.2} parent=67 // pred_check
          %p430 = pneg %p89
        $region74: #{model_x0_forward.2} parent=67 // pred_check_branch
          %432 = sbr.rel (%p430) target = $region76
        $region75: #{model_x0_forward.2} parent=67 // pred_region
          %434 = dma.done [#allocation6], 896
        $region76: #{model_x0_forward.2} parent=67 // pred_fallthru
          _
        // Predicated region
        $region77: #{model_x0_forward.2} parent=67 // pred_check
          %p435 = pneg %p110
        $region78: #{model_x0_forward.2} parent=67 // pred_check_branch
          %437 = sbr.rel (%p435) target = $region80
        $region79: #{model_x0_forward.2} parent=67 // pred_region
          %439 = dma.done [#allocation6], 1536
        $region80: #{model_x0_forward.2} parent=67 // pred_fallthru
          _
        // Predicated region
        $region81: #{model_x0_forward.2} parent=67 // pred_check
          %p440 = pneg %p236
        $region82: #{model_x0_forward.2} parent=67 // pred_check_branch
          %442 = sbr.rel (%p440) target = $region84
        $region83: #{model_x0_forward.2} parent=67 // pred_region
          %444 = dma.done [#allocation9], 3584
        $region84: #{model_x0_forward.2} parent=67 // pred_fallthru
          _
        // Predicated region
        $region85: #{model_x0_forward.2} parent=67 // pred_check
          %p445 = pneg %p257
        $region86: #{model_x0_forward.2} parent=67 // pred_check_branch
          %447 = sbr.rel (%p445) target = $region88
        $region87: #{model_x0_forward.2} parent=67 // pred_region
          %449 = dma.done [#allocation9], 3584
        $region88: #{model_x0_forward.2} parent=67 // pred_fallthru
          _
        %p450 = scmp.lt.s32.totalorder %s26, 1
        %s451 = scalar_select %p450, %s26, 1
        %s452 = smul.addr %s451, 4
        %s453 = scalar_lea.vmem %s0, %s452
        %p454 = pneg %p47
        %p455 = pneg %p44
        %p456 = pneg %p68
        %p457 = pneg %p65
        %p458 = pneg %p89
        %p459 = pneg %p86
        %p460 = pneg %p110
        %p461 = pneg %p107
        %p462 = pneg %p131
        %p463 = pneg %p128
        %p464 = pneg %p152
        %p465 = pneg %p149
        %p466 = pneg %p173
        %p467 = pneg %p170
        %p468 = pneg %p194
        %p469 = pneg %p191
        %p470 = pneg %p215
        %p471 = pneg %p212
        %p472 = pneg %p236
        %p473 = pneg %p233
        %p474 = pneg %p257
        %p475 = pneg %p254
        %p476 = pneg %p278
        %p477 = pneg %p275
        %p478 = pneg %p304
        %p479 = pneg %p301
        %p480 = scmp.lt.s32.totalorder %s26, 1
        %s481 = scalar_select %p480, %s26, 1
        %s482 = smul.addr %s481, 8
        %s483 = smul.addr %s482, 8
        %s484 = scalar_lea.vmem %s12, %s483
        %p485 = scmp.lt.s32.totalorder %s26, 1
        %s486 = scalar_select %p485, %s26, 1
        %s487 = smul.addr %s486, 4
        %s488 = scalar_lea.vmem %s0, %s487
        %p489 = scmp.lt.s32.totalorder %s26, 1
        %s490 = scalar_select %p489, %s26, 1
        %s491 = smul.addr %s490, 8
        %s492 = smul.addr %s491, 8
        %s493 = scalar_lea.vmem %s12, %s492
        %v495 = vld [vmem:[%s488] sm:$0x7]
        %vm496 = vcmask 894976
        %497 = vst.msk [vmem:[#allocation2] sm:$0x7] %vm496, %v495
        %v498 = vld [vmem:[#allocation2] sm:$0x7]
        %v499 = vpack.c.bf16 %v498, %v498
        %v500 = vld [vmem:[%s4] sm:$0xf]
        %v501 = vld [vmem:[%s4 + $0x4] sm:$0x3]
        %v502 = vld [vmem:[#allocation3] sm:$0xf]
        %v503 = vld [vmem:[#allocation3 + $0x4] sm:$0xf]
        %v504 = vld [vmem:[#allocation3 + $0x8] sm:$0xf]
        %v505 = vld [vmem:[#allocation3 + $0xc] sm:$0xf]
        %v506 = vld [vmem:[#allocation3 + $0x10] sm:$0xf]
        %v507 = vld [vmem:[#allocation3 + $0x14] sm:$0xf]
        %v508 = vld [vmem:[#allocation3 + $0x18] sm:$0xf]
        %v509 = vld [vmem:[#allocation3 + $0x1c] sm:$0xf]
        %v510 = vld [vmem:[#allocation3 + $0x20] sm:$0xf]
        %v511 = vld [vmem:[#allocation3 + $0x24] sm:$0xf]
        %v512 = vld [vmem:[#allocation3 + $0x28] sm:$0xf]
        %v513 = vld [vmem:[#allocation3 + $0x2c] sm:$0xf]
        %v514 = vld [vmem:[#allocation3 + $0x30] sm:$0xf]
        %v515 = vld [vmem:[#allocation3 + $0x34] sm:$0x7]
        %v530 = vunpack.c.l.b16 %v502
        %v531 = vunpack.c.l.b16 %v503
        %v532 = vunpack.c.l.b16 %v504
        %v533 = vunpack.c.l.b16 %v505
        %v534 = vunpack.c.l.b16 %v506
        %v535 = vunpack.c.l.b16 %v507
        %v536 = vunpack.c.l.b16 %v508
        %v537 = vunpack.c.l.b16 %v509
        %v538 = vunpack.c.l.b16 %v510
        %v539 = vunpack.c.l.b16 %v511
        %v540 = vunpack.c.l.b16 %v512
        %v541 = vunpack.c.l.b16 %v513
        %v542 = vunpack.c.l.b16 %v514
        %v543 = vunpack.c.l.b16 %v515
        %v544 = vpack.c.b16 %v531, %v530
        %v545 = vpack.c.b16 %v533, %v532
        %v546 = vpack.c.b16 %v535, %v534
        %v547 = vpack.c.b16 %v537, %v536
        %v548 = vpack.c.b16 %v539, %v538
        %v549 = vpack.c.b16 %v541, %v540
        %v550 = vpack.c.b16 %v543, %v542
        %vm557 = vcmask 900096
        %v559 = vsel %vm557, %v499, 0
        %vm561 = vcmask 1046528
        %v563 = vsel %vm561, %v550, 0
        %565 = vmatpush.bf16.msra.mxu0 0
        %566 = vmatpush.bf16.msra.mxu0 %v563
        %567 = vmatpush.bf16.msra.mxu0 %v549
        %568 = vmatpush.bf16.msra.mxu0 %v548
        %569 = vmatpush.bf16.msra.mxu0 %v547
        %570 = vmatpush.bf16.msra.mxu0 %v546
        %571 = vmatpush.bf16.msra.mxu0 %v545
        %572 = vmatpush.bf16.msra.mxu0 %v544
        %573 = vmatmul.bf16.gmra.mxu0 %v559
        %v574 = vpop.f32.mrf.mxu0
        %v575 = vadd.f32 0.0, %v574
        %v576 = vpop.f32.mrf.mxu0
        %577 = vdwg.mxu0
        %v578 = vpack.c.bf16 %v575, %v575
        %s579 = scalar_lea.vmem %s4, 8
        %v580 = vld [vmem:[%s579] sm:$0xf]
        %v581 = vld [vmem:[%s579 + $0x4] sm:$0x3]
        %v584 = vunpack.c.l.b16 %v580
        %v585 = vunpack.c.l.b16 %v581
        %v586 = vpack.c.b16 %v585, %v584
        %vm587 = vcmask 23552
        %v589 = vsel %vm587, %v586, 0
        %vm591 = vcmask 1040384
        %vm592 = vcmask 1041408
        %v593 = vsel %vm591, 4294967295, 65535
        %v594 = vsel %vm592, %v593, 0
        %v596 = vand.u32 %v578, %v594
        %598 = vmatpush.bf16.msra.mxu0 0
        %599 = vmatpush.bf16.msra.mxu0 0
        %600 = vmatpush.bf16.msra.mxu0 0
        %601 = vmatpush.bf16.msra.mxu0 0
        %602 = vmatpush.bf16.msra.mxu0 0
        %603 = vmatpush.bf16.msra.mxu0 0
        %604 = vmatpush.bf16.msra.mxu0 0
        %605 = vmatpush.bf16.msra.mxu0 %v596
        %606 = vmatmul.bf16.gmra.mxu0 %v589
        %v607 = vpop.f32.mrf.mxu0
        %v608 = vadd.f32 0.0, %v607
        %v609 = vpop.f32.mrf.mxu0
        %v610 = vadd.f32 0.0, %v609
        %611 = vdwg.mxu0
        %v614 = vunpack.c.l.b16 %v500
        %v615 = vunpack.c.l.b16 %v501
        %v616 = vpack.c.b16 %v615, %v614
        %v618 = vsel %vm587, %v616, 0
        %v620 = vand.u32 %v499, %v594
        %622 = vmatpush.bf16.msra.mxu0 0
        %623 = vmatpush.bf16.msra.mxu0 0
        %624 = vmatpush.bf16.msra.mxu0 0
        %625 = vmatpush.bf16.msra.mxu0 0
        %626 = vmatpush.bf16.msra.mxu0 0
        %627 = vmatpush.bf16.msra.mxu0 0
        %628 = vmatpush.bf16.msra.mxu0 0
        %629 = vmatpush.bf16.msra.mxu0 %v620
        %630 = vmatmul.bf16.gmra.mxu0 %v618
        %v631 = vpop.f32.mrf.mxu0
        %v632 = vadd.f32 %v608, %v631
        %v633 = vpop.f32.mrf.mxu0
        %v634 = vadd.f32 %v610, %v633
        %635 = vdwg.mxu0
        %s636 = scalar_lea.vmem [#allocation3], 56
        %v637 = vld [vmem:[%s636] sm:$0xf]
        %v638 = vld [vmem:[%s636 + $0x4] sm:$0xf]
        %v639 = vld [vmem:[%s636 + $0x8] sm:$0xf]
        %v640 = vld [vmem:[%s636 + $0xc] sm:$0xf]
        %v641 = vld [vmem:[%s636 + $0x10] sm:$0xf]
        %v642 = vld [vmem:[%s636 + $0x14] sm:$0xf]
        %v643 = vld [vmem:[%s636 + $0x18] sm:$0xf]
        %v644 = vld [vmem:[%s636 + $0x1c] sm:$0xf]
        %v645 = vld [vmem:[%s636 + $0x20] sm:$0xf]
        %v646 = vld [vmem:[%s636 + $0x24] sm:$0xf]
        %v647 = vld [vmem:[%s636 + $0x28] sm:$0xf]
        %v648 = vld [vmem:[%s636 + $0x2c] sm:$0xf]
        %v649 = vld [vmem:[%s636 + $0x30] sm:$0xf]
        %v650 = vld [vmem:[%s636 + $0x34] sm:$0x7]
        %v665 = vunpack.c.l.b16 %v637
        %v666 = vunpack.c.l.b16 %v638
        %v667 = vunpack.c.l.b16 %v639
        %v668 = vunpack.c.l.b16 %v640
        %v669 = vunpack.c.l.b16 %v641
        %v670 = vunpack.c.l.b16 %v642
        %v671 = vunpack.c.l.b16 %v643
        %v672 = vunpack.c.l.b16 %v644
        %v673 = vunpack.c.l.b16 %v645
        %v674 = vunpack.c.l.b16 %v646
        %v675 = vunpack.c.l.b16 %v647
        %v676 = vunpack.c.l.b16 %v648
        %v677 = vunpack.c.l.b16 %v649
        %v678 = vunpack.c.l.b16 %v650
        %v679 = vpack.c.b16 %v666, %v665
        %v680 = vpack.c.b16 %v668, %v667
        %v681 = vpack.c.b16 %v670, %v669
        %v682 = vpack.c.b16 %v672, %v671
        %v683 = vpack.c.b16 %v674, %v673
        %v684 = vpack.c.b16 %v676, %v675
        %v685 = vpack.c.b16 %v678, %v677
        %v693 = vsel %vm561, %v685, 0
        %695 = vmatpush.bf16.msra.mxu0 0
        %696 = vmatpush.bf16.msra.mxu0 %v693
        %697 = vmatpush.bf16.msra.mxu0 %v684
        %698 = vmatpush.bf16.msra.mxu0 %v683
        %699 = vmatpush.bf16.msra.mxu0 %v682
        %700 = vmatpush.bf16.msra.mxu0 %v681
        %701 = vmatpush.bf16.msra.mxu0 %v680
        %702 = vmatpush.bf16.msra.mxu0 %v679
        %703 = vmatmul.bf16.gmra.mxu0 %v559
        %v704 = vpop.f32.mrf.mxu0
        %v705 = vadd.f32 0.0, %v704
        %v706 = vpop.f32.mrf.mxu0
        %707 = vdwg.mxu0
        %v708 = vpack.c.bf16 %v705, %v705
        %s709 = scalar_lea.vmem %s4, 16
        %v710 = vld [vmem:[%s709] sm:$0xf]
        %v711 = vld [vmem:[%s709 + $0x4] sm:$0x3]
        %v714 = vunpack.c.l.b16 %v710
        %v715 = vunpack.c.l.b16 %v711
        %v716 = vpack.c.b16 %v715, %v714
        %v718 = vsel %vm587, %v716, 0
        %v721 = vand.u32 %v708, %v594
        %723 = vmatpush.bf16.msra.mxu0 0
        %724 = vmatpush.bf16.msra.mxu0 0
        %725 = vmatpush.bf16.msra.mxu0 0
        %726 = vmatpush.bf16.msra.mxu0 0
        %727 = vmatpush.bf16.msra.mxu0 0
        %728 = vmatpush.bf16.msra.mxu0 0
        %729 = vmatpush.bf16.msra.mxu0 0
        %730 = vmatpush.bf16.msra.mxu0 %v721
        %731 = vmatmul.bf16.gmra.mxu0 %v718
        %v732 = vpop.f32.mrf.mxu0
        %v733 = vadd.f32 0.0, %v732
        %v734 = vpop.f32.mrf.mxu0
        %v735 = vadd.f32 0.0, %v734
        %736 = vdwg.mxu0
        %v737 = vadd.f32 %v632, %v733
        %v738 = vadd.f32 %v634, %v735
        %s739 = scalar_lea.vmem [#allocation3], 112
        %v740 = vld [vmem:[%s739] sm:$0xf]
        %v741 = vld [vmem:[%s739 + $0x4] sm:$0xf]
        %v742 = vld [vmem:[%s739 + $0x8] sm:$0xf]
        %v743 = vld [vmem:[%s739 + $0xc] sm:$0xf]
        %v744 = vld [vmem:[%s739 + $0x10] sm:$0xf]
        %v745 = vld [vmem:[%s739 + $0x14] sm:$0xf]
        %v746 = vld [vmem:[%s739 + $0x18] sm:$0xf]
        %v747 = vld [vmem:[%s739 + $0x1c] sm:$0xf]
        %v748 = vld [vmem:[%s739 + $0x20] sm:$0xf]
        %v749 = vld [vmem:[%s739 + $0x24] sm:$0xf]
        %v750 = vld [vmem:[%s739 + $0x28] sm:$0xf]
        %v751 = vld [vmem:[%s739 + $0x2c] sm:$0xf]
        %v752 = vld [vmem:[%s739 + $0x30] sm:$0xf]
        %v753 = vld [vmem:[%s739 + $0x34] sm:$0x7]
        %v768 = vunpack.c.l.b16 %v740
        %v769 = vunpack.c.l.b16 %v741
        %v770 = vunpack.c.l.b16 %v742
        %v771 = vunpack.c.l.b16 %v743
        %v772 = vunpack.c.l.b16 %v744
        %v773 = vunpack.c.l.b16 %v745
        %v774 = vunpack.c.l.b16 %v746
        %v775 = vunpack.c.l.b16 %v747
        %v776 = vunpack.c.l.b16 %v748
        %v777 = vunpack.c.l.b16 %v749
        %v778 = vunpack.c.l.b16 %v750
        %v779 = vunpack.c.l.b16 %v751
        %v780 = vunpack.c.l.b16 %v752
        %v781 = vunpack.c.l.b16 %v753
        %v782 = vpack.c.b16 %v769, %v768
        %v783 = vpack.c.b16 %v771, %v770
        %v784 = vpack.c.b16 %v773, %v772
        %v785 = vpack.c.b16 %v775, %v774
        %v786 = vpack.c.b16 %v777, %v776
        %v787 = vpack.c.b16 %v779, %v778
        %v788 = vpack.c.b16 %v781, %v780
        %v796 = vsel %vm561, %v788, 0
        %798 = vmatpush.bf16.msra.mxu0 0
        %799 = vmatpush.bf16.msra.mxu0 %v796
        %800 = vmatpush.bf16.msra.mxu0 %v787
        %801 = vmatpush.bf16.msra.mxu0 %v786
        %802 = vmatpush.bf16.msra.mxu0 %v785
        %803 = vmatpush.bf16.msra.mxu0 %v784
        %804 = vmatpush.bf16.msra.mxu0 %v783
        %805 = vmatpush.bf16.msra.mxu0 %v782
        %806 = vmatmul.bf16.gmra.mxu0 %v559
        %v807 = vpop.f32.mrf.mxu0
        %v808 = vadd.f32 0.0, %v807
        %v809 = vpop.f32.mrf.mxu0
        %810 = vdwg.mxu0
        %v811 = vpack.c.bf16 %v808, %v808
        %s812 = scalar_lea.vmem %s4, 24
        %v813 = vld [vmem:[%s812] sm:$0xf]
        %v814 = vld [vmem:[%s812 + $0x4] sm:$0x3]
        %v817 = vunpack.c.l.b16 %v813
        %v818 = vunpack.c.l.b16 %v814
        %v819 = vpack.c.b16 %v818, %v817
        %v821 = vsel %vm587, %v819, 0
        %v824 = vand.u32 %v811, %v594
        %826 = vmatpush.bf16.msra.mxu0 0
        %827 = vmatpush.bf16.msra.mxu0 0
        %828 = vmatpush.bf16.msra.mxu0 0
        %829 = vmatpush.bf16.msra.mxu0 0
        %830 = vmatpush.bf16.msra.mxu0 0
        %831 = vmatpush.bf16.msra.mxu0 0
        %832 = vmatpush.bf16.msra.mxu0 0
        %833 = vmatpush.bf16.msra.mxu0 %v824
        %834 = vmatmul.bf16.gmra.mxu0 %v821
        %v835 = vpop.f32.mrf.mxu0
        %v836 = vadd.f32 0.0, %v835
        %v837 = vpop.f32.mrf.mxu0
        %v838 = vadd.f32 0.0, %v837
        %839 = vdwg.mxu0
        %v840 = vadd.f32 %v737, %v836
        %v841 = vadd.f32 %v738, %v838
        %s842 = scalar_lea.vmem [#allocation3], 168
        %v843 = vld [vmem:[%s842] sm:$0xf]
        %v844 = vld [vmem:[%s842 + $0x4] sm:$0xf]
        %v845 = vld [vmem:[%s842 + $0x8] sm:$0xf]
        %v846 = vld [vmem:[%s842 + $0xc] sm:$0xf]
        %v847 = vld [vmem:[%s842 + $0x10] sm:$0xf]
        %v848 = vld [vmem:[%s842 + $0x14] sm:$0xf]
        %v849 = vld [vmem:[%s842 + $0x18] sm:$0xf]
        %v850 = vld [vmem:[%s842 + $0x1c] sm:$0xf]
        %v851 = vld [vmem:[%s842 + $0x20] sm:$0xf]
        %v852 = vld [vmem:[%s842 + $0x24] sm:$0xf]
        %v853 = vld [vmem:[%s842 + $0x28] sm:$0xf]
        %v854 = vld [vmem:[%s842 + $0x2c] sm:$0xf]
        %v855 = vld [vmem:[%s842 + $0x30] sm:$0xf]
        %v856 = vld [vmem:[%s842 + $0x34] sm:$0x7]
        %v871 = vunpack.c.l.b16 %v843
        %v872 = vunpack.c.l.b16 %v844
        %v873 = vunpack.c.l.b16 %v845
        %v874 = vunpack.c.l.b16 %v846
        %v875 = vunpack.c.l.b16 %v847
        %v876 = vunpack.c.l.b16 %v848
        %v877 = vunpack.c.l.b16 %v849
        %v878 = vunpack.c.l.b16 %v850
        %v879 = vunpack.c.l.b16 %v851
        %v880 = vunpack.c.l.b16 %v852
        %v881 = vunpack.c.l.b16 %v853
        %v882 = vunpack.c.l.b16 %v854
        %v883 = vunpack.c.l.b16 %v855
        %v884 = vunpack.c.l.b16 %v856
        %v885 = vpack.c.b16 %v872, %v871
        %v886 = vpack.c.b16 %v874, %v873
        %v887 = vpack.c.b16 %v876, %v875
        %v888 = vpack.c.b16 %v878, %v877
        %v889 = vpack.c.b16 %v880, %v879
        %v890 = vpack.c.b16 %v882, %v881
        %v891 = vpack.c.b16 %v884, %v883
        %v899 = vsel %vm561, %v891, 0
        %901 = vmatpush.bf16.msra.mxu0 0
        %902 = vmatpush.bf16.msra.mxu0 %v899
        %903 = vmatpush.bf16.msra.mxu0 %v890
        %904 = vmatpush.bf16.msra.mxu0 %v889
        %905 = vmatpush.bf16.msra.mxu0 %v888
        %906 = vmatpush.bf16.msra.mxu0 %v887
        %907 = vmatpush.bf16.msra.mxu0 %v886
        %908 = vmatpush.bf16.msra.mxu0 %v885
        %909 = vmatmul.bf16.gmra.mxu0 %v559
        %v910 = vpop.f32.mrf.mxu0
        %v911 = vadd.f32 0.0, %v910
        %v912 = vpop.f32.mrf.mxu0
        %913 = vdwg.mxu0
        %v914 = vpack.c.bf16 %v911, %v911
        %s915 = scalar_lea.vmem %s4, 32
        %v916 = vld [vmem:[%s915] sm:$0xf]
        %v917 = vld [vmem:[%s915 + $0x4] sm:$0x3]
        %v920 = vunpack.c.l.b16 %v916
        %v921 = vunpack.c.l.b16 %v917
        %v922 = vpack.c.b16 %v921, %v920
        %v924 = vsel %vm587, %v922, 0
        %v927 = vand.u32 %v914, %v594
        %929 = vmatpush.bf16.msra.mxu0 0
        %930 = vmatpush.bf16.msra.mxu0 0
        %931 = vmatpush.bf16.msra.mxu0 0
        %932 = vmatpush.bf16.msra.mxu0 0
        %933 = vmatpush.bf16.msra.mxu0 0
        %934 = vmatpush.bf16.msra.mxu0 0
        %935 = vmatpush.bf16.msra.mxu0 0
        %936 = vmatpush.bf16.msra.mxu0 %v927
        %937 = vmatmul.bf16.gmra.mxu0 %v924
        %v938 = vpop.f32.mrf.mxu0
        %v939 = vadd.f32 0.0, %v938
        %v940 = vpop.f32.mrf.mxu0
        %v941 = vadd.f32 0.0, %v940
        %942 = vdwg.mxu0
        %v943 = vadd.f32 %v840, %v939
        %v944 = vadd.f32 %v841, %v941
        %s945 = scalar_lea.vmem [#allocation3], 224
        %v946 = vld [vmem:[%s945] sm:$0xf]
        %v947 = vld [vmem:[%s945 + $0x4] sm:$0xf]
        %v948 = vld [vmem:[%s945 + $0x8] sm:$0xf]
        %v949 = vld [vmem:[%s945 + $0xc] sm:$0xf]
        %v950 = vld [vmem:[%s945 + $0x10] sm:$0xf]
        %v951 = vld [vmem:[%s945 + $0x14] sm:$0xf]
        %v952 = vld [vmem:[%s945 + $0x18] sm:$0xf]
        %v953 = vld [vmem:[%s945 + $0x1c] sm:$0xf]
        %v954 = vld [vmem:[%s945 + $0x20] sm:$0xf]
        %v955 = vld [vmem:[%s945 + $0x24] sm:$0xf]
        %v956 = vld [vmem:[%s945 + $0x28] sm:$0xf]
        %v957 = vld [vmem:[%s945 + $0x2c] sm:$0xf]
        %v958 = vld [vmem:[%s945 + $0x30] sm:$0xf]
        %v959 = vld [vmem:[%s945 + $0x34] sm:$0x7]
        %v974 = vunpack.c.l.b16 %v946
        %v975 = vunpack.c.l.b16 %v947
        %v976 = vunpack.c.l.b16 %v948
        %v977 = vunpack.c.l.b16 %v949
        %v978 = vunpack.c.l.b16 %v950
        %v979 = vunpack.c.l.b16 %v951
        %v980 = vunpack.c.l.b16 %v952
        %v981 = vunpack.c.l.b16 %v953
        %v982 = vunpack.c.l.b16 %v954
        %v983 = vunpack.c.l.b16 %v955
        %v984 = vunpack.c.l.b16 %v956
        %v985 = vunpack.c.l.b16 %v957
        %v986 = vunpack.c.l.b16 %v958
        %v987 = vunpack.c.l.b16 %v959
        %v988 = vpack.c.b16 %v975, %v974
        %v989 = vpack.c.b16 %v977, %v976
        %v990 = vpack.c.b16 %v979, %v978
        %v991 = vpack.c.b16 %v981, %v980
        %v992 = vpack.c.b16 %v983, %v982
        %v993 = vpack.c.b16 %v985, %v984
        %v994 = vpack.c.b16 %v987, %v986
        %v1002 = vsel %vm561, %v994, 0
        %1004 = vmatpush.bf16.msra.mxu0 0
        %1005 = vmatpush.bf16.msra.mxu0 %v1002
        %1006 = vmatpush.bf16.msra.mxu0 %v993
        %1007 = vmatpush.bf16.msra.mxu0 %v992
        %1008 = vmatpush.bf16.msra.mxu0 %v991
        %1009 = vmatpush.bf16.msra.mxu0 %v990
        %1010 = vmatpush.bf16.msra.mxu0 %v989
        %1011 = vmatpush.bf16.msra.mxu0 %v988
        %1012 = vmatmul.bf16.gmra.mxu0 %v559
        %v1013 = vpop.f32.mrf.mxu0
        %v1014 = vadd.f32 0.0, %v1013
        %v1015 = vpop.f32.mrf.mxu0
        %1016 = vdwg.mxu0
        %v1017 = vpack.c.bf16 %v1014, %v1014
        %s1018 = scalar_lea.vmem %s4, 40
        %v1019 = vld [vmem:[%s1018] sm:$0xf]
        %v1020 = vld [vmem:[%s1018 + $0x4] sm:$0x3]
        %v1023 = vunpack.c.l.b16 %v1019
        %v1024 = vunpack.c.l.b16 %v1020
        %v1025 = vpack.c.b16 %v1024, %v1023
        %v1027 = vsel %vm587, %v1025, 0
        %v1030 = vand.u32 %v1017, %v594
        %1032 = vmatpush.bf16.msra.mxu0 0
        %1033 = vmatpush.bf16.msra.mxu0 0
        %1034 = vmatpush.bf16.msra.mxu0 0
        %1035 = vmatpush.bf16.msra.mxu0 0
        %1036 = vmatpush.bf16.msra.mxu0 0
        %1037 = vmatpush.bf16.msra.mxu0 0
        %1038 = vmatpush.bf16.msra.mxu0 0
        %1039 = vmatpush.bf16.msra.mxu0 %v1030
        %1040 = vmatmul.bf16.gmra.mxu0 %v1027
        %v1041 = vpop.f32.mrf.mxu0
        %v1042 = vadd.f32 0.0, %v1041
        %v1043 = vpop.f32.mrf.mxu0
        %v1044 = vadd.f32 0.0, %v1043
        %1045 = vdwg.mxu0
        %v1046 = vadd.f32 %v943, %v1042
        %v1047 = vadd.f32 %v944, %v1044
        %s1048 = scalar_lea.vmem [#allocation3], 280
        %v1049 = vld [vmem:[%s1048] sm:$0xf]
        %v1050 = vld [vmem:[%s1048 + $0x4] sm:$0xf]
        %v1051 = vld [vmem:[%s1048 + $0x8] sm:$0xf]
        %v1052 = vld [vmem:[%s1048 + $0xc] sm:$0xf]
        %v1053 = vld [vmem:[%s1048 + $0x10] sm:$0xf]
        %v1054 = vld [vmem:[%s1048 + $0x14] sm:$0xf]
        %v1055 = vld [vmem:[%s1048 + $0x18] sm:$0xf]
        %v1056 = vld [vmem:[%s1048 + $0x1c] sm:$0xf]
        %v1057 = vld [vmem:[%s1048 + $0x20] sm:$0xf]
        %v1058 = vld [vmem:[%s1048 + $0x24] sm:$0xf]
        %v1059 = vld [vmem:[%s1048 + $0x28] sm:$0xf]
        %v1060 = vld [vmem:[%s1048 + $0x2c] sm:$0xf]
        %v1061 = vld [vmem:[%s1048 + $0x30] sm:$0xf]
        %v1062 = vld [vmem:[%s1048 + $0x34] sm:$0x7]
        %v1077 = vunpack.c.l.b16 %v1049
        %v1078 = vunpack.c.l.b16 %v1050
        %v1079 = vunpack.c.l.b16 %v1051
        %v1080 = vunpack.c.l.b16 %v1052
        %v1081 = vunpack.c.l.b16 %v1053
        %v1082 = vunpack.c.l.b16 %v1054
        %v1083 = vunpack.c.l.b16 %v1055
        %v1084 = vunpack.c.l.b16 %v1056
        %v1085 = vunpack.c.l.b16 %v1057
        %v1086 = vunpack.c.l.b16 %v1058
        %v1087 = vunpack.c.l.b16 %v1059
        %v1088 = vunpack.c.l.b16 %v1060
        %v1089 = vunpack.c.l.b16 %v1061
        %v1090 = vunpack.c.l.b16 %v1062
        %v1091 = vpack.c.b16 %v1078, %v1077
        %v1092 = vpack.c.b16 %v1080, %v1079
        %v1093 = vpack.c.b16 %v1082, %v1081
        %v1094 = vpack.c.b16 %v1084, %v1083
        %v1095 = vpack.c.b16 %v1086, %v1085
        %v1096 = vpack.c.b16 %v1088, %v1087
        %v1097 = vpack.c.b16 %v1090, %v1089
        %v1105 = vsel %vm561, %v1097, 0
        %1107 = vmatpush.bf16.msra.mxu0 0
        %1108 = vmatpush.bf16.msra.mxu0 %v1105
        %1109 = vmatpush.bf16.msra.mxu0 %v1096
        %1110 = vmatpush.bf16.msra.mxu0 %v1095
        %1111 = vmatpush.bf16.msra.mxu0 %v1094
        %1112 = vmatpush.bf16.msra.mxu0 %v1093
        %1113 = vmatpush.bf16.msra.mxu0 %v1092
        %1114 = vmatpush.bf16.msra.mxu0 %v1091
        %1115 = vmatmul.bf16.gmra.mxu0 %v559
        %v1116 = vpop.f32.mrf.mxu0
        %v1117 = vadd.f32 0.0, %v1116
        %v1118 = vpop.f32.mrf.mxu0
        %1119 = vdwg.mxu0
        %v1120 = vpack.c.bf16 %v1117, %v1117
        %s1121 = scalar_lea.vmem %s4, 48
        %v1122 = vld [vmem:[%s1121] sm:$0xf]
        %v1123 = vld [vmem:[%s1121 + $0x4] sm:$0x3]
        %v1126 = vunpack.c.l.b16 %v1122
        %v1127 = vunpack.c.l.b16 %v1123
        %v1128 = vpack.c.b16 %v1127, %v1126
        %v1130 = vsel %vm587, %v1128, 0
        %v1133 = vand.u32 %v1120, %v594
        %1135 = vmatpush.bf16.msra.mxu0 0
        %1136 = vmatpush.bf16.msra.mxu0 0
        %1137 = vmatpush.bf16.msra.mxu0 0
        %1138 = vmatpush.bf16.msra.mxu0 0
        %1139 = vmatpush.bf16.msra.mxu0 0
        %1140 = vmatpush.bf16.msra.mxu0 0
        %1141 = vmatpush.bf16.msra.mxu0 0
        %1142 = vmatpush.bf16.msra.mxu0 %v1133
        %1143 = vmatmul.bf16.gmra.mxu0 %v1130
        %v1144 = vpop.f32.mrf.mxu0
        %v1145 = vadd.f32 0.0, %v1144
        %v1146 = vpop.f32.mrf.mxu0
        %v1147 = vadd.f32 0.0, %v1146
        %1148 = vdwg.mxu0
        %v1149 = vadd.f32 %v1046, %v1145
        %v1150 = vadd.f32 %v1047, %v1147
        %v1151 = vld [vmem:[%s11] sm:$0xff]
        %v1152 = vld [vmem:[%s11 + $0x8] sm:$0xf]
        %1154 = vset.pattern.permute.xlu0 0
        %1155 = vperm.xlu0 %1154, %v1151
        %v1156 = vpop.permute.xlu0 %1155
        %1159 = vset.pattern.permute.xlu0 0
        %1160 = vperm.xlu0 %1159, %v1152
        %v1161 = vpop.permute.xlu0 %1160
        %v1163 = vadd.f32 %v1149, %v1156
        %v1164 = vadd.f32 %v1150, %v1161
        %v1165 = vmax.f32 %v1163, 0.0
        %v1166 = vmax.f32 %v1164, 0.0
        %1167 = vst.msk [vmem:[#allocation2 + $0x3] sm:$0xff] %vm557, %v1165
        %vm1168 = vcmask 896000
        %1169 = vst.msk [vmem:[#allocation2 + $0xb] sm:$0xf] %vm1168, %v1166
        %v1170 = vld [vmem:[#allocation2] sm:$0xff]
        %v1171 = vld [vmem:[#allocation2 + $0x8] sm:$0x7f]
        %v1172 = vpack.c.bf16 %v1171, %v1170
        %v1173 = vld [vmem:[%s5] sm:$0xf]
        %v1174 = vld [vmem:[%s5 + $0x4] sm:$0x3]
        %v1175 = vld [vmem:[#allocation3] sm:$0xf]
        %v1176 = vld [vmem:[#allocation3 + $0x4] sm:$0xf]
        %v1177 = vld [vmem:[#allocation3 + $0x8] sm:$0xf]
        %v1178 = vld [vmem:[#allocation3 + $0xc] sm:$0xf]
        %v1179 = vld [vmem:[#allocation3 + $0x10] sm:$0xf]
        %v1180 = vld [vmem:[#allocation3 + $0x14] sm:$0xf]
        %v1181 = vld [vmem:[#allocation3 + $0x18] sm:$0xf]
        %v1182 = vld [vmem:[#allocation3 + $0x1c] sm:$0xf]
        %v1183 = vld [vmem:[#allocation3 + $0x20] sm:$0xf]
        %v1184 = vld [vmem:[#allocation3 + $0x24] sm:$0xf]
        %v1185 = vld [vmem:[#allocation3 + $0x28] sm:$0xf]
        %v1186 = vld [vmem:[#allocation3 + $0x2c] sm:$0xf]
        %v1187 = vld [vmem:[#allocation3 + $0x30] sm:$0xf]
        %v1188 = vld [vmem:[#allocation3 + $0x34] sm:$0x7]
        %v1203 = vunpack.c.l.b16 %v1175
        %v1204 = vunpack.c.l.b16 %v1176
        %v1205 = vunpack.c.l.b16 %v1177
        %v1206 = vunpack.c.l.b16 %v1178
        %v1207 = vunpack.c.l.b16 %v1179
        %v1208 = vunpack.c.l.b16 %v1180
        %v1209 = vunpack.c.l.b16 %v1181
        %v1210 = vunpack.c.l.b16 %v1182
        %v1211 = vunpack.c.l.b16 %v1183
        %v1212 = vunpack.c.l.b16 %v1184
        %v1213 = vunpack.c.l.b16 %v1185
        %v1214 = vunpack.c.l.b16 %v1186
        %v1215 = vunpack.c.l.b16 %v1187
        %v1216 = vunpack.c.l.b16 %v1188
        %v1217 = vpack.c.b16 %v1204, %v1203
        %v1218 = vpack.c.b16 %v1206, %v1205
        %v1219 = vpack.c.b16 %v1208, %v1207
        %v1220 = vpack.c.b16 %v1210, %v1209
        %v1221 = vpack.c.b16 %v1212, %v1211
        %v1222 = vpack.c.b16 %v1214, %v1213
        %v1223 = vpack.c.b16 %v1216, %v1215
        %v1231 = vsel %vm557, %v1172, 0
        %v1234 = vsel %vm561, %v1223, 0
        %1236 = vmatpush.bf16.msra.mxu0 0
        %1237 = vmatpush.bf16.msra.mxu0 %v1234
        %1238 = vmatpush.bf16.msra.mxu0 %v1222
        %1239 = vmatpush.bf16.msra.mxu0 %v1221
        %1240 = vmatpush.bf16.msra.mxu0 %v1220
        %1241 = vmatpush.bf16.msra.mxu0 %v1219
        %1242 = vmatpush.bf16.msra.mxu0 %v1218
        %1243 = vmatpush.bf16.msra.mxu0 %v1217
        %1244 = vmatmul.bf16.gmra.mxu0 %v1231
        %v1245 = vpop.f32.mrf.mxu0
        %v1246 = vadd.f32 0.0, %v1245
        %v1247 = vpop.f32.mrf.mxu0
        %v1248 = vadd.f32 0.0, %v1247
        %1249 = vdwg.mxu0
        %v1250 = vpack.c.bf16 %v1248, %v1246
        %s1251 = scalar_lea.vmem %s5, 8
        %v1252 = vld [vmem:[%s1251] sm:$0xf]
        %v1253 = vld [vmem:[%s1251 + $0x4] sm:$0x3]
        %v1256 = vunpack.c.l.b16 %v1252
        %v1257 = vunpack.c.l.b16 %v1253
        %v1258 = vpack.c.b16 %v1257, %v1256
        %vm1259 = vcmask 121856
        %v1261 = vsel %vm1259, %v1258, 0
        %vm1263 = vcmask 1047552
        %v1264 = vsel %vm561, 4294967295, 65535
        %v1265 = vsel %vm1263, %v1264, 0
        %v1267 = vand.u32 %v1250, %v1265
        %1269 = vmatpush.bf16.msra.mxu0 0
        %1270 = vmatpush.bf16.msra.mxu0 0
        %1271 = vmatpush.bf16.msra.mxu0 0
        %1272 = vmatpush.bf16.msra.mxu0 0
        %1273 = vmatpush.bf16.msra.mxu0 0
        %1274 = vmatpush.bf16.msra.mxu0 0
        %1275 = vmatpush.bf16.msra.mxu0 0
        %1276 = vmatpush.bf16.msra.mxu0 %v1267
        %1277 = vmatmul.bf16.gmra.mxu0 %v1261
        %v1278 = vpop.f32.mrf.mxu0
        %v1279 = vadd.f32 0.0, %v1278
        %v1280 = vpop.f32.mrf.mxu0
        %v1281 = vadd.f32 0.0, %v1280
        %1282 = vdwg.mxu0
        %v1285 = vunpack.c.l.b16 %v1173
        %v1286 = vunpack.c.l.b16 %v1174
        %v1287 = vpack.c.b16 %v1286, %v1285
        %v1289 = vsel %vm1259, %v1287, 0
        %v1291 = vand.u32 %v1172, %v1265
        %1293 = vmatpush.bf16.msra.mxu0 0
        %1294 = vmatpush.bf16.msra.mxu0 0
        %1295 = vmatpush.bf16.msra.mxu0 0
        %1296 = vmatpush.bf16.msra.mxu0 0
        %1297 = vmatpush.bf16.msra.mxu0 0
        %1298 = vmatpush.bf16.msra.mxu0 0
        %1299 = vmatpush.bf16.msra.mxu0 0
        %1300 = vmatpush.bf16.msra.mxu0 %v1291
        %1301 = vmatmul.bf16.gmra.mxu0 %v1289
        %v1302 = vpop.f32.mrf.mxu0
        %v1303 = vadd.f32 %v1279, %v1302
        %v1304 = vpop.f32.mrf.mxu0
        %v1305 = vadd.f32 %v1281, %v1304
        %1306 = vdwg.mxu0
        %v1307 = vld [vmem:[%s636] sm:$0xf]
        %v1308 = vld [vmem:[%s636 + $0x4] sm:$0xf]
        %v1309 = vld [vmem:[%s636 + $0x8] sm:$0xf]
        %v1310 = vld [vmem:[%s636 + $0xc] sm:$0xf]
        %v1311 = vld [vmem:[%s636 + $0x10] sm:$0xf]
        %v1312 = vld [vmem:[%s636 + $0x14] sm:$0xf]
        %v1313 = vld [vmem:[%s636 + $0x18] sm:$0xf]
        %v1314 = vld [vmem:[%s636 + $0x1c] sm:$0xf]
        %v1315 = vld [vmem:[%s636 + $0x20] sm:$0xf]
        %v1316 = vld [vmem:[%s636 + $0x24] sm:$0xf]
        %v1317 = vld [vmem:[%s636 + $0x28] sm:$0xf]
        %v1318 = vld [vmem:[%s636 + $0x2c] sm:$0xf]
        %v1319 = vld [vmem:[%s636 + $0x30] sm:$0xf]
        %v1320 = vld [vmem:[%s636 + $0x34] sm:$0x7]
        %v1335 = vunpack.c.l.b16 %v1307
        %v1336 = vunpack.c.l.b16 %v1308
        %v1337 = vunpack.c.l.b16 %v1309
        %v1338 = vunpack.c.l.b16 %v1310
        %v1339 = vunpack.c.l.b16 %v1311
        %v1340 = vunpack.c.l.b16 %v1312
        %v1341 = vunpack.c.l.b16 %v1313
        %v1342 = vunpack.c.l.b16 %v1314
        %v1343 = vunpack.c.l.b16 %v1315
        %v1344 = vunpack.c.l.b16 %v1316
        %v1345 = vunpack.c.l.b16 %v1317
        %v1346 = vunpack.c.l.b16 %v1318
        %v1347 = vunpack.c.l.b16 %v1319
        %v1348 = vunpack.c.l.b16 %v1320
        %v1349 = vpack.c.b16 %v1336, %v1335
        %v1350 = vpack.c.b16 %v1338, %v1337
        %v1351 = vpack.c.b16 %v1340, %v1339
        %v1352 = vpack.c.b16 %v1342, %v1341
        %v1353 = vpack.c.b16 %v1344, %v1343
        %v1354 = vpack.c.b16 %v1346, %v1345
        %v1355 = vpack.c.b16 %v1348, %v1347
        %v1363 = vsel %vm561, %v1355, 0
        %1365 = vmatpush.bf16.msra.mxu0 0
        %1366 = vmatpush.bf16.msra.mxu0 %v1363
        %1367 = vmatpush.bf16.msra.mxu0 %v1354
        %1368 = vmatpush.bf16.msra.mxu0 %v1353
        %1369 = vmatpush.bf16.msra.mxu0 %v1352
        %1370 = vmatpush.bf16.msra.mxu0 %v1351
        %1371 = vmatpush.bf16.msra.mxu0 %v1350
        %1372 = vmatpush.bf16.msra.mxu0 %v1349
        %1373 = vmatmul.bf16.gmra.mxu0 %v1231
        %v1374 = vpop.f32.mrf.mxu0
        %v1375 = vadd.f32 0.0, %v1374
        %v1376 = vpop.f32.mrf.mxu0
        %v1377 = vadd.f32 0.0, %v1376
        %1378 = vdwg.mxu0
        %v1379 = vpack.c.bf16 %v1377, %v1375
        %s1380 = scalar_lea.vmem %s5, 16
        %v1381 = vld [vmem:[%s1380] sm:$0xf]
        %v1382 = vld [vmem:[%s1380 + $0x4] sm:$0x3]
        %v1385 = vunpack.c.l.b16 %v1381
        %v1386 = vunpack.c.l.b16 %v1382
        %v1387 = vpack.c.b16 %v1386, %v1385
        %v1389 = vsel %vm1259, %v1387, 0
        %v1392 = vand.u32 %v1379, %v1265
        %1394 = vmatpush.bf16.msra.mxu0 0
        %1395 = vmatpush.bf16.msra.mxu0 0
        %1396 = vmatpush.bf16.msra.mxu0 0
        %1397 = vmatpush.bf16.msra.mxu0 0
        %1398 = vmatpush.bf16.msra.mxu0 0
        %1399 = vmatpush.bf16.msra.mxu0 0
        %1400 = vmatpush.bf16.msra.mxu0 0
        %1401 = vmatpush.bf16.msra.mxu0 %v1392
        %1402 = vmatmul.bf16.gmra.mxu0 %v1389
        %v1403 = vpop.f32.mrf.mxu0
        %v1404 = vadd.f32 0.0, %v1403
        %v1405 = vpop.f32.mrf.mxu0
        %v1406 = vadd.f32 0.0, %v1405
        %1407 = vdwg.mxu0
        %v1408 = vadd.f32 %v1303, %v1404
        %v1409 = vadd.f32 %v1305, %v1406
        %v1410 = vld [vmem:[%s739] sm:$0xf]
        %v1411 = vld [vmem:[%s739 + $0x4] sm:$0xf]
        %v1412 = vld [vmem:[%s739 + $0x8] sm:$0xf]
        %v1413 = vld [vmem:[%s739 + $0xc] sm:$0xf]
        %v1414 = vld [vmem:[%s739 + $0x10] sm:$0xf]
        %v1415 = vld [vmem:[%s739 + $0x14] sm:$0xf]
        %v1416 = vld [vmem:[%s739 + $0x18] sm:$0xf]
        %v1417 = vld [vmem:[%s739 + $0x1c] sm:$0xf]
        %v1418 = vld [vmem:[%s739 + $0x20] sm:$0xf]
        %v1419 = vld [vmem:[%s739 + $0x24] sm:$0xf]
        %v1420 = vld [vmem:[%s739 + $0x28] sm:$0xf]
        %v1421 = vld [vmem:[%s739 + $0x2c] sm:$0xf]
        %v1422 = vld [vmem:[%s739 + $0x30] sm:$0xf]
        %v1423 = vld [vmem:[%s739 + $0x34] sm:$0x7]
        %v1438 = vunpack.c.l.b16 %v1410
        %v1439 = vunpack.c.l.b16 %v1411
        %v1440 = vunpack.c.l.b16 %v1412
        %v1441 = vunpack.c.l.b16 %v1413
        %v1442 = vunpack.c.l.b16 %v1414
        %v1443 = vunpack.c.l.b16 %v1415
        %v1444 = vunpack.c.l.b16 %v1416
        %v1445 = vunpack.c.l.b16 %v1417
        %v1446 = vunpack.c.l.b16 %v1418
        %v1447 = vunpack.c.l.b16 %v1419
        %v1448 = vunpack.c.l.b16 %v1420
        %v1449 = vunpack.c.l.b16 %v1421
        %v1450 = vunpack.c.l.b16 %v1422
        %v1451 = vunpack.c.l.b16 %v1423
        %v1452 = vpack.c.b16 %v1439, %v1438
        %v1453 = vpack.c.b16 %v1441, %v1440
        %v1454 = vpack.c.b16 %v1443, %v1442
        %v1455 = vpack.c.b16 %v1445, %v1444
        %v1456 = vpack.c.b16 %v1447, %v1446
        %v1457 = vpack.c.b16 %v1449, %v1448
        %v1458 = vpack.c.b16 %v1451, %v1450
        %v1466 = vsel %vm561, %v1458, 0
        %1468 = vmatpush.bf16.msra.mxu0 0
        %1469 = vmatpush.bf16.msra.mxu0 %v1466
        %1470 = vmatpush.bf16.msra.mxu0 %v1457
        %1471 = vmatpush.bf16.msra.mxu0 %v1456
        %1472 = vmatpush.bf16.msra.mxu0 %v1455
        %1473 = vmatpush.bf16.msra.mxu0 %v1454
        %1474 = vmatpush.bf16.msra.mxu0 %v1453
        %1475 = vmatpush.bf16.msra.mxu0 %v1452
        %1476 = vmatmul.bf16.gmra.mxu0 %v1231
        %v1477 = vpop.f32.mrf.mxu0
        %v1478 = vadd.f32 0.0, %v1477
        %v1479 = vpop.f32.mrf.mxu0
        %v1480 = vadd.f32 0.0, %v1479
        %1481 = vdwg.mxu0
        %v1482 = vpack.c.bf16 %v1480, %v1478
        %s1483 = scalar_lea.vmem %s5, 24
        %v1484 = vld [vmem:[%s1483] sm:$0xf]
        %v1485 = vld [vmem:[%s1483 + $0x4] sm:$0x3]
        %v1488 = vunpack.c.l.b16 %v1484
        %v1489 = vunpack.c.l.b16 %v1485
        %v1490 = vpack.c.b16 %v1489, %v1488
        %v1492 = vsel %vm1259, %v1490, 0
        %v1495 = vand.u32 %v1482, %v1265
        %1497 = vmatpush.bf16.msra.mxu0 0
        %1498 = vmatpush.bf16.msra.mxu0 0
        %1499 = vmatpush.bf16.msra.mxu0 0
        %1500 = vmatpush.bf16.msra.mxu0 0
        %1501 = vmatpush.bf16.msra.mxu0 0
        %1502 = vmatpush.bf16.msra.mxu0 0
        %1503 = vmatpush.bf16.msra.mxu0 0
        %1504 = vmatpush.bf16.msra.mxu0 %v1495
        %1505 = vmatmul.bf16.gmra.mxu0 %v1492
        %v1506 = vpop.f32.mrf.mxu0
        %v1507 = vadd.f32 0.0, %v1506
        %v1508 = vpop.f32.mrf.mxu0
        %v1509 = vadd.f32 0.0, %v1508
        %1510 = vdwg.mxu0
        %v1511 = vadd.f32 %v1408, %v1507
        %v1512 = vadd.f32 %v1409, %v1509
        %v1513 = vld [vmem:[%s842] sm:$0xf]
        %v1514 = vld [vmem:[%s842 + $0x4] sm:$0xf]
        %v1515 = vld [vmem:[%s842 + $0x8] sm:$0xf]
        %v1516 = vld [vmem:[%s842 + $0xc] sm:$0xf]
        %v1517 = vld [vmem:[%s842 + $0x10] sm:$0xf]
        %v1518 = vld [vmem:[%s842 + $0x14] sm:$0xf]
        %v1519 = vld [vmem:[%s842 + $0x18] sm:$0xf]
        %v1520 = vld [vmem:[%s842 + $0x1c] sm:$0xf]
        %v1521 = vld [vmem:[%s842 + $0x20] sm:$0xf]
        %v1522 = vld [vmem:[%s842 + $0x24] sm:$0xf]
        %v1523 = vld [vmem:[%s842 + $0x28] sm:$0xf]
        %v1524 = vld [vmem:[%s842 + $0x2c] sm:$0xf]
        %v1525 = vld [vmem:[%s842 + $0x30] sm:$0xf]
        %v1526 = vld [vmem:[%s842 + $0x34] sm:$0x7]
        %v1541 = vunpack.c.l.b16 %v1513
        %v1542 = vunpack.c.l.b16 %v1514
        %v1543 = vunpack.c.l.b16 %v1515
        %v1544 = vunpack.c.l.b16 %v1516
        %v1545 = vunpack.c.l.b16 %v1517
        %v1546 = vunpack.c.l.b16 %v1518
        %v1547 = vunpack.c.l.b16 %v1519
        %v1548 = vunpack.c.l.b16 %v1520
        %v1549 = vunpack.c.l.b16 %v1521
        %v1550 = vunpack.c.l.b16 %v1522
        %v1551 = vunpack.c.l.b16 %v1523
        %v1552 = vunpack.c.l.b16 %v1524
        %v1553 = vunpack.c.l.b16 %v1525
        %v1554 = vunpack.c.l.b16 %v1526
        %v1555 = vpack.c.b16 %v1542, %v1541
        %v1556 = vpack.c.b16 %v1544, %v1543
        %v1557 = vpack.c.b16 %v1546, %v1545
        %v1558 = vpack.c.b16 %v1548, %v1547
        %v1559 = vpack.c.b16 %v1550, %v1549
        %v1560 = vpack.c.b16 %v1552, %v1551
        %v1561 = vpack.c.b16 %v1554, %v1553
        %v1569 = vsel %vm561, %v1561, 0
        %1571 = vmatpush.bf16.msra.mxu0 0
        %1572 = vmatpush.bf16.msra.mxu0 %v1569
        %1573 = vmatpush.bf16.msra.mxu0 %v1560
        %1574 = vmatpush.bf16.msra.mxu0 %v1559
        %1575 = vmatpush.bf16.msra.mxu0 %v1558
        %1576 = vmatpush.bf16.msra.mxu0 %v1557
        %1577 = vmatpush.bf16.msra.mxu0 %v1556
        %1578 = vmatpush.bf16.msra.mxu0 %v1555
        %1579 = vmatmul.bf16.gmra.mxu0 %v1231
        %v1580 = vpop.f32.mrf.mxu0
        %v1581 = vadd.f32 0.0, %v1580
        %v1582 = vpop.f32.mrf.mxu0
        %v1583 = vadd.f32 0.0, %v1582
        %1584 = vdwg.mxu0
        %v1585 = vpack.c.bf16 %v1583, %v1581
        %s1586 = scalar_lea.vmem %s5, 32
        %v1587 = vld [vmem:[%s1586] sm:$0xf]
        %v1588 = vld [vmem:[%s1586 + $0x4] sm:$0x3]
        %v1591 = vunpack.c.l.b16 %v1587
        %v1592 = vunpack.c.l.b16 %v1588
        %v1593 = vpack.c.b16 %v1592, %v1591
        %v1595 = vsel %vm1259, %v1593, 0
        %v1598 = vand.u32 %v1585, %v1265
        %1600 = vmatpush.bf16.msra.mxu0 0
        %1601 = vmatpush.bf16.msra.mxu0 0
        %1602 = vmatpush.bf16.msra.mxu0 0
        %1603 = vmatpush.bf16.msra.mxu0 0
        %1604 = vmatpush.bf16.msra.mxu0 0
        %1605 = vmatpush.bf16.msra.mxu0 0
        %1606 = vmatpush.bf16.msra.mxu0 0
        %1607 = vmatpush.bf16.msra.mxu0 %v1598
        %1608 = vmatmul.bf16.gmra.mxu0 %v1595
        %v1609 = vpop.f32.mrf.mxu0
        %v1610 = vadd.f32 0.0, %v1609
        %v1611 = vpop.f32.mrf.mxu0
        %v1612 = vadd.f32 0.0, %v1611
        %1613 = vdwg.mxu0
        %v1614 = vadd.f32 %v1511, %v1610
        %v1615 = vadd.f32 %v1512, %v1612
        %v1616 = vld [vmem:[%s945] sm:$0xf]
        %v1617 = vld [vmem:[%s945 + $0x4] sm:$0xf]
        %v1618 = vld [vmem:[%s945 + $0x8] sm:$0xf]
        %v1619 = vld [vmem:[%s945 + $0xc] sm:$0xf]
        %v1620 = vld [vmem:[%s945 + $0x10] sm:$0xf]
        %v1621 = vld [vmem:[%s945 + $0x14] sm:$0xf]
        %v1622 = vld [vmem:[%s945 + $0x18] sm:$0xf]
        %v1623 = vld [vmem:[%s945 + $0x1c] sm:$0xf]
        %v1624 = vld [vmem:[%s945 + $0x20] sm:$0xf]
        %v1625 = vld [vmem:[%s945 + $0x24] sm:$0xf]
        %v1626 = vld [vmem:[%s945 + $0x28] sm:$0xf]
        %v1627 = vld [vmem:[%s945 + $0x2c] sm:$0xf]
        %v1628 = vld [vmem:[%s945 + $0x30] sm:$0xf]
        %v1629 = vld [vmem:[%s945 + $0x34] sm:$0x7]
        %v1644 = vunpack.c.l.b16 %v1616
        %v1645 = vunpack.c.l.b16 %v1617
        %v1646 = vunpack.c.l.b16 %v1618
        %v1647 = vunpack.c.l.b16 %v1619
        %v1648 = vunpack.c.l.b16 %v1620
        %v1649 = vunpack.c.l.b16 %v1621
        %v1650 = vunpack.c.l.b16 %v1622
        %v1651 = vunpack.c.l.b16 %v1623
        %v1652 = vunpack.c.l.b16 %v1624
        %v1653 = vunpack.c.l.b16 %v1625
        %v1654 = vunpack.c.l.b16 %v1626
        %v1655 = vunpack.c.l.b16 %v1627
        %v1656 = vunpack.c.l.b16 %v1628
        %v1657 = vunpack.c.l.b16 %v1629
        %v1658 = vpack.c.b16 %v1645, %v1644
        %v1659 = vpack.c.b16 %v1647, %v1646
        %v1660 = vpack.c.b16 %v1649, %v1648
        %v1661 = vpack.c.b16 %v1651, %v1650
        %v1662 = vpack.c.b16 %v1653, %v1652
        %v1663 = vpack.c.b16 %v1655, %v1654
        %v1664 = vpack.c.b16 %v1657, %v1656
        %v1672 = vsel %vm561, %v1664, 0
        %1674 = vmatpush.bf16.msra.mxu0 0
        %1675 = vmatpush.bf16.msra.mxu0 %v1672
        %1676 = vmatpush.bf16.msra.mxu0 %v1663
        %1677 = vmatpush.bf16.msra.mxu0 %v1662
        %1678 = vmatpush.bf16.msra.mxu0 %v1661
        %1679 = vmatpush.bf16.msra.mxu0 %v1660
        %1680 = vmatpush.bf16.msra.mxu0 %v1659
        %1681 = vmatpush.bf16.msra.mxu0 %v1658
        %1682 = vmatmul.bf16.gmra.mxu0 %v1231
        %v1683 = vpop.f32.mrf.mxu0
        %v1684 = vadd.f32 0.0, %v1683
        %v1685 = vpop.f32.mrf.mxu0
        %v1686 = vadd.f32 0.0, %v1685
        %1687 = vdwg.mxu0
        %v1688 = vpack.c.bf16 %v1686, %v1684
        %s1689 = scalar_lea.vmem %s5, 40
        %v1690 = vld [vmem:[%s1689] sm:$0xf]
        %v1691 = vld [vmem:[%s1689 + $0x4] sm:$0x3]
        %v1694 = vunpack.c.l.b16 %v1690
        %v1695 = vunpack.c.l.b16 %v1691
        %v1696 = vpack.c.b16 %v1695, %v1694
        %v1698 = vsel %vm1259, %v1696, 0
        %v1701 = vand.u32 %v1688, %v1265
        %1703 = vmatpush.bf16.msra.mxu0 0
        %1704 = vmatpush.bf16.msra.mxu0 0
        %1705 = vmatpush.bf16.msra.mxu0 0
        %1706 = vmatpush.bf16.msra.mxu0 0
        %1707 = vmatpush.bf16.msra.mxu0 0
        %1708 = vmatpush.bf16.msra.mxu0 0
        %1709 = vmatpush.bf16.msra.mxu0 0
        %1710 = vmatpush.bf16.msra.mxu0 %v1701
        %1711 = vmatmul.bf16.gmra.mxu0 %v1698
        %v1712 = vpop.f32.mrf.mxu0
        %v1713 = vadd.f32 0.0, %v1712
        %v1714 = vpop.f32.mrf.mxu0
        %v1715 = vadd.f32 0.0, %v1714
        %1716 = vdwg.mxu0
        %v1717 = vadd.f32 %v1614, %v1713
        %v1718 = vadd.f32 %v1615, %v1715
        %v1719 = vld [vmem:[%s1048] sm:$0xf]
        %v1720 = vld [vmem:[%s1048 + $0x4] sm:$0xf]
        %v1721 = vld [vmem:[%s1048 + $0x8] sm:$0xf]
        %v1722 = vld [vmem:[%s1048 + $0xc] sm:$0xf]
        %v1723 = vld [vmem:[%s1048 + $0x10] sm:$0xf]
        %v1724 = vld [vmem:[%s1048 + $0x14] sm:$0xf]
        %v1725 = vld [vmem:[%s1048 + $0x18] sm:$0xf]
        %v1726 = vld [vmem:[%s1048 + $0x1c] sm:$0xf]
        %v1727 = vld [vmem:[%s1048 + $0x20] sm:$0xf]
        %v1728 = vld [vmem:[%s1048 + $0x24] sm:$0xf]
        %v1729 = vld [vmem:[%s1048 + $0x28] sm:$0xf]
        %v1730 = vld [vmem:[%s1048 + $0x2c] sm:$0xf]
        %v1731 = vld [vmem:[%s1048 + $0x30] sm:$0xf]
        %v1732 = vld [vmem:[%s1048 + $0x34] sm:$0x7]
        %v1747 = vunpack.c.l.b16 %v1719
        %v1748 = vunpack.c.l.b16 %v1720
        %v1749 = vunpack.c.l.b16 %v1721
        %v1750 = vunpack.c.l.b16 %v1722
        %v1751 = vunpack.c.l.b16 %v1723
        %v1752 = vunpack.c.l.b16 %v1724
        %v1753 = vunpack.c.l.b16 %v1725
        %v1754 = vunpack.c.l.b16 %v1726
        %v1755 = vunpack.c.l.b16 %v1727
        %v1756 = vunpack.c.l.b16 %v1728
        %v1757 = vunpack.c.l.b16 %v1729
        %v1758 = vunpack.c.l.b16 %v1730
        %v1759 = vunpack.c.l.b16 %v1731
        %v1760 = vunpack.c.l.b16 %v1732
        %v1761 = vpack.c.b16 %v1748, %v1747
        %v1762 = vpack.c.b16 %v1750, %v1749
        %v1763 = vpack.c.b16 %v1752, %v1751
        %v1764 = vpack.c.b16 %v1754, %v1753
        %v1765 = vpack.c.b16 %v1756, %v1755
        %v1766 = vpack.c.b16 %v1758, %v1757
        %v1767 = vpack.c.b16 %v1760, %v1759
        %v1775 = vsel %vm561, %v1767, 0
        %1777 = vmatpush.bf16.msra.mxu0 0
        %1778 = vmatpush.bf16.msra.mxu0 %v1775
        %1779 = vmatpush.bf16.msra.mxu0 %v1766
        %1780 = vmatpush.bf16.msra.mxu0 %v1765
        %1781 = vmatpush.bf16.msra.mxu0 %v1764
        %1782 = vmatpush.bf16.msra.mxu0 %v1763
        %1783 = vmatpush.bf16.msra.mxu0 %v1762
        %1784 = vmatpush.bf16.msra.mxu0 %v1761
        %1785 = vmatmul.bf16.gmra.mxu0 %v1231
        %v1786 = vpop.f32.mrf.mxu0
        %v1787 = vadd.f32 0.0, %v1786
        %v1788 = vpop.f32.mrf.mxu0
        %v1789 = vadd.f32 0.0, %v1788
        %1790 = vdwg.mxu0
        %v1791 = vpack.c.bf16 %v1789, %v1787
        %s1792 = scalar_lea.vmem %s5, 48
        %v1793 = vld [vmem:[%s1792] sm:$0xf]
        %v1794 = vld [vmem:[%s1792 + $0x4] sm:$0x3]
        %v1797 = vunpack.c.l.b16 %v1793
        %v1798 = vunpack.c.l.b16 %v1794
        %v1799 = vpack.c.b16 %v1798, %v1797
        %v1801 = vsel %vm1259, %v1799, 0
        %v1804 = vand.u32 %v1791, %v1265
        %1806 = vmatpush.bf16.msra.mxu0 0
        %1807 = vmatpush.bf16.msra.mxu0 0
        %1808 = vmatpush.bf16.msra.mxu0 0
        %1809 = vmatpush.bf16.msra.mxu0 0
        %1810 = vmatpush.bf16.msra.mxu0 0
        %1811 = vmatpush.bf16.msra.mxu0 0
        %1812 = vmatpush.bf16.msra.mxu0 0
        %1813 = vmatpush.bf16.msra.mxu0 %v1804
        %1814 = vmatmul.bf16.gmra.mxu0 %v1801
        %v1815 = vpop.f32.mrf.mxu0
        %v1816 = vadd.f32 0.0, %v1815
        %v1817 = vpop.f32.mrf.mxu0
        %v1818 = vadd.f32 0.0, %v1817
        %1819 = vdwg.mxu0
        %v1820 = vadd.f32 %v1717, %v1816
        %v1821 = vadd.f32 %v1718, %v1818
        %v1822 = vld [vmem:[%s11] sm:$0xff]
        %v1823 = vld [vmem:[%s11 + $0x8] sm:$0xf]
        %1825 = vset.pattern.permute.xlu0 1
        %1826 = vperm.xlu0 %1825, %v1822
        %v1827 = vpop.permute.xlu0 %1826
        %1830 = vset.pattern.permute.xlu0 1
        %1831 = vperm.xlu0 %1830, %v1823
        %v1832 = vpop.permute.xlu0 %1831
        %v1834 = vadd.f32 %v1820, %v1827
        %v1835 = vadd.f32 %v1821, %v1832
        %v1836 = vmax.f32 %v1834, 0.0
        %v1837 = vmax.f32 %v1835, 0.0
        %1838 = vst.msk [vmem:[#allocation2 + $0xf] sm:$0xff] %vm557, %v1836
        %1839 = vst.msk [vmem:[#allocation2 + $0x17] sm:$0xf] %vm1168, %v1837
        %v1840 = vld [vmem:[#allocation2] sm:$0xff]
        %v1841 = vld [vmem:[#allocation2 + $0x8] sm:$0xff]
        %v1842 = vld [vmem:[#allocation2 + $0x10] sm:$0xff]
        %v1843 = vld [vmem:[#allocation2 + $0x18] sm:$0x7]
        %v1844 = vpack.c.bf16 %v1841, %v1840
        %v1845 = vpack.c.bf16 %v1843, %v1842
        %v1846 = vld [vmem:[%s6] sm:$0xf]
        %v1847 = vld [vmem:[%s6 + $0x4] sm:$0x3]
        %v1848 = vld [vmem:[#allocation3] sm:$0xf]
        %v1849 = vld [vmem:[#allocation3 + $0x4] sm:$0xf]
        %v1850 = vld [vmem:[#allocation3 + $0x8] sm:$0xf]
        %v1851 = vld [vmem:[#allocation3 + $0xc] sm:$0xf]
        %v1852 = vld [vmem:[#allocation3 + $0x10] sm:$0xf]
        %v1853 = vld [vmem:[#allocation3 + $0x14] sm:$0xf]
        %v1854 = vld [vmem:[#allocation3 + $0x18] sm:$0xf]
        %v1855 = vld [vmem:[#allocation3 + $0x1c] sm:$0xf]
        %v1856 = vld [vmem:[#allocation3 + $0x20] sm:$0xf]
        %v1857 = vld [vmem:[#allocation3 + $0x24] sm:$0xf]
        %v1858 = vld [vmem:[#allocation3 + $0x28] sm:$0xf]
        %v1859 = vld [vmem:[#allocation3 + $0x2c] sm:$0xf]
        %v1860 = vld [vmem:[#allocation3 + $0x30] sm:$0xf]
        %v1861 = vld [vmem:[#allocation3 + $0x34] sm:$0x7]
        %v1876 = vunpack.c.l.b16 %v1848
        %v1877 = vunpack.c.l.b16 %v1849
        %v1878 = vunpack.c.l.b16 %v1850
        %v1879 = vunpack.c.l.b16 %v1851
        %v1880 = vunpack.c.l.b16 %v1852
        %v1881 = vunpack.c.l.b16 %v1853
        %v1882 = vunpack.c.l.b16 %v1854
        %v1883 = vunpack.c.l.b16 %v1855
        %v1884 = vunpack.c.l.b16 %v1856
        %v1885 = vunpack.c.l.b16 %v1857
        %v1886 = vunpack.c.l.b16 %v1858
        %v1887 = vunpack.c.l.b16 %v1859
        %v1888 = vunpack.c.l.b16 %v1860
        %v1889 = vunpack.c.l.b16 %v1861
        %v1890 = vpack.c.b16 %v1877, %v1876
        %v1891 = vpack.c.b16 %v1879, %v1878
        %v1892 = vpack.c.b16 %v1881, %v1880
        %v1893 = vpack.c.b16 %v1883, %v1882
        %v1894 = vpack.c.b16 %v1885, %v1884
        %v1895 = vpack.c.b16 %v1887, %v1886
        %v1896 = vpack.c.b16 %v1889, %v1888
        %v1904 = vsel %vm557, %v1844, 0
        %v1907 = vsel %vm557, %v1845, 0
        %v1910 = vsel %vm561, %v1896, 0
        %1912 = vmatpush.bf16.msra.mxu0 0
        %1913 = vmatpush.bf16.msra.mxu0 %v1910
        %1914 = vmatpush.bf16.msra.mxu0 %v1895
        %1915 = vmatpush.bf16.msra.mxu0 %v1894
        %1916 = vmatpush.bf16.msra.mxu0 %v1893
        %1917 = vmatpush.bf16.msra.mxu0 %v1892
        %1918 = vmatpush.bf16.msra.mxu0 %v1891
        %1919 = vmatpush.bf16.msra.mxu0 %v1890
        %1920 = vmatmul.bf16.gmra.mxu0 %v1904
        %v1921 = vpop.f32.mrf.mxu0
        %v1922 = vadd.f32 0.0, %v1921
        %v1923 = vpop.f32.mrf.mxu0
        %v1924 = vadd.f32 0.0, %v1923
        %1925 = vmatmul.bf16.gmra.mxu0 %v1907
        %v1926 = vpop.f32.mrf.mxu0
        %v1927 = vadd.f32 0.0, %v1926
        %v1928 = vpop.f32.mrf.mxu0
        %v1929 = vadd.f32 0.0, %v1928
        %1930 = vdwg.mxu0
        %v1931 = vpack.c.bf16 %v1924, %v1922
        %v1932 = vpack.c.bf16 %v1929, %v1927
        %s1933 = scalar_lea.vmem %s6, 8
        %v1934 = vld [vmem:[%s1933] sm:$0xf]
        %v1935 = vld [vmem:[%s1933 + $0x4] sm:$0x3]
        %v1938 = vunpack.c.l.b16 %v1934
        %v1939 = vunpack.c.l.b16 %v1935
        %v1940 = vpack.c.b16 %v1939, %v1938
        %vm1941 = vcmask 220160
        %v1943 = vsel %vm1941, %v1940, 0
        %vm1945 = vcmask 1044480
        %vm1946 = vcmask 1045504
        %v1947 = vsel %vm1945, 4294967295, 65535
        %v1948 = vsel %vm1946, %v1947, 0
        %v1950 = vand.u32 %v1932, %v1948
        %1952 = vmatpush.bf16.msra.mxu0 0
        %1953 = vmatpush.bf16.msra.mxu0 0
        %1954 = vmatpush.bf16.msra.mxu0 0
        %1955 = vmatpush.bf16.msra.mxu0 0
        %1956 = vmatpush.bf16.msra.mxu0 0
        %1957 = vmatpush.bf16.msra.mxu0 0
        %1958 = vmatpush.bf16.msra.mxu0 %v1950
        %1959 = vmatpush.bf16.msra.mxu0 %v1931
        %1960 = vmatmul.bf16.gmra.mxu0 %v1943
        %v1961 = vpop.f32.mrf.mxu0
        %v1962 = vadd.f32 0.0, %v1961
        %v1963 = vpop.f32.mrf.mxu0
        %v1964 = vadd.f32 0.0, %v1963
        %1965 = vdwg.mxu0
        %v1968 = vunpack.c.l.b16 %v1846
        %v1969 = vunpack.c.l.b16 %v1847
        %v1970 = vpack.c.b16 %v1969, %v1968
        %v1972 = vsel %vm1941, %v1970, 0
        %v1974 = vand.u32 %v1845, %v1948
        %1976 = vmatpush.bf16.msra.mxu0 0
        %1977 = vmatpush.bf16.msra.mxu0 0
        %1978 = vmatpush.bf16.msra.mxu0 0
        %1979 = vmatpush.bf16.msra.mxu0 0
        %1980 = vmatpush.bf16.msra.mxu0 0
        %1981 = vmatpush.bf16.msra.mxu0 0
        %1982 = vmatpush.bf16.msra.mxu0 %v1974
        %1983 = vmatpush.bf16.msra.mxu0 %v1844
        %1984 = vmatmul.bf16.gmra.mxu0 %v1972
        %v1985 = vpop.f32.mrf.mxu0
        %v1986 = vadd.f32 %v1962, %v1985
        %v1987 = vpop.f32.mrf.mxu0
        %v1988 = vadd.f32 %v1964, %v1987
        %1989 = vdwg.mxu0
        %v1990 = vld [vmem:[%s636] sm:$0xf]
        %v1991 = vld [vmem:[%s636 + $0x4] sm:$0xf]
        %v1992 = vld [vmem:[%s636 + $0x8] sm:$0xf]
        %v1993 = vld [vmem:[%s636 + $0xc] sm:$0xf]
        %v1994 = vld [vmem:[%s636 + $0x10] sm:$0xf]
        %v1995 = vld [vmem:[%s636 + $0x14] sm:$0xf]
        %v1996 = vld [vmem:[%s636 + $0x18] sm:$0xf]
        %v1997 = vld [vmem:[%s636 + $0x1c] sm:$0xf]
        %v1998 = vld [vmem:[%s636 + $0x20] sm:$0xf]
        %v1999 = vld [vmem:[%s636 + $0x24] sm:$0xf]
        %v2000 = vld [vmem:[%s636 + $0x28] sm:$0xf]
        %v2001 = vld [vmem:[%s636 + $0x2c] sm:$0xf]
        %v2002 = vld [vmem:[%s636 + $0x30] sm:$0xf]
        %v2003 = vld [vmem:[%s636 + $0x34] sm:$0x7]
        %v2018 = vunpack.c.l.b16 %v1990
        %v2019 = vunpack.c.l.b16 %v1991
        %v2020 = vunpack.c.l.b16 %v1992
        %v2021 = vunpack.c.l.b16 %v1993
        %v2022 = vunpack.c.l.b16 %v1994
        %v2023 = vunpack.c.l.b16 %v1995
        %v2024 = vunpack.c.l.b16 %v1996
        %v2025 = vunpack.c.l.b16 %v1997
        %v2026 = vunpack.c.l.b16 %v1998
        %v2027 = vunpack.c.l.b16 %v1999
        %v2028 = vunpack.c.l.b16 %v2000
        %v2029 = vunpack.c.l.b16 %v2001
        %v2030 = vunpack.c.l.b16 %v2002
        %v2031 = vunpack.c.l.b16 %v2003
        %v2032 = vpack.c.b16 %v2019, %v2018
        %v2033 = vpack.c.b16 %v2021, %v2020
        %v2034 = vpack.c.b16 %v2023, %v2022
        %v2035 = vpack.c.b16 %v2025, %v2024
        %v2036 = vpack.c.b16 %v2027, %v2026
        %v2037 = vpack.c.b16 %v2029, %v2028
        %v2038 = vpack.c.b16 %v2031, %v2030
        %v2046 = vsel %vm561, %v2038, 0
        %2048 = vmatpush.bf16.msra.mxu0 0
        %2049 = vmatpush.bf16.msra.mxu0 %v2046
        %2050 = vmatpush.bf16.msra.mxu0 %v2037
        %2051 = vmatpush.bf16.msra.mxu0 %v2036
        %2052 = vmatpush.bf16.msra.mxu0 %v2035
        %2053 = vmatpush.bf16.msra.mxu0 %v2034
        %2054 = vmatpush.bf16.msra.mxu0 %v2033
        %2055 = vmatpush.bf16.msra.mxu0 %v2032
        %2056 = vmatmul.bf16.gmra.mxu0 %v1904
        %v2057 = vpop.f32.mrf.mxu0
        %v2058 = vadd.f32 0.0, %v2057
        %v2059 = vpop.f32.mrf.mxu0
        %v2060 = vadd.f32 0.0, %v2059
        %2061 = vmatmul.bf16.gmra.mxu0 %v1907
        %v2062 = vpop.f32.mrf.mxu0
        %v2063 = vadd.f32 0.0, %v2062
        %v2064 = vpop.f32.mrf.mxu0
        %v2065 = vadd.f32 0.0, %v2064
        %2066 = vdwg.mxu0
        %v2067 = vpack.c.bf16 %v2060, %v2058
        %v2068 = vpack.c.bf16 %v2065, %v2063
        %s2069 = scalar_lea.vmem %s6, 16
        %v2070 = vld [vmem:[%s2069] sm:$0xf]
        %v2071 = vld [vmem:[%s2069 + $0x4] sm:$0x3]
        %v2074 = vunpack.c.l.b16 %v2070
        %v2075 = vunpack.c.l.b16 %v2071
        %v2076 = vpack.c.b16 %v2075, %v2074
        %v2078 = vsel %vm1941, %v2076, 0
        %v2081 = vand.u32 %v2068, %v1948
        %2083 = vmatpush.bf16.msra.mxu0 0
        %2084 = vmatpush.bf16.msra.mxu0 0
        %2085 = vmatpush.bf16.msra.mxu0 0
        %2086 = vmatpush.bf16.msra.mxu0 0
        %2087 = vmatpush.bf16.msra.mxu0 0
        %2088 = vmatpush.bf16.msra.mxu0 0
        %2089 = vmatpush.bf16.msra.mxu0 %v2081
        %2090 = vmatpush.bf16.msra.mxu0 %v2067
        %2091 = vmatmul.bf16.gmra.mxu0 %v2078
        %v2092 = vpop.f32.mrf.mxu0
        %v2093 = vadd.f32 0.0, %v2092
        %v2094 = vpop.f32.mrf.mxu0
        %v2095 = vadd.f32 0.0, %v2094
        %2096 = vdwg.mxu0
        %v2097 = vadd.f32 %v1986, %v2093
        %v2098 = vadd.f32 %v1988, %v2095
        %v2099 = vld [vmem:[%s739] sm:$0xf]
        %v2100 = vld [vmem:[%s739 + $0x4] sm:$0xf]
        %v2101 = vld [vmem:[%s739 + $0x8] sm:$0xf]
        %v2102 = vld [vmem:[%s739 + $0xc] sm:$0xf]
        %v2103 = vld [vmem:[%s739 + $0x10] sm:$0xf]
        %v2104 = vld [vmem:[%s739 + $0x14] sm:$0xf]
        %v2105 = vld [vmem:[%s739 + $0x18] sm:$0xf]
        %v2106 = vld [vmem:[%s739 + $0x1c] sm:$0xf]
        %v2107 = vld [vmem:[%s739 + $0x20] sm:$0xf]
        %v2108 = vld [vmem:[%s739 + $0x24] sm:$0xf]
        %v2109 = vld [vmem:[%s739 + $0x28] sm:$0xf]
        %v2110 = vld [vmem:[%s739 + $0x2c] sm:$0xf]
        %v2111 = vld [vmem:[%s739 + $0x30] sm:$0xf]
        %v2112 = vld [vmem:[%s739 + $0x34] sm:$0x7]
        %v2127 = vunpack.c.l.b16 %v2099
        %v2128 = vunpack.c.l.b16 %v2100
        %v2129 = vunpack.c.l.b16 %v2101
        %v2130 = vunpack.c.l.b16 %v2102
        %v2131 = vunpack.c.l.b16 %v2103
        %v2132 = vunpack.c.l.b16 %v2104
        %v2133 = vunpack.c.l.b16 %v2105
        %v2134 = vunpack.c.l.b16 %v2106
        %v2135 = vunpack.c.l.b16 %v2107
        %v2136 = vunpack.c.l.b16 %v2108
        %v2137 = vunpack.c.l.b16 %v2109
        %v2138 = vunpack.c.l.b16 %v2110
        %v2139 = vunpack.c.l.b16 %v2111
        %v2140 = vunpack.c.l.b16 %v2112
        %v2141 = vpack.c.b16 %v2128, %v2127
        %v2142 = vpack.c.b16 %v2130, %v2129
        %v2143 = vpack.c.b16 %v2132, %v2131
        %v2144 = vpack.c.b16 %v2134, %v2133
        %v2145 = vpack.c.b16 %v2136, %v2135
        %v2146 = vpack.c.b16 %v2138, %v2137
        %v2147 = vpack.c.b16 %v2140, %v2139
        %v2155 = vsel %vm561, %v2147, 0
        %2157 = vmatpush.bf16.msra.mxu0 0
        %2158 = vmatpush.bf16.msra.mxu0 %v2155
        %2159 = vmatpush.bf16.msra.mxu0 %v2146
        %2160 = vmatpush.bf16.msra.mxu0 %v2145
        %2161 = vmatpush.bf16.msra.mxu0 %v2144
        %2162 = vmatpush.bf16.msra.mxu0 %v2143
        %2163 = vmatpush.bf16.msra.mxu0 %v2142
        %2164 = vmatpush.bf16.msra.mxu0 %v2141
        %2165 = vmatmul.bf16.gmra.mxu0 %v1904
        %v2166 = vpop.f32.mrf.mxu0
        %v2167 = vadd.f32 0.0, %v2166
        %v2168 = vpop.f32.mrf.mxu0
        %v2169 = vadd.f32 0.0, %v2168
        %2170 = vmatmul.bf16.gmra.mxu0 %v1907
        %v2171 = vpop.f32.mrf.mxu0
        %v2172 = vadd.f32 0.0, %v2171
        %v2173 = vpop.f32.mrf.mxu0
        %v2174 = vadd.f32 0.0, %v2173
        %2175 = vdwg.mxu0
        %v2176 = vpack.c.bf16 %v2169, %v2167
        %v2177 = vpack.c.bf16 %v2174, %v2172
        %s2178 = scalar_lea.vmem %s6, 24
        %v2179 = vld [vmem:[%s2178] sm:$0xf]
        %v2180 = vld [vmem:[%s2178 + $0x4] sm:$0x3]
        %v2183 = vunpack.c.l.b16 %v2179
        %v2184 = vunpack.c.l.b16 %v2180
        %v2185 = vpack.c.b16 %v2184, %v2183
        %v2187 = vsel %vm1941, %v2185, 0
        %v2190 = vand.u32 %v2177, %v1948
        %2192 = vmatpush.bf16.msra.mxu0 0
        %2193 = vmatpush.bf16.msra.mxu0 0
        %2194 = vmatpush.bf16.msra.mxu0 0
        %2195 = vmatpush.bf16.msra.mxu0 0
        %2196 = vmatpush.bf16.msra.mxu0 0
        %2197 = vmatpush.bf16.msra.mxu0 0
        %2198 = vmatpush.bf16.msra.mxu0 %v2190
        %2199 = vmatpush.bf16.msra.mxu0 %v2176
        %2200 = vmatmul.bf16.gmra.mxu0 %v2187
        %v2201 = vpop.f32.mrf.mxu0
        %v2202 = vadd.f32 0.0, %v2201
        %v2203 = vpop.f32.mrf.mxu0
        %v2204 = vadd.f32 0.0, %v2203
        %2205 = vdwg.mxu0
        %v2206 = vadd.f32 %v2097, %v2202
        %v2207 = vadd.f32 %v2098, %v2204
        %v2208 = vld [vmem:[%s842] sm:$0xf]
        %v2209 = vld [vmem:[%s842 + $0x4] sm:$0xf]
        %v2210 = vld [vmem:[%s842 + $0x8] sm:$0xf]
        %v2211 = vld [vmem:[%s842 + $0xc] sm:$0xf]
        %v2212 = vld [vmem:[%s842 + $0x10] sm:$0xf]
        %v2213 = vld [vmem:[%s842 + $0x14] sm:$0xf]
        %v2214 = vld [vmem:[%s842 + $0x18] sm:$0xf]
        %v2215 = vld [vmem:[%s842 + $0x1c] sm:$0xf]
        %v2216 = vld [vmem:[%s842 + $0x20] sm:$0xf]
        %v2217 = vld [vmem:[%s842 + $0x24] sm:$0xf]
        %v2218 = vld [vmem:[%s842 + $0x28] sm:$0xf]
        %v2219 = vld [vmem:[%s842 + $0x2c] sm:$0xf]
        %v2220 = vld [vmem:[%s842 + $0x30] sm:$0xf]
        %v2221 = vld [vmem:[%s842 + $0x34] sm:$0x7]
        %v2236 = vunpack.c.l.b16 %v2208
        %v2237 = vunpack.c.l.b16 %v2209
        %v2238 = vunpack.c.l.b16 %v2210
        %v2239 = vunpack.c.l.b16 %v2211
        %v2240 = vunpack.c.l.b16 %v2212
        %v2241 = vunpack.c.l.b16 %v2213
        %v2242 = vunpack.c.l.b16 %v2214
        %v2243 = vunpack.c.l.b16 %v2215
        %v2244 = vunpack.c.l.b16 %v2216
        %v2245 = vunpack.c.l.b16 %v2217
        %v2246 = vunpack.c.l.b16 %v2218
        %v2247 = vunpack.c.l.b16 %v2219
        %v2248 = vunpack.c.l.b16 %v2220
        %v2249 = vunpack.c.l.b16 %v2221
        %v2250 = vpack.c.b16 %v2237, %v2236
        %v2251 = vpack.c.b16 %v2239, %v2238
        %v2252 = vpack.c.b16 %v2241, %v2240
        %v2253 = vpack.c.b16 %v2243, %v2242
        %v2254 = vpack.c.b16 %v2245, %v2244
        %v2255 = vpack.c.b16 %v2247, %v2246
        %v2256 = vpack.c.b16 %v2249, %v2248
        %v2264 = vsel %vm561, %v2256, 0
        %2266 = vmatpush.bf16.msra.mxu0 0
        %2267 = vmatpush.bf16.msra.mxu0 %v2264
        %2268 = vmatpush.bf16.msra.mxu0 %v2255
        %2269 = vmatpush.bf16.msra.mxu0 %v2254
        %2270 = vmatpush.bf16.msra.mxu0 %v2253
        %2271 = vmatpush.bf16.msra.mxu0 %v2252
        %2272 = vmatpush.bf16.msra.mxu0 %v2251
        %2273 = vmatpush.bf16.msra.mxu0 %v2250
        %2274 = vmatmul.bf16.gmra.mxu0 %v1904
        %v2275 = vpop.f32.mrf.mxu0
        %v2276 = vadd.f32 0.0, %v2275
        %v2277 = vpop.f32.mrf.mxu0
        %v2278 = vadd.f32 0.0, %v2277
        %2279 = vmatmul.bf16.gmra.mxu0 %v1907
        %v2280 = vpop.f32.mrf.mxu0
        %v2281 = vadd.f32 0.0, %v2280
        %v2282 = vpop.f32.mrf.mxu0
        %v2283 = vadd.f32 0.0, %v2282
        %2284 = vdwg.mxu0
        %v2285 = vpack.c.bf16 %v2278, %v2276
        %v2286 = vpack.c.bf16 %v2283, %v2281
        %s2287 = scalar_lea.vmem %s6, 32
        %v2288 = vld [vmem:[%s2287] sm:$0xf]
        %v2289 = vld [vmem:[%s2287 + $0x4] sm:$0x3]
        %v2292 = vunpack.c.l.b16 %v2288
        %v2293 = vunpack.c.l.b16 %v2289
        %v2294 = vpack.c.b16 %v2293, %v2292
        %v2296 = vsel %vm1941, %v2294, 0
        %v2299 = vand.u32 %v2286, %v1948
        %2301 = vmatpush.bf16.msra.mxu0 0
        %2302 = vmatpush.bf16.msra.mxu0 0
        %2303 = vmatpush.bf16.msra.mxu0 0
        %2304 = vmatpush.bf16.msra.mxu0 0
        %2305 = vmatpush.bf16.msra.mxu0 0
        %2306 = vmatpush.bf16.msra.mxu0 0
        %2307 = vmatpush.bf16.msra.mxu0 %v2299
        %2308 = vmatpush.bf16.msra.mxu0 %v2285
        %2309 = vmatmul.bf16.gmra.mxu0 %v2296
        %v2310 = vpop.f32.mrf.mxu0
        %v2311 = vadd.f32 0.0, %v2310
        %v2312 = vpop.f32.mrf.mxu0
        %v2313 = vadd.f32 0.0, %v2312
        %2314 = vdwg.mxu0
        %v2315 = vadd.f32 %v2206, %v2311
        %v2316 = vadd.f32 %v2207, %v2313
        %v2317 = vld [vmem:[%s945] sm:$0xf]
        %v2318 = vld [vmem:[%s945 + $0x4] sm:$0xf]
        %v2319 = vld [vmem:[%s945 + $0x8] sm:$0xf]
        %v2320 = vld [vmem:[%s945 + $0xc] sm:$0xf]
        %v2321 = vld [vmem:[%s945 + $0x10] sm:$0xf]
        %v2322 = vld [vmem:[%s945 + $0x14] sm:$0xf]
        %v2323 = vld [vmem:[%s945 + $0x18] sm:$0xf]
        %v2324 = vld [vmem:[%s945 + $0x1c] sm:$0xf]
        %v2325 = vld [vmem:[%s945 + $0x20] sm:$0xf]
        %v2326 = vld [vmem:[%s945 + $0x24] sm:$0xf]
        %v2327 = vld [vmem:[%s945 + $0x28] sm:$0xf]
        %v2328 = vld [vmem:[%s945 + $0x2c] sm:$0xf]
        %v2329 = vld [vmem:[%s945 + $0x30] sm:$0xf]
        %v2330 = vld [vmem:[%s945 + $0x34] sm:$0x7]
        %v2345 = vunpack.c.l.b16 %v2317
        %v2346 = vunpack.c.l.b16 %v2318
        %v2347 = vunpack.c.l.b16 %v2319
        %v2348 = vunpack.c.l.b16 %v2320
        %v2349 = vunpack.c.l.b16 %v2321
        %v2350 = vunpack.c.l.b16 %v2322
        %v2351 = vunpack.c.l.b16 %v2323
        %v2352 = vunpack.c.l.b16 %v2324
        %v2353 = vunpack.c.l.b16 %v2325
        %v2354 = vunpack.c.l.b16 %v2326
        %v2355 = vunpack.c.l.b16 %v2327
        %v2356 = vunpack.c.l.b16 %v2328
        %v2357 = vunpack.c.l.b16 %v2329
        %v2358 = vunpack.c.l.b16 %v2330
        %v2359 = vpack.c.b16 %v2346, %v2345
        %v2360 = vpack.c.b16 %v2348, %v2347
        %v2361 = vpack.c.b16 %v2350, %v2349
        %v2362 = vpack.c.b16 %v2352, %v2351
        %v2363 = vpack.c.b16 %v2354, %v2353
        %v2364 = vpack.c.b16 %v2356, %v2355
        %v2365 = vpack.c.b16 %v2358, %v2357
        %v2373 = vsel %vm561, %v2365, 0
        %2375 = vmatpush.bf16.msra.mxu0 0
        %2376 = vmatpush.bf16.msra.mxu0 %v2373
        %2377 = vmatpush.bf16.msra.mxu0 %v2364
        %2378 = vmatpush.bf16.msra.mxu0 %v2363
        %2379 = vmatpush.bf16.msra.mxu0 %v2362
        %2380 = vmatpush.bf16.msra.mxu0 %v2361
        %2381 = vmatpush.bf16.msra.mxu0 %v2360
        %2382 = vmatpush.bf16.msra.mxu0 %v2359
        %2383 = vmatmul.bf16.gmra.mxu0 %v1904
        %v2384 = vpop.f32.mrf.mxu0
        %v2385 = vadd.f32 0.0, %v2384
        %v2386 = vpop.f32.mrf.mxu0
        %v2387 = vadd.f32 0.0, %v2386
        %2388 = vmatmul.bf16.gmra.mxu0 %v1907
        %v2389 = vpop.f32.mrf.mxu0
        %v2390 = vadd.f32 0.0, %v2389
        %v2391 = vpop.f32.mrf.mxu0
        %v2392 = vadd.f32 0.0, %v2391
        %2393 = vdwg.mxu0
        %v2394 = vpack.c.bf16 %v2387, %v2385
        %v2395 = vpack.c.bf16 %v2392, %v2390
        %s2396 = scalar_lea.vmem %s6, 40
        %v2397 = vld [vmem:[%s2396] sm:$0xf]
        %v2398 = vld [vmem:[%s2396 + $0x4] sm:$0x3]
        %v2401 = vunpack.c.l.b16 %v2397
        %v2402 = vunpack.c.l.b16 %v2398
        %v2403 = vpack.c.b16 %v2402, %v2401
        %v2405 = vsel %vm1941, %v2403, 0
        %v2408 = vand.u32 %v2395, %v1948
        %2410 = vmatpush.bf16.msra.mxu0 0
        %2411 = vmatpush.bf16.msra.mxu0 0
        %2412 = vmatpush.bf16.msra.mxu0 0
        %2413 = vmatpush.bf16.msra.mxu0 0
        %2414 = vmatpush.bf16.msra.mxu0 0
        %2415 = vmatpush.bf16.msra.mxu0 0
        %2416 = vmatpush.bf16.msra.mxu0 %v2408
        %2417 = vmatpush.bf16.msra.mxu0 %v2394
        %2418 = vmatmul.bf16.gmra.mxu0 %v2405
        %v2419 = vpop.f32.mrf.mxu0
        %v2420 = vadd.f32 0.0, %v2419
        %v2421 = vpop.f32.mrf.mxu0
        %v2422 = vadd.f32 0.0, %v2421
        %2423 = vdwg.mxu0
        %v2424 = vadd.f32 %v2315, %v2420
        %v2425 = vadd.f32 %v2316, %v2422
        %v2426 = vld [vmem:[%s1048] sm:$0xf]
        %v2427 = vld [vmem:[%s1048 + $0x4] sm:$0xf]
        %v2428 = vld [vmem:[%s1048 + $0x8] sm:$0xf]
        %v2429 = vld [vmem:[%s1048 + $0xc] sm:$0xf]
        %v2430 = vld [vmem:[%s1048 + $0x10] sm:$0xf]
        %v2431 = vld [vmem:[%s1048 + $0x14] sm:$0xf]
        %v2432 = vld [vmem:[%s1048 + $0x18] sm:$0xf]
        %v2433 = vld [vmem:[%s1048 + $0x1c] sm:$0xf]
        %v2434 = vld [vmem:[%s1048 + $0x20] sm:$0xf]
        %v2435 = vld [vmem:[%s1048 + $0x24] sm:$0xf]
        %v2436 = vld [vmem:[%s1048 + $0x28] sm:$0xf]
        %v2437 = vld [vmem:[%s1048 + $0x2c] sm:$0xf]
        %v2438 = vld [vmem:[%s1048 + $0x30] sm:$0xf]
        %v2439 = vld [vmem:[%s1048 + $0x34] sm:$0x7]
        %v2454 = vunpack.c.l.b16 %v2426
        %v2455 = vunpack.c.l.b16 %v2427
        %v2456 = vunpack.c.l.b16 %v2428
        %v2457 = vunpack.c.l.b16 %v2429
        %v2458 = vunpack.c.l.b16 %v2430
        %v2459 = vunpack.c.l.b16 %v2431
        %v2460 = vunpack.c.l.b16 %v2432
        %v2461 = vunpack.c.l.b16 %v2433
        %v2462 = vunpack.c.l.b16 %v2434
        %v2463 = vunpack.c.l.b16 %v2435
        %v2464 = vunpack.c.l.b16 %v2436
        %v2465 = vunpack.c.l.b16 %v2437
        %v2466 = vunpack.c.l.b16 %v2438
        %v2467 = vunpack.c.l.b16 %v2439
        %v2468 = vpack.c.b16 %v2455, %v2454
        %v2469 = vpack.c.b16 %v2457, %v2456
        %v2470 = vpack.c.b16 %v2459, %v2458
        %v2471 = vpack.c.b16 %v2461, %v2460
        %v2472 = vpack.c.b16 %v2463, %v2462
        %v2473 = vpack.c.b16 %v2465, %v2464
        %v2474 = vpack.c.b16 %v2467, %v2466
        %v2482 = vsel %vm561, %v2474, 0
        %2484 = vmatpush.bf16.msra.mxu0 0
        %2485 = vmatpush.bf16.msra.mxu0 %v2482
        %2486 = vmatpush.bf16.msra.mxu0 %v2473
        %2487 = vmatpush.bf16.msra.mxu0 %v2472
        %2488 = vmatpush.bf16.msra.mxu0 %v2471
        %2489 = vmatpush.bf16.msra.mxu0 %v2470
        %2490 = vmatpush.bf16.msra.mxu0 %v2469
        %2491 = vmatpush.bf16.msra.mxu0 %v2468
        %2492 = vmatmul.bf16.gmra.mxu0 %v1904
        %v2493 = vpop.f32.mrf.mxu0
        %v2494 = vadd.f32 0.0, %v2493
        %v2495 = vpop.f32.mrf.mxu0
        %v2496 = vadd.f32 0.0, %v2495
        %2497 = vmatmul.bf16.gmra.mxu0 %v1907
        %v2498 = vpop.f32.mrf.mxu0
        %v2499 = vadd.f32 0.0, %v2498
        %v2500 = vpop.f32.mrf.mxu0
        %v2501 = vadd.f32 0.0, %v2500
        %2502 = vdwg.mxu0
        %v2503 = vpack.c.bf16 %v2496, %v2494
        %v2504 = vpack.c.bf16 %v2501, %v2499
        %s2505 = scalar_lea.vmem %s6, 48
        %v2506 = vld [vmem:[%s2505] sm:$0xf]
        %v2507 = vld [vmem:[%s2505 + $0x4] sm:$0x3]
        %v2510 = vunpack.c.l.b16 %v2506
        %v2511 = vunpack.c.l.b16 %v2507
        %v2512 = vpack.c.b16 %v2511, %v2510
        %v2514 = vsel %vm1941, %v2512, 0
        %v2517 = vand.u32 %v2504, %v1948
        %2519 = vmatpush.bf16.msra.mxu0 0
        %2520 = vmatpush.bf16.msra.mxu0 0
        %2521 = vmatpush.bf16.msra.mxu0 0
        %2522 = vmatpush.bf16.msra.mxu0 0
        %2523 = vmatpush.bf16.msra.mxu0 0
        %2524 = vmatpush.bf16.msra.mxu0 0
        %2525 = vmatpush.bf16.msra.mxu0 %v2517
        %2526 = vmatpush.bf16.msra.mxu0 %v2503
        %2527 = vmatmul.bf16.gmra.mxu0 %v2514
        %v2528 = vpop.f32.mrf.mxu0
        %v2529 = vadd.f32 0.0, %v2528
        %v2530 = vpop.f32.mrf.mxu0
        %v2531 = vadd.f32 0.0, %v2530
        %2532 = vdwg.mxu0
        %v2533 = vadd.f32 %v2424, %v2529
        %v2534 = vadd.f32 %v2425, %v2531
        %v2535 = vld [vmem:[%s11] sm:$0xff]
        %v2536 = vld [vmem:[%s11 + $0x8] sm:$0xf]
        %2538 = vset.pattern.permute.xlu0 2
        %2539 = vperm.xlu0 %2538, %v2535
        %v2540 = vpop.permute.xlu0 %2539
        %2543 = vset.pattern.permute.xlu0 2
        %2544 = vperm.xlu0 %2543, %v2536
        %v2545 = vpop.permute.xlu0 %2544
        %v2547 = vadd.f32 %v2533, %v2540
        %v2548 = vadd.f32 %v2534, %v2545
        %v2549 = vmax.f32 %v2547, 0.0
        %v2550 = vmax.f32 %v2548, 0.0
        %2551 = vst.msk [vmem:[#allocation2 + $0x1b] sm:$0xff] %vm557, %v2549
        %2552 = vst.msk [vmem:[#allocation2 + $0x23] sm:$0xf] %vm1168, %v2550
        %v2553 = vld [vmem:[#allocation2] sm:$0xff]
        %v2554 = vld [vmem:[#allocation2 + $0x8] sm:$0xff]
        %v2555 = vld [vmem:[#allocation2 + $0x10] sm:$0xff]
        %v2556 = vld [vmem:[#allocation2 + $0x18] sm:$0xff]
        %v2557 = vld [vmem:[#allocation2 + $0x20] sm:$0x7f]
        %v2558 = vpack.c.bf16 %v2554, %v2553
        %v2559 = vpack.c.bf16 %v2556, %v2555
        %v2560 = vpack.c.bf16 %v2557, %v2557
        %v2561 = vld [vmem:[%s7] sm:$0xf]
        %v2562 = vld [vmem:[%s7 + $0x4] sm:$0x3]
        %v2563 = vld [vmem:[#allocation3] sm:$0xf]
        %v2564 = vld [vmem:[#allocation3 + $0x4] sm:$0xf]
        %v2565 = vld [vmem:[#allocation3 + $0x8] sm:$0xf]
        %v2566 = vld [vmem:[#allocation3 + $0xc] sm:$0xf]
        %v2567 = vld [vmem:[#allocation3 + $0x10] sm:$0xf]
        %v2568 = vld [vmem:[#allocation3 + $0x14] sm:$0xf]
        %v2569 = vld [vmem:[#allocation3 + $0x18] sm:$0xf]
        %v2570 = vld [vmem:[#allocation3 + $0x1c] sm:$0xf]
        %v2571 = vld [vmem:[#allocation3 + $0x20] sm:$0xf]
        %v2572 = vld [vmem:[#allocation3 + $0x24] sm:$0xf]
        %v2573 = vld [vmem:[#allocation3 + $0x28] sm:$0xf]
        %v2574 = vld [vmem:[#allocation3 + $0x2c] sm:$0xf]
        %v2575 = vld [vmem:[#allocation3 + $0x30] sm:$0xf]
        %v2576 = vld [vmem:[#allocation3 + $0x34] sm:$0x7]
        %v2591 = vunpack.c.l.b16 %v2563
        %v2592 = vunpack.c.l.b16 %v2564
        %v2593 = vunpack.c.l.b16 %v2565
        %v2594 = vunpack.c.l.b16 %v2566
        %v2595 = vunpack.c.l.b16 %v2567
        %v2596 = vunpack.c.l.b16 %v2568
        %v2597 = vunpack.c.l.b16 %v2569
        %v2598 = vunpack.c.l.b16 %v2570
        %v2599 = vunpack.c.l.b16 %v2571
        %v2600 = vunpack.c.l.b16 %v2572
        %v2601 = vunpack.c.l.b16 %v2573
        %v2602 = vunpack.c.l.b16 %v2574
        %v2603 = vunpack.c.l.b16 %v2575
        %v2604 = vunpack.c.l.b16 %v2576
        %v2605 = vpack.c.b16 %v2592, %v2591
        %v2606 = vpack.c.b16 %v2594, %v2593
        %v2607 = vpack.c.b16 %v2596, %v2595
        %v2608 = vpack.c.b16 %v2598, %v2597
        %v2609 = vpack.c.b16 %v2600, %v2599
        %v2610 = vpack.c.b16 %v2602, %v2601
        %v2611 = vpack.c.b16 %v2604, %v2603
        %v2619 = vsel %vm557, %v2558, 0
        %v2622 = vsel %vm557, %v2559, 0
        %v2625 = vsel %vm557, %v2560, 0
        %v2628 = vsel %vm561, %v2611, 0
        %2630 = vmatpush.bf16.msra.mxu0 0
        %2631 = vmatpush.bf16.msra.mxu0 %v2628
        %2632 = vmatpush.bf16.msra.mxu0 %v2610
        %2633 = vmatpush.bf16.msra.mxu0 %v2609
        %2634 = vmatpush.bf16.msra.mxu0 %v2608
        %2635 = vmatpush.bf16.msra.mxu0 %v2607
        %2636 = vmatpush.bf16.msra.mxu0 %v2606
        %2637 = vmatpush.bf16.msra.mxu0 %v2605
        %2638 = vmatmul.bf16.gmra.mxu0 %v2619
        %v2639 = vpop.f32.mrf.mxu0
        %v2640 = vadd.f32 0.0, %v2639
        %v2641 = vpop.f32.mrf.mxu0
        %v2642 = vadd.f32 0.0, %v2641
        %2643 = vmatmul.bf16.gmra.mxu0 %v2622
        %v2644 = vpop.f32.mrf.mxu0
        %v2645 = vadd.f32 0.0, %v2644
        %v2646 = vpop.f32.mrf.mxu0
        %v2647 = vadd.f32 0.0, %v2646
        %2648 = vmatmul.bf16.gmra.mxu0 %v2625
        %v2649 = vpop.f32.mrf.mxu0
        %v2650 = vadd.f32 0.0, %v2649
        %v2651 = vpop.f32.mrf.mxu0
        %2652 = vdwg.mxu0
        %v2653 = vpack.c.bf16 %v2642, %v2640
        %v2654 = vpack.c.bf16 %v2647, %v2645
        %v2655 = vpack.c.bf16 %v2650, %v2650
        %s2656 = scalar_lea.vmem %s7, 8
        %v2657 = vld [vmem:[%s2656] sm:$0xf]
        %v2658 = vld [vmem:[%s2656 + $0x4] sm:$0x3]
        %v2661 = vunpack.c.l.b16 %v2657
        %v2662 = vunpack.c.l.b16 %v2658
        %v2663 = vpack.c.b16 %v2662, %v2661
        %vm2664 = vcmask 318464
        %v2666 = vsel %vm2664, %v2663, 0
        %vm2668 = vcmask 1042432
        %vm2669 = vcmask 1043456
        %v2670 = vsel %vm2668, 4294967295, 65535
        %v2671 = vsel %vm2669, %v2670, 0
        %v2673 = vand.u32 %v2655, %v2671
        %2675 = vmatpush.bf16.msra.mxu0 0
        %2676 = vmatpush.bf16.msra.mxu0 0
        %2677 = vmatpush.bf16.msra.mxu0 0
        %2678 = vmatpush.bf16.msra.mxu0 0
        %2679 = vmatpush.bf16.msra.mxu0 0
        %2680 = vmatpush.bf16.msra.mxu0 %v2673
        %2681 = vmatpush.bf16.msra.mxu0 %v2654
        %2682 = vmatpush.bf16.msra.mxu0 %v2653
        %2683 = vmatmul.bf16.gmra.mxu0 %v2666
        %v2684 = vpop.f32.mrf.mxu0
        %v2685 = vadd.f32 0.0, %v2684
        %v2686 = vpop.f32.mrf.mxu0
        %v2687 = vadd.f32 0.0, %v2686
        %2688 = vdwg.mxu0
        %v2691 = vunpack.c.l.b16 %v2561
        %v2692 = vunpack.c.l.b16 %v2562
        %v2693 = vpack.c.b16 %v2692, %v2691
        %v2695 = vsel %vm2664, %v2693, 0
        %v2697 = vand.u32 %v2560, %v2671
        %2699 = vmatpush.bf16.msra.mxu0 0
        %2700 = vmatpush.bf16.msra.mxu0 0
        %2701 = vmatpush.bf16.msra.mxu0 0
        %2702 = vmatpush.bf16.msra.mxu0 0
        %2703 = vmatpush.bf16.msra.mxu0 0
        %2704 = vmatpush.bf16.msra.mxu0 %v2697
        %2705 = vmatpush.bf16.msra.mxu0 %v2559
        %2706 = vmatpush.bf16.msra.mxu0 %v2558
        %2707 = vmatmul.bf16.gmra.mxu0 %v2695
        %v2708 = vpop.f32.mrf.mxu0
        %v2709 = vadd.f32 %v2685, %v2708
        %v2710 = vpop.f32.mrf.mxu0
        %v2711 = vadd.f32 %v2687, %v2710
        %2712 = vdwg.mxu0
        %v2713 = vld [vmem:[%s636] sm:$0xf]
        %v2714 = vld [vmem:[%s636 + $0x4] sm:$0xf]
        %v2715 = vld [vmem:[%s636 + $0x8] sm:$0xf]
        %v2716 = vld [vmem:[%s636 + $0xc] sm:$0xf]
        %v2717 = vld [vmem:[%s636 + $0x10] sm:$0xf]
        %v2718 = vld [vmem:[%s636 + $0x14] sm:$0xf]
        %v2719 = vld [vmem:[%s636 + $0x18] sm:$0xf]
        %v2720 = vld [vmem:[%s636 + $0x1c] sm:$0xf]
        %v2721 = vld [vmem:[%s636 + $0x20] sm:$0xf]
        %v2722 = vld [vmem:[%s636 + $0x24] sm:$0xf]
        %v2723 = vld [vmem:[%s636 + $0x28] sm:$0xf]
        %v2724 = vld [vmem:[%s636 + $0x2c] sm:$0xf]
        %v2725 = vld [vmem:[%s636 + $0x30] sm:$0xf]
        %v2726 = vld [vmem:[%s636 + $0x34] sm:$0x7]
        %v2741 = vunpack.c.l.b16 %v2713
        %v2742 = vunpack.c.l.b16 %v2714
        %v2743 = vunpack.c.l.b16 %v2715
        %v2744 = vunpack.c.l.b16 %v2716
        %v2745 = vunpack.c.l.b16 %v2717
        %v2746 = vunpack.c.l.b16 %v2718
        %v2747 = vunpack.c.l.b16 %v2719
        %v2748 = vunpack.c.l.b16 %v2720
        %v2749 = vunpack.c.l.b16 %v2721
        %v2750 = vunpack.c.l.b16 %v2722
        %v2751 = vunpack.c.l.b16 %v2723
        %v2752 = vunpack.c.l.b16 %v2724
        %v2753 = vunpack.c.l.b16 %v2725
        %v2754 = vunpack.c.l.b16 %v2726
        %v2755 = vpack.c.b16 %v2742, %v2741
        %v2756 = vpack.c.b16 %v2744, %v2743
        %v2757 = vpack.c.b16 %v2746, %v2745
        %v2758 = vpack.c.b16 %v2748, %v2747
        %v2759 = vpack.c.b16 %v2750, %v2749
        %v2760 = vpack.c.b16 %v2752, %v2751
        %v2761 = vpack.c.b16 %v2754, %v2753
        %v2769 = vsel %vm561, %v2761, 0
        %2771 = vmatpush.bf16.msra.mxu0 0
        %2772 = vmatpush.bf16.msra.mxu0 %v2769
        %2773 = vmatpush.bf16.msra.mxu0 %v2760
        %2774 = vmatpush.bf16.msra.mxu0 %v2759
        %2775 = vmatpush.bf16.msra.mxu0 %v2758
        %2776 = vmatpush.bf16.msra.mxu0 %v2757
        %2777 = vmatpush.bf16.msra.mxu0 %v2756
        %2778 = vmatpush.bf16.msra.mxu0 %v2755
        %2779 = vmatmul.bf16.gmra.mxu0 %v2619
        %v2780 = vpop.f32.mrf.mxu0
        %v2781 = vadd.f32 0.0, %v2780
        %v2782 = vpop.f32.mrf.mxu0
        %v2783 = vadd.f32 0.0, %v2782
        %2784 = vmatmul.bf16.gmra.mxu0 %v2622
        %v2785 = vpop.f32.mrf.mxu0
        %v2786 = vadd.f32 0.0, %v2785
        %v2787 = vpop.f32.mrf.mxu0
        %v2788 = vadd.f32 0.0, %v2787
        %2789 = vmatmul.bf16.gmra.mxu0 %v2625
        %v2790 = vpop.f32.mrf.mxu0
        %v2791 = vadd.f32 0.0, %v2790
        %v2792 = vpop.f32.mrf.mxu0
        %2793 = vdwg.mxu0
        %v2794 = vpack.c.bf16 %v2783, %v2781
        %v2795 = vpack.c.bf16 %v2788, %v2786
        %v2796 = vpack.c.bf16 %v2791, %v2791
        %s2797 = scalar_lea.vmem %s7, 16
        %v2798 = vld [vmem:[%s2797] sm:$0xf]
        %v2799 = vld [vmem:[%s2797 + $0x4] sm:$0x3]
        %v2802 = vunpack.c.l.b16 %v2798
        %v2803 = vunpack.c.l.b16 %v2799
        %v2804 = vpack.c.b16 %v2803, %v2802
        %v2806 = vsel %vm2664, %v2804, 0
        %v2809 = vand.u32 %v2796, %v2671
        %2811 = vmatpush.bf16.msra.mxu0 0
        %2812 = vmatpush.bf16.msra.mxu0 0
        %2813 = vmatpush.bf16.msra.mxu0 0
        %2814 = vmatpush.bf16.msra.mxu0 0
        %2815 = vmatpush.bf16.msra.mxu0 0
        %2816 = vmatpush.bf16.msra.mxu0 %v2809
        %2817 = vmatpush.bf16.msra.mxu0 %v2795
        %2818 = vmatpush.bf16.msra.mxu0 %v2794
        %2819 = vmatmul.bf16.gmra.mxu0 %v2806
        %v2820 = vpop.f32.mrf.mxu0
        %v2821 = vadd.f32 0.0, %v2820
        %v2822 = vpop.f32.mrf.mxu0
        %v2823 = vadd.f32 0.0, %v2822
        %2824 = vdwg.mxu0
        %v2825 = vadd.f32 %v2709, %v2821
        %v2826 = vadd.f32 %v2711, %v2823
        %v2827 = vld [vmem:[%s739] sm:$0xf]
        %v2828 = vld [vmem:[%s739 + $0x4] sm:$0xf]
        %v2829 = vld [vmem:[%s739 + $0x8] sm:$0xf]
        %v2830 = vld [vmem:[%s739 + $0xc] sm:$0xf]
        %v2831 = vld [vmem:[%s739 + $0x10] sm:$0xf]
        %v2832 = vld [vmem:[%s739 + $0x14] sm:$0xf]
        %v2833 = vld [vmem:[%s739 + $0x18] sm:$0xf]
        %v2834 = vld [vmem:[%s739 + $0x1c] sm:$0xf]
        %v2835 = vld [vmem:[%s739 + $0x20] sm:$0xf]
        %v2836 = vld [vmem:[%s739 + $0x24] sm:$0xf]
        %v2837 = vld [vmem:[%s739 + $0x28] sm:$0xf]
        %v2838 = vld [vmem:[%s739 + $0x2c] sm:$0xf]
        %v2839 = vld [vmem:[%s739 + $0x30] sm:$0xf]
        %v2840 = vld [vmem:[%s739 + $0x34] sm:$0x7]
        %v2855 = vunpack.c.l.b16 %v2827
        %v2856 = vunpack.c.l.b16 %v2828
        %v2857 = vunpack.c.l.b16 %v2829
        %v2858 = vunpack.c.l.b16 %v2830
        %v2859 = vunpack.c.l.b16 %v2831
        %v2860 = vunpack.c.l.b16 %v2832
        %v2861 = vunpack.c.l.b16 %v2833
        %v2862 = vunpack.c.l.b16 %v2834
        %v2863 = vunpack.c.l.b16 %v2835
        %v2864 = vunpack.c.l.b16 %v2836
        %v2865 = vunpack.c.l.b16 %v2837
        %v2866 = vunpack.c.l.b16 %v2838
        %v2867 = vunpack.c.l.b16 %v2839
        %v2868 = vunpack.c.l.b16 %v2840
        %v2869 = vpack.c.b16 %v2856, %v2855
        %v2870 = vpack.c.b16 %v2858, %v2857
        %v2871 = vpack.c.b16 %v2860, %v2859
        %v2872 = vpack.c.b16 %v2862, %v2861
        %v2873 = vpack.c.b16 %v2864, %v2863
        %v2874 = vpack.c.b16 %v2866, %v2865
        %v2875 = vpack.c.b16 %v2868, %v2867
        %v2883 = vsel %vm561, %v2875, 0
        %2885 = vmatpush.bf16.msra.mxu0 0
        %2886 = vmatpush.bf16.msra.mxu0 %v2883
        %2887 = vmatpush.bf16.msra.mxu0 %v2874
        %2888 = vmatpush.bf16.msra.mxu0 %v2873
        %2889 = vmatpush.bf16.msra.mxu0 %v2872
        %2890 = vmatpush.bf16.msra.mxu0 %v2871
        %2891 = vmatpush.bf16.msra.mxu0 %v2870
        %2892 = vmatpush.bf16.msra.mxu0 %v2869
        %2893 = vmatmul.bf16.gmra.mxu0 %v2619
        %v2894 = vpop.f32.mrf.mxu0
        %v2895 = vadd.f32 0.0, %v2894
        %v2896 = vpop.f32.mrf.mxu0
        %v2897 = vadd.f32 0.0, %v2896
        %2898 = vmatmul.bf16.gmra.mxu0 %v2622
        %v2899 = vpop.f32.mrf.mxu0
        %v2900 = vadd.f32 0.0, %v2899
        %v2901 = vpop.f32.mrf.mxu0
        %v2902 = vadd.f32 0.0, %v2901
        %2903 = vmatmul.bf16.gmra.mxu0 %v2625
        %v2904 = vpop.f32.mrf.mxu0
        %v2905 = vadd.f32 0.0, %v2904
        %v2906 = vpop.f32.mrf.mxu0
        %2907 = vdwg.mxu0
        %v2908 = vpack.c.bf16 %v2897, %v2895
        %v2909 = vpack.c.bf16 %v2902, %v2900
        %v2910 = vpack.c.bf16 %v2905, %v2905
        %s2911 = scalar_lea.vmem %s7, 24
        %v2912 = vld [vmem:[%s2911] sm:$0xf]
        %v2913 = vld [vmem:[%s2911 + $0x4] sm:$0x3]
        %v2916 = vunpack.c.l.b16 %v2912
        %v2917 = vunpack.c.l.b16 %v2913
        %v2918 = vpack.c.b16 %v2917, %v2916
        %v2920 = vsel %vm2664, %v2918, 0
        %v2923 = vand.u32 %v2910, %v2671
        %2925 = vmatpush.bf16.msra.mxu0 0
        %2926 = vmatpush.bf16.msra.mxu0 0
        %2927 = vmatpush.bf16.msra.mxu0 0
        %2928 = vmatpush.bf16.msra.mxu0 0
        %2929 = vmatpush.bf16.msra.mxu0 0
        %2930 = vmatpush.bf16.msra.mxu0 %v2923
        %2931 = vmatpush.bf16.msra.mxu0 %v2909
        %2932 = vmatpush.bf16.msra.mxu0 %v2908
        %2933 = vmatmul.bf16.gmra.mxu0 %v2920
        %v2934 = vpop.f32.mrf.mxu0
        %v2935 = vadd.f32 0.0, %v2934
        %v2936 = vpop.f32.mrf.mxu0
        %v2937 = vadd.f32 0.0, %v2936
        %2938 = vdwg.mxu0
        %v2939 = vadd.f32 %v2825, %v2935
        %v2940 = vadd.f32 %v2826, %v2937
        %v2941 = vld [vmem:[%s842] sm:$0xf]
        %v2942 = vld [vmem:[%s842 + $0x4] sm:$0xf]
        %v2943 = vld [vmem:[%s842 + $0x8] sm:$0xf]
        %v2944 = vld [vmem:[%s842 + $0xc] sm:$0xf]
        %v2945 = vld [vmem:[%s842 + $0x10] sm:$0xf]
        %v2946 = vld [vmem:[%s842 + $0x14] sm:$0xf]
        %v2947 = vld [vmem:[%s842 + $0x18] sm:$0xf]
        %v2948 = vld [vmem:[%s842 + $0x1c] sm:$0xf]
        %v2949 = vld [vmem:[%s842 + $0x20] sm:$0xf]
        %v2950 = vld [vmem:[%s842 + $0x24] sm:$0xf]
        %v2951 = vld [vmem:[%s842 + $0x28] sm:$0xf]
        %v2952 = vld [vmem:[%s842 + $0x2c] sm:$0xf]
        %v2953 = vld [vmem:[%s842 + $0x30] sm:$0xf]
        %v2954 = vld [vmem:[%s842 + $0x34] sm:$0x7]
        %v2969 = vunpack.c.l.b16 %v2941
        %v2970 = vunpack.c.l.b16 %v2942
        %v2971 = vunpack.c.l.b16 %v2943
        %v2972 = vunpack.c.l.b16 %v2944
        %v2973 = vunpack.c.l.b16 %v2945
        %v2974 = vunpack.c.l.b16 %v2946
        %v2975 = vunpack.c.l.b16 %v2947
        %v2976 = vunpack.c.l.b16 %v2948
        %v2977 = vunpack.c.l.b16 %v2949
        %v2978 = vunpack.c.l.b16 %v2950
        %v2979 = vunpack.c.l.b16 %v2951
        %v2980 = vunpack.c.l.b16 %v2952
        %v2981 = vunpack.c.l.b16 %v2953
        %v2982 = vunpack.c.l.b16 %v2954
        %v2983 = vpack.c.b16 %v2970, %v2969
        %v2984 = vpack.c.b16 %v2972, %v2971
        %v2985 = vpack.c.b16 %v2974, %v2973
        %v2986 = vpack.c.b16 %v2976, %v2975
        %v2987 = vpack.c.b16 %v2978, %v2977
        %v2988 = vpack.c.b16 %v2980, %v2979
        %v2989 = vpack.c.b16 %v2982, %v2981
        %v2997 = vsel %vm561, %v2989, 0
        %2999 = vmatpush.bf16.msra.mxu0 0
        %3000 = vmatpush.bf16.msra.mxu0 %v2997
        %3001 = vmatpush.bf16.msra.mxu0 %v2988
        %3002 = vmatpush.bf16.msra.mxu0 %v2987
        %3003 = vmatpush.bf16.msra.mxu0 %v2986
        %3004 = vmatpush.bf16.msra.mxu0 %v2985
        %3005 = vmatpush.bf16.msra.mxu0 %v2984
        %3006 = vmatpush.bf16.msra.mxu0 %v2983
        %3007 = vmatmul.bf16.gmra.mxu0 %v2619
        %v3008 = vpop.f32.mrf.mxu0
        %v3009 = vadd.f32 0.0, %v3008
        %v3010 = vpop.f32.mrf.mxu0
        %v3011 = vadd.f32 0.0, %v3010
        %3012 = vmatmul.bf16.gmra.mxu0 %v2622
        %v3013 = vpop.f32.mrf.mxu0
        %v3014 = vadd.f32 0.0, %v3013
        %v3015 = vpop.f32.mrf.mxu0
        %v3016 = vadd.f32 0.0, %v3015
        %3017 = vmatmul.bf16.gmra.mxu0 %v2625
        %v3018 = vpop.f32.mrf.mxu0
        %v3019 = vadd.f32 0.0, %v3018
        %v3020 = vpop.f32.mrf.mxu0
        %3021 = vdwg.mxu0
        %v3022 = vpack.c.bf16 %v3011, %v3009
        %v3023 = vpack.c.bf16 %v3016, %v3014
        %v3024 = vpack.c.bf16 %v3019, %v3019
        %s3025 = scalar_lea.vmem %s7, 32
        %v3026 = vld [vmem:[%s3025] sm:$0xf]
        %v3027 = vld [vmem:[%s3025 + $0x4] sm:$0x3]
        %v3030 = vunpack.c.l.b16 %v3026
        %v3031 = vunpack.c.l.b16 %v3027
        %v3032 = vpack.c.b16 %v3031, %v3030
        %v3034 = vsel %vm2664, %v3032, 0
        %v3037 = vand.u32 %v3024, %v2671
        %3039 = vmatpush.bf16.msra.mxu0 0
        %3040 = vmatpush.bf16.msra.mxu0 0
        %3041 = vmatpush.bf16.msra.mxu0 0
        %3042 = vmatpush.bf16.msra.mxu0 0
        %3043 = vmatpush.bf16.msra.mxu0 0
        %3044 = vmatpush.bf16.msra.mxu0 %v3037
        %3045 = vmatpush.bf16.msra.mxu0 %v3023
        %3046 = vmatpush.bf16.msra.mxu0 %v3022
        %3047 = vmatmul.bf16.gmra.mxu0 %v3034
        %v3048 = vpop.f32.mrf.mxu0
        %v3049 = vadd.f32 0.0, %v3048
        %v3050 = vpop.f32.mrf.mxu0
        %v3051 = vadd.f32 0.0, %v3050
        %3052 = vdwg.mxu0
        %v3053 = vadd.f32 %v2939, %v3049
        %v3054 = vadd.f32 %v2940, %v3051
        %v3055 = vld [vmem:[%s945] sm:$0xf]
        %v3056 = vld [vmem:[%s945 + $0x4] sm:$0xf]
        %v3057 = vld [vmem:[%s945 + $0x8] sm:$0xf]
        %v3058 = vld [vmem:[%s945 + $0xc] sm:$0xf]
        %v3059 = vld [vmem:[%s945 + $0x10] sm:$0xf]
        %v3060 = vld [vmem:[%s945 + $0x14] sm:$0xf]
        %v3061 = vld [vmem:[%s945 + $0x18] sm:$0xf]
        %v3062 = vld [vmem:[%s945 + $0x1c] sm:$0xf]
        %v3063 = vld [vmem:[%s945 + $0x20] sm:$0xf]
        %v3064 = vld [vmem:[%s945 + $0x24] sm:$0xf]
        %v3065 = vld [vmem:[%s945 + $0x28] sm:$0xf]
        %v3066 = vld [vmem:[%s945 + $0x2c] sm:$0xf]
        %v3067 = vld [vmem:[%s945 + $0x30] sm:$0xf]
        %v3068 = vld [vmem:[%s945 + $0x34] sm:$0x7]
        %v3083 = vunpack.c.l.b16 %v3055
        %v3084 = vunpack.c.l.b16 %v3056
        %v3085 = vunpack.c.l.b16 %v3057
        %v3086 = vunpack.c.l.b16 %v3058
        %v3087 = vunpack.c.l.b16 %v3059
        %v3088 = vunpack.c.l.b16 %v3060
        %v3089 = vunpack.c.l.b16 %v3061
        %v3090 = vunpack.c.l.b16 %v3062
        %v3091 = vunpack.c.l.b16 %v3063
        %v3092 = vunpack.c.l.b16 %v3064
        %v3093 = vunpack.c.l.b16 %v3065
        %v3094 = vunpack.c.l.b16 %v3066
        %v3095 = vunpack.c.l.b16 %v3067
        %v3096 = vunpack.c.l.b16 %v3068
        %v3097 = vpack.c.b16 %v3084, %v3083
        %v3098 = vpack.c.b16 %v3086, %v3085
        %v3099 = vpack.c.b16 %v3088, %v3087
        %v3100 = vpack.c.b16 %v3090, %v3089
        %v3101 = vpack.c.b16 %v3092, %v3091
        %v3102 = vpack.c.b16 %v3094, %v3093
        %v3103 = vpack.c.b16 %v3096, %v3095
        %v3111 = vsel %vm561, %v3103, 0
        %3113 = vmatpush.bf16.msra.mxu0 0
        %3114 = vmatpush.bf16.msra.mxu0 %v3111
        %3115 = vmatpush.bf16.msra.mxu0 %v3102
        %3116 = vmatpush.bf16.msra.mxu0 %v3101
        %3117 = vmatpush.bf16.msra.mxu0 %v3100
        %3118 = vmatpush.bf16.msra.mxu0 %v3099
        %3119 = vmatpush.bf16.msra.mxu0 %v3098
        %3120 = vmatpush.bf16.msra.mxu0 %v3097
        %3121 = vmatmul.bf16.gmra.mxu0 %v2619
        %v3122 = vpop.f32.mrf.mxu0
        %v3123 = vadd.f32 0.0, %v3122
        %v3124 = vpop.f32.mrf.mxu0
        %v3125 = vadd.f32 0.0, %v3124
        %3126 = vmatmul.bf16.gmra.mxu0 %v2622
        %v3127 = vpop.f32.mrf.mxu0
        %v3128 = vadd.f32 0.0, %v3127
        %v3129 = vpop.f32.mrf.mxu0
        %v3130 = vadd.f32 0.0, %v3129
        %3131 = vmatmul.bf16.gmra.mxu0 %v2625
        %v3132 = vpop.f32.mrf.mxu0
        %v3133 = vadd.f32 0.0, %v3132
        %v3134 = vpop.f32.mrf.mxu0
        %3135 = vdwg.mxu0
        %v3136 = vpack.c.bf16 %v3125, %v3123
        %v3137 = vpack.c.bf16 %v3130, %v3128
        %v3138 = vpack.c.bf16 %v3133, %v3133
        %s3139 = scalar_lea.vmem %s7, 40
        %v3140 = vld [vmem:[%s3139] sm:$0xf]
        %v3141 = vld [vmem:[%s3139 + $0x4] sm:$0x3]
        %v3144 = vunpack.c.l.b16 %v3140
        %v3145 = vunpack.c.l.b16 %v3141
        %v3146 = vpack.c.b16 %v3145, %v3144
        %v3148 = vsel %vm2664, %v3146, 0
        %v3151 = vand.u32 %v3138, %v2671
        %3153 = vmatpush.bf16.msra.mxu0 0
        %3154 = vmatpush.bf16.msra.mxu0 0
        %3155 = vmatpush.bf16.msra.mxu0 0
        %3156 = vmatpush.bf16.msra.mxu0 0
        %3157 = vmatpush.bf16.msra.mxu0 0
        %3158 = vmatpush.bf16.msra.mxu0 %v3151
        %3159 = vmatpush.bf16.msra.mxu0 %v3137
        %3160 = vmatpush.bf16.msra.mxu0 %v3136
        %3161 = vmatmul.bf16.gmra.mxu0 %v3148
        %v3162 = vpop.f32.mrf.mxu0
        %v3163 = vadd.f32 0.0, %v3162
        %v3164 = vpop.f32.mrf.mxu0
        %v3165 = vadd.f32 0.0, %v3164
        %3166 = vdwg.mxu0
        %v3167 = vadd.f32 %v3053, %v3163
        %v3168 = vadd.f32 %v3054, %v3165
        %v3169 = vld [vmem:[%s1048] sm:$0xf]
        %v3170 = vld [vmem:[%s1048 + $0x4] sm:$0xf]
        %v3171 = vld [vmem:[%s1048 + $0x8] sm:$0xf]
        %v3172 = vld [vmem:[%s1048 + $0xc] sm:$0xf]
        %v3173 = vld [vmem:[%s1048 + $0x10] sm:$0xf]
        %v3174 = vld [vmem:[%s1048 + $0x14] sm:$0xf]
        %v3175 = vld [vmem:[%s1048 + $0x18] sm:$0xf]
        %v3176 = vld [vmem:[%s1048 + $0x1c] sm:$0xf]
        %v3177 = vld [vmem:[%s1048 + $0x20] sm:$0xf]
        %v3178 = vld [vmem:[%s1048 + $0x24] sm:$0xf]
        %v3179 = vld [vmem:[%s1048 + $0x28] sm:$0xf]
        %v3180 = vld [vmem:[%s1048 + $0x2c] sm:$0xf]
        %v3181 = vld [vmem:[%s1048 + $0x30] sm:$0xf]
        %v3182 = vld [vmem:[%s1048 + $0x34] sm:$0x7]
        %v3197 = vunpack.c.l.b16 %v3169
        %v3198 = vunpack.c.l.b16 %v3170
        %v3199 = vunpack.c.l.b16 %v3171
        %v3200 = vunpack.c.l.b16 %v3172
        %v3201 = vunpack.c.l.b16 %v3173
        %v3202 = vunpack.c.l.b16 %v3174
        %v3203 = vunpack.c.l.b16 %v3175
        %v3204 = vunpack.c.l.b16 %v3176
        %v3205 = vunpack.c.l.b16 %v3177
        %v3206 = vunpack.c.l.b16 %v3178
        %v3207 = vunpack.c.l.b16 %v3179
        %v3208 = vunpack.c.l.b16 %v3180
        %v3209 = vunpack.c.l.b16 %v3181
        %v3210 = vunpack.c.l.b16 %v3182
        %v3211 = vpack.c.b16 %v3198, %v3197
        %v3212 = vpack.c.b16 %v3200, %v3199
        %v3213 = vpack.c.b16 %v3202, %v3201
        %v3214 = vpack.c.b16 %v3204, %v3203
        %v3215 = vpack.c.b16 %v3206, %v3205
        %v3216 = vpack.c.b16 %v3208, %v3207
        %v3217 = vpack.c.b16 %v3210, %v3209
        %v3225 = vsel %vm561, %v3217, 0
        %3227 = vmatpush.bf16.msra.mxu0 0
        %3228 = vmatpush.bf16.msra.mxu0 %v3225
        %3229 = vmatpush.bf16.msra.mxu0 %v3216
        %3230 = vmatpush.bf16.msra.mxu0 %v3215
        %3231 = vmatpush.bf16.msra.mxu0 %v3214
        %3232 = vmatpush.bf16.msra.mxu0 %v3213
        %3233 = vmatpush.bf16.msra.mxu0 %v3212
        %3234 = vmatpush.bf16.msra.mxu0 %v3211
        %3235 = vmatmul.bf16.gmra.mxu0 %v2619
        %v3236 = vpop.f32.mrf.mxu0
        %v3237 = vadd.f32 0.0, %v3236
        %v3238 = vpop.f32.mrf.mxu0
        %v3239 = vadd.f32 0.0, %v3238
        %3240 = vmatmul.bf16.gmra.mxu0 %v2622
        %v3241 = vpop.f32.mrf.mxu0
        %v3242 = vadd.f32 0.0, %v3241
        %v3243 = vpop.f32.mrf.mxu0
        %v3244 = vadd.f32 0.0, %v3243
        %3245 = vmatmul.bf16.gmra.mxu0 %v2625
        %v3246 = vpop.f32.mrf.mxu0
        %v3247 = vadd.f32 0.0, %v3246
        %v3248 = vpop.f32.mrf.mxu0
        %3249 = vdwg.mxu0
        %v3250 = vpack.c.bf16 %v3239, %v3237
        %v3251 = vpack.c.bf16 %v3244, %v3242
        %v3252 = vpack.c.bf16 %v3247, %v3247
        %s3253 = scalar_lea.vmem %s7, 48
        %v3254 = vld [vmem:[%s3253] sm:$0xf]
        %v3255 = vld [vmem:[%s3253 + $0x4] sm:$0x3]
        %v3258 = vunpack.c.l.b16 %v3254
        %v3259 = vunpack.c.l.b16 %v3255
        %v3260 = vpack.c.b16 %v3259, %v3258
        %v3262 = vsel %vm2664, %v3260, 0
        %v3265 = vand.u32 %v3252, %v2671
        %3267 = vmatpush.bf16.msra.mxu0 0
        %3268 = vmatpush.bf16.msra.mxu0 0
        %3269 = vmatpush.bf16.msra.mxu0 0
        %3270 = vmatpush.bf16.msra.mxu0 0
        %3271 = vmatpush.bf16.msra.mxu0 0
        %3272 = vmatpush.bf16.msra.mxu0 %v3265
        %3273 = vmatpush.bf16.msra.mxu0 %v3251
        %3274 = vmatpush.bf16.msra.mxu0 %v3250
        %3275 = vmatmul.bf16.gmra.mxu0 %v3262
        %v3276 = vpop.f32.mrf.mxu0
        %v3277 = vadd.f32 0.0, %v3276
        %v3278 = vpop.f32.mrf.mxu0
        %v3279 = vadd.f32 0.0, %v3278
        %3280 = vdwg.mxu0
        %v3281 = vadd.f32 %v3167, %v3277
        %v3282 = vadd.f32 %v3168, %v3279
        %v3283 = vld [vmem:[%s11] sm:$0xff]
        %v3284 = vld [vmem:[%s11 + $0x8] sm:$0xf]
        %3286 = vset.pattern.permute.xlu0 3
        %3287 = vperm.xlu0 %3286, %v3283
        %v3288 = vpop.permute.xlu0 %3287
        %3291 = vset.pattern.permute.xlu0 3
        %3292 = vperm.xlu0 %3291, %v3284
        %v3293 = vpop.permute.xlu0 %3292
        %v3295 = vadd.f32 %v3281, %v3288
        %v3296 = vadd.f32 %v3282, %v3293
        %v3297 = vmax.f32 %v3295, 0.0
        %v3298 = vmax.f32 %v3296, 0.0
        %3299 = vst.msk [vmem:[#allocation2 + $0x27] sm:$0xff] %vm557, %v3297
        %3300 = vst.msk [vmem:[#allocation2 + $0x2f] sm:$0xf] %vm1168, %v3298
        %v3301 = vld [vmem:[#allocation2] sm:$0xff]
        %v3302 = vld [vmem:[#allocation2 + $0x8] sm:$0xff]
        %v3303 = vld [vmem:[#allocation2 + $0x10] sm:$0xff]
        %v3304 = vld [vmem:[#allocation2 + $0x18] sm:$0xff]
        %v3305 = vld [vmem:[#allocation2 + $0x20] sm:$0xff]
        %v3306 = vld [vmem:[#allocation2 + $0x28] sm:$0xff]
        %v3307 = vld [vmem:[#allocation2 + $0x30] sm:$0x7]
        %v3308 = vpack.c.bf16 %v3302, %v3301
        %v3309 = vpack.c.bf16 %v3304, %v3303
        %v3310 = vpack.c.bf16 %v3306, %v3305
        %v3311 = vpack.c.bf16 %v3307, %v3307
        %v3312 = vld [vmem:[%s8] sm:$0xf]
        %v3313 = vld [vmem:[%s8 + $0x4] sm:$0x3]
        %v3314 = vld [vmem:[#allocation3] sm:$0xf]
        %v3315 = vld [vmem:[#allocation3 + $0x4] sm:$0xf]
        %v3316 = vld [vmem:[#allocation3 + $0x8] sm:$0xf]
        %v3317 = vld [vmem:[#allocation3 + $0xc] sm:$0xf]
        %v3318 = vld [vmem:[#allocation3 + $0x10] sm:$0xf]
        %v3319 = vld [vmem:[#allocation3 + $0x14] sm:$0xf]
        %v3320 = vld [vmem:[#allocation3 + $0x18] sm:$0xf]
        %v3321 = vld [vmem:[#allocation3 + $0x1c] sm:$0xf]
        %v3322 = vld [vmem:[#allocation3 + $0x20] sm:$0xf]
        %v3323 = vld [vmem:[#allocation3 + $0x24] sm:$0xf]
        %v3324 = vld [vmem:[#allocation3 + $0x28] sm:$0xf]
        %v3325 = vld [vmem:[#allocation3 + $0x2c] sm:$0xf]
        %v3326 = vld [vmem:[#allocation3 + $0x30] sm:$0xf]
        %v3327 = vld [vmem:[#allocation3 + $0x34] sm:$0x7]
        %v3342 = vunpack.c.l.b16 %v3314
        %v3343 = vunpack.c.l.b16 %v3315
        %v3344 = vunpack.c.l.b16 %v3316
        %v3345 = vunpack.c.l.b16 %v3317
        %v3346 = vunpack.c.l.b16 %v3318
        %v3347 = vunpack.c.l.b16 %v3319
        %v3348 = vunpack.c.l.b16 %v3320
        %v3349 = vunpack.c.l.b16 %v3321
        %v3350 = vunpack.c.l.b16 %v3322
        %v3351 = vunpack.c.l.b16 %v3323
        %v3352 = vunpack.c.l.b16 %v3324
        %v3353 = vunpack.c.l.b16 %v3325
        %v3354 = vunpack.c.l.b16 %v3326
        %v3355 = vunpack.c.l.b16 %v3327
        %v3356 = vpack.c.b16 %v3343, %v3342
        %v3357 = vpack.c.b16 %v3345, %v3344
        %v3358 = vpack.c.b16 %v3347, %v3346
        %v3359 = vpack.c.b16 %v3349, %v3348
        %v3360 = vpack.c.b16 %v3351, %v3350
        %v3361 = vpack.c.b16 %v3353, %v3352
        %v3362 = vpack.c.b16 %v3355, %v3354
        %v3370 = vsel %vm557, %v3308, 0
        %v3373 = vsel %vm557, %v3309, 0
        %v3376 = vsel %vm557, %v3310, 0
        %v3379 = vsel %vm557, %v3311, 0
        %v3382 = vsel %vm561, %v3362, 0
        %3384 = vmatpush.bf16.msra.mxu0 0
        %3385 = vmatpush.bf16.msra.mxu0 %v3382
        %3386 = vmatpush.bf16.msra.mxu0 %v3361
        %3387 = vmatpush.bf16.msra.mxu0 %v3360
        %3388 = vmatpush.bf16.msra.mxu0 %v3359
        %3389 = vmatpush.bf16.msra.mxu0 %v3358
        %3390 = vmatpush.bf16.msra.mxu0 %v3357
        %3391 = vmatpush.bf16.msra.mxu0 %v3356
        %3392 = vmatmul.bf16.gmra.mxu0 %v3370
        %v3393 = vpop.f32.mrf.mxu0
        %v3394 = vadd.f32 0.0, %v3393
        %v3395 = vpop.f32.mrf.mxu0
        %v3396 = vadd.f32 0.0, %v3395
        %3397 = vmatmul.bf16.gmra.mxu0 %v3373
        %v3398 = vpop.f32.mrf.mxu0
        %v3399 = vadd.f32 0.0, %v3398
        %v3400 = vpop.f32.mrf.mxu0
        %v3401 = vadd.f32 0.0, %v3400
        %3402 = vmatmul.bf16.gmra.mxu0 %v3376
        %v3403 = vpop.f32.mrf.mxu0
        %v3404 = vadd.f32 0.0, %v3403
        %v3405 = vpop.f32.mrf.mxu0
        %v3406 = vadd.f32 0.0, %v3405
        %3407 = vmatmul.bf16.gmra.mxu0 %v3379
        %v3408 = vpop.f32.mrf.mxu0
        %v3409 = vadd.f32 0.0, %v3408
        %v3410 = vpop.f32.mrf.mxu0
        %3411 = vdwg.mxu0
        %v3412 = vpack.c.bf16 %v3396, %v3394
        %v3413 = vpack.c.bf16 %v3401, %v3399
        %v3414 = vpack.c.bf16 %v3406, %v3404
        %v3415 = vpack.c.bf16 %v3409, %v3409
        %s3416 = scalar_lea.vmem %s8, 8
        %v3417 = vld [vmem:[%s3416] sm:$0xf]
        %v3418 = vld [vmem:[%s3416 + $0x4] sm:$0x3]
        %v3421 = vunpack.c.l.b16 %v3417
        %v3422 = vunpack.c.l.b16 %v3418
        %v3423 = vpack.c.b16 %v3422, %v3421
        %vm3424 = vcmask 416768
        %v3426 = vsel %vm3424, %v3423, 0
        %v3429 = vand.u32 %v3415, %v594
        %3431 = vmatpush.bf16.msra.mxu0 0
        %3432 = vmatpush.bf16.msra.mxu0 0
        %3433 = vmatpush.bf16.msra.mxu0 0
        %3434 = vmatpush.bf16.msra.mxu0 0
        %3435 = vmatpush.bf16.msra.mxu0 %v3429
        %3436 = vmatpush.bf16.msra.mxu0 %v3414
        %3437 = vmatpush.bf16.msra.mxu0 %v3413
        %3438 = vmatpush.bf16.msra.mxu0 %v3412
        %3439 = vmatmul.bf16.gmra.mxu0 %v3426
        %v3440 = vpop.f32.mrf.mxu0
        %v3441 = vadd.f32 0.0, %v3440
        %v3442 = vpop.f32.mrf.mxu0
        %v3443 = vadd.f32 0.0, %v3442
        %3444 = vdwg.mxu0
        %v3447 = vunpack.c.l.b16 %v3312
        %v3448 = vunpack.c.l.b16 %v3313
        %v3449 = vpack.c.b16 %v3448, %v3447
        %v3451 = vsel %vm3424, %v3449, 0
        %v3453 = vand.u32 %v3311, %v594
        %3455 = vmatpush.bf16.msra.mxu0 0
        %3456 = vmatpush.bf16.msra.mxu0 0
        %3457 = vmatpush.bf16.msra.mxu0 0
        %3458 = vmatpush.bf16.msra.mxu0 0
        %3459 = vmatpush.bf16.msra.mxu0 %v3453
        %3460 = vmatpush.bf16.msra.mxu0 %v3310
        %3461 = vmatpush.bf16.msra.mxu0 %v3309
        %3462 = vmatpush.bf16.msra.mxu0 %v3308
        %3463 = vmatmul.bf16.gmra.mxu0 %v3451
        %v3464 = vpop.f32.mrf.mxu0
        %v3465 = vadd.f32 %v3441, %v3464
        %v3466 = vpop.f32.mrf.mxu0
        %v3467 = vadd.f32 %v3443, %v3466
        %3468 = vdwg.mxu0
        %v3469 = vld [vmem:[%s636] sm:$0xf]
        %v3470 = vld [vmem:[%s636 + $0x4] sm:$0xf]
        %v3471 = vld [vmem:[%s636 + $0x8] sm:$0xf]
        %v3472 = vld [vmem:[%s636 + $0xc] sm:$0xf]
        %v3473 = vld [vmem:[%s636 + $0x10] sm:$0xf]
        %v3474 = vld [vmem:[%s636 + $0x14] sm:$0xf]
        %v3475 = vld [vmem:[%s636 + $0x18] sm:$0xf]
        %v3476 = vld [vmem:[%s636 + $0x1c] sm:$0xf]
        %v3477 = vld [vmem:[%s636 + $0x20] sm:$0xf]
        %v3478 = vld [vmem:[%s636 + $0x24] sm:$0xf]
        %v3479 = vld [vmem:[%s636 + $0x28] sm:$0xf]
        %v3480 = vld [vmem:[%s636 + $0x2c] sm:$0xf]
        %v3481 = vld [vmem:[%s636 + $0x30] sm:$0xf]
        %v3482 = vld [vmem:[%s636 + $0x34] sm:$0x7]
        %v3497 = vunpack.c.l.b16 %v3469
        %v3498 = vunpack.c.l.b16 %v3470
        %v3499 = vunpack.c.l.b16 %v3471
        %v3500 = vunpack.c.l.b16 %v3472
        %v3501 = vunpack.c.l.b16 %v3473
        %v3502 = vunpack.c.l.b16 %v3474
        %v3503 = vunpack.c.l.b16 %v3475
        %v3504 = vunpack.c.l.b16 %v3476
        %v3505 = vunpack.c.l.b16 %v3477
        %v3506 = vunpack.c.l.b16 %v3478
        %v3507 = vunpack.c.l.b16 %v3479
        %v3508 = vunpack.c.l.b16 %v3480
        %v3509 = vunpack.c.l.b16 %v3481
        %v3510 = vunpack.c.l.b16 %v3482
        %v3511 = vpack.c.b16 %v3498, %v3497
        %v3512 = vpack.c.b16 %v3500, %v3499
        %v3513 = vpack.c.b16 %v3502, %v3501
        %v3514 = vpack.c.b16 %v3504, %v3503
        %v3515 = vpack.c.b16 %v3506, %v3505
        %v3516 = vpack.c.b16 %v3508, %v3507
        %v3517 = vpack.c.b16 %v3510, %v3509
        %v3525 = vsel %vm561, %v3517, 0
        %3527 = vmatpush.bf16.msra.mxu0 0
        %3528 = vmatpush.bf16.msra.mxu0 %v3525
        %3529 = vmatpush.bf16.msra.mxu0 %v3516
        %3530 = vmatpush.bf16.msra.mxu0 %v3515
        %3531 = vmatpush.bf16.msra.mxu0 %v3514
        %3532 = vmatpush.bf16.msra.mxu0 %v3513
        %3533 = vmatpush.bf16.msra.mxu0 %v3512
        %3534 = vmatpush.bf16.msra.mxu0 %v3511
        %3535 = vmatmul.bf16.gmra.mxu0 %v3370
        %v3536 = vpop.f32.mrf.mxu0
        %v3537 = vadd.f32 0.0, %v3536
        %v3538 = vpop.f32.mrf.mxu0
        %v3539 = vadd.f32 0.0, %v3538
        %3540 = vmatmul.bf16.gmra.mxu0 %v3373
        %v3541 = vpop.f32.mrf.mxu0
        %v3542 = vadd.f32 0.0, %v3541
        %v3543 = vpop.f32.mrf.mxu0
        %v3544 = vadd.f32 0.0, %v3543
        %3545 = vmatmul.bf16.gmra.mxu0 %v3376
        %v3546 = vpop.f32.mrf.mxu0
        %v3547 = vadd.f32 0.0, %v3546
        %v3548 = vpop.f32.mrf.mxu0
        %v3549 = vadd.f32 0.0, %v3548
        %3550 = vmatmul.bf16.gmra.mxu0 %v3379
        %v3551 = vpop.f32.mrf.mxu0
        %v3552 = vadd.f32 0.0, %v3551
        %v3553 = vpop.f32.mrf.mxu0
        %3554 = vdwg.mxu0
        %v3555 = vpack.c.bf16 %v3539, %v3537
        %v3556 = vpack.c.bf16 %v3544, %v3542
        %v3557 = vpack.c.bf16 %v3549, %v3547
        %v3558 = vpack.c.bf16 %v3552, %v3552
        %s3559 = scalar_lea.vmem %s8, 16
        %v3560 = vld [vmem:[%s3559] sm:$0xf]
        %v3561 = vld [vmem:[%s3559 + $0x4] sm:$0x3]
        %v3564 = vunpack.c.l.b16 %v3560
        %v3565 = vunpack.c.l.b16 %v3561
        %v3566 = vpack.c.b16 %v3565, %v3564
        %v3568 = vsel %vm3424, %v3566, 0
        %v3571 = vand.u32 %v3558, %v594
        %3573 = vmatpush.bf16.msra.mxu0 0
        %3574 = vmatpush.bf16.msra.mxu0 0
        %3575 = vmatpush.bf16.msra.mxu0 0
        %3576 = vmatpush.bf16.msra.mxu0 0
        %3577 = vmatpush.bf16.msra.mxu0 %v3571
        %3578 = vmatpush.bf16.msra.mxu0 %v3557
        %3579 = vmatpush.bf16.msra.mxu0 %v3556
        %3580 = vmatpush.bf16.msra.mxu0 %v3555
        %3581 = vmatmul.bf16.gmra.mxu0 %v3568
        %v3582 = vpop.f32.mrf.mxu0
        %v3583 = vadd.f32 0.0, %v3582
        %v3584 = vpop.f32.mrf.mxu0
        %v3585 = vadd.f32 0.0, %v3584
        %3586 = vdwg.mxu0
        %v3587 = vadd.f32 %v3465, %v3583
        %v3588 = vadd.f32 %v3467, %v3585
        %v3589 = vld [vmem:[%s739] sm:$0xf]
        %v3590 = vld [vmem:[%s739 + $0x4] sm:$0xf]
        %v3591 = vld [vmem:[%s739 + $0x8] sm:$0xf]
        %v3592 = vld [vmem:[%s739 + $0xc] sm:$0xf]
        %v3593 = vld [vmem:[%s739 + $0x10] sm:$0xf]
        %v3594 = vld [vmem:[%s739 + $0x14] sm:$0xf]
        %v3595 = vld [vmem:[%s739 + $0x18] sm:$0xf]
        %v3596 = vld [vmem:[%s739 + $0x1c] sm:$0xf]
        %v3597 = vld [vmem:[%s739 + $0x20] sm:$0xf]
        %v3598 = vld [vmem:[%s739 + $0x24] sm:$0xf]
        %v3599 = vld [vmem:[%s739 + $0x28] sm:$0xf]
        %v3600 = vld [vmem:[%s739 + $0x2c] sm:$0xf]
        %v3601 = vld [vmem:[%s739 + $0x30] sm:$0xf]
        %v3602 = vld [vmem:[%s739 + $0x34] sm:$0x7]
        %v3617 = vunpack.c.l.b16 %v3589
        %v3618 = vunpack.c.l.b16 %v3590
        %v3619 = vunpack.c.l.b16 %v3591
        %v3620 = vunpack.c.l.b16 %v3592
        %v3621 = vunpack.c.l.b16 %v3593
        %v3622 = vunpack.c.l.b16 %v3594
        %v3623 = vunpack.c.l.b16 %v3595
        %v3624 = vunpack.c.l.b16 %v3596
        %v3625 = vunpack.c.l.b16 %v3597
        %v3626 = vunpack.c.l.b16 %v3598
        %v3627 = vunpack.c.l.b16 %v3599
        %v3628 = vunpack.c.l.b16 %v3600
        %v3629 = vunpack.c.l.b16 %v3601
        %v3630 = vunpack.c.l.b16 %v3602
        %v3631 = vpack.c.b16 %v3618, %v3617
        %v3632 = vpack.c.b16 %v3620, %v3619
        %v3633 = vpack.c.b16 %v3622, %v3621
        %v3634 = vpack.c.b16 %v3624, %v3623
        %v3635 = vpack.c.b16 %v3626, %v3625
        %v3636 = vpack.c.b16 %v3628, %v3627
        %v3637 = vpack.c.b16 %v3630, %v3629
        %v3645 = vsel %vm561, %v3637, 0
        %3647 = vmatpush.bf16.msra.mxu0 0
        %3648 = vmatpush.bf16.msra.mxu0 %v3645
        %3649 = vmatpush.bf16.msra.mxu0 %v3636
        %3650 = vmatpush.bf16.msra.mxu0 %v3635
        %3651 = vmatpush.bf16.msra.mxu0 %v3634
        %3652 = vmatpush.bf16.msra.mxu0 %v3633
        %3653 = vmatpush.bf16.msra.mxu0 %v3632
        %3654 = vmatpush.bf16.msra.mxu0 %v3631
        %3655 = vmatmul.bf16.gmra.mxu0 %v3370
        %v3656 = vpop.f32.mrf.mxu0
        %v3657 = vadd.f32 0.0, %v3656
        %v3658 = vpop.f32.mrf.mxu0
        %v3659 = vadd.f32 0.0, %v3658
        %3660 = vmatmul.bf16.gmra.mxu0 %v3373
        %v3661 = vpop.f32.mrf.mxu0
        %v3662 = vadd.f32 0.0, %v3661
        %v3663 = vpop.f32.mrf.mxu0
        %v3664 = vadd.f32 0.0, %v3663
        %3665 = vmatmul.bf16.gmra.mxu0 %v3376
        %v3666 = vpop.f32.mrf.mxu0
        %v3667 = vadd.f32 0.0, %v3666
        %v3668 = vpop.f32.mrf.mxu0
        %v3669 = vadd.f32 0.0, %v3668
        %3670 = vmatmul.bf16.gmra.mxu0 %v3379
        %v3671 = vpop.f32.mrf.mxu0
        %v3672 = vadd.f32 0.0, %v3671
        %v3673 = vpop.f32.mrf.mxu0
        %3674 = vdwg.mxu0
        %v3675 = vpack.c.bf16 %v3659, %v3657
        %v3676 = vpack.c.bf16 %v3664, %v3662
        %v3677 = vpack.c.bf16 %v3669, %v3667
        %v3678 = vpack.c.bf16 %v3672, %v3672
        %s3679 = scalar_lea.vmem %s8, 24
        %v3680 = vld [vmem:[%s3679] sm:$0xf]
        %v3681 = vld [vmem:[%s3679 + $0x4] sm:$0x3]
        %v3684 = vunpack.c.l.b16 %v3680
        %v3685 = vunpack.c.l.b16 %v3681
        %v3686 = vpack.c.b16 %v3685, %v3684
        %v3688 = vsel %vm3424, %v3686, 0
        %v3691 = vand.u32 %v3678, %v594
        %3693 = vmatpush.bf16.msra.mxu0 0
        %3694 = vmatpush.bf16.msra.mxu0 0
        %3695 = vmatpush.bf16.msra.mxu0 0
        %3696 = vmatpush.bf16.msra.mxu0 0
        %3697 = vmatpush.bf16.msra.mxu0 %v3691
        %3698 = vmatpush.bf16.msra.mxu0 %v3677
        %3699 = vmatpush.bf16.msra.mxu0 %v3676
        %3700 = vmatpush.bf16.msra.mxu0 %v3675
        %3701 = vmatmul.bf16.gmra.mxu0 %v3688
        %v3702 = vpop.f32.mrf.mxu0
        %v3703 = vadd.f32 0.0, %v3702
        %v3704 = vpop.f32.mrf.mxu0
        %v3705 = vadd.f32 0.0, %v3704
        %3706 = vdwg.mxu0
        %v3707 = vadd.f32 %v3587, %v3703
        %v3708 = vadd.f32 %v3588, %v3705
        %v3709 = vld [vmem:[%s842] sm:$0xf]
        %v3710 = vld [vmem:[%s842 + $0x4] sm:$0xf]
        %v3711 = vld [vmem:[%s842 + $0x8] sm:$0xf]
        %v3712 = vld [vmem:[%s842 + $0xc] sm:$0xf]
        %v3713 = vld [vmem:[%s842 + $0x10] sm:$0xf]
        %v3714 = vld [vmem:[%s842 + $0x14] sm:$0xf]
        %v3715 = vld [vmem:[%s842 + $0x18] sm:$0xf]
        %v3716 = vld [vmem:[%s842 + $0x1c] sm:$0xf]
        %v3717 = vld [vmem:[%s842 + $0x20] sm:$0xf]
        %v3718 = vld [vmem:[%s842 + $0x24] sm:$0xf]
        %v3719 = vld [vmem:[%s842 + $0x28] sm:$0xf]
        %v3720 = vld [vmem:[%s842 + $0x2c] sm:$0xf]
        %v3721 = vld [vmem:[%s842 + $0x30] sm:$0xf]
        %v3722 = vld [vmem:[%s842 + $0x34] sm:$0x7]
        %v3737 = vunpack.c.l.b16 %v3709
        %v3738 = vunpack.c.l.b16 %v3710
        %v3739 = vunpack.c.l.b16 %v3711
        %v3740 = vunpack.c.l.b16 %v3712
        %v3741 = vunpack.c.l.b16 %v3713
        %v3742 = vunpack.c.l.b16 %v3714
        %v3743 = vunpack.c.l.b16 %v3715
        %v3744 = vunpack.c.l.b16 %v3716
        %v3745 = vunpack.c.l.b16 %v3717
        %v3746 = vunpack.c.l.b16 %v3718
        %v3747 = vunpack.c.l.b16 %v3719
        %v3748 = vunpack.c.l.b16 %v3720
        %v3749 = vunpack.c.l.b16 %v3721
        %v3750 = vunpack.c.l.b16 %v3722
        %v3751 = vpack.c.b16 %v3738, %v3737
        %v3752 = vpack.c.b16 %v3740, %v3739
        %v3753 = vpack.c.b16 %v3742, %v3741
        %v3754 = vpack.c.b16 %v3744, %v3743
        %v3755 = vpack.c.b16 %v3746, %v3745
        %v3756 = vpack.c.b16 %v3748, %v3747
        %v3757 = vpack.c.b16 %v3750, %v3749
        %v3765 = vsel %vm561, %v3757, 0
        %3767 = vmatpush.bf16.msra.mxu0 0
        %3768 = vmatpush.bf16.msra.mxu0 %v3765
        %3769 = vmatpush.bf16.msra.mxu0 %v3756
        %3770 = vmatpush.bf16.msra.mxu0 %v3755
        %3771 = vmatpush.bf16.msra.mxu0 %v3754
        %3772 = vmatpush.bf16.msra.mxu0 %v3753
        %3773 = vmatpush.bf16.msra.mxu0 %v3752
        %3774 = vmatpush.bf16.msra.mxu0 %v3751
        %3775 = vmatmul.bf16.gmra.mxu0 %v3370
        %v3776 = vpop.f32.mrf.mxu0
        %v3777 = vadd.f32 0.0, %v3776
        %v3778 = vpop.f32.mrf.mxu0
        %v3779 = vadd.f32 0.0, %v3778
        %3780 = vmatmul.bf16.gmra.mxu0 %v3373
        %v3781 = vpop.f32.mrf.mxu0
        %v3782 = vadd.f32 0.0, %v3781
        %v3783 = vpop.f32.mrf.mxu0
        %v3784 = vadd.f32 0.0, %v3783
        %3785 = vmatmul.bf16.gmra.mxu0 %v3376
        %v3786 = vpop.f32.mrf.mxu0
        %v3787 = vadd.f32 0.0, %v3786
        %v3788 = vpop.f32.mrf.mxu0
        %v3789 = vadd.f32 0.0, %v3788
        %3790 = vmatmul.bf16.gmra.mxu0 %v3379
        %v3791 = vpop.f32.mrf.mxu0
        %v3792 = vadd.f32 0.0, %v3791
        %v3793 = vpop.f32.mrf.mxu0
        %3794 = vdwg.mxu0
        %v3795 = vpack.c.bf16 %v3779, %v3777
        %v3796 = vpack.c.bf16 %v3784, %v3782
        %v3797 = vpack.c.bf16 %v3789, %v3787
        %v3798 = vpack.c.bf16 %v3792, %v3792
        %s3799 = scalar_lea.vmem %s8, 32
        %v3800 = vld [vmem:[%s3799] sm:$0xf]
        %v3801 = vld [vmem:[%s3799 + $0x4] sm:$0x3]
        %v3804 = vunpack.c.l.b16 %v3800
        %v3805 = vunpack.c.l.b16 %v3801
        %v3806 = vpack.c.b16 %v3805, %v3804
        %v3808 = vsel %vm3424, %v3806, 0
        %v3811 = vand.u32 %v3798, %v594
        %3813 = vmatpush.bf16.msra.mxu0 0
        %3814 = vmatpush.bf16.msra.mxu0 0
        %3815 = vmatpush.bf16.msra.mxu0 0
        %3816 = vmatpush.bf16.msra.mxu0 0
        %3817 = vmatpush.bf16.msra.mxu0 %v3811
        %3818 = vmatpush.bf16.msra.mxu0 %v3797
        %3819 = vmatpush.bf16.msra.mxu0 %v3796
        %3820 = vmatpush.bf16.msra.mxu0 %v3795
        %3821 = vmatmul.bf16.gmra.mxu0 %v3808
        %v3822 = vpop.f32.mrf.mxu0
        %v3823 = vadd.f32 0.0, %v3822
        %v3824 = vpop.f32.mrf.mxu0
        %v3825 = vadd.f32 0.0, %v3824
        %3826 = vdwg.mxu0
        %v3827 = vadd.f32 %v3707, %v3823
        %v3828 = vadd.f32 %v3708, %v3825
        %v3829 = vld [vmem:[%s945] sm:$0xf]
        %v3830 = vld [vmem:[%s945 + $0x4] sm:$0xf]
        %v3831 = vld [vmem:[%s945 + $0x8] sm:$0xf]
        %v3832 = vld [vmem:[%s945 + $0xc] sm:$0xf]
        %v3833 = vld [vmem:[%s945 + $0x10] sm:$0xf]
        %v3834 = vld [vmem:[%s945 + $0x14] sm:$0xf]
        %v3835 = vld [vmem:[%s945 + $0x18] sm:$0xf]
        %v3836 = vld [vmem:[%s945 + $0x1c] sm:$0xf]
        %v3837 = vld [vmem:[%s945 + $0x20] sm:$0xf]
        %v3838 = vld [vmem:[%s945 + $0x24] sm:$0xf]
        %v3839 = vld [vmem:[%s945 + $0x28] sm:$0xf]
        %v3840 = vld [vmem:[%s945 + $0x2c] sm:$0xf]
        %v3841 = vld [vmem:[%s945 + $0x30] sm:$0xf]
        %v3842 = vld [vmem:[%s945 + $0x34] sm:$0x7]
        %v3857 = vunpack.c.l.b16 %v3829
        %v3858 = vunpack.c.l.b16 %v3830
        %v3859 = vunpack.c.l.b16 %v3831
        %v3860 = vunpack.c.l.b16 %v3832
        %v3861 = vunpack.c.l.b16 %v3833
        %v3862 = vunpack.c.l.b16 %v3834
        %v3863 = vunpack.c.l.b16 %v3835
        %v3864 = vunpack.c.l.b16 %v3836
        %v3865 = vunpack.c.l.b16 %v3837
        %v3866 = vunpack.c.l.b16 %v3838
        %v3867 = vunpack.c.l.b16 %v3839
        %v3868 = vunpack.c.l.b16 %v3840
        %v3869 = vunpack.c.l.b16 %v3841
        %v3870 = vunpack.c.l.b16 %v3842
        %v3871 = vpack.c.b16 %v3858, %v3857
        %v3872 = vpack.c.b16 %v3860, %v3859
        %v3873 = vpack.c.b16 %v3862, %v3861
        %v3874 = vpack.c.b16 %v3864, %v3863
        %v3875 = vpack.c.b16 %v3866, %v3865
        %v3876 = vpack.c.b16 %v3868, %v3867
        %v3877 = vpack.c.b16 %v3870, %v3869
        %v3885 = vsel %vm561, %v3877, 0
        %3887 = vmatpush.bf16.msra.mxu0 0
        %3888 = vmatpush.bf16.msra.mxu0 %v3885
        %3889 = vmatpush.bf16.msra.mxu0 %v3876
        %3890 = vmatpush.bf16.msra.mxu0 %v3875
        %3891 = vmatpush.bf16.msra.mxu0 %v3874
        %3892 = vmatpush.bf16.msra.mxu0 %v3873
        %3893 = vmatpush.bf16.msra.mxu0 %v3872
        %3894 = vmatpush.bf16.msra.mxu0 %v3871
        %3895 = vmatmul.bf16.gmra.mxu0 %v3370
        %v3896 = vpop.f32.mrf.mxu0
        %v3897 = vadd.f32 0.0, %v3896
        %v3898 = vpop.f32.mrf.mxu0
        %v3899 = vadd.f32 0.0, %v3898
        %3900 = vmatmul.bf16.gmra.mxu0 %v3373
        %v3901 = vpop.f32.mrf.mxu0
        %v3902 = vadd.f32 0.0, %v3901
        %v3903 = vpop.f32.mrf.mxu0
        %v3904 = vadd.f32 0.0, %v3903
        %3905 = vmatmul.bf16.gmra.mxu0 %v3376
        %v3906 = vpop.f32.mrf.mxu0
        %v3907 = vadd.f32 0.0, %v3906
        %v3908 = vpop.f32.mrf.mxu0
        %v3909 = vadd.f32 0.0, %v3908
        %3910 = vmatmul.bf16.gmra.mxu0 %v3379
        %v3911 = vpop.f32.mrf.mxu0
        %v3912 = vadd.f32 0.0, %v3911
        %v3913 = vpop.f32.mrf.mxu0
        %3914 = vdwg.mxu0
        %v3915 = vpack.c.bf16 %v3899, %v3897
        %v3916 = vpack.c.bf16 %v3904, %v3902
        %v3917 = vpack.c.bf16 %v3909, %v3907
        %v3918 = vpack.c.bf16 %v3912, %v3912
        %s3919 = scalar_lea.vmem %s8, 40
        %v3920 = vld [vmem:[%s3919] sm:$0xf]
        %v3921 = vld [vmem:[%s3919 + $0x4] sm:$0x3]
        %v3924 = vunpack.c.l.b16 %v3920
        %v3925 = vunpack.c.l.b16 %v3921
        %v3926 = vpack.c.b16 %v3925, %v3924
        %v3928 = vsel %vm3424, %v3926, 0
        %v3931 = vand.u32 %v3918, %v594
        %3933 = vmatpush.bf16.msra.mxu0 0
        %3934 = vmatpush.bf16.msra.mxu0 0
        %3935 = vmatpush.bf16.msra.mxu0 0
        %3936 = vmatpush.bf16.msra.mxu0 0
        %3937 = vmatpush.bf16.msra.mxu0 %v3931
        %3938 = vmatpush.bf16.msra.mxu0 %v3917
        %3939 = vmatpush.bf16.msra.mxu0 %v3916
        %3940 = vmatpush.bf16.msra.mxu0 %v3915
        %3941 = vmatmul.bf16.gmra.mxu0 %v3928
        %v3942 = vpop.f32.mrf.mxu0
        %v3943 = vadd.f32 0.0, %v3942
        %v3944 = vpop.f32.mrf.mxu0
        %v3945 = vadd.f32 0.0, %v3944
        %3946 = vdwg.mxu0
        %v3947 = vadd.f32 %v3827, %v3943
        %v3948 = vadd.f32 %v3828, %v3945
        %v3949 = vld [vmem:[%s1048] sm:$0xf]
        %v3950 = vld [vmem:[%s1048 + $0x4] sm:$0xf]
        %v3951 = vld [vmem:[%s1048 + $0x8] sm:$0xf]
        %v3952 = vld [vmem:[%s1048 + $0xc] sm:$0xf]
        %v3953 = vld [vmem:[%s1048 + $0x10] sm:$0xf]
        %v3954 = vld [vmem:[%s1048 + $0x14] sm:$0xf]
        %v3955 = vld [vmem:[%s1048 + $0x18] sm:$0xf]
        %v3956 = vld [vmem:[%s1048 + $0x1c] sm:$0xf]
        %v3957 = vld [vmem:[%s1048 + $0x20] sm:$0xf]
        %v3958 = vld [vmem:[%s1048 + $0x24] sm:$0xf]
        %v3959 = vld [vmem:[%s1048 + $0x28] sm:$0xf]
        %v3960 = vld [vmem:[%s1048 + $0x2c] sm:$0xf]
        %v3961 = vld [vmem:[%s1048 + $0x30] sm:$0xf]
        %v3962 = vld [vmem:[%s1048 + $0x34] sm:$0x7]
        %v3977 = vunpack.c.l.b16 %v3949
        %v3978 = vunpack.c.l.b16 %v3950
        %v3979 = vunpack.c.l.b16 %v3951
        %v3980 = vunpack.c.l.b16 %v3952
        %v3981 = vunpack.c.l.b16 %v3953
        %v3982 = vunpack.c.l.b16 %v3954
        %v3983 = vunpack.c.l.b16 %v3955
        %v3984 = vunpack.c.l.b16 %v3956
        %v3985 = vunpack.c.l.b16 %v3957
        %v3986 = vunpack.c.l.b16 %v3958
        %v3987 = vunpack.c.l.b16 %v3959
        %v3988 = vunpack.c.l.b16 %v3960
        %v3989 = vunpack.c.l.b16 %v3961
        %v3990 = vunpack.c.l.b16 %v3962
        %v3991 = vpack.c.b16 %v3978, %v3977
        %v3992 = vpack.c.b16 %v3980, %v3979
        %v3993 = vpack.c.b16 %v3982, %v3981
        %v3994 = vpack.c.b16 %v3984, %v3983
        %v3995 = vpack.c.b16 %v3986, %v3985
        %v3996 = vpack.c.b16 %v3988, %v3987
        %v3997 = vpack.c.b16 %v3990, %v3989
        %v4005 = vsel %vm561, %v3997, 0
        %4007 = vmatpush.bf16.msra.mxu0 0
        %4008 = vmatpush.bf16.msra.mxu0 %v4005
        %4009 = vmatpush.bf16.msra.mxu0 %v3996
        %4010 = vmatpush.bf16.msra.mxu0 %v3995
        %4011 = vmatpush.bf16.msra.mxu0 %v3994
        %4012 = vmatpush.bf16.msra.mxu0 %v3993
        %4013 = vmatpush.bf16.msra.mxu0 %v3992
        %4014 = vmatpush.bf16.msra.mxu0 %v3991
        %4015 = vmatmul.bf16.gmra.mxu0 %v3370
        %v4016 = vpop.f32.mrf.mxu0
        %v4017 = vadd.f32 0.0, %v4016
        %v4018 = vpop.f32.mrf.mxu0
        %v4019 = vadd.f32 0.0, %v4018
        %4020 = vmatmul.bf16.gmra.mxu0 %v3373
        %v4021 = vpop.f32.mrf.mxu0
        %v4022 = vadd.f32 0.0, %v4021
        %v4023 = vpop.f32.mrf.mxu0
        %v4024 = vadd.f32 0.0, %v4023
        %4025 = vmatmul.bf16.gmra.mxu0 %v3376
        %v4026 = vpop.f32.mrf.mxu0
        %v4027 = vadd.f32 0.0, %v4026
        %v4028 = vpop.f32.mrf.mxu0
        %v4029 = vadd.f32 0.0, %v4028
        %4030 = vmatmul.bf16.gmra.mxu0 %v3379
        %v4031 = vpop.f32.mrf.mxu0
        %v4032 = vadd.f32 0.0, %v4031
        %v4033 = vpop.f32.mrf.mxu0
        %4034 = vdwg.mxu0
        %v4035 = vpack.c.bf16 %v4019, %v4017
        %v4036 = vpack.c.bf16 %v4024, %v4022
        %v4037 = vpack.c.bf16 %v4029, %v4027
        %v4038 = vpack.c.bf16 %v4032, %v4032
        %s4039 = scalar_lea.vmem %s8, 48
        %v4040 = vld [vmem:[%s4039] sm:$0xf]
        %v4041 = vld [vmem:[%s4039 + $0x4] sm:$0x3]
        %v4044 = vunpack.c.l.b16 %v4040
        %v4045 = vunpack.c.l.b16 %v4041
        %v4046 = vpack.c.b16 %v4045, %v4044
        %v4048 = vsel %vm3424, %v4046, 0
        %v4051 = vand.u32 %v4038, %v594
        %4053 = vmatpush.bf16.msra.mxu0 0
        %4054 = vmatpush.bf16.msra.mxu0 0
        %4055 = vmatpush.bf16.msra.mxu0 0
        %4056 = vmatpush.bf16.msra.mxu0 0
        %4057 = vmatpush.bf16.msra.mxu0 %v4051
        %4058 = vmatpush.bf16.msra.mxu0 %v4037
        %4059 = vmatpush.bf16.msra.mxu0 %v4036
        %4060 = vmatpush.bf16.msra.mxu0 %v4035
        %4061 = vmatmul.bf16.gmra.mxu0 %v4048
        %v4062 = vpop.f32.mrf.mxu0
        %v4063 = vadd.f32 0.0, %v4062
        %v4064 = vpop.f32.mrf.mxu0
        %v4065 = vadd.f32 0.0, %v4064
        %4066 = vdwg.mxu0
        %v4067 = vadd.f32 %v3947, %v4063
        %v4068 = vadd.f32 %v3948, %v4065
        %v4069 = vld [vmem:[%s11] sm:$0xff]
        %v4070 = vld [vmem:[%s11 + $0x8] sm:$0xf]
        %4072 = vset.pattern.permute.xlu0 4
        %4073 = vperm.xlu0 %4072, %v4069
        %v4074 = vpop.permute.xlu0 %4073
        %4077 = vset.pattern.permute.xlu0 4
        %4078 = vperm.xlu0 %4077, %v4070
        %v4079 = vpop.permute.xlu0 %4078
        %v4081 = vadd.f32 %v4067, %v4074
        %v4082 = vadd.f32 %v4068, %v4079
        %v4083 = vmax.f32 %v4081, 0.0
        %v4084 = vmax.f32 %v4082, 0.0
        %4085 = vst.msk [vmem:[#allocation2 + $0x33] sm:$0xff] %vm557, %v4083
        %4086 = vst.msk [vmem:[#allocation2 + $0x3b] sm:$0xf] %vm1168, %v4084
        %v4087 = vld [vmem:[#allocation2] sm:$0xff]
        %v4088 = vld [vmem:[#allocation2 + $0x8] sm:$0xff]
        %v4089 = vld [vmem:[#allocation2 + $0x10] sm:$0xff]
        %v4090 = vld [vmem:[#allocation2 + $0x18] sm:$0xff]
        %v4091 = vld [vmem:[#allocation2 + $0x20] sm:$0xff]
        %v4092 = vld [vmem:[#allocation2 + $0x28] sm:$0xff]
        %v4093 = vld [vmem:[#allocation2 + $0x30] sm:$0xff]
        %v4094 = vld [vmem:[#allocation2 + $0x38] sm:$0x7f]
        %v4095 = vpack.c.bf16 %v4088, %v4087
        %v4096 = vpack.c.bf16 %v4090, %v4089
        %v4097 = vpack.c.bf16 %v4092, %v4091
        %v4098 = vpack.c.bf16 %v4094, %v4093
        %v4099 = vld [vmem:[#allocation5] sm:$0xf]
        %v4100 = vld [vmem:[#allocation5 + $0x4] sm:$0xf]
        %v4101 = vld [vmem:[#allocation5 + $0x8] sm:$0xf]
        %v4102 = vld [vmem:[#allocation5 + $0xc] sm:$0xf]
        %v4103 = vld [vmem:[#allocation5 + $0x10] sm:$0xf]
        %v4104 = vld [vmem:[#allocation5 + $0x14] sm:$0xf]
        %v4105 = vld [vmem:[#allocation5 + $0x18] sm:$0xf]
        %v4106 = vld [vmem:[#allocation5 + $0x1c] sm:$0xf]
        %v4107 = vld [vmem:[#allocation5 + $0x20] sm:$0xf]
        %v4108 = vld [vmem:[#allocation5 + $0x24] sm:$0xf]
        %v4109 = vld [vmem:[#allocation5 + $0x28] sm:$0xf]
        %v4110 = vld [vmem:[#allocation5 + $0x2c] sm:$0xf]
        %v4111 = vld [vmem:[#allocation5 + $0x30] sm:$0xf]
        %v4112 = vld [vmem:[#allocation5 + $0x34] sm:$0x7]
        %v4127 = vunpack.c.l.b16 %v4099
        %v4128 = vunpack.c.l.b16 %v4100
        %v4129 = vunpack.c.l.b16 %v4101
        %v4130 = vunpack.c.l.b16 %v4102
        %v4131 = vunpack.c.l.b16 %v4103
        %v4132 = vunpack.c.l.b16 %v4104
        %v4133 = vunpack.c.l.b16 %v4105
        %v4134 = vunpack.c.l.b16 %v4106
        %v4135 = vunpack.c.l.b16 %v4107
        %v4136 = vunpack.c.l.b16 %v4108
        %v4137 = vunpack.c.l.b16 %v4109
        %v4138 = vunpack.c.l.b16 %v4110
        %v4139 = vunpack.c.l.b16 %v4111
        %v4140 = vunpack.c.l.b16 %v4112
        %v4141 = vpack.c.b16 %v4128, %v4127
        %v4142 = vpack.c.b16 %v4130, %v4129
        %v4143 = vpack.c.b16 %v4132, %v4131
        %v4144 = vpack.c.b16 %v4134, %v4133
        %v4145 = vpack.c.b16 %v4136, %v4135
        %v4146 = vpack.c.b16 %v4138, %v4137
        %v4147 = vpack.c.b16 %v4140, %v4139
        %v4155 = vsel %vm557, %v4095, 0
        %v4158 = vsel %vm557, %v4096, 0
        %v4161 = vsel %vm557, %v4097, 0
        %v4164 = vsel %vm557, %v4098, 0
        %v4167 = vsel %vm561, %v4147, 0
        %4169 = vmatpush.bf16.msra.mxu0 0
        %4170 = vmatpush.bf16.msra.mxu0 %v4167
        %4171 = vmatpush.bf16.msra.mxu0 %v4146
        %4172 = vmatpush.bf16.msra.mxu0 %v4145
        %4173 = vmatpush.bf16.msra.mxu0 %v4144
        %4174 = vmatpush.bf16.msra.mxu0 %v4143
        %4175 = vmatpush.bf16.msra.mxu0 %v4142
        %4176 = vmatpush.bf16.msra.mxu0 %v4141
        %4177 = vmatmul.bf16.gmra.mxu0 %v4155
        %v4178 = vpop.f32.mrf.mxu0
        %v4179 = vadd.f32 0.0, %v4178
        %v4180 = vpop.f32.mrf.mxu0
        %v4181 = vadd.f32 0.0, %v4180
        %4182 = vmatmul.bf16.gmra.mxu0 %v4158
        %v4183 = vpop.f32.mrf.mxu0
        %v4184 = vadd.f32 0.0, %v4183
        %v4185 = vpop.f32.mrf.mxu0
        %v4186 = vadd.f32 0.0, %v4185
        %4187 = vmatmul.bf16.gmra.mxu0 %v4161
        %v4188 = vpop.f32.mrf.mxu0
        %v4189 = vadd.f32 0.0, %v4188
        %v4190 = vpop.f32.mrf.mxu0
        %v4191 = vadd.f32 0.0, %v4190
        %4192 = vmatmul.bf16.gmra.mxu0 %v4164
        %v4193 = vpop.f32.mrf.mxu0
        %v4194 = vadd.f32 0.0, %v4193
        %v4195 = vpop.f32.mrf.mxu0
        %v4196 = vadd.f32 0.0, %v4195
        %4197 = vdwg.mxu0
        %vm4198 = vcmask 244736
        %v4199 = vsel %vm4198, %v4179, 0.0
        %v4200 = vsel %vm4198, %v4181, 0.0
        %v4201 = vadd.f32 %v4199, %v4200
        %v4202 = vsel %vm4198, %v4184, 0.0
        %v4203 = vadd.f32 %v4201, %v4202
        %v4204 = vsel %vm4198, %v4186, 0.0
        %v4205 = vadd.f32 %v4203, %v4204
        %v4206 = vsel %vm4198, %v4189, 0.0
        %v4207 = vadd.f32 %v4205, %v4206
        %v4208 = vsel %vm4198, %v4191, 0.0
        %v4209 = vadd.f32 %v4207, %v4208
        %v4210 = vsel %vm4198, %v4194, 0.0
        %v4211 = vadd.f32 %v4209, %v4210
        %vm4212 = vcmask 243712
        %v4213 = vsel %vm4212, %v4196, 0.0
        %v4214 = vadd.f32 %v4211, %v4213
        %v4215 = vrot.slane %v4214, 4
        %v4216 = vadd.f32 %v4214, %v4215
        %v4217 = vrot.slane %v4216, 2
        %v4218 = vadd.f32 %v4216, %v4217
        %v4219 = vrot.slane %v4218, 1
        %v4220 = vadd.f32 %v4218, %v4219
        %v4221 = vpack.c.bf16 %v4220, %v4220
        %v4222 = vld [vmem:[#allocation8] sm:$0xf]
        %v4223 = vld [vmem:[#allocation8 + $0x4] sm:$0xf]
        %v4224 = vld [vmem:[#allocation8 + $0x8] sm:$0xf]
        %v4225 = vld [vmem:[#allocation8 + $0xc] sm:$0xf]
        %v4226 = vld [vmem:[#allocation8 + $0x10] sm:$0xf]
        %v4227 = vld [vmem:[#allocation8 + $0x14] sm:$0xf]
        %v4228 = vld [vmem:[#allocation8 + $0x18] sm:$0xf]
        %v4229 = vld [vmem:[#allocation8 + $0x1c] sm:$0xf]
        %v4230 = vld [vmem:[#allocation7] sm:$0xf]
        %v4231 = vld [vmem:[#allocation7 + $0x4] sm:$0xf]
        %v4232 = vld [vmem:[#allocation7 + $0x8] sm:$0xf]
        %v4233 = vld [vmem:[#allocation7 + $0xc] sm:$0x7]
        %v4238 = vunpack.c.l.b16 %v4230
        %v4239 = vunpack.c.l.b16 %v4231
        %v4240 = vunpack.c.l.b16 %v4232
        %v4241 = vunpack.c.l.b16 %v4233
        %v4242 = vpack.c.b16 %v4239, %v4238
        %v4243 = vpack.c.b16 %v4241, %v4240
        %v4246 = vsel %vm4198, %v4221, 0
        %v4249 = vsel %vm561, %v4243, 0
        %4251 = vmatpush.bf16.msra.mxu0 0
        %4252 = vmatpush.bf16.msra.mxu0 0
        %4253 = vmatpush.bf16.msra.mxu0 0
        %4254 = vmatpush.bf16.msra.mxu0 0
        %4255 = vmatpush.bf16.msra.mxu0 0
        %4256 = vmatpush.bf16.msra.mxu0 0
        %4257 = vmatpush.bf16.msra.mxu0 %v4249
        %4258 = vmatpush.bf16.msra.mxu0 %v4242
        %4259 = vmatmul.bf16.gmra.mxu0 %v4246
        %v4260 = vpop.f32.mrf.mxu0
        %v4261 = vadd.f32 0.0, %v4260
        %v4262 = vpop.f32.mrf.mxu0
        %v4263 = vadd.f32 0.0, %v4262
        %4264 = vmatmul.bf16.gmra.mxu0 %v4246
        %v4265 = vpop.f32.mrf.mxu0
        %v4266 = vadd.f32 0.0, %v4265
        %v4267 = vpop.f32.mrf.mxu0
        %v4268 = vadd.f32 0.0, %v4267
        %4269 = vmatmul.bf16.gmra.mxu0 %v4246
        %v4270 = vpop.f32.mrf.mxu0
        %v4271 = vadd.f32 0.0, %v4270
        %v4272 = vpop.f32.mrf.mxu0
        %v4273 = vadd.f32 0.0, %v4272
        %4274 = vmatmul.bf16.gmra.mxu0 %v4246
        %v4275 = vpop.f32.mrf.mxu0
        %v4276 = vadd.f32 0.0, %v4275
        %v4277 = vpop.f32.mrf.mxu0
        %v4278 = vadd.f32 0.0, %v4277
        %4279 = vdwg.mxu0
        %v4280 = vpack.c.bf16 %v4263, %v4261
        %v4281 = vpack.c.bf16 %v4268, %v4266
        %v4282 = vpack.c.bf16 %v4273, %v4271
        %v4283 = vpack.c.bf16 %v4278, %v4276
        %s4284 = scalar_lea.vmem [#allocation8], 32
        %v4285 = vld [vmem:[%s4284] sm:$0xf]
        %v4286 = vld [vmem:[%s4284 + $0x4] sm:$0xf]
        %v4287 = vld [vmem:[%s4284 + $0x8] sm:$0xf]
        %v4288 = vld [vmem:[%s4284 + $0xc] sm:$0xf]
        %v4289 = vld [vmem:[%s4284 + $0x10] sm:$0xf]
        %v4290 = vld [vmem:[%s4284 + $0x14] sm:$0xf]
        %v4291 = vld [vmem:[%s4284 + $0x18] sm:$0xf]
        %v4292 = vld [vmem:[%s4284 + $0x1c] sm:$0xf]
        %v4301 = vunpack.c.l.b16 %v4285
        %v4302 = vunpack.c.l.b16 %v4286
        %v4303 = vunpack.c.l.b16 %v4287
        %v4304 = vunpack.c.l.b16 %v4288
        %v4305 = vunpack.c.l.b16 %v4289
        %v4306 = vunpack.c.l.b16 %v4290
        %v4307 = vunpack.c.l.b16 %v4291
        %v4308 = vunpack.c.l.b16 %v4292
        %v4309 = vpack.c.b16 %v4302, %v4301
        %v4310 = vpack.c.b16 %v4304, %v4303
        %v4311 = vpack.c.b16 %v4306, %v4305
        %v4312 = vpack.c.b16 %v4308, %v4307
        %vm4313 = vcmask 515072
        %v4315 = vsel %vm4313, %v4309, 0
        %v4318 = vsel %vm4313, %v4310, 0
        %v4321 = vsel %vm4313, %v4311, 0
        %v4324 = vsel %vm4313, %v4312, 0
        %v4327 = vand.u32 %v4283, %v1265
        %4329 = vmatpush.bf16.msra.mxu0 0
        %4330 = vmatpush.bf16.msra.mxu0 0
        %4331 = vmatpush.bf16.msra.mxu0 0
        %4332 = vmatpush.bf16.msra.mxu0 0
        %4333 = vmatpush.bf16.msra.mxu0 %v4327
        %4334 = vmatpush.bf16.msra.mxu0 %v4282
        %4335 = vmatpush.bf16.msra.mxu0 %v4281
        %4336 = vmatpush.bf16.msra.mxu0 %v4280
        %4337 = vmatmul.bf16.gmra.mxu0 %v4315
        %v4338 = vpop.f32.mrf.mxu0
        %v4339 = vadd.f32 0.0, %v4338
        %v4340 = vpop.f32.mrf.mxu0
        %v4341 = vadd.f32 0.0, %v4340
        %4342 = vmatmul.bf16.gmra.mxu0 %v4318
        %v4343 = vpop.f32.mrf.mxu0
        %v4344 = vadd.f32 0.0, %v4343
        %v4345 = vpop.f32.mrf.mxu0
        %v4346 = vadd.f32 0.0, %v4345
        %4347 = vmatmul.bf16.gmra.mxu0 %v4321
        %v4348 = vpop.f32.mrf.mxu0
        %v4349 = vadd.f32 0.0, %v4348
        %v4350 = vpop.f32.mrf.mxu0
        %v4351 = vadd.f32 0.0, %v4350
        %4352 = vmatmul.bf16.gmra.mxu0 %v4324
        %v4353 = vpop.f32.mrf.mxu0
        %v4354 = vadd.f32 0.0, %v4353
        %v4355 = vpop.f32.mrf.mxu0
        %v4356 = vadd.f32 0.0, %v4355
        %4357 = vdwg.mxu0
        %v4366 = vunpack.c.l.b16 %v4222
        %v4367 = vunpack.c.l.b16 %v4223
        %v4368 = vunpack.c.l.b16 %v4224
        %v4369 = vunpack.c.l.b16 %v4225
        %v4370 = vunpack.c.l.b16 %v4226
        %v4371 = vunpack.c.l.b16 %v4227
        %v4372 = vunpack.c.l.b16 %v4228
        %v4373 = vunpack.c.l.b16 %v4229
        %v4374 = vpack.c.b16 %v4367, %v4366
        %v4375 = vpack.c.b16 %v4369, %v4368
        %v4376 = vpack.c.b16 %v4371, %v4370
        %v4377 = vpack.c.b16 %v4373, %v4372
        %v4379 = vsel %vm4313, %v4374, 0
        %v4382 = vsel %vm4313, %v4375, 0
        %v4385 = vsel %vm4313, %v4376, 0
        %v4388 = vsel %vm4313, %v4377, 0
        %v4390 = vand.u32 %v4221, %v1265
        %4392 = vmatpush.bf16.msra.mxu0 0
        %4393 = vmatpush.bf16.msra.mxu0 0
        %4394 = vmatpush.bf16.msra.mxu0 0
        %4395 = vmatpush.bf16.msra.mxu0 0
        %4396 = vmatpush.bf16.msra.mxu0 %v4390
        %4397 = vmatpush.bf16.msra.mxu0 %v4221
        %4398 = vmatpush.bf16.msra.mxu0 %v4221
        %4399 = vmatpush.bf16.msra.mxu0 %v4221
        %4400 = vmatmul.bf16.gmra.mxu0 %v4379
        %v4401 = vpop.f32.mrf.mxu0
        %v4402 = vadd.f32 %v4339, %v4401
        %v4403 = vpop.f32.mrf.mxu0
        %v4404 = vadd.f32 %v4341, %v4403
        %4405 = vmatmul.bf16.gmra.mxu0 %v4382
        %v4406 = vpop.f32.mrf.mxu0
        %v4407 = vadd.f32 %v4344, %v4406
        %v4408 = vpop.f32.mrf.mxu0
        %v4409 = vadd.f32 %v4346, %v4408
        %4410 = vmatmul.bf16.gmra.mxu0 %v4385
        %v4411 = vpop.f32.mrf.mxu0
        %v4412 = vadd.f32 %v4349, %v4411
        %v4413 = vpop.f32.mrf.mxu0
        %v4414 = vadd.f32 %v4351, %v4413
        %4415 = vmatmul.bf16.gmra.mxu0 %v4388
        %v4416 = vpop.f32.mrf.mxu0
        %v4417 = vadd.f32 %v4354, %v4416
        %v4418 = vpop.f32.mrf.mxu0
        %v4419 = vadd.f32 %v4356, %v4418
        %4420 = vdwg.mxu0
        %s4421 = scalar_lea.vmem [#allocation7], 16
        %v4422 = vld [vmem:[%s4421] sm:$0xf]
        %v4423 = vld [vmem:[%s4421 + $0x4] sm:$0xf]
        %v4424 = vld [vmem:[%s4421 + $0x8] sm:$0xf]
        %v4425 = vld [vmem:[%s4421 + $0xc] sm:$0x7]
        %v4430 = vunpack.c.l.b16 %v4422
        %v4431 = vunpack.c.l.b16 %v4423
        %v4432 = vunpack.c.l.b16 %v4424
        %v4433 = vunpack.c.l.b16 %v4425
        %v4434 = vpack.c.b16 %v4431, %v4430
        %v4435 = vpack.c.b16 %v4433, %v4432
        %v4438 = vsel %vm561, %v4435, 0
        %4440 = vmatpush.bf16.msra.mxu0 0
        %4441 = vmatpush.bf16.msra.mxu0 0
        %4442 = vmatpush.bf16.msra.mxu0 0
        %4443 = vmatpush.bf16.msra.mxu0 0
        %4444 = vmatpush.bf16.msra.mxu0 0
        %4445 = vmatpush.bf16.msra.mxu0 0
        %4446 = vmatpush.bf16.msra.mxu0 %v4438
        %4447 = vmatpush.bf16.msra.mxu0 %v4434
        %4448 = vmatmul.bf16.gmra.mxu0 %v4246
        %v4449 = vpop.f32.mrf.mxu0
        %v4450 = vadd.f32 0.0, %v4449
        %v4451 = vpop.f32.mrf.mxu0
        %v4452 = vadd.f32 0.0, %v4451
        %4453 = vmatmul.bf16.gmra.mxu0 %v4246
        %v4454 = vpop.f32.mrf.mxu0
        %v4455 = vadd.f32 0.0, %v4454
        %v4456 = vpop.f32.mrf.mxu0
        %v4457 = vadd.f32 0.0, %v4456
        %4458 = vmatmul.bf16.gmra.mxu0 %v4246
        %v4459 = vpop.f32.mrf.mxu0
        %v4460 = vadd.f32 0.0, %v4459
        %v4461 = vpop.f32.mrf.mxu0
        %v4462 = vadd.f32 0.0, %v4461
        %4463 = vmatmul.bf16.gmra.mxu0 %v4246
        %v4464 = vpop.f32.mrf.mxu0
        %v4465 = vadd.f32 0.0, %v4464
        %v4466 = vpop.f32.mrf.mxu0
        %v4467 = vadd.f32 0.0, %v4466
        %4468 = vdwg.mxu0
        %v4469 = vpack.c.bf16 %v4452, %v4450
        %v4470 = vpack.c.bf16 %v4457, %v4455
        %v4471 = vpack.c.bf16 %v4462, %v4460
        %v4472 = vpack.c.bf16 %v4467, %v4465
        %s4473 = scalar_lea.vmem [#allocation8], 64
        %v4474 = vld [vmem:[%s4473] sm:$0xf]
        %v4475 = vld [vmem:[%s4473 + $0x4] sm:$0xf]
        %v4476 = vld [vmem:[%s4473 + $0x8] sm:$0xf]
        %v4477 = vld [vmem:[%s4473 + $0xc] sm:$0xf]
        %v4478 = vld [vmem:[%s4473 + $0x10] sm:$0xf]
        %v4479 = vld [vmem:[%s4473 + $0x14] sm:$0xf]
        %v4480 = vld [vmem:[%s4473 + $0x18] sm:$0xf]
        %v4481 = vld [vmem:[%s4473 + $0x1c] sm:$0xf]
        %v4490 = vunpack.c.l.b16 %v4474
        %v4491 = vunpack.c.l.b16 %v4475
        %v4492 = vunpack.c.l.b16 %v4476
        %v4493 = vunpack.c.l.b16 %v4477
        %v4494 = vunpack.c.l.b16 %v4478
        %v4495 = vunpack.c.l.b16 %v4479
        %v4496 = vunpack.c.l.b16 %v4480
        %v4497 = vunpack.c.l.b16 %v4481
        %v4498 = vpack.c.b16 %v4491, %v4490
        %v4499 = vpack.c.b16 %v4493, %v4492
        %v4500 = vpack.c.b16 %v4495, %v4494
        %v4501 = vpack.c.b16 %v4497, %v4496
        %v4503 = vsel %vm4313, %v4498, 0
        %v4506 = vsel %vm4313, %v4499, 0
        %v4509 = vsel %vm4313, %v4500, 0
        %v4512 = vsel %vm4313, %v4501, 0
        %v4515 = vand.u32 %v4472, %v1265
        %4517 = vmatpush.bf16.msra.mxu0 0
        %4518 = vmatpush.bf16.msra.mxu0 0
        %4519 = vmatpush.bf16.msra.mxu0 0
        %4520 = vmatpush.bf16.msra.mxu0 0
        %4521 = vmatpush.bf16.msra.mxu0 %v4515
        %4522 = vmatpush.bf16.msra.mxu0 %v4471
        %4523 = vmatpush.bf16.msra.mxu0 %v4470
        %4524 = vmatpush.bf16.msra.mxu0 %v4469
        %4525 = vmatmul.bf16.gmra.mxu0 %v4503
        %v4526 = vpop.f32.mrf.mxu0
        %v4527 = vadd.f32 0.0, %v4526
        %v4528 = vpop.f32.mrf.mxu0
        %v4529 = vadd.f32 0.0, %v4528
        %4530 = vmatmul.bf16.gmra.mxu0 %v4506
        %v4531 = vpop.f32.mrf.mxu0
        %v4532 = vadd.f32 0.0, %v4531
        %v4533 = vpop.f32.mrf.mxu0
        %v4534 = vadd.f32 0.0, %v4533
        %4535 = vmatmul.bf16.gmra.mxu0 %v4509
        %v4536 = vpop.f32.mrf.mxu0
        %v4537 = vadd.f32 0.0, %v4536
        %v4538 = vpop.f32.mrf.mxu0
        %v4539 = vadd.f32 0.0, %v4538
        %4540 = vmatmul.bf16.gmra.mxu0 %v4512
        %v4541 = vpop.f32.mrf.mxu0
        %v4542 = vadd.f32 0.0, %v4541
        %v4543 = vpop.f32.mrf.mxu0
        %v4544 = vadd.f32 0.0, %v4543
        %4545 = vdwg.mxu0
        %v4546 = vadd.f32 %v4402, %v4527
        %v4547 = vadd.f32 %v4404, %v4529
        %v4548 = vadd.f32 %v4407, %v4532
        %v4549 = vadd.f32 %v4409, %v4534
        %v4550 = vadd.f32 %v4412, %v4537
        %v4551 = vadd.f32 %v4414, %v4539
        %v4552 = vadd.f32 %v4417, %v4542
        %v4553 = vadd.f32 %v4419, %v4544
        %s4554 = scalar_lea.vmem [#allocation7], 32
        %v4555 = vld [vmem:[%s4554] sm:$0xf]
        %v4556 = vld [vmem:[%s4554 + $0x4] sm:$0xf]
        %v4557 = vld [vmem:[%s4554 + $0x8] sm:$0xf]
        %v4558 = vld [vmem:[%s4554 + $0xc] sm:$0x7]
        %v4563 = vunpack.c.l.b16 %v4555
        %v4564 = vunpack.c.l.b16 %v4556
        %v4565 = vunpack.c.l.b16 %v4557
        %v4566 = vunpack.c.l.b16 %v4558
        %v4567 = vpack.c.b16 %v4564, %v4563
        %v4568 = vpack.c.b16 %v4566, %v4565
        %v4571 = vsel %vm561, %v4568, 0
        %4573 = vmatpush.bf16.msra.mxu0 0
        %4574 = vmatpush.bf16.msra.mxu0 0
        %4575 = vmatpush.bf16.msra.mxu0 0
        %4576 = vmatpush.bf16.msra.mxu0 0
        %4577 = vmatpush.bf16.msra.mxu0 0
        %4578 = vmatpush.bf16.msra.mxu0 0
        %4579 = vmatpush.bf16.msra.mxu0 %v4571
        %4580 = vmatpush.bf16.msra.mxu0 %v4567
        %4581 = vmatmul.bf16.gmra.mxu0 %v4246
        %v4582 = vpop.f32.mrf.mxu0
        %v4583 = vadd.f32 0.0, %v4582
        %v4584 = vpop.f32.mrf.mxu0
        %v4585 = vadd.f32 0.0, %v4584
        %4586 = vmatmul.bf16.gmra.mxu0 %v4246
        %v4587 = vpop.f32.mrf.mxu0
        %v4588 = vadd.f32 0.0, %v4587
        %v4589 = vpop.f32.mrf.mxu0
        %v4590 = vadd.f32 0.0, %v4589
        %4591 = vmatmul.bf16.gmra.mxu0 %v4246
        %v4592 = vpop.f32.mrf.mxu0
        %v4593 = vadd.f32 0.0, %v4592
        %v4594 = vpop.f32.mrf.mxu0
        %v4595 = vadd.f32 0.0, %v4594
        %4596 = vmatmul.bf16.gmra.mxu0 %v4246
        %v4597 = vpop.f32.mrf.mxu0
        %v4598 = vadd.f32 0.0, %v4597
        %v4599 = vpop.f32.mrf.mxu0
        %v4600 = vadd.f32 0.0, %v4599
        %4601 = vdwg.mxu0
        %v4602 = vpack.c.bf16 %v4585, %v4583
        %v4603 = vpack.c.bf16 %v4590, %v4588
        %v4604 = vpack.c.bf16 %v4595, %v4593
        %v4605 = vpack.c.bf16 %v4600, %v4598
        %s4606 = scalar_lea.vmem [#allocation8], 96
        %v4607 = vld [vmem:[%s4606] sm:$0xf]
        %v4608 = vld [vmem:[%s4606 + $0x4] sm:$0xf]
        %v4609 = vld [vmem:[%s4606 + $0x8] sm:$0xf]
        %v4610 = vld [vmem:[%s4606 + $0xc] sm:$0xf]
        %v4611 = vld [vmem:[%s4606 + $0x10] sm:$0xf]
        %v4612 = vld [vmem:[%s4606 + $0x14] sm:$0xf]
        %v4613 = vld [vmem:[%s4606 + $0x18] sm:$0xf]
        %v4614 = vld [vmem:[%s4606 + $0x1c] sm:$0xf]
        %v4623 = vunpack.c.l.b16 %v4607
        %v4624 = vunpack.c.l.b16 %v4608
        %v4625 = vunpack.c.l.b16 %v4609
        %v4626 = vunpack.c.l.b16 %v4610
        %v4627 = vunpack.c.l.b16 %v4611
        %v4628 = vunpack.c.l.b16 %v4612
        %v4629 = vunpack.c.l.b16 %v4613
        %v4630 = vunpack.c.l.b16 %v4614
        %v4631 = vpack.c.b16 %v4624, %v4623
        %v4632 = vpack.c.b16 %v4626, %v4625
        %v4633 = vpack.c.b16 %v4628, %v4627
        %v4634 = vpack.c.b16 %v4630, %v4629
        %v4636 = vsel %vm4313, %v4631, 0
        %v4639 = vsel %vm4313, %v4632, 0
        %v4642 = vsel %vm4313, %v4633, 0
        %v4645 = vsel %vm4313, %v4634, 0
        %v4648 = vand.u32 %v4605, %v1265
        %4650 = vmatpush.bf16.msra.mxu0 0
        %4651 = vmatpush.bf16.msra.mxu0 0
        %4652 = vmatpush.bf16.msra.mxu0 0
        %4653 = vmatpush.bf16.msra.mxu0 0
        %4654 = vmatpush.bf16.msra.mxu0 %v4648
        %4655 = vmatpush.bf16.msra.mxu0 %v4604
        %4656 = vmatpush.bf16.msra.mxu0 %v4603
        %4657 = vmatpush.bf16.msra.mxu0 %v4602
        %4658 = vmatmul.bf16.gmra.mxu0 %v4636
        %v4659 = vpop.f32.mrf.mxu0
        %v4660 = vadd.f32 0.0, %v4659
        %v4661 = vpop.f32.mrf.mxu0
        %v4662 = vadd.f32 0.0, %v4661
        %4663 = vmatmul.bf16.gmra.mxu0 %v4639
        %v4664 = vpop.f32.mrf.mxu0
        %v4665 = vadd.f32 0.0, %v4664
        %v4666 = vpop.f32.mrf.mxu0
        %v4667 = vadd.f32 0.0, %v4666
        %4668 = vmatmul.bf16.gmra.mxu0 %v4642
        %v4669 = vpop.f32.mrf.mxu0
        %v4670 = vadd.f32 0.0, %v4669
        %v4671 = vpop.f32.mrf.mxu0
        %v4672 = vadd.f32 0.0, %v4671
        %4673 = vmatmul.bf16.gmra.mxu0 %v4645
        %v4674 = vpop.f32.mrf.mxu0
        %v4675 = vadd.f32 0.0, %v4674
        %v4676 = vpop.f32.mrf.mxu0
        %v4677 = vadd.f32 0.0, %v4676
        %4678 = vdwg.mxu0
        %v4679 = vadd.f32 %v4546, %v4660
        %v4680 = vadd.f32 %v4547, %v4662
        %v4681 = vadd.f32 %v4548, %v4665
        %v4682 = vadd.f32 %v4549, %v4667
        %v4683 = vadd.f32 %v4550, %v4670
        %v4684 = vadd.f32 %v4551, %v4672
        %v4685 = vadd.f32 %v4552, %v4675
        %v4686 = vadd.f32 %v4553, %v4677
        %s4687 = scalar_lea.vmem [#allocation7], 48
        %v4688 = vld [vmem:[%s4687] sm:$0xf]
        %v4689 = vld [vmem:[%s4687 + $0x4] sm:$0xf]
        %v4690 = vld [vmem:[%s4687 + $0x8] sm:$0xf]
        %v4691 = vld [vmem:[%s4687 + $0xc] sm:$0x7]
        %v4696 = vunpack.c.l.b16 %v4688
        %v4697 = vunpack.c.l.b16 %v4689
        %v4698 = vunpack.c.l.b16 %v4690
        %v4699 = vunpack.c.l.b16 %v4691
        %v4700 = vpack.c.b16 %v4697, %v4696
        %v4701 = vpack.c.b16 %v4699, %v4698
        %v4704 = vsel %vm561, %v4701, 0
        %4706 = vmatpush.bf16.msra.mxu0 0
        %4707 = vmatpush.bf16.msra.mxu0 0
        %4708 = vmatpush.bf16.msra.mxu0 0
        %4709 = vmatpush.bf16.msra.mxu0 0
        %4710 = vmatpush.bf16.msra.mxu0 0
        %4711 = vmatpush.bf16.msra.mxu0 0
        %4712 = vmatpush.bf16.msra.mxu0 %v4704
        %4713 = vmatpush.bf16.msra.mxu0 %v4700
        %4714 = vmatmul.bf16.gmra.mxu0 %v4246
        %v4715 = vpop.f32.mrf.mxu0
        %v4716 = vadd.f32 0.0, %v4715
        %v4717 = vpop.f32.mrf.mxu0
        %v4718 = vadd.f32 0.0, %v4717
        %4719 = vmatmul.bf16.gmra.mxu0 %v4246
        %v4720 = vpop.f32.mrf.mxu0
        %v4721 = vadd.f32 0.0, %v4720
        %v4722 = vpop.f32.mrf.mxu0
        %v4723 = vadd.f32 0.0, %v4722
        %4724 = vmatmul.bf16.gmra.mxu0 %v4246
        %v4725 = vpop.f32.mrf.mxu0
        %v4726 = vadd.f32 0.0, %v4725
        %v4727 = vpop.f32.mrf.mxu0
        %v4728 = vadd.f32 0.0, %v4727
        %4729 = vmatmul.bf16.gmra.mxu0 %v4246
        %v4730 = vpop.f32.mrf.mxu0
        %v4731 = vadd.f32 0.0, %v4730
        %v4732 = vpop.f32.mrf.mxu0
        %v4733 = vadd.f32 0.0, %v4732
        %4734 = vdwg.mxu0
        %v4735 = vpack.c.bf16 %v4718, %v4716
        %v4736 = vpack.c.bf16 %v4723, %v4721
        %v4737 = vpack.c.bf16 %v4728, %v4726
        %v4738 = vpack.c.bf16 %v4733, %v4731
        %s4739 = scalar_lea.vmem [#allocation8], 128
        %v4740 = vld [vmem:[%s4739] sm:$0xf]
        %v4741 = vld [vmem:[%s4739 + $0x4] sm:$0xf]
        %v4742 = vld [vmem:[%s4739 + $0x8] sm:$0xf]
        %v4743 = vld [vmem:[%s4739 + $0xc] sm:$0xf]
        %v4744 = vld [vmem:[%s4739 + $0x10] sm:$0xf]
        %v4745 = vld [vmem:[%s4739 + $0x14] sm:$0xf]
        %v4746 = vld [vmem:[%s4739 + $0x18] sm:$0xf]
        %v4747 = vld [vmem:[%s4739 + $0x1c] sm:$0xf]
        %v4756 = vunpack.c.l.b16 %v4740
        %v4757 = vunpack.c.l.b16 %v4741
        %v4758 = vunpack.c.l.b16 %v4742
        %v4759 = vunpack.c.l.b16 %v4743
        %v4760 = vunpack.c.l.b16 %v4744
        %v4761 = vunpack.c.l.b16 %v4745
        %v4762 = vunpack.c.l.b16 %v4746
        %v4763 = vunpack.c.l.b16 %v4747
        %v4764 = vpack.c.b16 %v4757, %v4756
        %v4765 = vpack.c.b16 %v4759, %v4758
        %v4766 = vpack.c.b16 %v4761, %v4760
        %v4767 = vpack.c.b16 %v4763, %v4762
        %v4769 = vsel %vm4313, %v4764, 0
        %v4772 = vsel %vm4313, %v4765, 0
        %v4775 = vsel %vm4313, %v4766, 0
        %v4778 = vsel %vm4313, %v4767, 0
        %v4781 = vand.u32 %v4738, %v1265
        %4783 = vmatpush.bf16.msra.mxu0 0
        %4784 = vmatpush.bf16.msra.mxu0 0
        %4785 = vmatpush.bf16.msra.mxu0 0
        %4786 = vmatpush.bf16.msra.mxu0 0
        %4787 = vmatpush.bf16.msra.mxu0 %v4781
        %4788 = vmatpush.bf16.msra.mxu0 %v4737
        %4789 = vmatpush.bf16.msra.mxu0 %v4736
        %4790 = vmatpush.bf16.msra.mxu0 %v4735
        %4791 = vmatmul.bf16.gmra.mxu0 %v4769
        %v4792 = vpop.f32.mrf.mxu0
        %v4793 = vadd.f32 0.0, %v4792
        %v4794 = vpop.f32.mrf.mxu0
        %v4795 = vadd.f32 0.0, %v4794
        %4796 = vmatmul.bf16.gmra.mxu0 %v4772
        %v4797 = vpop.f32.mrf.mxu0
        %v4798 = vadd.f32 0.0, %v4797
        %v4799 = vpop.f32.mrf.mxu0
        %v4800 = vadd.f32 0.0, %v4799
        %4801 = vmatmul.bf16.gmra.mxu0 %v4775
        %v4802 = vpop.f32.mrf.mxu0
        %v4803 = vadd.f32 0.0, %v4802
        %v4804 = vpop.f32.mrf.mxu0
        %v4805 = vadd.f32 0.0, %v4804
        %4806 = vmatmul.bf16.gmra.mxu0 %v4778
        %v4807 = vpop.f32.mrf.mxu0
        %v4808 = vadd.f32 0.0, %v4807
        %v4809 = vpop.f32.mrf.mxu0
        %v4810 = vadd.f32 0.0, %v4809
        %4811 = vdwg.mxu0
        %v4812 = vadd.f32 %v4679, %v4793
        %v4813 = vadd.f32 %v4680, %v4795
        %v4814 = vadd.f32 %v4681, %v4798
        %v4815 = vadd.f32 %v4682, %v4800
        %v4816 = vadd.f32 %v4683, %v4803
        %v4817 = vadd.f32 %v4684, %v4805
        %v4818 = vadd.f32 %v4685, %v4808
        %v4819 = vadd.f32 %v4686, %v4810
        %s4820 = scalar_lea.vmem [#allocation7], 64
        %v4821 = vld [vmem:[%s4820] sm:$0xf]
        %v4822 = vld [vmem:[%s4820 + $0x4] sm:$0xf]
        %v4823 = vld [vmem:[%s4820 + $0x8] sm:$0xf]
        %v4824 = vld [vmem:[%s4820 + $0xc] sm:$0x7]
        %v4829 = vunpack.c.l.b16 %v4821
        %v4830 = vunpack.c.l.b16 %v4822
        %v4831 = vunpack.c.l.b16 %v4823
        %v4832 = vunpack.c.l.b16 %v4824
        %v4833 = vpack.c.b16 %v4830, %v4829
        %v4834 = vpack.c.b16 %v4832, %v4831
        %v4837 = vsel %vm561, %v4834, 0
        %4839 = vmatpush.bf16.msra.mxu0 0
        %4840 = vmatpush.bf16.msra.mxu0 0
        %4841 = vmatpush.bf16.msra.mxu0 0
        %4842 = vmatpush.bf16.msra.mxu0 0
        %4843 = vmatpush.bf16.msra.mxu0 0
        %4844 = vmatpush.bf16.msra.mxu0 0
        %4845 = vmatpush.bf16.msra.mxu0 %v4837
        %4846 = vmatpush.bf16.msra.mxu0 %v4833
        %4847 = vmatmul.bf16.gmra.mxu0 %v4246
        %v4848 = vpop.f32.mrf.mxu0
        %v4849 = vadd.f32 0.0, %v4848
        %v4850 = vpop.f32.mrf.mxu0
        %v4851 = vadd.f32 0.0, %v4850
        %4852 = vmatmul.bf16.gmra.mxu0 %v4246
        %v4853 = vpop.f32.mrf.mxu0
        %v4854 = vadd.f32 0.0, %v4853
        %v4855 = vpop.f32.mrf.mxu0
        %v4856 = vadd.f32 0.0, %v4855
        %4857 = vmatmul.bf16.gmra.mxu0 %v4246
        %v4858 = vpop.f32.mrf.mxu0
        %v4859 = vadd.f32 0.0, %v4858
        %v4860 = vpop.f32.mrf.mxu0
        %v4861 = vadd.f32 0.0, %v4860
        %4862 = vmatmul.bf16.gmra.mxu0 %v4246
        %v4863 = vpop.f32.mrf.mxu0
        %v4864 = vadd.f32 0.0, %v4863
        %v4865 = vpop.f32.mrf.mxu0
        %v4866 = vadd.f32 0.0, %v4865
        %4867 = vdwg.mxu0
        %v4868 = vpack.c.bf16 %v4851, %v4849
        %v4869 = vpack.c.bf16 %v4856, %v4854
        %v4870 = vpack.c.bf16 %v4861, %v4859
        %v4871 = vpack.c.bf16 %v4866, %v4864
        %s4872 = scalar_lea.vmem [#allocation8], 160
        %v4873 = vld [vmem:[%s4872] sm:$0xf]
        %v4874 = vld [vmem:[%s4872 + $0x4] sm:$0xf]
        %v4875 = vld [vmem:[%s4872 + $0x8] sm:$0xf]
        %v4876 = vld [vmem:[%s4872 + $0xc] sm:$0xf]
        %v4877 = vld [vmem:[%s4872 + $0x10] sm:$0xf]
        %v4878 = vld [vmem:[%s4872 + $0x14] sm:$0xf]
        %v4879 = vld [vmem:[%s4872 + $0x18] sm:$0xf]
        %v4880 = vld [vmem:[%s4872 + $0x1c] sm:$0xf]
        %v4889 = vunpack.c.l.b16 %v4873
        %v4890 = vunpack.c.l.b16 %v4874
        %v4891 = vunpack.c.l.b16 %v4875
        %v4892 = vunpack.c.l.b16 %v4876
        %v4893 = vunpack.c.l.b16 %v4877
        %v4894 = vunpack.c.l.b16 %v4878
        %v4895 = vunpack.c.l.b16 %v4879
        %v4896 = vunpack.c.l.b16 %v4880
        %v4897 = vpack.c.b16 %v4890, %v4889
        %v4898 = vpack.c.b16 %v4892, %v4891
        %v4899 = vpack.c.b16 %v4894, %v4893
        %v4900 = vpack.c.b16 %v4896, %v4895
        %v4902 = vsel %vm4313, %v4897, 0
        %v4905 = vsel %vm4313, %v4898, 0
        %v4908 = vsel %vm4313, %v4899, 0
        %v4911 = vsel %vm4313, %v4900, 0
        %v4914 = vand.u32 %v4871, %v1265
        %4916 = vmatpush.bf16.msra.mxu0 0
        %4917 = vmatpush.bf16.msra.mxu0 0
        %4918 = vmatpush.bf16.msra.mxu0 0
        %4919 = vmatpush.bf16.msra.mxu0 0
        %4920 = vmatpush.bf16.msra.mxu0 %v4914
        %4921 = vmatpush.bf16.msra.mxu0 %v4870
        %4922 = vmatpush.bf16.msra.mxu0 %v4869
        %4923 = vmatpush.bf16.msra.mxu0 %v4868
        %4924 = vmatmul.bf16.gmra.mxu0 %v4902
        %v4925 = vpop.f32.mrf.mxu0
        %v4926 = vadd.f32 0.0, %v4925
        %v4927 = vpop.f32.mrf.mxu0
        %v4928 = vadd.f32 0.0, %v4927
        %4929 = vmatmul.bf16.gmra.mxu0 %v4905
        %v4930 = vpop.f32.mrf.mxu0
        %v4931 = vadd.f32 0.0, %v4930
        %v4932 = vpop.f32.mrf.mxu0
        %v4933 = vadd.f32 0.0, %v4932
        %4934 = vmatmul.bf16.gmra.mxu0 %v4908
        %v4935 = vpop.f32.mrf.mxu0
        %v4936 = vadd.f32 0.0, %v4935
        %v4937 = vpop.f32.mrf.mxu0
        %v4938 = vadd.f32 0.0, %v4937
        %4939 = vmatmul.bf16.gmra.mxu0 %v4911
        %v4940 = vpop.f32.mrf.mxu0
        %v4941 = vadd.f32 0.0, %v4940
        %v4942 = vpop.f32.mrf.mxu0
        %v4943 = vadd.f32 0.0, %v4942
        %4944 = vdwg.mxu0
        %v4945 = vadd.f32 %v4812, %v4926
        %v4946 = vadd.f32 %v4813, %v4928
        %v4947 = vadd.f32 %v4814, %v4931
        %v4948 = vadd.f32 %v4815, %v4933
        %v4949 = vadd.f32 %v4816, %v4936
        %v4950 = vadd.f32 %v4817, %v4938
        %v4951 = vadd.f32 %v4818, %v4941
        %v4952 = vadd.f32 %v4819, %v4943
        %s4953 = scalar_lea.vmem [#allocation7], 80
        %v4954 = vld [vmem:[%s4953] sm:$0xf]
        %v4955 = vld [vmem:[%s4953 + $0x4] sm:$0xf]
        %v4956 = vld [vmem:[%s4953 + $0x8] sm:$0xf]
        %v4957 = vld [vmem:[%s4953 + $0xc] sm:$0x7]
        %v4962 = vunpack.c.l.b16 %v4954
        %v4963 = vunpack.c.l.b16 %v4955
        %v4964 = vunpack.c.l.b16 %v4956
        %v4965 = vunpack.c.l.b16 %v4957
        %v4966 = vpack.c.b16 %v4963, %v4962
        %v4967 = vpack.c.b16 %v4965, %v4964
        %v4970 = vsel %vm561, %v4967, 0
        %4972 = vmatpush.bf16.msra.mxu0 0
        %4973 = vmatpush.bf16.msra.mxu0 0
        %4974 = vmatpush.bf16.msra.mxu0 0
        %4975 = vmatpush.bf16.msra.mxu0 0
        %4976 = vmatpush.bf16.msra.mxu0 0
        %4977 = vmatpush.bf16.msra.mxu0 0
        %4978 = vmatpush.bf16.msra.mxu0 %v4970
        %4979 = vmatpush.bf16.msra.mxu0 %v4966
        %4980 = vmatmul.bf16.gmra.mxu0 %v4246
        %v4981 = vpop.f32.mrf.mxu0
        %v4982 = vadd.f32 0.0, %v4981
        %v4983 = vpop.f32.mrf.mxu0
        %v4984 = vadd.f32 0.0, %v4983
        %4985 = vmatmul.bf16.gmra.mxu0 %v4246
        %v4986 = vpop.f32.mrf.mxu0
        %v4987 = vadd.f32 0.0, %v4986
        %v4988 = vpop.f32.mrf.mxu0
        %v4989 = vadd.f32 0.0, %v4988
        %4990 = vmatmul.bf16.gmra.mxu0 %v4246
        %v4991 = vpop.f32.mrf.mxu0
        %v4992 = vadd.f32 0.0, %v4991
        %v4993 = vpop.f32.mrf.mxu0
        %v4994 = vadd.f32 0.0, %v4993
        %4995 = vmatmul.bf16.gmra.mxu0 %v4246
        %v4996 = vpop.f32.mrf.mxu0
        %v4997 = vadd.f32 0.0, %v4996
        %v4998 = vpop.f32.mrf.mxu0
        %v4999 = vadd.f32 0.0, %v4998
        %5000 = vdwg.mxu0
        %v5001 = vpack.c.bf16 %v4984, %v4982
        %v5002 = vpack.c.bf16 %v4989, %v4987
        %v5003 = vpack.c.bf16 %v4994, %v4992
        %v5004 = vpack.c.bf16 %v4999, %v4997
        %s5005 = scalar_lea.vmem [#allocation8], 192
        %v5006 = vld [vmem:[%s5005] sm:$0xf]
        %v5007 = vld [vmem:[%s5005 + $0x4] sm:$0xf]
        %v5008 = vld [vmem:[%s5005 + $0x8] sm:$0xf]
        %v5009 = vld [vmem:[%s5005 + $0xc] sm:$0xf]
        %v5010 = vld [vmem:[%s5005 + $0x10] sm:$0xf]
        %v5011 = vld [vmem:[%s5005 + $0x14] sm:$0xf]
        %v5012 = vld [vmem:[%s5005 + $0x18] sm:$0xf]
        %v5013 = vld [vmem:[%s5005 + $0x1c] sm:$0xf]
        %v5022 = vunpack.c.l.b16 %v5006
        %v5023 = vunpack.c.l.b16 %v5007
        %v5024 = vunpack.c.l.b16 %v5008
        %v5025 = vunpack.c.l.b16 %v5009
        %v5026 = vunpack.c.l.b16 %v5010
        %v5027 = vunpack.c.l.b16 %v5011
        %v5028 = vunpack.c.l.b16 %v5012
        %v5029 = vunpack.c.l.b16 %v5013
        %v5030 = vpack.c.b16 %v5023, %v5022
        %v5031 = vpack.c.b16 %v5025, %v5024
        %v5032 = vpack.c.b16 %v5027, %v5026
        %v5033 = vpack.c.b16 %v5029, %v5028
        %v5035 = vsel %vm4313, %v5030, 0
        %v5038 = vsel %vm4313, %v5031, 0
        %v5041 = vsel %vm4313, %v5032, 0
        %v5044 = vsel %vm4313, %v5033, 0
        %v5047 = vand.u32 %v5004, %v1265
        %5049 = vmatpush.bf16.msra.mxu0 0
        %5050 = vmatpush.bf16.msra.mxu0 0
        %5051 = vmatpush.bf16.msra.mxu0 0
        %5052 = vmatpush.bf16.msra.mxu0 0
        %5053 = vmatpush.bf16.msra.mxu0 %v5047
        %5054 = vmatpush.bf16.msra.mxu0 %v5003
        %5055 = vmatpush.bf16.msra.mxu0 %v5002
        %5056 = vmatpush.bf16.msra.mxu0 %v5001
        %5057 = vmatmul.bf16.gmra.mxu0 %v5035
        %v5058 = vpop.f32.mrf.mxu0
        %v5059 = vadd.f32 0.0, %v5058
        %v5060 = vpop.f32.mrf.mxu0
        %v5061 = vadd.f32 0.0, %v5060
        %5062 = vmatmul.bf16.gmra.mxu0 %v5038
        %v5063 = vpop.f32.mrf.mxu0
        %v5064 = vadd.f32 0.0, %v5063
        %v5065 = vpop.f32.mrf.mxu0
        %v5066 = vadd.f32 0.0, %v5065
        %5067 = vmatmul.bf16.gmra.mxu0 %v5041
        %v5068 = vpop.f32.mrf.mxu0
        %v5069 = vadd.f32 0.0, %v5068
        %v5070 = vpop.f32.mrf.mxu0
        %v5071 = vadd.f32 0.0, %v5070
        %5072 = vmatmul.bf16.gmra.mxu0 %v5044
        %v5073 = vpop.f32.mrf.mxu0
        %v5074 = vadd.f32 0.0, %v5073
        %v5075 = vpop.f32.mrf.mxu0
        %v5076 = vadd.f32 0.0, %v5075
        %5077 = vdwg.mxu0
        %v5078 = vadd.f32 %v4945, %v5059
        %v5079 = vadd.f32 %v4946, %v5061
        %v5080 = vadd.f32 %v4947, %v5064
        %v5081 = vadd.f32 %v4948, %v5066
        %v5082 = vadd.f32 %v4949, %v5069
        %v5083 = vadd.f32 %v4950, %v5071
        %v5084 = vadd.f32 %v4951, %v5074
        %v5085 = vadd.f32 %v4952, %v5076
        %v5086 = vld [vmem:[%s11] sm:$0xff]
        %v5087 = vld [vmem:[%s11 + $0x8] sm:$0xff]
        %v5088 = vld [vmem:[%s11 + $0x10] sm:$0xff]
        %v5089 = vld [vmem:[%s11 + $0x18] sm:$0xff]
        %v5090 = vld [vmem:[%s11 + $0x20] sm:$0xff]
        %v5091 = vld [vmem:[%s11 + $0x28] sm:$0xff]
        %v5092 = vld [vmem:[%s11 + $0x30] sm:$0xff]
        %v5093 = vld [vmem:[%s11 + $0x38] sm:$0x7f]
        %5095 = vset.pattern.permute.xlu0 5
        %5096 = vperm.xlu0 %5095, %v5086
        %v5097 = vpop.permute.xlu0 %5096
        %5100 = vset.pattern.permute.xlu0 5
        %5101 = vperm.xlu0 %5100, %v5087
        %v5102 = vpop.permute.xlu0 %5101
        %5105 = vset.pattern.permute.xlu0 5
        %5106 = vperm.xlu0 %5105, %v5088
        %v5107 = vpop.permute.xlu0 %5106
        %5110 = vset.pattern.permute.xlu0 5
        %5111 = vperm.xlu0 %5110, %v5089
        %v5112 = vpop.permute.xlu0 %5111
        %5115 = vset.pattern.permute.xlu0 5
        %5116 = vperm.xlu0 %5115, %v5090
        %v5117 = vpop.permute.xlu0 %5116
        %5120 = vset.pattern.permute.xlu0 5
        %5121 = vperm.xlu0 %5120, %v5091
        %v5122 = vpop.permute.xlu0 %5121
        %5125 = vset.pattern.permute.xlu0 5
        %5126 = vperm.xlu0 %5125, %v5092
        %v5127 = vpop.permute.xlu0 %5126
        %5130 = vset.pattern.permute.xlu0 5
        %5131 = vperm.xlu0 %5130, %v5093
        %v5132 = vpop.permute.xlu0 %5131
        %v5134 = vadd.f32 %v5078, %v5097
        %v5135 = vadd.f32 %v5079, %v5102
        %v5136 = vadd.f32 %v5080, %v5107
        %v5137 = vadd.f32 %v5081, %v5112
        %v5138 = vadd.f32 %v5082, %v5117
        %v5139 = vadd.f32 %v5083, %v5122
        %v5140 = vadd.f32 %v5084, %v5127
        %v5141 = vadd.f32 %v5085, %v5132
        %v5142 = vmax.f32 %v5134, 0.0
        %v5143 = vmax.f32 %v5135, 0.0
        %v5144 = vmax.f32 %v5136, 0.0
        %v5145 = vmax.f32 %v5137, 0.0
        %v5146 = vmax.f32 %v5138, 0.0
        %v5147 = vmax.f32 %v5139, 0.0
        %v5148 = vmax.f32 %v5140, 0.0
        %v5149 = vmax.f32 %v5141, 0.0
        %v5150 = vpack.c.bf16 %v5143, %v5142
        %v5151 = vpack.c.bf16 %v5145, %v5144
        %v5152 = vpack.c.bf16 %v5147, %v5146
        %v5153 = vpack.c.bf16 %v5149, %v5148
        %v5154 = vld [vmem:[#allocation10] sm:$0xf]
        %v5155 = vld [vmem:[#allocation10 + $0x4] sm:$0xf]
        %v5156 = vld [vmem:[#allocation10 + $0x8] sm:$0xf]
        %v5157 = vld [vmem:[#allocation10 + $0xc] sm:$0xf]
        %v5158 = vld [vmem:[#allocation10 + $0x10] sm:$0xf]
        %v5159 = vld [vmem:[#allocation10 + $0x14] sm:$0xf]
        %v5160 = vld [vmem:[#allocation10 + $0x18] sm:$0xf]
        %v5161 = vld [vmem:[#allocation10 + $0x1c] sm:$0xf]
        %v5163 = vsel %vm4198, %v5150, 0
        %v5166 = vsel %vm4198, %v5151, 0
        %v5169 = vsel %vm4198, %v5152, 0
        %v5172 = vsel %vm4198, %v5153, 0
        %5174 = vmatpush.bf16.msra.mxu0 0
        %5175 = vmatpush.bf16.msra.mxu0 0
        %5176 = vmatpush.bf16.msra.mxu0 0
        %5177 = vmatpush.bf16.msra.mxu0 0
        %5178 = vmatpush.bf16.msra.mxu0 0
        %5179 = vmatpush.bf16.msra.mxu0 0
        %5180 = vmatpush.bf16.msra.mxu0 %v4249
        %5181 = vmatpush.bf16.msra.mxu0 %v4242
        %5182 = vmatmul.bf16.gmra.mxu0 %v5163
        %v5183 = vpop.f32.mrf.mxu0
        %v5184 = vadd.f32 0.0, %v5183
        %v5185 = vpop.f32.mrf.mxu0
        %v5186 = vadd.f32 0.0, %v5185
        %5187 = vmatmul.bf16.gmra.mxu0 %v5166
        %v5188 = vpop.f32.mrf.mxu0
        %v5189 = vadd.f32 0.0, %v5188
        %v5190 = vpop.f32.mrf.mxu0
        %v5191 = vadd.f32 0.0, %v5190
        %5192 = vmatmul.bf16.gmra.mxu0 %v5169
        %v5193 = vpop.f32.mrf.mxu0
        %v5194 = vadd.f32 0.0, %v5193
        %v5195 = vpop.f32.mrf.mxu0
        %v5196 = vadd.f32 0.0, %v5195
        %5197 = vmatmul.bf16.gmra.mxu0 %v5172
        %v5198 = vpop.f32.mrf.mxu0
        %v5199 = vadd.f32 0.0, %v5198
        %v5200 = vpop.f32.mrf.mxu0
        %v5201 = vadd.f32 0.0, %v5200
        %5202 = vdwg.mxu0
        %v5203 = vpack.c.bf16 %v5186, %v5184
        %v5204 = vpack.c.bf16 %v5191, %v5189
        %v5205 = vpack.c.bf16 %v5196, %v5194
        %v5206 = vpack.c.bf16 %v5201, %v5199
        %s5207 = scalar_lea.vmem [#allocation10], 32
        %v5208 = vld [vmem:[%s5207] sm:$0xf]
        %v5209 = vld [vmem:[%s5207 + $0x4] sm:$0xf]
        %v5210 = vld [vmem:[%s5207 + $0x8] sm:$0xf]
        %v5211 = vld [vmem:[%s5207 + $0xc] sm:$0xf]
        %v5212 = vld [vmem:[%s5207 + $0x10] sm:$0xf]
        %v5213 = vld [vmem:[%s5207 + $0x14] sm:$0xf]
        %v5214 = vld [vmem:[%s5207 + $0x18] sm:$0xf]
        %v5215 = vld [vmem:[%s5207 + $0x1c] sm:$0xf]
        %v5224 = vunpack.c.l.b16 %v5208
        %v5225 = vunpack.c.l.b16 %v5209
        %v5226 = vunpack.c.l.b16 %v5210
        %v5227 = vunpack.c.l.b16 %v5211
        %v5228 = vunpack.c.l.b16 %v5212
        %v5229 = vunpack.c.l.b16 %v5213
        %v5230 = vunpack.c.l.b16 %v5214
        %v5231 = vunpack.c.l.b16 %v5215
        %v5232 = vpack.c.b16 %v5225, %v5224
        %v5233 = vpack.c.b16 %v5227, %v5226
        %v5234 = vpack.c.b16 %v5229, %v5228
        %v5235 = vpack.c.b16 %v5231, %v5230
        %v5237 = vsel %vm4313, %v5232, 0
        %v5240 = vsel %vm4313, %v5233, 0
        %v5243 = vsel %vm4313, %v5234, 0
        %v5246 = vsel %vm4313, %v5235, 0
        %v5249 = vand.u32 %v5206, %v1265
        %5251 = vmatpush.bf16.msra.mxu0 0
        %5252 = vmatpush.bf16.msra.mxu0 0
        %5253 = vmatpush.bf16.msra.mxu0 0
        %5254 = vmatpush.bf16.msra.mxu0 0
        %5255 = vmatpush.bf16.msra.mxu0 %v5249
        %5256 = vmatpush.bf16.msra.mxu0 %v5205
        %5257 = vmatpush.bf16.msra.mxu0 %v5204
        %5258 = vmatpush.bf16.msra.mxu0 %v5203
        %5259 = vmatmul.bf16.gmra.mxu0 %v5237
        %v5260 = vpop.f32.mrf.mxu0
        %v5261 = vadd.f32 0.0, %v5260
        %v5262 = vpop.f32.mrf.mxu0
        %v5263 = vadd.f32 0.0, %v5262
        %5264 = vmatmul.bf16.gmra.mxu0 %v5240
        %v5265 = vpop.f32.mrf.mxu0
        %v5266 = vadd.f32 0.0, %v5265
        %v5267 = vpop.f32.mrf.mxu0
        %v5268 = vadd.f32 0.0, %v5267
        %5269 = vmatmul.bf16.gmra.mxu0 %v5243
        %v5270 = vpop.f32.mrf.mxu0
        %v5271 = vadd.f32 0.0, %v5270
        %v5272 = vpop.f32.mrf.mxu0
        %v5273 = vadd.f32 0.0, %v5272
        %5274 = vmatmul.bf16.gmra.mxu0 %v5246
        %v5275 = vpop.f32.mrf.mxu0
        %v5276 = vadd.f32 0.0, %v5275
        %v5277 = vpop.f32.mrf.mxu0
        %v5278 = vadd.f32 0.0, %v5277
        %5279 = vdwg.mxu0
        %v5288 = vunpack.c.l.b16 %v5154
        %v5289 = vunpack.c.l.b16 %v5155
        %v5290 = vunpack.c.l.b16 %v5156
        %v5291 = vunpack.c.l.b16 %v5157
        %v5292 = vunpack.c.l.b16 %v5158
        %v5293 = vunpack.c.l.b16 %v5159
        %v5294 = vunpack.c.l.b16 %v5160
        %v5295 = vunpack.c.l.b16 %v5161
        %v5296 = vpack.c.b16 %v5289, %v5288
        %v5297 = vpack.c.b16 %v5291, %v5290
        %v5298 = vpack.c.b16 %v5293, %v5292
        %v5299 = vpack.c.b16 %v5295, %v5294
        %v5301 = vsel %vm4313, %v5296, 0
        %v5304 = vsel %vm4313, %v5297, 0
        %v5307 = vsel %vm4313, %v5298, 0
        %v5310 = vsel %vm4313, %v5299, 0
        %v5312 = vand.u32 %v5153, %v1265
        %5314 = vmatpush.bf16.msra.mxu0 0
        %5315 = vmatpush.bf16.msra.mxu0 0
        %5316 = vmatpush.bf16.msra.mxu0 0
        %5317 = vmatpush.bf16.msra.mxu0 0
        %5318 = vmatpush.bf16.msra.mxu0 %v5312
        %5319 = vmatpush.bf16.msra.mxu0 %v5152
        %5320 = vmatpush.bf16.msra.mxu0 %v5151
        %5321 = vmatpush.bf16.msra.mxu0 %v5150
        %5322 = vmatmul.bf16.gmra.mxu0 %v5301
        %v5323 = vpop.f32.mrf.mxu0
        %v5324 = vadd.f32 %v5261, %v5323
        %v5325 = vpop.f32.mrf.mxu0
        %v5326 = vadd.f32 %v5263, %v5325
        %5327 = vmatmul.bf16.gmra.mxu0 %v5304
        %v5328 = vpop.f32.mrf.mxu0
        %v5329 = vadd.f32 %v5266, %v5328
        %v5330 = vpop.f32.mrf.mxu0
        %v5331 = vadd.f32 %v5268, %v5330
        %5332 = vmatmul.bf16.gmra.mxu0 %v5307
        %v5333 = vpop.f32.mrf.mxu0
        %v5334 = vadd.f32 %v5271, %v5333
        %v5335 = vpop.f32.mrf.mxu0
        %v5336 = vadd.f32 %v5273, %v5335
        %5337 = vmatmul.bf16.gmra.mxu0 %v5310
        %v5338 = vpop.f32.mrf.mxu0
        %v5339 = vadd.f32 %v5276, %v5338
        %v5340 = vpop.f32.mrf.mxu0
        %v5341 = vadd.f32 %v5278, %v5340
        %5342 = vdwg.mxu0
        %5343 = vmatpush.bf16.msra.mxu0 0
        %5344 = vmatpush.bf16.msra.mxu0 0
        %5345 = vmatpush.bf16.msra.mxu0 0
        %5346 = vmatpush.bf16.msra.mxu0 0
        %5347 = vmatpush.bf16.msra.mxu0 0
        %5348 = vmatpush.bf16.msra.mxu0 0
        %5349 = vmatpush.bf16.msra.mxu0 %v4438
        %5350 = vmatpush.bf16.msra.mxu0 %v4434
        %5351 = vmatmul.bf16.gmra.mxu0 %v5163
        %v5352 = vpop.f32.mrf.mxu0
        %v5353 = vadd.f32 0.0, %v5352
        %v5354 = vpop.f32.mrf.mxu0
        %v5355 = vadd.f32 0.0, %v5354
        %5356 = vmatmul.bf16.gmra.mxu0 %v5166
        %v5357 = vpop.f32.mrf.mxu0
        %v5358 = vadd.f32 0.0, %v5357
        %v5359 = vpop.f32.mrf.mxu0
        %v5360 = vadd.f32 0.0, %v5359
        %5361 = vmatmul.bf16.gmra.mxu0 %v5169
        %v5362 = vpop.f32.mrf.mxu0
        %v5363 = vadd.f32 0.0, %v5362
        %v5364 = vpop.f32.mrf.mxu0
        %v5365 = vadd.f32 0.0, %v5364
        %5366 = vmatmul.bf16.gmra.mxu0 %v5172
        %v5367 = vpop.f32.mrf.mxu0
        %v5368 = vadd.f32 0.0, %v5367
        %v5369 = vpop.f32.mrf.mxu0
        %v5370 = vadd.f32 0.0, %v5369
        %5371 = vdwg.mxu0
        %v5372 = vpack.c.bf16 %v5355, %v5353
        %v5373 = vpack.c.bf16 %v5360, %v5358
        %v5374 = vpack.c.bf16 %v5365, %v5363
        %v5375 = vpack.c.bf16 %v5370, %v5368
        %s5376 = scalar_lea.vmem [#allocation10], 64
        %v5377 = vld [vmem:[%s5376] sm:$0xf]
        %v5378 = vld [vmem:[%s5376 + $0x4] sm:$0xf]
        %v5379 = vld [vmem:[%s5376 + $0x8] sm:$0xf]
        %v5380 = vld [vmem:[%s5376 + $0xc] sm:$0xf]
        %v5381 = vld [vmem:[%s5376 + $0x10] sm:$0xf]
        %v5382 = vld [vmem:[%s5376 + $0x14] sm:$0xf]
        %v5383 = vld [vmem:[%s5376 + $0x18] sm:$0xf]
        %v5384 = vld [vmem:[%s5376 + $0x1c] sm:$0xf]
        %v5393 = vunpack.c.l.b16 %v5377
        %v5394 = vunpack.c.l.b16 %v5378
        %v5395 = vunpack.c.l.b16 %v5379
        %v5396 = vunpack.c.l.b16 %v5380
        %v5397 = vunpack.c.l.b16 %v5381
        %v5398 = vunpack.c.l.b16 %v5382
        %v5399 = vunpack.c.l.b16 %v5383
        %v5400 = vunpack.c.l.b16 %v5384
        %v5401 = vpack.c.b16 %v5394, %v5393
        %v5402 = vpack.c.b16 %v5396, %v5395
        %v5403 = vpack.c.b16 %v5398, %v5397
        %v5404 = vpack.c.b16 %v5400, %v5399
        %v5406 = vsel %vm4313, %v5401, 0
        %v5409 = vsel %vm4313, %v5402, 0
        %v5412 = vsel %vm4313, %v5403, 0
        %v5415 = vsel %vm4313, %v5404, 0
        %v5418 = vand.u32 %v5375, %v1265
        %5420 = vmatpush.bf16.msra.mxu0 0
        %5421 = vmatpush.bf16.msra.mxu0 0
        %5422 = vmatpush.bf16.msra.mxu0 0
        %5423 = vmatpush.bf16.msra.mxu0 0
        %5424 = vmatpush.bf16.msra.mxu0 %v5418
        %5425 = vmatpush.bf16.msra.mxu0 %v5374
        %5426 = vmatpush.bf16.msra.mxu0 %v5373
        %5427 = vmatpush.bf16.msra.mxu0 %v5372
        %5428 = vmatmul.bf16.gmra.mxu0 %v5406
        %v5429 = vpop.f32.mrf.mxu0
        %v5430 = vadd.f32 0.0, %v5429
        %v5431 = vpop.f32.mrf.mxu0
        %v5432 = vadd.f32 0.0, %v5431
        %5433 = vmatmul.bf16.gmra.mxu0 %v5409
        %v5434 = vpop.f32.mrf.mxu0
        %v5435 = vadd.f32 0.0, %v5434
        %v5436 = vpop.f32.mrf.mxu0
        %v5437 = vadd.f32 0.0, %v5436
        %5438 = vmatmul.bf16.gmra.mxu0 %v5412
        %v5439 = vpop.f32.mrf.mxu0
        %v5440 = vadd.f32 0.0, %v5439
        %v5441 = vpop.f32.mrf.mxu0
        %v5442 = vadd.f32 0.0, %v5441
        %5443 = vmatmul.bf16.gmra.mxu0 %v5415
        %v5444 = vpop.f32.mrf.mxu0
        %v5445 = vadd.f32 0.0, %v5444
        %v5446 = vpop.f32.mrf.mxu0
        %v5447 = vadd.f32 0.0, %v5446
        %5448 = vdwg.mxu0
        %v5449 = vadd.f32 %v5324, %v5430
        %v5450 = vadd.f32 %v5326, %v5432
        %v5451 = vadd.f32 %v5329, %v5435
        %v5452 = vadd.f32 %v5331, %v5437
        %v5453 = vadd.f32 %v5334, %v5440
        %v5454 = vadd.f32 %v5336, %v5442
        %v5455 = vadd.f32 %v5339, %v5445
        %v5456 = vadd.f32 %v5341, %v5447
        %5457 = vmatpush.bf16.msra.mxu0 0
        %5458 = vmatpush.bf16.msra.mxu0 0
        %5459 = vmatpush.bf16.msra.mxu0 0
        %5460 = vmatpush.bf16.msra.mxu0 0
        %5461 = vmatpush.bf16.msra.mxu0 0
        %5462 = vmatpush.bf16.msra.mxu0 0
        %5463 = vmatpush.bf16.msra.mxu0 %v4571
        %5464 = vmatpush.bf16.msra.mxu0 %v4567
        %5465 = vmatmul.bf16.gmra.mxu0 %v5163
        %v5466 = vpop.f32.mrf.mxu0
        %v5467 = vadd.f32 0.0, %v5466
        %v5468 = vpop.f32.mrf.mxu0
        %v5469 = vadd.f32 0.0, %v5468
        %5470 = vmatmul.bf16.gmra.mxu0 %v5166
        %v5471 = vpop.f32.mrf.mxu0
        %v5472 = vadd.f32 0.0, %v5471
        %v5473 = vpop.f32.mrf.mxu0
        %v5474 = vadd.f32 0.0, %v5473
        %5475 = vmatmul.bf16.gmra.mxu0 %v5169
        %v5476 = vpop.f32.mrf.mxu0
        %v5477 = vadd.f32 0.0, %v5476
        %v5478 = vpop.f32.mrf.mxu0
        %v5479 = vadd.f32 0.0, %v5478
        %5480 = vmatmul.bf16.gmra.mxu0 %v5172
        %v5481 = vpop.f32.mrf.mxu0
        %v5482 = vadd.f32 0.0, %v5481
        %v5483 = vpop.f32.mrf.mxu0
        %v5484 = vadd.f32 0.0, %v5483
        %5485 = vdwg.mxu0
        %v5486 = vpack.c.bf16 %v5469, %v5467
        %v5487 = vpack.c.bf16 %v5474, %v5472
        %v5488 = vpack.c.bf16 %v5479, %v5477
        %v5489 = vpack.c.bf16 %v5484, %v5482
        %s5490 = scalar_lea.vmem [#allocation10], 96
        %v5491 = vld [vmem:[%s5490] sm:$0xf]
        %v5492 = vld [vmem:[%s5490 + $0x4] sm:$0xf]
        %v5493 = vld [vmem:[%s5490 + $0x8] sm:$0xf]
        %v5494 = vld [vmem:[%s5490 + $0xc] sm:$0xf]
        %v5495 = vld [vmem:[%s5490 + $0x10] sm:$0xf]
        %v5496 = vld [vmem:[%s5490 + $0x14] sm:$0xf]
        %v5497 = vld [vmem:[%s5490 + $0x18] sm:$0xf]
        %v5498 = vld [vmem:[%s5490 + $0x1c] sm:$0xf]
        %v5507 = vunpack.c.l.b16 %v5491
        %v5508 = vunpack.c.l.b16 %v5492
        %v5509 = vunpack.c.l.b16 %v5493
        %v5510 = vunpack.c.l.b16 %v5494
        %v5511 = vunpack.c.l.b16 %v5495
        %v5512 = vunpack.c.l.b16 %v5496
        %v5513 = vunpack.c.l.b16 %v5497
        %v5514 = vunpack.c.l.b16 %v5498
        %v5515 = vpack.c.b16 %v5508, %v5507
        %v5516 = vpack.c.b16 %v5510, %v5509
        %v5517 = vpack.c.b16 %v5512, %v5511
        %v5518 = vpack.c.b16 %v5514, %v5513
        %v5520 = vsel %vm4313, %v5515, 0
        %v5523 = vsel %vm4313, %v5516, 0
        %v5526 = vsel %vm4313, %v5517, 0
        %v5529 = vsel %vm4313, %v5518, 0
        %v5532 = vand.u32 %v5489, %v1265
        %5534 = vmatpush.bf16.msra.mxu0 0
        %5535 = vmatpush.bf16.msra.mxu0 0
        %5536 = vmatpush.bf16.msra.mxu0 0
        %5537 = vmatpush.bf16.msra.mxu0 0
        %5538 = vmatpush.bf16.msra.mxu0 %v5532
        %5539 = vmatpush.bf16.msra.mxu0 %v5488
        %5540 = vmatpush.bf16.msra.mxu0 %v5487
        %5541 = vmatpush.bf16.msra.mxu0 %v5486
        %5542 = vmatmul.bf16.gmra.mxu0 %v5520
        %v5543 = vpop.f32.mrf.mxu0
        %v5544 = vadd.f32 0.0, %v5543
        %v5545 = vpop.f32.mrf.mxu0
        %v5546 = vadd.f32 0.0, %v5545
        %5547 = vmatmul.bf16.gmra.mxu0 %v5523
        %v5548 = vpop.f32.mrf.mxu0
        %v5549 = vadd.f32 0.0, %v5548
        %v5550 = vpop.f32.mrf.mxu0
        %v5551 = vadd.f32 0.0, %v5550
        %5552 = vmatmul.bf16.gmra.mxu0 %v5526
        %v5553 = vpop.f32.mrf.mxu0
        %v5554 = vadd.f32 0.0, %v5553
        %v5555 = vpop.f32.mrf.mxu0
        %v5556 = vadd.f32 0.0, %v5555
        %5557 = vmatmul.bf16.gmra.mxu0 %v5529
        %v5558 = vpop.f32.mrf.mxu0
        %v5559 = vadd.f32 0.0, %v5558
        %v5560 = vpop.f32.mrf.mxu0
        %v5561 = vadd.f32 0.0, %v5560
        %5562 = vdwg.mxu0
        %v5563 = vadd.f32 %v5449, %v5544
        %v5564 = vadd.f32 %v5450, %v5546
        %v5565 = vadd.f32 %v5451, %v5549
        %v5566 = vadd.f32 %v5452, %v5551
        %v5567 = vadd.f32 %v5453, %v5554
        %v5568 = vadd.f32 %v5454, %v5556
        %v5569 = vadd.f32 %v5455, %v5559
        %v5570 = vadd.f32 %v5456, %v5561
        %5571 = vmatpush.bf16.msra.mxu0 0
        %5572 = vmatpush.bf16.msra.mxu0 0
        %5573 = vmatpush.bf16.msra.mxu0 0
        %5574 = vmatpush.bf16.msra.mxu0 0
        %5575 = vmatpush.bf16.msra.mxu0 0
        %5576 = vmatpush.bf16.msra.mxu0 0
        %5577 = vmatpush.bf16.msra.mxu0 %v4704
        %5578 = vmatpush.bf16.msra.mxu0 %v4700
        %5579 = vmatmul.bf16.gmra.mxu0 %v5163
        %v5580 = vpop.f32.mrf.mxu0
        %v5581 = vadd.f32 0.0, %v5580
        %v5582 = vpop.f32.mrf.mxu0
        %v5583 = vadd.f32 0.0, %v5582
        %5584 = vmatmul.bf16.gmra.mxu0 %v5166
        %v5585 = vpop.f32.mrf.mxu0
        %v5586 = vadd.f32 0.0, %v5585
        %v5587 = vpop.f32.mrf.mxu0
        %v5588 = vadd.f32 0.0, %v5587
        %5589 = vmatmul.bf16.gmra.mxu0 %v5169
        %v5590 = vpop.f32.mrf.mxu0
        %v5591 = vadd.f32 0.0, %v5590
        %v5592 = vpop.f32.mrf.mxu0
        %v5593 = vadd.f32 0.0, %v5592
        %5594 = vmatmul.bf16.gmra.mxu0 %v5172
        %v5595 = vpop.f32.mrf.mxu0
        %v5596 = vadd.f32 0.0, %v5595
        %v5597 = vpop.f32.mrf.mxu0
        %v5598 = vadd.f32 0.0, %v5597
        %5599 = vdwg.mxu0
        %v5600 = vpack.c.bf16 %v5583, %v5581
        %v5601 = vpack.c.bf16 %v5588, %v5586
        %v5602 = vpack.c.bf16 %v5593, %v5591
        %v5603 = vpack.c.bf16 %v5598, %v5596
        %s5604 = scalar_lea.vmem [#allocation10], 128
        %v5605 = vld [vmem:[%s5604] sm:$0xf]
        %v5606 = vld [vmem:[%s5604 + $0x4] sm:$0xf]
        %v5607 = vld [vmem:[%s5604 + $0x8] sm:$0xf]
        %v5608 = vld [vmem:[%s5604 + $0xc] sm:$0xf]
        %v5609 = vld [vmem:[%s5604 + $0x10] sm:$0xf]
        %v5610 = vld [vmem:[%s5604 + $0x14] sm:$0xf]
        %v5611 = vld [vmem:[%s5604 + $0x18] sm:$0xf]
        %v5612 = vld [vmem:[%s5604 + $0x1c] sm:$0xf]
        %v5621 = vunpack.c.l.b16 %v5605
        %v5622 = vunpack.c.l.b16 %v5606
        %v5623 = vunpack.c.l.b16 %v5607
        %v5624 = vunpack.c.l.b16 %v5608
        %v5625 = vunpack.c.l.b16 %v5609
        %v5626 = vunpack.c.l.b16 %v5610
        %v5627 = vunpack.c.l.b16 %v5611
        %v5628 = vunpack.c.l.b16 %v5612
        %v5629 = vpack.c.b16 %v5622, %v5621
        %v5630 = vpack.c.b16 %v5624, %v5623
        %v5631 = vpack.c.b16 %v5626, %v5625
        %v5632 = vpack.c.b16 %v5628, %v5627
        %v5634 = vsel %vm4313, %v5629, 0
        %v5637 = vsel %vm4313, %v5630, 0
        %v5640 = vsel %vm4313, %v5631, 0
        %v5643 = vsel %vm4313, %v5632, 0
        %v5646 = vand.u32 %v5603, %v1265
        %5648 = vmatpush.bf16.msra.mxu0 0
        %5649 = vmatpush.bf16.msra.mxu0 0
        %5650 = vmatpush.bf16.msra.mxu0 0
        %5651 = vmatpush.bf16.msra.mxu0 0
        %5652 = vmatpush.bf16.msra.mxu0 %v5646
        %5653 = vmatpush.bf16.msra.mxu0 %v5602
        %5654 = vmatpush.bf16.msra.mxu0 %v5601
        %5655 = vmatpush.bf16.msra.mxu0 %v5600
        %5656 = vmatmul.bf16.gmra.mxu0 %v5634
        %v5657 = vpop.f32.mrf.mxu0
        %v5658 = vadd.f32 0.0, %v5657
        %v5659 = vpop.f32.mrf.mxu0
        %v5660 = vadd.f32 0.0, %v5659
        %5661 = vmatmul.bf16.gmra.mxu0 %v5637
        %v5662 = vpop.f32.mrf.mxu0
        %v5663 = vadd.f32 0.0, %v5662
        %v5664 = vpop.f32.mrf.mxu0
        %v5665 = vadd.f32 0.0, %v5664
        %5666 = vmatmul.bf16.gmra.mxu0 %v5640
        %v5667 = vpop.f32.mrf.mxu0
        %v5668 = vadd.f32 0.0, %v5667
        %v5669 = vpop.f32.mrf.mxu0
        %v5670 = vadd.f32 0.0, %v5669
        %5671 = vmatmul.bf16.gmra.mxu0 %v5643
        %v5672 = vpop.f32.mrf.mxu0
        %v5673 = vadd.f32 0.0, %v5672
        %v5674 = vpop.f32.mrf.mxu0
        %v5675 = vadd.f32 0.0, %v5674
        %5676 = vdwg.mxu0
        %v5677 = vadd.f32 %v5563, %v5658
        %v5678 = vadd.f32 %v5564, %v5660
        %v5679 = vadd.f32 %v5565, %v5663
        %v5680 = vadd.f32 %v5566, %v5665
        %v5681 = vadd.f32 %v5567, %v5668
        %v5682 = vadd.f32 %v5568, %v5670
        %v5683 = vadd.f32 %v5569, %v5673
        %v5684 = vadd.f32 %v5570, %v5675
        %5685 = vmatpush.bf16.msra.mxu0 0
        %5686 = vmatpush.bf16.msra.mxu0 0
        %5687 = vmatpush.bf16.msra.mxu0 0
        %5688 = vmatpush.bf16.msra.mxu0 0
        %5689 = vmatpush.bf16.msra.mxu0 0
        %5690 = vmatpush.bf16.msra.mxu0 0
        %5691 = vmatpush.bf16.msra.mxu0 %v4837
        %5692 = vmatpush.bf16.msra.mxu0 %v4833
        %5693 = vmatmul.bf16.gmra.mxu0 %v5163
        %v5694 = vpop.f32.mrf.mxu0
        %v5695 = vadd.f32 0.0, %v5694
        %v5696 = vpop.f32.mrf.mxu0
        %v5697 = vadd.f32 0.0, %v5696
        %5698 = vmatmul.bf16.gmra.mxu0 %v5166
        %v5699 = vpop.f32.mrf.mxu0
        %v5700 = vadd.f32 0.0, %v5699
        %v5701 = vpop.f32.mrf.mxu0
        %v5702 = vadd.f32 0.0, %v5701
        %5703 = vmatmul.bf16.gmra.mxu0 %v5169
        %v5704 = vpop.f32.mrf.mxu0
        %v5705 = vadd.f32 0.0, %v5704
        %v5706 = vpop.f32.mrf.mxu0
        %v5707 = vadd.f32 0.0, %v5706
        %5708 = vmatmul.bf16.gmra.mxu0 %v5172
        %v5709 = vpop.f32.mrf.mxu0
        %v5710 = vadd.f32 0.0, %v5709
        %v5711 = vpop.f32.mrf.mxu0
        %v5712 = vadd.f32 0.0, %v5711
        %5713 = vdwg.mxu0
        %v5714 = vpack.c.bf16 %v5697, %v5695
        %v5715 = vpack.c.bf16 %v5702, %v5700
        %v5716 = vpack.c.bf16 %v5707, %v5705
        %v5717 = vpack.c.bf16 %v5712, %v5710
        %s5718 = scalar_lea.vmem [#allocation10], 160
        %v5719 = vld [vmem:[%s5718] sm:$0xf]
        %v5720 = vld [vmem:[%s5718 + $0x4] sm:$0xf]
        %v5721 = vld [vmem:[%s5718 + $0x8] sm:$0xf]
        %v5722 = vld [vmem:[%s5718 + $0xc] sm:$0xf]
        %v5723 = vld [vmem:[%s5718 + $0x10] sm:$0xf]
        %v5724 = vld [vmem:[%s5718 + $0x14] sm:$0xf]
        %v5725 = vld [vmem:[%s5718 + $0x18] sm:$0xf]
        %v5726 = vld [vmem:[%s5718 + $0x1c] sm:$0xf]
        %v5735 = vunpack.c.l.b16 %v5719
        %v5736 = vunpack.c.l.b16 %v5720
        %v5737 = vunpack.c.l.b16 %v5721
        %v5738 = vunpack.c.l.b16 %v5722
        %v5739 = vunpack.c.l.b16 %v5723
        %v5740 = vunpack.c.l.b16 %v5724
        %v5741 = vunpack.c.l.b16 %v5725
        %v5742 = vunpack.c.l.b16 %v5726
        %v5743 = vpack.c.b16 %v5736, %v5735
        %v5744 = vpack.c.b16 %v5738, %v5737
        %v5745 = vpack.c.b16 %v5740, %v5739
        %v5746 = vpack.c.b16 %v5742, %v5741
        %v5748 = vsel %vm4313, %v5743, 0
        %v5751 = vsel %vm4313, %v5744, 0
        %v5754 = vsel %vm4313, %v5745, 0
        %v5757 = vsel %vm4313, %v5746, 0
        %v5760 = vand.u32 %v5717, %v1265
        %5762 = vmatpush.bf16.msra.mxu0 0
        %5763 = vmatpush.bf16.msra.mxu0 0
        %5764 = vmatpush.bf16.msra.mxu0 0
        %5765 = vmatpush.bf16.msra.mxu0 0
        %5766 = vmatpush.bf16.msra.mxu0 %v5760
        %5767 = vmatpush.bf16.msra.mxu0 %v5716
        %5768 = vmatpush.bf16.msra.mxu0 %v5715
        %5769 = vmatpush.bf16.msra.mxu0 %v5714
        %5770 = vmatmul.bf16.gmra.mxu0 %v5748
        %v5771 = vpop.f32.mrf.mxu0
        %v5772 = vadd.f32 0.0, %v5771
        %v5773 = vpop.f32.mrf.mxu0
        %v5774 = vadd.f32 0.0, %v5773
        %5775 = vmatmul.bf16.gmra.mxu0 %v5751
        %v5776 = vpop.f32.mrf.mxu0
        %v5777 = vadd.f32 0.0, %v5776
        %v5778 = vpop.f32.mrf.mxu0
        %v5779 = vadd.f32 0.0, %v5778
        %5780 = vmatmul.bf16.gmra.mxu0 %v5754
        %v5781 = vpop.f32.mrf.mxu0
        %v5782 = vadd.f32 0.0, %v5781
        %v5783 = vpop.f32.mrf.mxu0
        %v5784 = vadd.f32 0.0, %v5783
        %5785 = vmatmul.bf16.gmra.mxu0 %v5757
        %v5786 = vpop.f32.mrf.mxu0
        %v5787 = vadd.f32 0.0, %v5786
        %v5788 = vpop.f32.mrf.mxu0
        %v5789 = vadd.f32 0.0, %v5788
        %5790 = vdwg.mxu0
        %v5791 = vadd.f32 %v5677, %v5772
        %v5792 = vadd.f32 %v5678, %v5774
        %v5793 = vadd.f32 %v5679, %v5777
        %v5794 = vadd.f32 %v5680, %v5779
        %v5795 = vadd.f32 %v5681, %v5782
        %v5796 = vadd.f32 %v5682, %v5784
        %v5797 = vadd.f32 %v5683, %v5787
        %v5798 = vadd.f32 %v5684, %v5789
        %5799 = vmatpush.bf16.msra.mxu0 0
        %5800 = vmatpush.bf16.msra.mxu0 0
        %5801 = vmatpush.bf16.msra.mxu0 0
        %5802 = vmatpush.bf16.msra.mxu0 0
        %5803 = vmatpush.bf16.msra.mxu0 0
        %5804 = vmatpush.bf16.msra.mxu0 0
        %5805 = vmatpush.bf16.msra.mxu0 %v4970
        %5806 = vmatpush.bf16.msra.mxu0 %v4966
        %5807 = vmatmul.bf16.gmra.mxu0 %v5163
        %v5808 = vpop.f32.mrf.mxu0
        %v5809 = vadd.f32 0.0, %v5808
        %v5810 = vpop.f32.mrf.mxu0
        %v5811 = vadd.f32 0.0, %v5810
        %5812 = vmatmul.bf16.gmra.mxu0 %v5166
        %v5813 = vpop.f32.mrf.mxu0
        %v5814 = vadd.f32 0.0, %v5813
        %v5815 = vpop.f32.mrf.mxu0
        %v5816 = vadd.f32 0.0, %v5815
        %5817 = vmatmul.bf16.gmra.mxu0 %v5169
        %v5818 = vpop.f32.mrf.mxu0
        %v5819 = vadd.f32 0.0, %v5818
        %v5820 = vpop.f32.mrf.mxu0
        %v5821 = vadd.f32 0.0, %v5820
        %5822 = vmatmul.bf16.gmra.mxu0 %v5172
        %v5823 = vpop.f32.mrf.mxu0
        %v5824 = vadd.f32 0.0, %v5823
        %v5825 = vpop.f32.mrf.mxu0
        %v5826 = vadd.f32 0.0, %v5825
        %5827 = vdwg.mxu0
        %v5828 = vpack.c.bf16 %v5811, %v5809
        %v5829 = vpack.c.bf16 %v5816, %v5814
        %v5830 = vpack.c.bf16 %v5821, %v5819
        %v5831 = vpack.c.bf16 %v5826, %v5824
        %s5832 = scalar_lea.vmem [#allocation10], 192
        %v5833 = vld [vmem:[%s5832] sm:$0xf]
        %v5834 = vld [vmem:[%s5832 + $0x4] sm:$0xf]
        %v5835 = vld [vmem:[%s5832 + $0x8] sm:$0xf]
        %v5836 = vld [vmem:[%s5832 + $0xc] sm:$0xf]
        %v5837 = vld [vmem:[%s5832 + $0x10] sm:$0xf]
        %v5838 = vld [vmem:[%s5832 + $0x14] sm:$0xf]
        %v5839 = vld [vmem:[%s5832 + $0x18] sm:$0xf]
        %v5840 = vld [vmem:[%s5832 + $0x1c] sm:$0xf]
        %v5849 = vunpack.c.l.b16 %v5833
        %v5850 = vunpack.c.l.b16 %v5834
        %v5851 = vunpack.c.l.b16 %v5835
        %v5852 = vunpack.c.l.b16 %v5836
        %v5853 = vunpack.c.l.b16 %v5837
        %v5854 = vunpack.c.l.b16 %v5838
        %v5855 = vunpack.c.l.b16 %v5839
        %v5856 = vunpack.c.l.b16 %v5840
        %v5857 = vpack.c.b16 %v5850, %v5849
        %v5858 = vpack.c.b16 %v5852, %v5851
        %v5859 = vpack.c.b16 %v5854, %v5853
        %v5860 = vpack.c.b16 %v5856, %v5855
        %v5862 = vsel %vm4313, %v5857, 0
        %v5865 = vsel %vm4313, %v5858, 0
        %v5868 = vsel %vm4313, %v5859, 0
        %v5871 = vsel %vm4313, %v5860, 0
        %v5874 = vand.u32 %v5831, %v1265
        %5876 = vmatpush.bf16.msra.mxu0 0
        %5877 = vmatpush.bf16.msra.mxu0 0
        %5878 = vmatpush.bf16.msra.mxu0 0
        %5879 = vmatpush.bf16.msra.mxu0 0
        %5880 = vmatpush.bf16.msra.mxu0 %v5874
        %5881 = vmatpush.bf16.msra.mxu0 %v5830
        %5882 = vmatpush.bf16.msra.mxu0 %v5829
        %5883 = vmatpush.bf16.msra.mxu0 %v5828
        %5884 = vmatmul.bf16.gmra.mxu0 %v5862
        %v5885 = vpop.f32.mrf.mxu0
        %v5886 = vadd.f32 0.0, %v5885
        %v5887 = vpop.f32.mrf.mxu0
        %v5888 = vadd.f32 0.0, %v5887
        %5889 = vmatmul.bf16.gmra.mxu0 %v5865
        %v5890 = vpop.f32.mrf.mxu0
        %v5891 = vadd.f32 0.0, %v5890
        %v5892 = vpop.f32.mrf.mxu0
        %v5893 = vadd.f32 0.0, %v5892
        %5894 = vmatmul.bf16.gmra.mxu0 %v5868
        %v5895 = vpop.f32.mrf.mxu0
        %v5896 = vadd.f32 0.0, %v5895
        %v5897 = vpop.f32.mrf.mxu0
        %v5898 = vadd.f32 0.0, %v5897
        %5899 = vmatmul.bf16.gmra.mxu0 %v5871
        %v5900 = vpop.f32.mrf.mxu0
        %v5901 = vadd.f32 0.0, %v5900
        %v5902 = vpop.f32.mrf.mxu0
        %v5903 = vadd.f32 0.0, %v5902
        %5904 = vdwg.mxu0
        %v5905 = vadd.f32 %v5791, %v5886
        %v5906 = vadd.f32 %v5792, %v5888
        %v5907 = vadd.f32 %v5793, %v5891
        %v5908 = vadd.f32 %v5794, %v5893
        %v5909 = vadd.f32 %v5795, %v5896
        %v5910 = vadd.f32 %v5796, %v5898
        %v5911 = vadd.f32 %v5797, %v5901
        %v5912 = vadd.f32 %v5798, %v5903
        %5913 = vset.pattern.permute.xlu0 6
        %5914 = vperm.xlu0 %5913, %v5086
        %v5915 = vpop.permute.xlu0 %5914
        %5917 = vset.pattern.permute.xlu0 6
        %5918 = vperm.xlu0 %5917, %v5087
        %v5919 = vpop.permute.xlu0 %5918
        %5921 = vset.pattern.permute.xlu0 6
        %5922 = vperm.xlu0 %5921, %v5088
        %v5923 = vpop.permute.xlu0 %5922
        %5925 = vset.pattern.permute.xlu0 6
        %5926 = vperm.xlu0 %5925, %v5089
        %v5927 = vpop.permute.xlu0 %5926
        %5929 = vset.pattern.permute.xlu0 6
        %5930 = vperm.xlu0 %5929, %v5090
        %v5931 = vpop.permute.xlu0 %5930
        %5933 = vset.pattern.permute.xlu0 6
        %5934 = vperm.xlu0 %5933, %v5091
        %v5935 = vpop.permute.xlu0 %5934
        %5937 = vset.pattern.permute.xlu0 6
        %5938 = vperm.xlu0 %5937, %v5092
        %v5939 = vpop.permute.xlu0 %5938
        %5941 = vset.pattern.permute.xlu0 6
        %5942 = vperm.xlu0 %5941, %v5093
        %v5943 = vpop.permute.xlu0 %5942
        %v5945 = vadd.f32 %v5905, %v5915
        %v5946 = vadd.f32 %v5906, %v5919
        %v5947 = vadd.f32 %v5907, %v5923
        %v5948 = vadd.f32 %v5908, %v5927
        %v5949 = vadd.f32 %v5909, %v5931
        %v5950 = vadd.f32 %v5910, %v5935
        %v5951 = vadd.f32 %v5911, %v5939
        %v5952 = vadd.f32 %v5912, %v5943
        %v5953 = vmax.f32 %v5945, 0.0
        %v5954 = vmax.f32 %v5946, 0.0
        %v5955 = vmax.f32 %v5947, 0.0
        %v5956 = vmax.f32 %v5948, 0.0
        %v5957 = vmax.f32 %v5949, 0.0
        %v5958 = vmax.f32 %v5950, 0.0
        %v5959 = vmax.f32 %v5951, 0.0
        %v5960 = vmax.f32 %v5952, 0.0
        %5961 = vst.msk [vmem:[%s493] sm:$0xff] %vm4198, %v5953
        %5962 = vst.msk [vmem:[%s493 + $0x8] sm:$0xff] %vm4198, %v5954
        %5963 = vst.msk [vmem:[%s493 + $0x10] sm:$0xff] %vm4198, %v5955
        %5964 = vst.msk [vmem:[%s493 + $0x18] sm:$0xff] %vm4198, %v5956
        %5965 = vst.msk [vmem:[%s493 + $0x20] sm:$0xff] %vm4198, %v5957
        %5966 = vst.msk [vmem:[%s493 + $0x28] sm:$0xff] %vm4198, %v5958
        %5967 = vst.msk [vmem:[%s493 + $0x30] sm:$0xff] %vm4198, %v5959
        %5968 = vst.msk [vmem:[%s493 + $0x38] sm:$0x7f] %vm4212, %v5960
        %p5969 = scmp.lt.s32.totalorder %s26, 1
        %s5970 = scalar_select %p5969, %s26, 1
        %s5971 = smul.addr %s5970, 8
        %s5972 = smul.addr %s5971, 8
        %s5973 = scalar_lea.vmem %s12, %s5972
        // Predicated region
        $region89: #{model_x0_forward.2} parent=67 // pred_check
          %p5974 = pneg %p301
        $region90: #{model_x0_forward.2} parent=67 // pred_check_branch
          %5976 = sbr.rel (%p5974) target = $region92
        $region91: #{model_x0_forward.2} parent=67 // pred_region
          _
        $region92: #{model_x0_forward.2} parent=67 // pred_fallthru
          _
      $region68: #{model_x0_forward.2} parent=5 // pred_fallthru
        _
      %p5977 = scmp.le.s32.totalorder 2, %s21
      // Predicated region
      $region93: #{model_x0_forward.2} parent=5 // pred_check
        %p5978 = pneg %p5977
      $region94: #{model_x0_forward.2} parent=5 // pred_check_branch
        %5980 = sbr.rel (%p5978) target = $region96
      $region95: #{model_x0_forward.2} parent=5 // pred_region
        %s5981 = ssub.s32 %s21, 2
        // Predicated region
        $region97: #{model_x0_forward.2} parent=95 // pred_check
          %p5982 = pneg %p307
        $region98: #{model_x0_forward.2} parent=95 // pred_check_branch
          %5984 = sbr.rel (%p5982) target = $region100
        $region99: #{model_x0_forward.2} parent=95 // pred_region
          %p5985 = scmp.lt.s32.totalorder %s27, 1
          %s5986 = scalar_select %p5985, %s27, 1
          %s5987 = smul.addr %s5986, 8
          %s5988 = smul.addr %s5987, 8
          %s5989 = scalar_lea.vmem %s12, %s5988
        $region100: #{model_x0_forward.2} parent=95 // pred_fallthru
          _
      $region96: #{model_x0_forward.2} parent=5 // pred_fallthru
        _
    $region6: #{model_x0_forward.2} parent=1 // loop_footer
      %s25 = sadd.s32 1, %s21
    $region7: #{model_x0_forward.2} parent=1 // loop_footer_branch
      %20 = sbr.rel target = $region3
    $region8: #{model_x0_forward.2} parent=1 // loop_exit
      _
    %5990 = vsyncpa [#allocation4], 1
    %s5991 = scalar_lea.sflag [#allocation4], 1
    %5992 = vsyncpa %s5991, 1
    %5993 = vsyncpa [#allocation6], 1
    %5994 = vsyncpa [#allocation9], 1

</llo_original>
